<compile_context>
chip_gen: v7x
topology: tpu7x:2x2x1
jax: 0.10.0
libtpu: 0.0.40
codegen_flags: <defaults>
</compile_context>

<pallas_src>
import numpy as np
import jax
import jax.numpy as jnp
from jax import lax
from jax.experimental import pallas as pl
from jax.experimental.pallas import tpu as pltpu


def ffm_kernel(idx_ref, sa_ref, sb_ref, lb_ref, out_ref):
    # idx_ref : (F, TB)      int32  -- global vocab index per (field, row); batch on lanes
    # sa_ref  : (PD_pad, VP) bf16   -- row p*D+d = ffm_w[i_p, :, d] masked to field j_p's rows
    # sb_ref  : (PD_pad, VP) bf16   -- row p*D+d = ffm_w[j_p, :, d] masked to field i_p's rows
    # lb_ref  : (1, 1, TB)   f32    -- linear term + bias per row
    # out_ref : (1, 1, TB)   f32    -- sigmoid output (lane-dense store)
    n_fields, tb = idx_ref.shape
    pd, vp = sa_ref.shape

    # Multi-hot (VP, TB): per-field vocab ranges are disjoint, so the sum of the F per-field
    # one-hots has exactly one 1 inside each field's row range -> one matmul gathers everything.
    iota_v = lax.broadcasted_iota(jnp.int32, (vp, tb), 0)
    hot = jnp.zeros((vp, tb), jnp.float32)
    for f in range(n_fields):                                   # static unroll (19 compares)
        hot = hot + (iota_v == idx_ref[f:f + 1, :]).astype(jnp.float32)
    hot = hot.astype(jnp.bfloat16)                              # 0/1 exact in bf16

    # Gather-by-matmul on the MXU, pair product + sublane reduce in f32 (v5e-safe).
    # Chunk along the pair*D (sublane) axis to keep live f32 temporaries small.
    ffm = jnp.zeros((1, tb), jnp.float32)
    chunk = 512
    for s in range(0, pd, chunk):
        e = min(s + chunk, pd)
        a_c = jnp.dot(sa_ref[s:e, :], hot, preferred_element_type=jnp.float32)  # (chunk, TB)
        b_c = jnp.dot(sb_ref[s:e, :], hot, preferred_element_type=jnp.float32)  # (chunk, TB)
        ffm = ffm + jnp.sum(a_c * b_c, axis=0, keepdims=True)                   # sublane reduce

    z = lb_ref[0, :, :] + ffm                                   # (1, TB)
    out_ref[0, :, :] = 1.0 / (1.0 + jnp.exp(-z))                # sigmoid (exp goes to the EUP)


def ffm_pallas_forward(x, params, slices, field_dims, *, block_rows=256):
    # field_dims: static numpy int array of the post-slicing per-field cardinalities.
    field_dims = np.asarray(field_dims, dtype=np.int64)
    F = int(field_dims.shape[0])
    V = int(field_dims.sum())
    offsets_np = np.concatenate(([0], np.cumsum(field_dims)[:-1])).astype(np.int32)
    offsets = jnp.asarray(offsets_np)

    ffm_w = params["ffm_w"]                                     # (F, V, D) f32
    lin_w = params["lin_w"]                                     # (V, 1)   f32
    bias = params["bias"]                                       # (1,)     f32
    D = int(ffm_w.shape[-1])

    # column selection + global vocab indices (same as the torch forward)
    x_sel = jnp.concatenate([x[:, s] for s in slices], axis=1)  # (B, F) int32
    idx = (x_sel + offsets[None, :]).astype(jnp.int32)
    B = idx.shape[0]

    # ---- static pair list & per-field vocab-range masks ------------------------------------
    i_arr, j_arr = np.triu_indices(F, k=1)                      # i < j, P = F*(F-1)/2 = 171
    P = int(i_arr.shape[0])
    field_mask = np.zeros((F, V), np.float32)
    for f in range(F):
        field_mask[f, offsets_np[f]:offsets_np[f] + int(field_dims[f])] = 1.0

    VP = 128                                                    # vocab 119 padded to one lane tile
    PD = P * D                                                  # 171 * 8 = 1368
    PD_pad = ((PD + 127) // 128) * 128                          # 1408

    # ---- gather slabs, built once from the 72 KB table (~360 KB bf16 each) ------------------
    # SA[p*D+d, v] = ffm_w[i_p, v, d] * [v in field j_p]  ->  (SA @ hot)[p*D+d, b] = W_{i_p}[x_{j_p}][d]
    # SB[p*D+d, v] = ffm_w[j_p, v, d] * [v in field i_p]  ->  (SB @ hot)[p*D+d, b] = W_{j_p}[x_{i_p}][d]
    def make_slab(tab_idx, mask_idx):
        g = ffm_w[tab_idx] * jnp.asarray(field_mask[mask_idx])[:, :, None]      # (P, V, D)
        g = jnp.transpose(g, (0, 2, 1)).reshape(PD, V)                          # (P*D, V)
        g = jnp.pad(g, ((0, PD_pad - PD), (0, VP - V)))                         # zero pad
        return g.astype(jnp.bfloat16)

    sa = make_slab(i_arr, j_arr)
    sb = make_slab(j_arr, i_arr)

    # ---- per-row linear term + bias (exact f32, trivial gather) -----------------------------
    linbias = jnp.sum(lin_w[idx, 0], axis=1) + bias[0]          # (B,)

    # ---- batch-tiled, lane-dense kernel inputs ----------------------------------------------
    tb = block_rows
    b_pad = ((B + tb - 1) // tb) * tb
    nt = b_pad // tb
    idx_t = jnp.pad(idx.T, ((0, 0), (0, b_pad - B)))            # (F, B_pad) int32
    lb = jnp.pad(linbias, (0, b_pad - B)).reshape(nt, 1, tb).astype(jnp.float32)

    cost = pl.CostEstimate(
        flops=2 * 2 * b_pad * PD_pad * VP,                      # two gather matmuls per row tile
        transcendentals=b_pad,                                  # one exp per row
        bytes_accessed=F * b_pad * 4 + 2 * PD_pad * VP * 2 + 2 * b_pad * 4)

    out = pl.pallas_call(
        ffm_kernel,
        out_shape=jax.ShapeDtypeStruct((nt, 1, tb), jnp.float32),
        grid=(nt,),
        in_specs=[
            pl.BlockSpec((F, tb), lambda t: (0, t)),            # indices: (19, TB) int32
            pl.BlockSpec((PD_pad, VP), lambda t: (0, 0)),       # slab A (constant -> resident)
            pl.BlockSpec((PD_pad, VP), lambda t: (0, 0)),       # slab B (constant -> resident)
            pl.BlockSpec((1, 1, tb), lambda t: (t, 0, 0)),      # linear + bias
        ],
        out_specs=pl.BlockSpec((1, 1, tb), lambda t: (t, 0, 0)),
        compiler_params=pltpu.CompilerParams(dimension_semantics=("parallel",)),
        cost_estimate=cost,
    )(idx_t, sa, sb, lb)
    return out.reshape(b_pad)[:B]                               # (B,) == sigmoid(x.squeeze(1))


def ffm_reference(x, params, slices, offsets, pair_dtype=jnp.float32):
    # pure-JAX transliteration of the torch forward. `pair_dtype` optionally routes the
    # gathered pair embeddings through the kernel's bf16 transport precision before the
    # f32 product/accumulate (use f32 for the exact torch-faithful reference).
    x_sel = jnp.concatenate([x[:, s] for s in slices], axis=1)
    idx = x_sel + offsets[None, :]
    ffm_w, lin_w, bias = params["ffm_w"], params["lin_w"], params["bias"]
    F = idx.shape[1]
    xs = [ffm_w[i][idx] for i in range(F)]                      # each (B, F, D)
    terms = []
    for i in range(F - 1):
        for j in range(i + 1, F):
            a = xs[i][:, j].astype(pair_dtype).astype(jnp.float32)  # W_i[x_j]
            b = xs[j][:, i].astype(pair_dtype).astype(jnp.float32)  # W_j[x_i]
            terms.append(b * a)
    ix = jnp.stack(terms, axis=1)                                   # (B, P, D)
    ffm_term = jnp.sum(jnp.sum(ix, axis=1), axis=1, keepdims=True)  # (B, 1)
    lin = jnp.sum(lin_w[idx], axis=1) + bias                        # (B, 1)
    return jax.nn.sigmoid(jnp.squeeze(lin + ffm_term, axis=1))


if __name__ == "__main__":
    # original (pre-slicing) field dims, length 28, so the model's slicing keeps 19 fields
    field_dims_full = np.array(
        [7, 5, 9, 4, 6, 8, 5, 3, 2, 4, 10, 6, 7, 5, 8, 3, 2, 9, 4, 6, 5, 7, 3, 8, 2, 6, 5, 4],
        dtype=np.int32)
    slices = [slice(0, 3), slice(4, 8), slice(10, 15), slice(17, 19),
              slice(21, 24), slice(26, None)]
    field_dims = np.hstack([field_dims_full[s] for s in slices]).astype(np.int32)
    num_fields = int(field_dims.shape[0])        # 19
    vocab = int(field_dims.sum())                # 119
    embed_dim = 8
    batch = 1024                                 # 4 x 256-row tiles -> >=2 'parallel' tiles per v7x core

    offsets_np = np.concatenate(([0], np.cumsum(field_dims)[:-1])).astype(np.int32)
    offsets = jnp.asarray(offsets_np)

    key = jax.random.PRNGKey(0)
    k1, k2, k3 = jax.random.split(key, 3)
    bound = float(np.sqrt(6.0 / (vocab + embed_dim)))                # xavier-uniform-like
    params = {
        "ffm_w": jax.random.uniform(k1, (num_fields, vocab, embed_dim), jnp.float32, -bound, bound),
        "lin_w": jax.random.normal(k2, (vocab, 1), jnp.float32) * 0.01,
        "bias": jnp.zeros((1,), jnp.float32),
    }

    # x: Long tensor of size (batch_size, num_fields_before_slicing); each column < field_dims_full[col]
    x = jax.random.randint(k3, (batch, field_dims_full.shape[0]), 0,
                           jnp.asarray(field_dims_full), dtype=jnp.int32)
    # TODO(synk): the torch forward also takes an `additional` arg that is never used; omitted here.

    fwd = jax.jit(lambda x_, p_: ffm_pallas_forward(x_, p_, slices, field_dims))
    out = jax.block_until_ready(fwd(x, params))

    # tight check of the kernel path (reference uses the same bf16 transport of the pair weights);
    # atol covers only f32 summation-order differences
    ref_bf16 = ffm_reference(x, params, slices, offsets, pair_dtype=jnp.bfloat16)
    np.testing.assert_allclose(np.asarray(out), np.asarray(ref_bf16), rtol=1e-5, atol=2e-5)

    # sanity check against the fully-f32 torch-faithful reference (only bf16 transport error remains)
    ref_f32 = ffm_reference(x, params, slices, offsets)
    np.testing.assert_allclose(np.asarray(out), np.asarray(ref_f32), rtol=1e-2, atol=1e-2)

    print("KERNEL_OK")
</pallas_src>

<mosaic_0001>
module attributes {stable_mosaic.version = 11 : i64} {
  func.func @ffm_kernel(%arg0: i32, %arg1: memref<19x256xi32, #tpu.memory_space<vmem>>, %arg2: memref<1408x128xbf16, #tpu.memory_space<vmem>>, %arg3: memref<1408x128xbf16, #tpu.memory_space<vmem>>, %arg4: memref<1x1x256xf32, #tpu.memory_space<vmem>>, %arg5: memref<1x1x256xf32, #tpu.memory_space<vmem>>) attributes {dimension_semantics = [#tpu.dimension_semantics<parallel>], iteration_bounds = array<i64: 4>, scalar_prefetch = 0 : i64, scratch_operands = 0 : i64, tpu.core_type = #tpu.core_type<tc>, window_params = [{transform_indices = @transform_0, window_bounds = array<i64: 19, 256>}, {pipeline_mode = #tpu.pipeline_mode<synchronous>, transform_indices = @transform_1, window_bounds = array<i64: 1408, 128>}, {pipeline_mode = #tpu.pipeline_mode<synchronous>, transform_indices = @transform_2, window_bounds = array<i64: 1408, 128>}, {transform_indices = @transform_3, window_bounds = array<i64: 1, 1, 256>}, {transform_indices = @transform_4, window_bounds = array<i64: 1, 1, 256>}]} {
    %0 = tpu.iota {dimensions = array<i32: 0>} : vector<128x256xi32>
    %cst = arith.constant 0.000000e+00 : f32
    %1 = vector.broadcast %cst : f32 to vector<128x256xf32>
    %c0 = arith.constant 0 : index
    %c0_0 = arith.constant 0 : index
    %2 = vector.load %arg1[%c0, %c0_0] : memref<19x256xi32, #tpu.memory_space<vmem>>, vector<1x256xi32>
    %3 = vector.broadcast %2 : vector<1x256xi32> to vector<128x256xi32>
    %4 = arith.cmpi eq, %0, %3 : vector<128x256xi32>
    %5 = arith.extui %4 : vector<128x256xi1> to vector<128x256xi32>
    %6 = arith.sitofp %5 : vector<128x256xi32> to vector<128x256xf32>
    %7 = arith.addf %1, %6 : vector<128x256xf32>
    %c1 = arith.constant 1 : index
    %c0_1 = arith.constant 0 : index
    %8 = vector.load %arg1[%c1, %c0_1] : memref<19x256xi32, #tpu.memory_space<vmem>>, vector<1x256xi32>
    %9 = vector.broadcast %8 : vector<1x256xi32> to vector<128x256xi32>
    %10 = arith.cmpi eq, %0, %9 : vector<128x256xi32>
    %11 = arith.extui %10 : vector<128x256xi1> to vector<128x256xi32>
    %12 = arith.sitofp %11 : vector<128x256xi32> to vector<128x256xf32>
    %13 = arith.addf %7, %12 : vector<128x256xf32>
    %c2 = arith.constant 2 : index
    %c0_2 = arith.constant 0 : index
    %14 = vector.load %arg1[%c2, %c0_2] : memref<19x256xi32, #tpu.memory_space<vmem>>, vector<1x256xi32>
    %15 = vector.broadcast %14 : vector<1x256xi32> to vector<128x256xi32>
    %16 = arith.cmpi eq, %0, %15 : vector<128x256xi32>
    %17 = arith.extui %16 : vector<128x256xi1> to vector<128x256xi32>
    %18 = arith.sitofp %17 : vector<128x256xi32> to vector<128x256xf32>
    %19 = arith.addf %13, %18 : vector<128x256xf32>
    %c3 = arith.constant 3 : index
    %c0_3 = arith.constant 0 : index
    %20 = vector.load %arg1[%c3, %c0_3] : memref<19x256xi32, #tpu.memory_space<vmem>>, vector<1x256xi32>
    %21 = vector.broadcast %20 : vector<1x256xi32> to vector<128x256xi32>
    %22 = arith.cmpi eq, %0, %21 : vector<128x256xi32>
    %23 = arith.extui %22 : vector<128x256xi1> to vector<128x256xi32>
    %24 = arith.sitofp %23 : vector<128x256xi32> to vector<128x256xf32>
    %25 = arith.addf %19, %24 : vector<128x256xf32>
    %c4 = arith.constant 4 : index
    %c0_4 = arith.constant 0 : index
    %26 = vector.load %arg1[%c4, %c0_4] : memref<19x256xi32, #tpu.memory_space<vmem>>, vector<1x256xi32>
    %27 = vector.broadcast %26 : vector<1x256xi32> to vector<128x256xi32>
    %28 = arith.cmpi eq, %0, %27 : vector<128x256xi32>
    %29 = arith.extui %28 : vector<128x256xi1> to vector<128x256xi32>
    %30 = arith.sitofp %29 : vector<128x256xi32> to vector<128x256xf32>
    %31 = arith.addf %25, %30 : vector<128x256xf32>
    %c5 = arith.constant 5 : index
    %c0_5 = arith.constant 0 : index
    %32 = vector.load %arg1[%c5, %c0_5] : memref<19x256xi32, #tpu.memory_space<vmem>>, vector<1x256xi32>
    %33 = vector.broadcast %32 : vector<1x256xi32> to vector<128x256xi32>
    %34 = arith.cmpi eq, %0, %33 : vector<128x256xi32>
    %35 = arith.extui %34 : vector<128x256xi1> to vector<128x256xi32>
    %36 = arith.sitofp %35 : vector<128x256xi32> to vector<128x256xf32>
    %37 = arith.addf %31, %36 : vector<128x256xf32>
    %c6 = arith.constant 6 : index
    %c0_6 = arith.constant 0 : index
    %38 = vector.load %arg1[%c6, %c0_6] : memref<19x256xi32, #tpu.memory_space<vmem>>, vector<1x256xi32>
    %39 = vector.broadcast %38 : vector<1x256xi32> to vector<128x256xi32>
    %40 = arith.cmpi eq, %0, %39 : vector<128x256xi32>
    %41 = arith.extui %40 : vector<128x256xi1> to vector<128x256xi32>
    %42 = arith.sitofp %41 : vector<128x256xi32> to vector<128x256xf32>
    %43 = arith.addf %37, %42 : vector<128x256xf32>
    %c7 = arith.constant 7 : index
    %c0_7 = arith.constant 0 : index
    %44 = vector.load %arg1[%c7, %c0_7] : memref<19x256xi32, #tpu.memory_space<vmem>>, vector<1x256xi32>
    %45 = vector.broadcast %44 : vector<1x256xi32> to vector<128x256xi32>
    %46 = arith.cmpi eq, %0, %45 : vector<128x256xi32>
    %47 = arith.extui %46 : vector<128x256xi1> to vector<128x256xi32>
    %48 = arith.sitofp %47 : vector<128x256xi32> to vector<128x256xf32>
    %49 = arith.addf %43, %48 : vector<128x256xf32>
    %c8 = arith.constant 8 : index
    %c0_8 = arith.constant 0 : index
    %50 = vector.load %arg1[%c8, %c0_8] : memref<19x256xi32, #tpu.memory_space<vmem>>, vector<1x256xi32>
    %51 = vector.broadcast %50 : vector<1x256xi32> to vector<128x256xi32>
    %52 = arith.cmpi eq, %0, %51 : vector<128x256xi32>
    %53 = arith.extui %52 : vector<128x256xi1> to vector<128x256xi32>
    %54 = arith.sitofp %53 : vector<128x256xi32> to vector<128x256xf32>
    %55 = arith.addf %49, %54 : vector<128x256xf32>
    %c9 = arith.constant 9 : index
    %c0_9 = arith.constant 0 : index
    %56 = vector.load %arg1[%c9, %c0_9] : memref<19x256xi32, #tpu.memory_space<vmem>>, vector<1x256xi32>
    %57 = vector.broadcast %56 : vector<1x256xi32> to vector<128x256xi32>
    %58 = arith.cmpi eq, %0, %57 : vector<128x256xi32>
    %59 = arith.extui %58 : vector<128x256xi1> to vector<128x256xi32>
    %60 = arith.sitofp %59 : vector<128x256xi32> to vector<128x256xf32>
    %61 = arith.addf %55, %60 : vector<128x256xf32>
    %c10 = arith.constant 10 : index
    %c0_10 = arith.constant 0 : index
    %62 = vector.load %arg1[%c10, %c0_10] : memref<19x256xi32, #tpu.memory_space<vmem>>, vector<1x256xi32>
    %63 = vector.broadcast %62 : vector<1x256xi32> to vector<128x256xi32>
    %64 = arith.cmpi eq, %0, %63 : vector<128x256xi32>
    %65 = arith.extui %64 : vector<128x256xi1> to vector<128x256xi32>
    %66 = arith.sitofp %65 : vector<128x256xi32> to vector<128x256xf32>
    %67 = arith.addf %61, %66 : vector<128x256xf32>
    %c11 = arith.constant 11 : index
    %c0_11 = arith.constant 0 : index
    %68 = vector.load %arg1[%c11, %c0_11] : memref<19x256xi32, #tpu.memory_space<vmem>>, vector<1x256xi32>
    %69 = vector.broadcast %68 : vector<1x256xi32> to vector<128x256xi32>
    %70 = arith.cmpi eq, %0, %69 : vector<128x256xi32>
    %71 = arith.extui %70 : vector<128x256xi1> to vector<128x256xi32>
    %72 = arith.sitofp %71 : vector<128x256xi32> to vector<128x256xf32>
    %73 = arith.addf %67, %72 : vector<128x256xf32>
    %c12 = arith.constant 12 : index
    %c0_12 = arith.constant 0 : index
    %74 = vector.load %arg1[%c12, %c0_12] : memref<19x256xi32, #tpu.memory_space<vmem>>, vector<1x256xi32>
    %75 = vector.broadcast %74 : vector<1x256xi32> to vector<128x256xi32>
    %76 = arith.cmpi eq, %0, %75 : vector<128x256xi32>
    %77 = arith.extui %76 : vector<128x256xi1> to vector<128x256xi32>
    %78 = arith.sitofp %77 : vector<128x256xi32> to vector<128x256xf32>
    %79 = arith.addf %73, %78 : vector<128x256xf32>
    %c13 = arith.constant 13 : index
    %c0_13 = arith.constant 0 : index
    %80 = vector.load %arg1[%c13, %c0_13] : memref<19x256xi32, #tpu.memory_space<vmem>>, vector<1x256xi32>
    %81 = vector.broadcast %80 : vector<1x256xi32> to vector<128x256xi32>
    %82 = arith.cmpi eq, %0, %81 : vector<128x256xi32>
    %83 = arith.extui %82 : vector<128x256xi1> to vector<128x256xi32>
    %84 = arith.sitofp %83 : vector<128x256xi32> to vector<128x256xf32>
    %85 = arith.addf %79, %84 : vector<128x256xf32>
    %c14 = arith.constant 14 : index
    %c0_14 = arith.constant 0 : index
    %86 = vector.load %arg1[%c14, %c0_14] : memref<19x256xi32, #tpu.memory_space<vmem>>, vector<1x256xi32>
    %87 = vector.broadcast %86 : vector<1x256xi32> to vector<128x256xi32>
    %88 = arith.cmpi eq, %0, %87 : vector<128x256xi32>
    %89 = arith.extui %88 : vector<128x256xi1> to vector<128x256xi32>
    %90 = arith.sitofp %89 : vector<128x256xi32> to vector<128x256xf32>
    %91 = arith.addf %85, %90 : vector<128x256xf32>
    %c15 = arith.constant 15 : index
    %c0_15 = arith.constant 0 : index
    %92 = vector.load %arg1[%c15, %c0_15] : memref<19x256xi32, #tpu.memory_space<vmem>>, vector<1x256xi32>
    %93 = vector.broadcast %92 : vector<1x256xi32> to vector<128x256xi32>
    %94 = arith.cmpi eq, %0, %93 : vector<128x256xi32>
    %95 = arith.extui %94 : vector<128x256xi1> to vector<128x256xi32>
    %96 = arith.sitofp %95 : vector<128x256xi32> to vector<128x256xf32>
    %97 = arith.addf %91, %96 : vector<128x256xf32>
    %c16 = arith.constant 16 : index
    %c0_16 = arith.constant 0 : index
    %98 = vector.load %arg1[%c16, %c0_16] : memref<19x256xi32, #tpu.memory_space<vmem>>, vector<1x256xi32>
    %99 = vector.broadcast %98 : vector<1x256xi32> to vector<128x256xi32>
    %100 = arith.cmpi eq, %0, %99 : vector<128x256xi32>
    %101 = arith.extui %100 : vector<128x256xi1> to vector<128x256xi32>
    %102 = arith.sitofp %101 : vector<128x256xi32> to vector<128x256xf32>
    %103 = arith.addf %97, %102 : vector<128x256xf32>
    %c17 = arith.constant 17 : index
    %c0_17 = arith.constant 0 : index
    %104 = vector.load %arg1[%c17, %c0_17] : memref<19x256xi32, #tpu.memory_space<vmem>>, vector<1x256xi32>
    %105 = vector.broadcast %104 : vector<1x256xi32> to vector<128x256xi32>
    %106 = arith.cmpi eq, %0, %105 : vector<128x256xi32>
    %107 = arith.extui %106 : vector<128x256xi1> to vector<128x256xi32>
    %108 = arith.sitofp %107 : vector<128x256xi32> to vector<128x256xf32>
    %109 = arith.addf %103, %108 : vector<128x256xf32>
    %c18 = arith.constant 18 : index
    %c0_18 = arith.constant 0 : index
    %110 = vector.load %arg1[%c18, %c0_18] : memref<19x256xi32, #tpu.memory_space<vmem>>, vector<1x256xi32>
    %111 = vector.broadcast %110 : vector<1x256xi32> to vector<128x256xi32>
    %112 = arith.cmpi eq, %0, %111 : vector<128x256xi32>
    %113 = arith.extui %112 : vector<128x256xi1> to vector<128x256xi32>
    %114 = arith.sitofp %113 : vector<128x256xi32> to vector<128x256xf32>
    %115 = arith.addf %109, %114 : vector<128x256xf32>
    %116 = arith.truncf %115 : vector<128x256xf32> to vector<128x256xbf16>
    %cst_19 = arith.constant 0.000000e+00 : f32
    %117 = vector.broadcast %cst_19 : f32 to vector<1x256xf32>
    %c0_20 = arith.constant 0 : index
    %c0_21 = arith.constant 0 : index
    %118 = vector.load %arg2[%c0_20, %c0_21] : memref<1408x128xbf16, #tpu.memory_space<vmem>>, vector<512x128xbf16>
    %cst_22 = arith.constant dense<0.000000e+00> : vector<512x256xf32>
    %119 = tpu.matmul %118, %116, %cst_22 {dimension_numbers = #tpu.dot_dimension_numbers<[1], [0], [0], [1], [0, 0, 1, 1], [], []>} : vector<512x128xbf16>, vector<128x256xbf16>, vector<512x256xf32> -> vector<512x256xf32>
    %c0_23 = arith.constant 0 : index
    %c0_24 = arith.constant 0 : index
    %120 = vector.load %arg3[%c0_23, %c0_24] : memref<1408x128xbf16, #tpu.memory_space<vmem>>, vector<512x128xbf16>
    %cst_25 = arith.constant dense<0.000000e+00> : vector<512x256xf32>
    %121 = tpu.matmul %120, %116, %cst_25 {dimension_numbers = #tpu.dot_dimension_numbers<[1], [0], [0], [1], [0, 0, 1, 1], [], []>} : vector<512x128xbf16>, vector<128x256xbf16>, vector<512x256xf32> -> vector<512x256xf32>
    %122 = arith.mulf %119, %121 : vector<512x256xf32>
    %cst_26 = arith.constant dense<0.000000e+00> : vector<256xf32>
    %123 = vector.multi_reduction <add>, %122, %cst_26 [0] : vector<512x256xf32> to vector<256xf32>
    %124 = vector.shape_cast %123 : vector<256xf32> to vector<1x256xf32>
    %125 = arith.addf %117, %124 : vector<1x256xf32>
    %c512 = arith.constant 512 : index
    %c0_27 = arith.constant 0 : index
    %126 = vector.load %arg2[%c512, %c0_27] : memref<1408x128xbf16, #tpu.memory_space<vmem>>, vector<512x128xbf16>
    %cst_28 = arith.constant dense<0.000000e+00> : vector<512x256xf32>
    %127 = tpu.matmul %126, %116, %cst_28 {dimension_numbers = #tpu.dot_dimension_numbers<[1], [0], [0], [1], [0, 0, 1, 1], [], []>} : vector<512x128xbf16>, vector<128x256xbf16>, vector<512x256xf32> -> vector<512x256xf32>
    %c512_29 = arith.constant 512 : index
    %c0_30 = arith.constant 0 : index
    %128 = vector.load %arg3[%c512_29, %c0_30] : memref<1408x128xbf16, #tpu.memory_space<vmem>>, vector<512x128xbf16>
    %cst_31 = arith.constant dense<0.000000e+00> : vector<512x256xf32>
    %129 = tpu.matmul %128, %116, %cst_31 {dimension_numbers = #tpu.dot_dimension_numbers<[1], [0], [0], [1], [0, 0, 1, 1], [], []>} : vector<512x128xbf16>, vector<128x256xbf16>, vector<512x256xf32> -> vector<512x256xf32>
    %130 = arith.mulf %127, %129 : vector<512x256xf32>
    %cst_32 = arith.constant dense<0.000000e+00> : vector<256xf32>
    %131 = vector.multi_reduction <add>, %130, %cst_32 [0] : vector<512x256xf32> to vector<256xf32>
    %132 = vector.shape_cast %131 : vector<256xf32> to vector<1x256xf32>
    %133 = arith.addf %125, %132 : vector<1x256xf32>
    %c1024 = arith.constant 1024 : index
    %c0_33 = arith.constant 0 : index
    %134 = vector.load %arg2[%c1024, %c0_33] : memref<1408x128xbf16, #tpu.memory_space<vmem>>, vector<384x128xbf16>
    %cst_34 = arith.constant dense<0.000000e+00> : vector<384x256xf32>
    %135 = tpu.matmul %134, %116, %cst_34 {dimension_numbers = #tpu.dot_dimension_numbers<[1], [0], [0], [1], [0, 0, 1, 1], [], []>} : vector<384x128xbf16>, vector<128x256xbf16>, vector<384x256xf32> -> vector<384x256xf32>
    %c1024_35 = arith.constant 1024 : index
    %c0_36 = arith.constant 0 : index
    %136 = vector.load %arg3[%c1024_35, %c0_36] : memref<1408x128xbf16, #tpu.memory_space<vmem>>, vector<384x128xbf16>
    %cst_37 = arith.constant dense<0.000000e+00> : vector<384x256xf32>
    %137 = tpu.matmul %136, %116, %cst_37 {dimension_numbers = #tpu.dot_dimension_numbers<[1], [0], [0], [1], [0, 0, 1, 1], [], []>} : vector<384x128xbf16>, vector<128x256xbf16>, vector<384x256xf32> -> vector<384x256xf32>
    %138 = arith.mulf %135, %137 : vector<384x256xf32>
    %cst_38 = arith.constant dense<0.000000e+00> : vector<256xf32>
    %139 = vector.multi_reduction <add>, %138, %cst_38 [0] : vector<384x256xf32> to vector<256xf32>
    %140 = vector.shape_cast %139 : vector<256xf32> to vector<1x256xf32>
    %141 = arith.addf %133, %140 : vector<1x256xf32>
    %c0_39 = arith.constant 0 : index
    %c0_40 = arith.constant 0 : index
    %c0_41 = arith.constant 0 : index
    %142 = vector.load %arg4[%c0_39, %c0_40, %c0_41] : memref<1x1x256xf32, #tpu.memory_space<vmem>>, vector<1x1x256xf32>
    %143 = vector.shape_cast %142 : vector<1x1x256xf32> to vector<1x256xf32>
    %144 = arith.addf %143, %141 : vector<1x256xf32>
    %cst_42 = arith.constant 0.000000e+00 : f32
    %145 = vector.broadcast %cst_42 : f32 to vector<1x256xf32>
    %146 = arith.subf %145, %144 : vector<1x256xf32>
    %147 = math.exp %146 : vector<1x256xf32>
    %cst_43 = arith.constant 1.000000e+00 : f32
    %148 = vector.broadcast %cst_43 : f32 to vector<1x256xf32>
    %149 = arith.addf %148, %147 : vector<1x256xf32>
    %cst_44 = arith.constant 1.000000e+00 : f32
    %150 = vector.broadcast %cst_44 : f32 to vector<1x256xf32>
    %151 = arith.divf %150, %149 : vector<1x256xf32>
    %c0_45 = arith.constant 0 : index
    %c0_46 = arith.constant 0 : index
    %c0_47 = arith.constant 0 : index
    %152 = vector.load %arg5[%c0_45, %c0_46, %c0_47] : memref<1x1x256xf32, #tpu.memory_space<vmem>>, vector<1x1x256xf32>
    %153 = vector.shape_cast %152 : vector<1x1x256xf32> to vector<1x256xf32>
    %154 = vector.shape_cast %151 : vector<1x256xf32> to vector<1x1x256xf32>
    tpu.vector_store %arg5[%c0_45, %c0_46, %c0_47], %154 {strides = array<i32>} : memref<1x1x256xf32, #tpu.memory_space<vmem>>, vector<1x1x256xf32>,
    return
  }
  func.func @transform_0(%arg0: i32) -> (i32, i32) {
    %c0_i32 = arith.constant 0 : i32
    %c0_i32_0 = arith.constant 0 : i32
    return %c0_i32, %arg0 : i32, i32
  }
  func.func @transform_1(%arg0: i32) -> (i32, i32) {
    %c0_i32 = arith.constant 0 : i32
    %c0_i32_0 = arith.constant 0 : i32
    %c0_i32_1 = arith.constant 0 : i32
    return %c0_i32, %c0_i32_0 : i32, i32
  }
  func.func @transform_2(%arg0: i32) -> (i32, i32) {
    %c0_i32 = arith.constant 0 : i32
    %c0_i32_0 = arith.constant 0 : i32
    %c0_i32_1 = arith.constant 0 : i32
    return %c0_i32, %c0_i32_0 : i32, i32
  }
  func.func @transform_3(%arg0: i32) -> (i32, i32, i32) {
    %c0_i32 = arith.constant 0 : i32
    %c0_i32_0 = arith.constant 0 : i32
    %c0_i32_1 = arith.constant 0 : i32
    return %arg0, %c0_i32, %c0_i32_0 : i32, i32, i32
  }
  func.func @transform_4(%arg0: i32) -> (i32, i32, i32) {
    %c0_i32 = arith.constant 0 : i32
    %c0_i32_0 = arith.constant 0 : i32
    %c0_i32_1 = arith.constant 0 : i32
    return %arg0, %c0_i32, %c0_i32_0 : i32, i32, i32
  }
}

</mosaic_0001>

<llo_original>
// kernel: _lambda_.1
$region0: #{_lambda_.1}
  #allocation0 [shape = 'u32[]', space=smem, size = 0x4, offset = 0x4, fixed_abs, tag = 'smem constant byte address 0x4 - core index']
  #allocation1 [shape = 'u32[144,128]{1,0:T(1,128)}', space=vmem, size = 0x12000, scoped, tag = 'internal scratch']
  %s0 = inlined_call_operand.vmem [shape: s32[19,1024], index: 0, kind: input, shape index: {}]
  %s1 = inlined_call_operand.vmem [shape: bf16[1408,128], index: 1, kind: input, shape index: {}]
  %s2 = inlined_call_operand.vmem [shape: bf16[1408,128], index: 2, kind: input, shape index: {}]
  %s3 = inlined_call_operand.vmem [shape: f32[4,1,256], index: 3, kind: input, shape index: {}]
  %s4 = inlined_call_operand.hbm [shape: f32[4,1,256], index: 4, kind: output, shape index: {}]
  %s5 = sld [smem:[#allocation0]]
  $region72: #{_lambda_.1} parent=0
    _
  %s7 = ssub.s32 1, %s5
  %s8 = scalar_select 0, %s7, %s5
  $region1: #{_lambda_.1} parent=0
    #allocation2 [shape = 'u8[49152]{0}', space=vmem, size = 0xc000, scoped, tag = 'input window, operand 0']
    #allocation3 [shape = 'u8[2048]{0}', space=vmem, size = 0x800, scoped, tag = 'output window, operand 0']
    #allocation4 [shape = 's32[2]{0}', space=sflag, size = 0x8, scoped, tag = 'scoped memory for _lambda_.1']
    %9 = vsyncpa [#allocation4], 0
    %s10 = scalar_lea.sflag [#allocation4], 1
    %11 = vsyncpa %s10, 0
    loop: start=0, step=1, limit=6
    $region2: #{_lambda_.1} parent=1 // loop_pre_header
      _
    $region3: #{_lambda_.1} parent=1 // loop_header
      %s13 = sphi 0, %s17
      %p14 = scmp.ge.s32.totalorder %s13, 6
      %s23 = sphi 0, %s25
      %s26 = sphi 0, %s23
      %s27 = sphi 0, %s26
      %s43 = sphi 0, %s27
      %s47 = sphi 0, %s47
      %s49 = sphi 0, %s47
      %s50 = sphi 0, %s49
      %s64 = sphi 0, %s50
      %s68 = sphi 0, %s68
      %s70 = sphi 0, %s68
      %s71 = sphi 0, %s70
      %s85 = sphi 0, %s71
      %s91 = sphi 0, %s93
      %s94 = sphi 0, %s91
      %s95 = sphi 0, %s94
      %s111 = sphi 0, %s95
      %s117 = sphi 0, %s119
      %s120 = sphi 0, %s117
      %s121 = sphi 0, %s120
      %s137 = sphi 0, %s121
    $region4: #{_lambda_.1} parent=1 // loop_header_branch
      %16 = sbr.rel (%p14) target = $region8
    $region5: #{_lambda_.1} parent=1 // loop_body
      %s18 = ssub.s32 %s13, 1
      %s19 = ssub.s32 %s13, 2
      %s20 = sadd.s32 %s13, 1
      %s21 = ssub.s32 %s13, %s20
      %p22 = scmp.eq.s32.totalorder %s21, 0
      %s24 = sadd.s32 %s23, 1
      %s25 = scalar_select %p22, %s23, %s24
      %p28 = pneg %p22
      %p29 = scmp.eq.s32.totalorder %s13, 3
      %p30 = por %p28, %p29
      %p31 = scmp.ne.s32.totalorder %s23, %s26
      %p32 = scmp.eq.s32.totalorder %s13, 0
      %p33 = por %p31, %p32
      %p34 = scmp.ne.s32.totalorder %s23, %s26
      %p35 = scmp.eq.s32.totalorder %s18, 3
      %p36 = por %p34, %p35
      %p37 = scmp.ne.s32.totalorder %s26, %s27
      %p38 = scmp.eq.s32.totalorder %s18, 0
      %p39 = por %p37, %p38
      %p40 = scmp.ne.s32.totalorder %s26, %s27
      %p41 = scmp.eq.s32.totalorder %s19, 3
      %p42 = por %p40, %p41
      %p44 = scmp.ne.s32.totalorder %s27, %s43
      %p45 = scmp.eq.s32.totalorder %s19, 0
      %p46 = por %p44, %p45
      %s48 = sadd.s32 %s47, 1
      %p51 = scmp.eq.s32.totalorder %s13, 3
      %p52 = scmp.ne.s32.totalorder %s47, %s49
      %p53 = scmp.eq.s32.totalorder %s13, 0
      %p54 = por %p52, %p53
      %p55 = scmp.ne.s32.totalorder %s47, %s49
      %p56 = scmp.eq.s32.totalorder %s18, 3
      %p57 = por %p55, %p56
      %p58 = scmp.ne.s32.totalorder %s49, %s50
      %p59 = scmp.eq.s32.totalorder %s18, 0
      %p60 = por %p58, %p59
      %p61 = scmp.ne.s32.totalorder %s49, %s50
      %p62 = scmp.eq.s32.totalorder %s19, 3
      %p63 = por %p61, %p62
      %p65 = scmp.ne.s32.totalorder %s50, %s64
      %p66 = scmp.eq.s32.totalorder %s19, 0
      %p67 = por %p65, %p66
      %s69 = sadd.s32 %s68, 1
      %p72 = scmp.eq.s32.totalorder %s13, 3
      %p73 = scmp.ne.s32.totalorder %s68, %s70
      %p74 = scmp.eq.s32.totalorder %s13, 0
      %p75 = por %p73, %p74
      %p76 = scmp.ne.s32.totalorder %s68, %s70
      %p77 = scmp.eq.s32.totalorder %s18, 3
      %p78 = por %p76, %p77
      %p79 = scmp.ne.s32.totalorder %s70, %s71
      %p80 = scmp.eq.s32.totalorder %s18, 0
      %p81 = por %p79, %p80
      %p82 = scmp.ne.s32.totalorder %s70, %s71
      %p83 = scmp.eq.s32.totalorder %s19, 3
      %p84 = por %p82, %p83
      %p86 = scmp.ne.s32.totalorder %s71, %s85
      %p87 = scmp.eq.s32.totalorder %s19, 0
      %p88 = por %p86, %p87
      %s89 = ssub.s32 %s13, %s20
      %p90 = scmp.eq.s32.totalorder %s89, 0
      %s92 = sadd.s32 %s91, 1
      %s93 = scalar_select %p90, %s91, %s92
      %p96 = pneg %p90
      %p97 = scmp.eq.s32.totalorder %s13, 3
      %p98 = por %p96, %p97
      %p99 = scmp.ne.s32.totalorder %s91, %s94
      %p100 = scmp.eq.s32.totalorder %s13, 0
      %p101 = por %p99, %p100
      %p102 = scmp.ne.s32.totalorder %s91, %s94
      %p103 = scmp.eq.s32.totalorder %s18, 3
      %p104 = por %p102, %p103
      %p105 = scmp.ne.s32.totalorder %s94, %s95
      %p106 = scmp.eq.s32.totalorder %s18, 0
      %p107 = por %p105, %p106
      %p108 = scmp.ne.s32.totalorder %s94, %s95
      %p109 = scmp.eq.s32.totalorder %s19, 3
      %p110 = por %p108, %p109
      %p112 = scmp.ne.s32.totalorder %s95, %s111
      %p113 = scmp.eq.s32.totalorder %s19, 0
      %p114 = por %p112, %p113
      %s115 = ssub.s32 %s13, %s20
      %p116 = scmp.eq.s32.totalorder %s115, 0
      %s118 = sadd.s32 %s117, 1
      %s119 = scalar_select %p116, %s117, %s118
      %p122 = pneg %p116
      %p123 = scmp.eq.s32.totalorder %s13, 3
      %p124 = por %p122, %p123
      %p125 = scmp.ne.s32.totalorder %s117, %s120
      %p126 = scmp.eq.s32.totalorder %s13, 0
      %p127 = por %p125, %p126
      %p128 = scmp.ne.s32.totalorder %s117, %s120
      %p129 = scmp.eq.s32.totalorder %s18, 3
      %p130 = por %p128, %p129
      %p131 = scmp.ne.s32.totalorder %s120, %s121
      %p132 = scmp.eq.s32.totalorder %s18, 0
      %p133 = por %p131, %p132
      %p134 = scmp.ne.s32.totalorder %s120, %s121
      %p135 = scmp.eq.s32.totalorder %s19, 3
      %p136 = por %p134, %p135
      %p138 = scmp.ne.s32.totalorder %s121, %s137
      %p139 = scmp.eq.s32.totalorder %s19, 0
      %p140 = por %p138, %p139
      %p141 = scmp.le.s32.totalorder 1, %s13
      %p142 = scmp.lt.s32.totalorder %s13, 5
      %p143 = pnand %p141, %p142
      %p144 = pneg %p143
      // Predicated region
      $region9: #{_lambda_.1} parent=5 // pred_check
        _
      $region10: #{_lambda_.1} parent=5 // pred_check_branch
        %146 = sbr.rel (%p143) target = $region12
      $region11: #{_lambda_.1} parent=5 // pred_region
        %s147 = ssub.s32 %s13, 1
        // Predicated region
        $region13: #{_lambda_.1} parent=11 // pred_check
          %p148 = pneg %p60
        $region14: #{_lambda_.1} parent=11 // pred_check_branch
          %150 = sbr.rel (%p148) target = $region16
        $region15: #{_lambda_.1} parent=11 // pred_region
          _
        $region16: #{_lambda_.1} parent=11 // pred_fallthru
          _
        // Predicated region
        $region17: #{_lambda_.1} parent=11 // pred_check
          %p151 = pneg %p81
        $region18: #{_lambda_.1} parent=11 // pred_check_branch
          %153 = sbr.rel (%p151) target = $region20
        $region19: #{_lambda_.1} parent=11 // pred_region
          _
        $region20: #{_lambda_.1} parent=11 // pred_fallthru
          _
      $region12: #{_lambda_.1} parent=5 // pred_fallthru
        _
      %p154 = scmp.lt.s32.totalorder %s13, 4
      // Predicated region
      $region21: #{_lambda_.1} parent=5 // pred_check
        %p155 = pneg %p154
      $region22: #{_lambda_.1} parent=5 // pred_check_branch
        %157 = sbr.rel (%p155) target = $region24
      $region23: #{_lambda_.1} parent=5 // pred_region
        // Predicated region
        $region25: #{_lambda_.1} parent=23 // pred_check
          %p158 = pneg %p33
        $region26: #{_lambda_.1} parent=23 // pred_check_branch
          %160 = sbr.rel (%p158) target = $region28
        $region27: #{_lambda_.1} parent=23 // pred_region
          %s161 = sand.u32 %s23, 1
          %s162 = sand.u32 %s23, 1
          %s163 = smul.addr %s162, 48
          %s164 = scalar_lea.vmem [#allocation2], %s163
          %s165 = smul.u32 2, %s13
          %s166 = smul.addr %s165, 8
          %s167 = scalar_lea.vmem %s0, %s166
          // Predicated region
          $region29: #{_lambda_.1} parent=27 // pred_check
            _
          $region30: #{_lambda_.1} parent=27 // pred_check_branch
            %169 = sbr.rel (0) target = $region32
          $region31: #{_lambda_.1} parent=27 // pred_region
            // Predicated region
            $region33: #{_lambda_.1} parent=31 // pred_check
              _
            $region34: #{_lambda_.1} parent=31 // pred_check_branch
              %171 = sbr.rel (0) target = $region36
            $region35: #{_lambda_.1} parent=31 // pred_region
              loop: start=0, step=1, limit=1
              $region37: #{_lambda_.1} parent=35 // loop_pre_header
                _
              $region38: #{_lambda_.1} parent=35 // loop_header
                %s173 = sphi 0, %s177
                %p174 = scmp.ge.s32.totalorder %s173, 1
                %s178 = sphi %s167, %s167
                %s179 = sphi %s164, %s164
              $region39: #{_lambda_.1} parent=35 // loop_header_branch
                %176 = sbr.rel (%p174) target = $region43
              $region40: #{_lambda_.1} parent=35 // loop_body
                %v180 = vld [vmem:[%s178] sm:$0xff]
                %181 = vst [vmem:[%s179] sm:$0xff] %v180
                %v182 = vld [vmem:[%s178 + $0x8] sm:$0xff]
                %183 = vst [vmem:[%s179 + $0x8] sm:$0xff] %v182
                %v184 = vld [vmem:[%s178 + $0x40] sm:$0xff]
                %185 = vst [vmem:[%s179 + $0x10] sm:$0xff] %v184
                %v186 = vld [vmem:[%s178 + $0x48] sm:$0xff]
                %187 = vst [vmem:[%s179 + $0x18] sm:$0xff] %v186
                %v188 = vld [vmem:[%s178 + $0x80] sm:$0xff]
                %189 = vst [vmem:[%s179 + $0x20] sm:$0xff] %v188
                %v190 = vld [vmem:[%s178 + $0x88] sm:$0xff]
                %191 = vst [vmem:[%s179 + $0x28] sm:$0xff] %v190
              $region41: #{_lambda_.1} parent=35 // loop_footer
                %s177 = sadd.s32 1, %s173
              $region42: #{_lambda_.1} parent=35 // loop_footer_branch
                %172 = sbr.rel target = $region38
              $region43: #{_lambda_.1} parent=35 // loop_exit
                _
            $region36: #{_lambda_.1} parent=31 // pred_fallthru
              _
            // Predicated region
            $region44: #{_lambda_.1} parent=31 // pred_check
              _
            $region45: #{_lambda_.1} parent=31 // pred_check_branch
              %193 = sbr.rel target = $region47
            $region46: #{_lambda_.1} parent=31 // pred_region
              _
            $region47: #{_lambda_.1} parent=31 // pred_fallthru
              _
          $region32: #{_lambda_.1} parent=27 // pred_fallthru
            _
          %194 = vnop
        $region28: #{_lambda_.1} parent=23 // pred_fallthru
          _
        // Predicated region
        $region48: #{_lambda_.1} parent=23 // pred_check
          %p195 = pneg %p101
        $region49: #{_lambda_.1} parent=23 // pred_check_branch
          %197 = sbr.rel (%p195) target = $region51
        $region50: #{_lambda_.1} parent=23 // pred_region
          %p198 = scmp.lt.s32.totalorder %s13, 3
          %s199 = scalar_select %p198, %s13, 3
          %s200 = smul.addr %s199, 2
          %s201 = scalar_lea.vmem %s3, %s200
        $region51: #{_lambda_.1} parent=23 // pred_fallthru
          _
      $region24: #{_lambda_.1} parent=5 // pred_fallthru
        _
      %p202 = scmp.le.s32.totalorder 1, %s13
      %p203 = scmp.lt.s32.totalorder %s13, 5
      %p204 = pnand %p202, %p203
      %p205 = pneg %p204
      // Predicated region
      $region52: #{_lambda_.1} parent=5 // pred_check
        _
      $region53: #{_lambda_.1} parent=5 // pred_check_branch
        %207 = sbr.rel (%p204) target = $region55
      $region54: #{_lambda_.1} parent=5 // pred_region
        %s208 = ssub.s32 %s13, 1
        %s209 = sand.u32 %s26, 1
        %s210 = sand.u32 %s26, 1
        %s211 = smul.addr %s210, 48
        %s212 = scalar_lea.vmem [#allocation2], %s211
        // Predicated region
        $region56: #{_lambda_.1} parent=54 // pred_check
          %p213 = pneg %p39
        $region57: #{_lambda_.1} parent=54 // pred_check_branch
          %215 = sbr.rel (%p213) target = $region59
        $region58: #{_lambda_.1} parent=54 // pred_region
          _
        $region59: #{_lambda_.1} parent=54 // pred_fallthru
          _
        %s216 = sand.u32 %s26, 1
        %s217 = sand.u32 %s26, 1
        %s218 = smul.addr %s217, 48
        %s219 = scalar_lea.vmem [#allocation2], %s218
        %p220 = pneg %p39
        %p221 = pneg %p36
        %p222 = pneg %p60
        %p223 = pneg %p57
        %p224 = pneg %p81
        %p225 = pneg %p78
        %p226 = scmp.lt.s32.totalorder %s18, 3
        %s227 = scalar_select %p226, %s18, 3
        %s228 = smul.addr %s227, 2
        %s229 = scalar_lea.vmem %s3, %s228
        %p230 = pneg %p107
        %p231 = pneg %p104
        %p232 = pneg %p133
        %p233 = pneg %p130
        %s234 = sand.u32 %s120, 1
        %s235 = scalar_lea.sflag [#allocation4], %s234
        %s236 = sand.u32 %s120, 1
        %s237 = smul.addr %s236, 2
        %s238 = scalar_lea.vmem [#allocation3], %s237
        %s239 = smul.u32 2, %s18
        %p240 = scmp.lt.s32.totalorder %s18, 3
        %s241 = scalar_select %p240, %s18, 3
        %s242 = smul.addr %s241, 2
        %s243 = scalar_lea.vmem %s3, %s242
        %v245 = vlaneseq
        %v246 = vshrl.u32 %v245, 7
        %v247 = vadd.s32 %v246, 8
        %v248 = vadd.s32 %v246, 16
        %v249 = vadd.s32 %v246, 24
        %v250 = vadd.s32 %v246, 32
        %v251 = vadd.s32 %v246, 40
        %v252 = vadd.s32 %v246, 48
        %v253 = vadd.s32 %v246, 56
        %v254 = vadd.s32 %v246, 64
        %v255 = vadd.s32 %v246, 72
        %v256 = vadd.s32 %v246, 80
        %v257 = vadd.s32 %v246, 88
        %v258 = vadd.s32 %v246, 96
        %v259 = vadd.s32 %v246, 104
        %v260 = vadd.s32 %v246, 112
        %v261 = vadd.s32 %v246, 120
        %v262 = vld [vmem:[%s212] ss:$8 sm:$0x3]
        %v263 = vlaneseq
        %v264 = vshrl.u32 %v263, 7
        %v265 = vsub.s32 0, %v264
        %v266 = vrot.slane %v262, %v265
        %v267 = vlaneseq
        %v268 = vshrl.u32 %v267, 7
        %v269 = vsub.s32 1, %v268
        %v270 = vrot.slane %v262, %v269
        %vm271 = vcmp.eq.s32.totalorder %v246, %v266
        %vm272 = vcmp.eq.s32.totalorder %v246, %v270
        %vm273 = vcmp.eq.s32.totalorder %v247, %v266
        %vm274 = vcmp.eq.s32.totalorder %v247, %v270
        %vm275 = vcmp.eq.s32.totalorder %v248, %v266
        %vm276 = vcmp.eq.s32.totalorder %v248, %v270
        %vm277 = vcmp.eq.s32.totalorder %v249, %v266
        %vm278 = vcmp.eq.s32.totalorder %v249, %v270
        %vm279 = vcmp.eq.s32.totalorder %v250, %v266
        %vm280 = vcmp.eq.s32.totalorder %v250, %v270
        %vm281 = vcmp.eq.s32.totalorder %v251, %v266
        %vm282 = vcmp.eq.s32.totalorder %v251, %v270
        %vm283 = vcmp.eq.s32.totalorder %v252, %v266
        %vm284 = vcmp.eq.s32.totalorder %v252, %v270
        %vm285 = vcmp.eq.s32.totalorder %v253, %v266
        %vm286 = vcmp.eq.s32.totalorder %v253, %v270
        %vm287 = vcmp.eq.s32.totalorder %v254, %v266
        %vm288 = vcmp.eq.s32.totalorder %v254, %v270
        %vm289 = vcmp.eq.s32.totalorder %v255, %v266
        %vm290 = vcmp.eq.s32.totalorder %v255, %v270
        %vm291 = vcmp.eq.s32.totalorder %v256, %v266
        %vm292 = vcmp.eq.s32.totalorder %v256, %v270
        %vm293 = vcmp.eq.s32.totalorder %v257, %v266
        %vm294 = vcmp.eq.s32.totalorder %v257, %v270
        %vm295 = vcmp.eq.s32.totalorder %v258, %v266
        %vm296 = vcmp.eq.s32.totalorder %v258, %v270
        %vm297 = vcmp.eq.s32.totalorder %v259, %v266
        %vm298 = vcmp.eq.s32.totalorder %v259, %v270
        %vm299 = vcmp.eq.s32.totalorder %v260, %v266
        %vm300 = vcmp.eq.s32.totalorder %v260, %v270
        %vm301 = vcmp.eq.s32.totalorder %v261, %v266
        %vm302 = vcmp.eq.s32.totalorder %v261, %v270
        %v303 = vsel %vm271, 1, 0
        %v304 = vsel %vm272, 1, 0
        %v305 = vsel %vm273, 1, 0
        %v306 = vsel %vm274, 1, 0
        %v307 = vsel %vm275, 1, 0
        %v308 = vsel %vm276, 1, 0
        %v309 = vsel %vm277, 1, 0
        %v310 = vsel %vm278, 1, 0
        %v311 = vsel %vm279, 1, 0
        %v312 = vsel %vm280, 1, 0
        %v313 = vsel %vm281, 1, 0
        %v314 = vsel %vm282, 1, 0
        %v315 = vsel %vm283, 1, 0
        %v316 = vsel %vm284, 1, 0
        %v317 = vsel %vm285, 1, 0
        %v318 = vsel %vm286, 1, 0
        %v319 = vsel %vm287, 1, 0
        %v320 = vsel %vm288, 1, 0
        %v321 = vsel %vm289, 1, 0
        %v322 = vsel %vm290, 1, 0
        %v323 = vsel %vm291, 1, 0
        %v324 = vsel %vm292, 1, 0
        %v325 = vsel %vm293, 1, 0
        %v326 = vsel %vm294, 1, 0
        %v327 = vsel %vm295, 1, 0
        %v328 = vsel %vm296, 1, 0
        %v329 = vsel %vm297, 1, 0
        %v330 = vsel %vm298, 1, 0
        %v331 = vsel %vm299, 1, 0
        %v332 = vsel %vm300, 1, 0
        %v333 = vsel %vm301, 1, 0
        %v334 = vsel %vm302, 1, 0
        %v335 = vcvt.s32.f32 %v303
        %v336 = vcvt.s32.f32 %v304
        %v337 = vcvt.s32.f32 %v305
        %v338 = vcvt.s32.f32 %v306
        %v339 = vcvt.s32.f32 %v307
        %v340 = vcvt.s32.f32 %v308
        %v341 = vcvt.s32.f32 %v309
        %v342 = vcvt.s32.f32 %v310
        %v343 = vcvt.s32.f32 %v311
        %v344 = vcvt.s32.f32 %v312
        %v345 = vcvt.s32.f32 %v313
        %v346 = vcvt.s32.f32 %v314
        %v347 = vcvt.s32.f32 %v315
        %v348 = vcvt.s32.f32 %v316
        %v349 = vcvt.s32.f32 %v317
        %v350 = vcvt.s32.f32 %v318
        %v351 = vcvt.s32.f32 %v319
        %v352 = vcvt.s32.f32 %v320
        %v353 = vcvt.s32.f32 %v321
        %v354 = vcvt.s32.f32 %v322
        %v355 = vcvt.s32.f32 %v323
        %v356 = vcvt.s32.f32 %v324
        %v357 = vcvt.s32.f32 %v325
        %v358 = vcvt.s32.f32 %v326
        %v359 = vcvt.s32.f32 %v327
        %v360 = vcvt.s32.f32 %v328
        %v361 = vcvt.s32.f32 %v329
        %v362 = vcvt.s32.f32 %v330
        %v363 = vcvt.s32.f32 %v331
        %v364 = vcvt.s32.f32 %v332
        %v365 = vcvt.s32.f32 %v333
        %v366 = vcvt.s32.f32 %v334
        %v367 = vadd.f32 %v335, 0.0
        %v368 = vadd.f32 %v336, 0.0
        %v369 = vadd.f32 %v337, 0.0
        %v370 = vadd.f32 %v338, 0.0
        %v371 = vadd.f32 %v339, 0.0
        %v372 = vadd.f32 %v340, 0.0
        %v373 = vadd.f32 %v341, 0.0
        %v374 = vadd.f32 %v342, 0.0
        %v375 = vadd.f32 %v343, 0.0
        %v376 = vadd.f32 %v344, 0.0
        %v377 = vadd.f32 %v345, 0.0
        %v378 = vadd.f32 %v346, 0.0
        %v379 = vadd.f32 %v347, 0.0
        %v380 = vadd.f32 %v348, 0.0
        %v381 = vadd.f32 %v349, 0.0
        %v382 = vadd.f32 %v350, 0.0
        %v383 = vadd.f32 %v351, 0.0
        %v384 = vadd.f32 %v352, 0.0
        %v385 = vadd.f32 %v353, 0.0
        %v386 = vadd.f32 %v354, 0.0
        %v387 = vadd.f32 %v355, 0.0
        %v388 = vadd.f32 %v356, 0.0
        %v389 = vadd.f32 %v357, 0.0
        %v390 = vadd.f32 %v358, 0.0
        %v391 = vadd.f32 %v359, 0.0
        %v392 = vadd.f32 %v360, 0.0
        %v393 = vadd.f32 %v361, 0.0
        %v394 = vadd.f32 %v362, 0.0
        %v395 = vadd.f32 %v363, 0.0
        %v396 = vadd.f32 %v364, 0.0
        %v397 = vadd.f32 %v365, 0.0
        %v398 = vadd.f32 %v366, 0.0
        %s399 = scalar_lea.vmem %s212, 1 [#allocation2]
        %v400 = vld [vmem:[%s399] ss:$8 sm:$0x3]
        %v401 = vlaneseq
        %v402 = vshrl.u32 %v401, 7
        %v403 = vsub.s32 0, %v402
        %v404 = vrot.slane %v400, %v403
        %v405 = vlaneseq
        %v406 = vshrl.u32 %v405, 7
        %v407 = vsub.s32 1, %v406
        %v408 = vrot.slane %v400, %v407
        %vm409 = vcmp.eq.s32.totalorder %v246, %v404
        %vm410 = vcmp.eq.s32.totalorder %v246, %v408
        %vm411 = vcmp.eq.s32.totalorder %v247, %v404
        %vm412 = vcmp.eq.s32.totalorder %v247, %v408
        %vm413 = vcmp.eq.s32.totalorder %v248, %v404
        %vm414 = vcmp.eq.s32.totalorder %v248, %v408
        %vm415 = vcmp.eq.s32.totalorder %v249, %v404
        %vm416 = vcmp.eq.s32.totalorder %v249, %v408
        %vm417 = vcmp.eq.s32.totalorder %v250, %v404
        %vm418 = vcmp.eq.s32.totalorder %v250, %v408
        %vm419 = vcmp.eq.s32.totalorder %v251, %v404
        %vm420 = vcmp.eq.s32.totalorder %v251, %v408
        %vm421 = vcmp.eq.s32.totalorder %v252, %v404
        %vm422 = vcmp.eq.s32.totalorder %v252, %v408
        %vm423 = vcmp.eq.s32.totalorder %v253, %v404
        %vm424 = vcmp.eq.s32.totalorder %v253, %v408
        %vm425 = vcmp.eq.s32.totalorder %v254, %v404
        %vm426 = vcmp.eq.s32.totalorder %v254, %v408
        %vm427 = vcmp.eq.s32.totalorder %v255, %v404
        %vm428 = vcmp.eq.s32.totalorder %v255, %v408
        %vm429 = vcmp.eq.s32.totalorder %v256, %v404
        %vm430 = vcmp.eq.s32.totalorder %v256, %v408
        %vm431 = vcmp.eq.s32.totalorder %v257, %v404
        %vm432 = vcmp.eq.s32.totalorder %v257, %v408
        %vm433 = vcmp.eq.s32.totalorder %v258, %v404
        %vm434 = vcmp.eq.s32.totalorder %v258, %v408
        %vm435 = vcmp.eq.s32.totalorder %v259, %v404
        %vm436 = vcmp.eq.s32.totalorder %v259, %v408
        %vm437 = vcmp.eq.s32.totalorder %v260, %v404
        %vm438 = vcmp.eq.s32.totalorder %v260, %v408
        %vm439 = vcmp.eq.s32.totalorder %v261, %v404
        %vm440 = vcmp.eq.s32.totalorder %v261, %v408
        %v441 = vsel %vm409, 1, 0
        %v442 = vsel %vm410, 1, 0
        %v443 = vsel %vm411, 1, 0
        %v444 = vsel %vm412, 1, 0
        %v445 = vsel %vm413, 1, 0
        %v446 = vsel %vm414, 1, 0
        %v447 = vsel %vm415, 1, 0
        %v448 = vsel %vm416, 1, 0
        %v449 = vsel %vm417, 1, 0
        %v450 = vsel %vm418, 1, 0
        %v451 = vsel %vm419, 1, 0
        %v452 = vsel %vm420, 1, 0
        %v453 = vsel %vm421, 1, 0
        %v454 = vsel %vm422, 1, 0
        %v455 = vsel %vm423, 1, 0
        %v456 = vsel %vm424, 1, 0
        %v457 = vsel %vm425, 1, 0
        %v458 = vsel %vm426, 1, 0
        %v459 = vsel %vm427, 1, 0
        %v460 = vsel %vm428, 1, 0
        %v461 = vsel %vm429, 1, 0
        %v462 = vsel %vm430, 1, 0
        %v463 = vsel %vm431, 1, 0
        %v464 = vsel %vm432, 1, 0
        %v465 = vsel %vm433, 1, 0
        %v466 = vsel %vm434, 1, 0
        %v467 = vsel %vm435, 1, 0
        %v468 = vsel %vm436, 1, 0
        %v469 = vsel %vm437, 1, 0
        %v470 = vsel %vm438, 1, 0
        %v471 = vsel %vm439, 1, 0
        %v472 = vsel %vm440, 1, 0
        %v473 = vcvt.s32.f32 %v441
        %v474 = vcvt.s32.f32 %v442
        %v475 = vcvt.s32.f32 %v443
        %v476 = vcvt.s32.f32 %v444
        %v477 = vcvt.s32.f32 %v445
        %v478 = vcvt.s32.f32 %v446
        %v479 = vcvt.s32.f32 %v447
        %v480 = vcvt.s32.f32 %v448
        %v481 = vcvt.s32.f32 %v449
        %v482 = vcvt.s32.f32 %v450
        %v483 = vcvt.s32.f32 %v451
        %v484 = vcvt.s32.f32 %v452
        %v485 = vcvt.s32.f32 %v453
        %v486 = vcvt.s32.f32 %v454
        %v487 = vcvt.s32.f32 %v455
        %v488 = vcvt.s32.f32 %v456
        %v489 = vcvt.s32.f32 %v457
        %v490 = vcvt.s32.f32 %v458
        %v491 = vcvt.s32.f32 %v459
        %v492 = vcvt.s32.f32 %v460
        %v493 = vcvt.s32.f32 %v461
        %v494 = vcvt.s32.f32 %v462
        %v495 = vcvt.s32.f32 %v463
        %v496 = vcvt.s32.f32 %v464
        %v497 = vcvt.s32.f32 %v465
        %v498 = vcvt.s32.f32 %v466
        %v499 = vcvt.s32.f32 %v467
        %v500 = vcvt.s32.f32 %v468
        %v501 = vcvt.s32.f32 %v469
        %v502 = vcvt.s32.f32 %v470
        %v503 = vcvt.s32.f32 %v471
        %v504 = vcvt.s32.f32 %v472
        %v505 = vadd.f32 %v367, %v473
        %v506 = vadd.f32 %v368, %v474
        %v507 = vadd.f32 %v369, %v475
        %v508 = vadd.f32 %v370, %v476
        %v509 = vadd.f32 %v371, %v477
        %v510 = vadd.f32 %v372, %v478
        %v511 = vadd.f32 %v373, %v479
        %v512 = vadd.f32 %v374, %v480
        %v513 = vadd.f32 %v375, %v481
        %v514 = vadd.f32 %v376, %v482
        %v515 = vadd.f32 %v377, %v483
        %v516 = vadd.f32 %v378, %v484
        %v517 = vadd.f32 %v379, %v485
        %v518 = vadd.f32 %v380, %v486
        %v519 = vadd.f32 %v381, %v487
        %v520 = vadd.f32 %v382, %v488
        %v521 = vadd.f32 %v383, %v489
        %v522 = vadd.f32 %v384, %v490
        %v523 = vadd.f32 %v385, %v491
        %v524 = vadd.f32 %v386, %v492
        %v525 = vadd.f32 %v387, %v493
        %v526 = vadd.f32 %v388, %v494
        %v527 = vadd.f32 %v389, %v495
        %v528 = vadd.f32 %v390, %v496
        %v529 = vadd.f32 %v391, %v497
        %v530 = vadd.f32 %v392, %v498
        %v531 = vadd.f32 %v393, %v499
        %v532 = vadd.f32 %v394, %v500
        %v533 = vadd.f32 %v395, %v501
        %v534 = vadd.f32 %v396, %v502
        %v535 = vadd.f32 %v397, %v503
        %v536 = vadd.f32 %v398, %v504
        %s537 = scalar_lea.vmem %s212, 2 [#allocation2]
        %v538 = vld [vmem:[%s537] ss:$8 sm:$0x3]
        %v539 = vlaneseq
        %v540 = vshrl.u32 %v539, 7
        %v541 = vsub.s32 0, %v540
        %v542 = vrot.slane %v538, %v541
        %v543 = vlaneseq
        %v544 = vshrl.u32 %v543, 7
        %v545 = vsub.s32 1, %v544
        %v546 = vrot.slane %v538, %v545
        %vm547 = vcmp.eq.s32.totalorder %v246, %v542
        %vm548 = vcmp.eq.s32.totalorder %v246, %v546
        %vm549 = vcmp.eq.s32.totalorder %v247, %v542
        %vm550 = vcmp.eq.s32.totalorder %v247, %v546
        %vm551 = vcmp.eq.s32.totalorder %v248, %v542
        %vm552 = vcmp.eq.s32.totalorder %v248, %v546
        %vm553 = vcmp.eq.s32.totalorder %v249, %v542
        %vm554 = vcmp.eq.s32.totalorder %v249, %v546
        %vm555 = vcmp.eq.s32.totalorder %v250, %v542
        %vm556 = vcmp.eq.s32.totalorder %v250, %v546
        %vm557 = vcmp.eq.s32.totalorder %v251, %v542
        %vm558 = vcmp.eq.s32.totalorder %v251, %v546
        %vm559 = vcmp.eq.s32.totalorder %v252, %v542
        %vm560 = vcmp.eq.s32.totalorder %v252, %v546
        %vm561 = vcmp.eq.s32.totalorder %v253, %v542
        %vm562 = vcmp.eq.s32.totalorder %v253, %v546
        %vm563 = vcmp.eq.s32.totalorder %v254, %v542
        %vm564 = vcmp.eq.s32.totalorder %v254, %v546
        %vm565 = vcmp.eq.s32.totalorder %v255, %v542
        %vm566 = vcmp.eq.s32.totalorder %v255, %v546
        %vm567 = vcmp.eq.s32.totalorder %v256, %v542
        %vm568 = vcmp.eq.s32.totalorder %v256, %v546
        %vm569 = vcmp.eq.s32.totalorder %v257, %v542
        %vm570 = vcmp.eq.s32.totalorder %v257, %v546
        %vm571 = vcmp.eq.s32.totalorder %v258, %v542
        %vm572 = vcmp.eq.s32.totalorder %v258, %v546
        %vm573 = vcmp.eq.s32.totalorder %v259, %v542
        %vm574 = vcmp.eq.s32.totalorder %v259, %v546
        %vm575 = vcmp.eq.s32.totalorder %v260, %v542
        %vm576 = vcmp.eq.s32.totalorder %v260, %v546
        %vm577 = vcmp.eq.s32.totalorder %v261, %v542
        %vm578 = vcmp.eq.s32.totalorder %v261, %v546
        %v579 = vsel %vm547, 1, 0
        %v580 = vsel %vm548, 1, 0
        %v581 = vsel %vm549, 1, 0
        %v582 = vsel %vm550, 1, 0
        %v583 = vsel %vm551, 1, 0
        %v584 = vsel %vm552, 1, 0
        %v585 = vsel %vm553, 1, 0
        %v586 = vsel %vm554, 1, 0
        %v587 = vsel %vm555, 1, 0
        %v588 = vsel %vm556, 1, 0
        %v589 = vsel %vm557, 1, 0
        %v590 = vsel %vm558, 1, 0
        %v591 = vsel %vm559, 1, 0
        %v592 = vsel %vm560, 1, 0
        %v593 = vsel %vm561, 1, 0
        %v594 = vsel %vm562, 1, 0
        %v595 = vsel %vm563, 1, 0
        %v596 = vsel %vm564, 1, 0
        %v597 = vsel %vm565, 1, 0
        %v598 = vsel %vm566, 1, 0
        %v599 = vsel %vm567, 1, 0
        %v600 = vsel %vm568, 1, 0
        %v601 = vsel %vm569, 1, 0
        %v602 = vsel %vm570, 1, 0
        %v603 = vsel %vm571, 1, 0
        %v604 = vsel %vm572, 1, 0
        %v605 = vsel %vm573, 1, 0
        %v606 = vsel %vm574, 1, 0
        %v607 = vsel %vm575, 1, 0
        %v608 = vsel %vm576, 1, 0
        %v609 = vsel %vm577, 1, 0
        %v610 = vsel %vm578, 1, 0
        %v611 = vcvt.s32.f32 %v579
        %v612 = vcvt.s32.f32 %v580
        %v613 = vcvt.s32.f32 %v581
        %v614 = vcvt.s32.f32 %v582
        %v615 = vcvt.s32.f32 %v583
        %v616 = vcvt.s32.f32 %v584
        %v617 = vcvt.s32.f32 %v585
        %v618 = vcvt.s32.f32 %v586
        %v619 = vcvt.s32.f32 %v587
        %v620 = vcvt.s32.f32 %v588
        %v621 = vcvt.s32.f32 %v589
        %v622 = vcvt.s32.f32 %v590
        %v623 = vcvt.s32.f32 %v591
        %v624 = vcvt.s32.f32 %v592
        %v625 = vcvt.s32.f32 %v593
        %v626 = vcvt.s32.f32 %v594
        %v627 = vcvt.s32.f32 %v595
        %v628 = vcvt.s32.f32 %v596
        %v629 = vcvt.s32.f32 %v597
        %v630 = vcvt.s32.f32 %v598
        %v631 = vcvt.s32.f32 %v599
        %v632 = vcvt.s32.f32 %v600
        %v633 = vcvt.s32.f32 %v601
        %v634 = vcvt.s32.f32 %v602
        %v635 = vcvt.s32.f32 %v603
        %v636 = vcvt.s32.f32 %v604
        %v637 = vcvt.s32.f32 %v605
        %v638 = vcvt.s32.f32 %v606
        %v639 = vcvt.s32.f32 %v607
        %v640 = vcvt.s32.f32 %v608
        %v641 = vcvt.s32.f32 %v609
        %v642 = vcvt.s32.f32 %v610
        %v643 = vadd.f32 %v505, %v611
        %v644 = vadd.f32 %v506, %v612
        %v645 = vadd.f32 %v507, %v613
        %v646 = vadd.f32 %v508, %v614
        %v647 = vadd.f32 %v509, %v615
        %v648 = vadd.f32 %v510, %v616
        %v649 = vadd.f32 %v511, %v617
        %v650 = vadd.f32 %v512, %v618
        %v651 = vadd.f32 %v513, %v619
        %v652 = vadd.f32 %v514, %v620
        %v653 = vadd.f32 %v515, %v621
        %v654 = vadd.f32 %v516, %v622
        %v655 = vadd.f32 %v517, %v623
        %v656 = vadd.f32 %v518, %v624
        %v657 = vadd.f32 %v519, %v625
        %v658 = vadd.f32 %v520, %v626
        %v659 = vadd.f32 %v521, %v627
        %v660 = vadd.f32 %v522, %v628
        %v661 = vadd.f32 %v523, %v629
        %v662 = vadd.f32 %v524, %v630
        %v663 = vadd.f32 %v525, %v631
        %v664 = vadd.f32 %v526, %v632
        %v665 = vadd.f32 %v527, %v633
        %v666 = vadd.f32 %v528, %v634
        %v667 = vadd.f32 %v529, %v635
        %v668 = vadd.f32 %v530, %v636
        %v669 = vadd.f32 %v531, %v637
        %v670 = vadd.f32 %v532, %v638
        %v671 = vadd.f32 %v533, %v639
        %v672 = vadd.f32 %v534, %v640
        %v673 = vadd.f32 %v535, %v641
        %v674 = vadd.f32 %v536, %v642
        %s675 = scalar_lea.vmem %s212, 3 [#allocation2]
        %v676 = vld [vmem:[%s675] ss:$8 sm:$0x3]
        %v677 = vlaneseq
        %v678 = vshrl.u32 %v677, 7
        %v679 = vsub.s32 0, %v678
        %v680 = vrot.slane %v676, %v679
        %v681 = vlaneseq
        %v682 = vshrl.u32 %v681, 7
        %v683 = vsub.s32 1, %v682
        %v684 = vrot.slane %v676, %v683
        %vm685 = vcmp.eq.s32.totalorder %v246, %v680
        %vm686 = vcmp.eq.s32.totalorder %v246, %v684
        %vm687 = vcmp.eq.s32.totalorder %v247, %v680
        %vm688 = vcmp.eq.s32.totalorder %v247, %v684
        %vm689 = vcmp.eq.s32.totalorder %v248, %v680
        %vm690 = vcmp.eq.s32.totalorder %v248, %v684
        %vm691 = vcmp.eq.s32.totalorder %v249, %v680
        %vm692 = vcmp.eq.s32.totalorder %v249, %v684
        %vm693 = vcmp.eq.s32.totalorder %v250, %v680
        %vm694 = vcmp.eq.s32.totalorder %v250, %v684
        %vm695 = vcmp.eq.s32.totalorder %v251, %v680
        %vm696 = vcmp.eq.s32.totalorder %v251, %v684
        %vm697 = vcmp.eq.s32.totalorder %v252, %v680
        %vm698 = vcmp.eq.s32.totalorder %v252, %v684
        %vm699 = vcmp.eq.s32.totalorder %v253, %v680
        %vm700 = vcmp.eq.s32.totalorder %v253, %v684
        %vm701 = vcmp.eq.s32.totalorder %v254, %v680
        %vm702 = vcmp.eq.s32.totalorder %v254, %v684
        %vm703 = vcmp.eq.s32.totalorder %v255, %v680
        %vm704 = vcmp.eq.s32.totalorder %v255, %v684
        %vm705 = vcmp.eq.s32.totalorder %v256, %v680
        %vm706 = vcmp.eq.s32.totalorder %v256, %v684
        %vm707 = vcmp.eq.s32.totalorder %v257, %v680
        %vm708 = vcmp.eq.s32.totalorder %v257, %v684
        %vm709 = vcmp.eq.s32.totalorder %v258, %v680
        %vm710 = vcmp.eq.s32.totalorder %v258, %v684
        %vm711 = vcmp.eq.s32.totalorder %v259, %v680
        %vm712 = vcmp.eq.s32.totalorder %v259, %v684
        %vm713 = vcmp.eq.s32.totalorder %v260, %v680
        %vm714 = vcmp.eq.s32.totalorder %v260, %v684
        %vm715 = vcmp.eq.s32.totalorder %v261, %v680
        %vm716 = vcmp.eq.s32.totalorder %v261, %v684
        %v717 = vsel %vm685, 1, 0
        %v718 = vsel %vm686, 1, 0
        %v719 = vsel %vm687, 1, 0
        %v720 = vsel %vm688, 1, 0
        %v721 = vsel %vm689, 1, 0
        %v722 = vsel %vm690, 1, 0
        %v723 = vsel %vm691, 1, 0
        %v724 = vsel %vm692, 1, 0
        %v725 = vsel %vm693, 1, 0
        %v726 = vsel %vm694, 1, 0
        %v727 = vsel %vm695, 1, 0
        %v728 = vsel %vm696, 1, 0
        %v729 = vsel %vm697, 1, 0
        %v730 = vsel %vm698, 1, 0
        %v731 = vsel %vm699, 1, 0
        %v732 = vsel %vm700, 1, 0
        %v733 = vsel %vm701, 1, 0
        %v734 = vsel %vm702, 1, 0
        %v735 = vsel %vm703, 1, 0
        %v736 = vsel %vm704, 1, 0
        %v737 = vsel %vm705, 1, 0
        %v738 = vsel %vm706, 1, 0
        %v739 = vsel %vm707, 1, 0
        %v740 = vsel %vm708, 1, 0
        %v741 = vsel %vm709, 1, 0
        %v742 = vsel %vm710, 1, 0
        %v743 = vsel %vm711, 1, 0
        %v744 = vsel %vm712, 1, 0
        %v745 = vsel %vm713, 1, 0
        %v746 = vsel %vm714, 1, 0
        %v747 = vsel %vm715, 1, 0
        %v748 = vsel %vm716, 1, 0
        %v749 = vcvt.s32.f32 %v717
        %v750 = vcvt.s32.f32 %v718
        %v751 = vcvt.s32.f32 %v719
        %v752 = vcvt.s32.f32 %v720
        %v753 = vcvt.s32.f32 %v721
        %v754 = vcvt.s32.f32 %v722
        %v755 = vcvt.s32.f32 %v723
        %v756 = vcvt.s32.f32 %v724
        %v757 = vcvt.s32.f32 %v725
        %v758 = vcvt.s32.f32 %v726
        %v759 = vcvt.s32.f32 %v727
        %v760 = vcvt.s32.f32 %v728
        %v761 = vcvt.s32.f32 %v729
        %v762 = vcvt.s32.f32 %v730
        %v763 = vcvt.s32.f32 %v731
        %v764 = vcvt.s32.f32 %v732
        %v765 = vcvt.s32.f32 %v733
        %v766 = vcvt.s32.f32 %v734
        %v767 = vcvt.s32.f32 %v735
        %v768 = vcvt.s32.f32 %v736
        %v769 = vcvt.s32.f32 %v737
        %v770 = vcvt.s32.f32 %v738
        %v771 = vcvt.s32.f32 %v739
        %v772 = vcvt.s32.f32 %v740
        %v773 = vcvt.s32.f32 %v741
        %v774 = vcvt.s32.f32 %v742
        %v775 = vcvt.s32.f32 %v743
        %v776 = vcvt.s32.f32 %v744
        %v777 = vcvt.s32.f32 %v745
        %v778 = vcvt.s32.f32 %v746
        %v779 = vcvt.s32.f32 %v747
        %v780 = vcvt.s32.f32 %v748
        %v781 = vadd.f32 %v643, %v749
        %v782 = vadd.f32 %v644, %v750
        %v783 = vadd.f32 %v645, %v751
        %v784 = vadd.f32 %v646, %v752
        %v785 = vadd.f32 %v647, %v753
        %v786 = vadd.f32 %v648, %v754
        %v787 = vadd.f32 %v649, %v755
        %v788 = vadd.f32 %v650, %v756
        %v789 = vadd.f32 %v651, %v757
        %v790 = vadd.f32 %v652, %v758
        %v791 = vadd.f32 %v653, %v759
        %v792 = vadd.f32 %v654, %v760
        %v793 = vadd.f32 %v655, %v761
        %v794 = vadd.f32 %v656, %v762
        %v795 = vadd.f32 %v657, %v763
        %v796 = vadd.f32 %v658, %v764
        %v797 = vadd.f32 %v659, %v765
        %v798 = vadd.f32 %v660, %v766
        %v799 = vadd.f32 %v661, %v767
        %v800 = vadd.f32 %v662, %v768
        %v801 = vadd.f32 %v663, %v769
        %v802 = vadd.f32 %v664, %v770
        %v803 = vadd.f32 %v665, %v771
        %v804 = vadd.f32 %v666, %v772
        %v805 = vadd.f32 %v667, %v773
        %v806 = vadd.f32 %v668, %v774
        %v807 = vadd.f32 %v669, %v775
        %v808 = vadd.f32 %v670, %v776
        %v809 = vadd.f32 %v671, %v777
        %v810 = vadd.f32 %v672, %v778
        %v811 = vadd.f32 %v673, %v779
        %v812 = vadd.f32 %v674, %v780
        %s813 = scalar_lea.vmem %s212, 4 [#allocation2]
        %v814 = vld [vmem:[%s813] ss:$8 sm:$0x3]
        %v815 = vlaneseq
        %v816 = vshrl.u32 %v815, 7
        %v817 = vsub.s32 0, %v816
        %v818 = vrot.slane %v814, %v817
        %v819 = vlaneseq
        %v820 = vshrl.u32 %v819, 7
        %v821 = vsub.s32 1, %v820
        %v822 = vrot.slane %v814, %v821
        %vm823 = vcmp.eq.s32.totalorder %v246, %v818
        %vm824 = vcmp.eq.s32.totalorder %v246, %v822
        %vm825 = vcmp.eq.s32.totalorder %v247, %v818
        %vm826 = vcmp.eq.s32.totalorder %v247, %v822
        %vm827 = vcmp.eq.s32.totalorder %v248, %v818
        %vm828 = vcmp.eq.s32.totalorder %v248, %v822
        %vm829 = vcmp.eq.s32.totalorder %v249, %v818
        %vm830 = vcmp.eq.s32.totalorder %v249, %v822
        %vm831 = vcmp.eq.s32.totalorder %v250, %v818
        %vm832 = vcmp.eq.s32.totalorder %v250, %v822
        %vm833 = vcmp.eq.s32.totalorder %v251, %v818
        %vm834 = vcmp.eq.s32.totalorder %v251, %v822
        %vm835 = vcmp.eq.s32.totalorder %v252, %v818
        %vm836 = vcmp.eq.s32.totalorder %v252, %v822
        %vm837 = vcmp.eq.s32.totalorder %v253, %v818
        %vm838 = vcmp.eq.s32.totalorder %v253, %v822
        %vm839 = vcmp.eq.s32.totalorder %v254, %v818
        %vm840 = vcmp.eq.s32.totalorder %v254, %v822
        %vm841 = vcmp.eq.s32.totalorder %v255, %v818
        %vm842 = vcmp.eq.s32.totalorder %v255, %v822
        %vm843 = vcmp.eq.s32.totalorder %v256, %v818
        %vm844 = vcmp.eq.s32.totalorder %v256, %v822
        %vm845 = vcmp.eq.s32.totalorder %v257, %v818
        %vm846 = vcmp.eq.s32.totalorder %v257, %v822
        %vm847 = vcmp.eq.s32.totalorder %v258, %v818
        %vm848 = vcmp.eq.s32.totalorder %v258, %v822
        %vm849 = vcmp.eq.s32.totalorder %v259, %v818
        %vm850 = vcmp.eq.s32.totalorder %v259, %v822
        %vm851 = vcmp.eq.s32.totalorder %v260, %v818
        %vm852 = vcmp.eq.s32.totalorder %v260, %v822
        %vm853 = vcmp.eq.s32.totalorder %v261, %v818
        %vm854 = vcmp.eq.s32.totalorder %v261, %v822
        %v855 = vsel %vm823, 1, 0
        %v856 = vsel %vm824, 1, 0
        %v857 = vsel %vm825, 1, 0
        %v858 = vsel %vm826, 1, 0
        %v859 = vsel %vm827, 1, 0
        %v860 = vsel %vm828, 1, 0
        %v861 = vsel %vm829, 1, 0
        %v862 = vsel %vm830, 1, 0
        %v863 = vsel %vm831, 1, 0
        %v864 = vsel %vm832, 1, 0
        %v865 = vsel %vm833, 1, 0
        %v866 = vsel %vm834, 1, 0
        %v867 = vsel %vm835, 1, 0
        %v868 = vsel %vm836, 1, 0
        %v869 = vsel %vm837, 1, 0
        %v870 = vsel %vm838, 1, 0
        %v871 = vsel %vm839, 1, 0
        %v872 = vsel %vm840, 1, 0
        %v873 = vsel %vm841, 1, 0
        %v874 = vsel %vm842, 1, 0
        %v875 = vsel %vm843, 1, 0
        %v876 = vsel %vm844, 1, 0
        %v877 = vsel %vm845, 1, 0
        %v878 = vsel %vm846, 1, 0
        %v879 = vsel %vm847, 1, 0
        %v880 = vsel %vm848, 1, 0
        %v881 = vsel %vm849, 1, 0
        %v882 = vsel %vm850, 1, 0
        %v883 = vsel %vm851, 1, 0
        %v884 = vsel %vm852, 1, 0
        %v885 = vsel %vm853, 1, 0
        %v886 = vsel %vm854, 1, 0
        %v887 = vcvt.s32.f32 %v855
        %v888 = vcvt.s32.f32 %v856
        %v889 = vcvt.s32.f32 %v857
        %v890 = vcvt.s32.f32 %v858
        %v891 = vcvt.s32.f32 %v859
        %v892 = vcvt.s32.f32 %v860
        %v893 = vcvt.s32.f32 %v861
        %v894 = vcvt.s32.f32 %v862
        %v895 = vcvt.s32.f32 %v863
        %v896 = vcvt.s32.f32 %v864
        %v897 = vcvt.s32.f32 %v865
        %v898 = vcvt.s32.f32 %v866
        %v899 = vcvt.s32.f32 %v867
        %v900 = vcvt.s32.f32 %v868
        %v901 = vcvt.s32.f32 %v869
        %v902 = vcvt.s32.f32 %v870
        %v903 = vcvt.s32.f32 %v871
        %v904 = vcvt.s32.f32 %v872
        %v905 = vcvt.s32.f32 %v873
        %v906 = vcvt.s32.f32 %v874
        %v907 = vcvt.s32.f32 %v875
        %v908 = vcvt.s32.f32 %v876
        %v909 = vcvt.s32.f32 %v877
        %v910 = vcvt.s32.f32 %v878
        %v911 = vcvt.s32.f32 %v879
        %v912 = vcvt.s32.f32 %v880
        %v913 = vcvt.s32.f32 %v881
        %v914 = vcvt.s32.f32 %v882
        %v915 = vcvt.s32.f32 %v883
        %v916 = vcvt.s32.f32 %v884
        %v917 = vcvt.s32.f32 %v885
        %v918 = vcvt.s32.f32 %v886
        %v919 = vadd.f32 %v781, %v887
        %v920 = vadd.f32 %v782, %v888
        %v921 = vadd.f32 %v783, %v889
        %v922 = vadd.f32 %v784, %v890
        %v923 = vadd.f32 %v785, %v891
        %v924 = vadd.f32 %v786, %v892
        %v925 = vadd.f32 %v787, %v893
        %v926 = vadd.f32 %v788, %v894
        %v927 = vadd.f32 %v789, %v895
        %v928 = vadd.f32 %v790, %v896
        %v929 = vadd.f32 %v791, %v897
        %v930 = vadd.f32 %v792, %v898
        %v931 = vadd.f32 %v793, %v899
        %v932 = vadd.f32 %v794, %v900
        %v933 = vadd.f32 %v795, %v901
        %v934 = vadd.f32 %v796, %v902
        %v935 = vadd.f32 %v797, %v903
        %v936 = vadd.f32 %v798, %v904
        %v937 = vadd.f32 %v799, %v905
        %v938 = vadd.f32 %v800, %v906
        %v939 = vadd.f32 %v801, %v907
        %v940 = vadd.f32 %v802, %v908
        %v941 = vadd.f32 %v803, %v909
        %v942 = vadd.f32 %v804, %v910
        %v943 = vadd.f32 %v805, %v911
        %v944 = vadd.f32 %v806, %v912
        %v945 = vadd.f32 %v807, %v913
        %v946 = vadd.f32 %v808, %v914
        %v947 = vadd.f32 %v809, %v915
        %v948 = vadd.f32 %v810, %v916
        %v949 = vadd.f32 %v811, %v917
        %v950 = vadd.f32 %v812, %v918
        %s951 = scalar_lea.vmem %s212, 5 [#allocation2]
        %v952 = vld [vmem:[%s951] ss:$8 sm:$0x3]
        %v953 = vlaneseq
        %v954 = vshrl.u32 %v953, 7
        %v955 = vsub.s32 0, %v954
        %v956 = vrot.slane %v952, %v955
        %v957 = vlaneseq
        %v958 = vshrl.u32 %v957, 7
        %v959 = vsub.s32 1, %v958
        %v960 = vrot.slane %v952, %v959
        %vm961 = vcmp.eq.s32.totalorder %v246, %v956
        %vm962 = vcmp.eq.s32.totalorder %v246, %v960
        %vm963 = vcmp.eq.s32.totalorder %v247, %v956
        %vm964 = vcmp.eq.s32.totalorder %v247, %v960
        %vm965 = vcmp.eq.s32.totalorder %v248, %v956
        %vm966 = vcmp.eq.s32.totalorder %v248, %v960
        %vm967 = vcmp.eq.s32.totalorder %v249, %v956
        %vm968 = vcmp.eq.s32.totalorder %v249, %v960
        %vm969 = vcmp.eq.s32.totalorder %v250, %v956
        %vm970 = vcmp.eq.s32.totalorder %v250, %v960
        %vm971 = vcmp.eq.s32.totalorder %v251, %v956
        %vm972 = vcmp.eq.s32.totalorder %v251, %v960
        %vm973 = vcmp.eq.s32.totalorder %v252, %v956
        %vm974 = vcmp.eq.s32.totalorder %v252, %v960
        %vm975 = vcmp.eq.s32.totalorder %v253, %v956
        %vm976 = vcmp.eq.s32.totalorder %v253, %v960
        %vm977 = vcmp.eq.s32.totalorder %v254, %v956
        %vm978 = vcmp.eq.s32.totalorder %v254, %v960
        %vm979 = vcmp.eq.s32.totalorder %v255, %v956
        %vm980 = vcmp.eq.s32.totalorder %v255, %v960
        %vm981 = vcmp.eq.s32.totalorder %v256, %v956
        %vm982 = vcmp.eq.s32.totalorder %v256, %v960
        %vm983 = vcmp.eq.s32.totalorder %v257, %v956
        %vm984 = vcmp.eq.s32.totalorder %v257, %v960
        %vm985 = vcmp.eq.s32.totalorder %v258, %v956
        %vm986 = vcmp.eq.s32.totalorder %v258, %v960
        %vm987 = vcmp.eq.s32.totalorder %v259, %v956
        %vm988 = vcmp.eq.s32.totalorder %v259, %v960
        %vm989 = vcmp.eq.s32.totalorder %v260, %v956
        %vm990 = vcmp.eq.s32.totalorder %v260, %v960
        %vm991 = vcmp.eq.s32.totalorder %v261, %v956
        %vm992 = vcmp.eq.s32.totalorder %v261, %v960
        %v993 = vsel %vm961, 1, 0
        %v994 = vsel %vm962, 1, 0
        %v995 = vsel %vm963, 1, 0
        %v996 = vsel %vm964, 1, 0
        %v997 = vsel %vm965, 1, 0
        %v998 = vsel %vm966, 1, 0
        %v999 = vsel %vm967, 1, 0
        %v1000 = vsel %vm968, 1, 0
        %v1001 = vsel %vm969, 1, 0
        %v1002 = vsel %vm970, 1, 0
        %v1003 = vsel %vm971, 1, 0
        %v1004 = vsel %vm972, 1, 0
        %v1005 = vsel %vm973, 1, 0
        %v1006 = vsel %vm974, 1, 0
        %v1007 = vsel %vm975, 1, 0
        %v1008 = vsel %vm976, 1, 0
        %v1009 = vsel %vm977, 1, 0
        %v1010 = vsel %vm978, 1, 0
        %v1011 = vsel %vm979, 1, 0
        %v1012 = vsel %vm980, 1, 0
        %v1013 = vsel %vm981, 1, 0
        %v1014 = vsel %vm982, 1, 0
        %v1015 = vsel %vm983, 1, 0
        %v1016 = vsel %vm984, 1, 0
        %v1017 = vsel %vm985, 1, 0
        %v1018 = vsel %vm986, 1, 0
        %v1019 = vsel %vm987, 1, 0
        %v1020 = vsel %vm988, 1, 0
        %v1021 = vsel %vm989, 1, 0
        %v1022 = vsel %vm990, 1, 0
        %v1023 = vsel %vm991, 1, 0
        %v1024 = vsel %vm992, 1, 0
        %v1025 = vcvt.s32.f32 %v993
        %v1026 = vcvt.s32.f32 %v994
        %v1027 = vcvt.s32.f32 %v995
        %v1028 = vcvt.s32.f32 %v996
        %v1029 = vcvt.s32.f32 %v997
        %v1030 = vcvt.s32.f32 %v998
        %v1031 = vcvt.s32.f32 %v999
        %v1032 = vcvt.s32.f32 %v1000
        %v1033 = vcvt.s32.f32 %v1001
        %v1034 = vcvt.s32.f32 %v1002
        %v1035 = vcvt.s32.f32 %v1003
        %v1036 = vcvt.s32.f32 %v1004
        %v1037 = vcvt.s32.f32 %v1005
        %v1038 = vcvt.s32.f32 %v1006
        %v1039 = vcvt.s32.f32 %v1007
        %v1040 = vcvt.s32.f32 %v1008
        %v1041 = vcvt.s32.f32 %v1009
        %v1042 = vcvt.s32.f32 %v1010
        %v1043 = vcvt.s32.f32 %v1011
        %v1044 = vcvt.s32.f32 %v1012
        %v1045 = vcvt.s32.f32 %v1013
        %v1046 = vcvt.s32.f32 %v1014
        %v1047 = vcvt.s32.f32 %v1015
        %v1048 = vcvt.s32.f32 %v1016
        %v1049 = vcvt.s32.f32 %v1017
        %v1050 = vcvt.s32.f32 %v1018
        %v1051 = vcvt.s32.f32 %v1019
        %v1052 = vcvt.s32.f32 %v1020
        %v1053 = vcvt.s32.f32 %v1021
        %v1054 = vcvt.s32.f32 %v1022
        %v1055 = vcvt.s32.f32 %v1023
        %v1056 = vcvt.s32.f32 %v1024
        %v1057 = vadd.f32 %v919, %v1025
        %v1058 = vadd.f32 %v920, %v1026
        %v1059 = vadd.f32 %v921, %v1027
        %v1060 = vadd.f32 %v922, %v1028
        %v1061 = vadd.f32 %v923, %v1029
        %v1062 = vadd.f32 %v924, %v1030
        %v1063 = vadd.f32 %v925, %v1031
        %v1064 = vadd.f32 %v926, %v1032
        %v1065 = vadd.f32 %v927, %v1033
        %v1066 = vadd.f32 %v928, %v1034
        %v1067 = vadd.f32 %v929, %v1035
        %v1068 = vadd.f32 %v930, %v1036
        %v1069 = vadd.f32 %v931, %v1037
        %v1070 = vadd.f32 %v932, %v1038
        %v1071 = vadd.f32 %v933, %v1039
        %v1072 = vadd.f32 %v934, %v1040
        %v1073 = vadd.f32 %v935, %v1041
        %v1074 = vadd.f32 %v936, %v1042
        %v1075 = vadd.f32 %v937, %v1043
        %v1076 = vadd.f32 %v938, %v1044
        %v1077 = vadd.f32 %v939, %v1045
        %v1078 = vadd.f32 %v940, %v1046
        %v1079 = vadd.f32 %v941, %v1047
        %v1080 = vadd.f32 %v942, %v1048
        %v1081 = vadd.f32 %v943, %v1049
        %v1082 = vadd.f32 %v944, %v1050
        %v1083 = vadd.f32 %v945, %v1051
        %v1084 = vadd.f32 %v946, %v1052
        %v1085 = vadd.f32 %v947, %v1053
        %v1086 = vadd.f32 %v948, %v1054
        %v1087 = vadd.f32 %v949, %v1055
        %v1088 = vadd.f32 %v950, %v1056
        %s1089 = scalar_lea.vmem %s212, 6 [#allocation2]
        %v1090 = vld [vmem:[%s1089] ss:$8 sm:$0x3]
        %v1091 = vlaneseq
        %v1092 = vshrl.u32 %v1091, 7
        %v1093 = vsub.s32 0, %v1092
        %v1094 = vrot.slane %v1090, %v1093
        %v1095 = vlaneseq
        %v1096 = vshrl.u32 %v1095, 7
        %v1097 = vsub.s32 1, %v1096
        %v1098 = vrot.slane %v1090, %v1097
        %vm1099 = vcmp.eq.s32.totalorder %v246, %v1094
        %vm1100 = vcmp.eq.s32.totalorder %v246, %v1098
        %vm1101 = vcmp.eq.s32.totalorder %v247, %v1094
        %vm1102 = vcmp.eq.s32.totalorder %v247, %v1098
        %vm1103 = vcmp.eq.s32.totalorder %v248, %v1094
        %vm1104 = vcmp.eq.s32.totalorder %v248, %v1098
        %vm1105 = vcmp.eq.s32.totalorder %v249, %v1094
        %vm1106 = vcmp.eq.s32.totalorder %v249, %v1098
        %vm1107 = vcmp.eq.s32.totalorder %v250, %v1094
        %vm1108 = vcmp.eq.s32.totalorder %v250, %v1098
        %vm1109 = vcmp.eq.s32.totalorder %v251, %v1094
        %vm1110 = vcmp.eq.s32.totalorder %v251, %v1098
        %vm1111 = vcmp.eq.s32.totalorder %v252, %v1094
        %vm1112 = vcmp.eq.s32.totalorder %v252, %v1098
        %vm1113 = vcmp.eq.s32.totalorder %v253, %v1094
        %vm1114 = vcmp.eq.s32.totalorder %v253, %v1098
        %vm1115 = vcmp.eq.s32.totalorder %v254, %v1094
        %vm1116 = vcmp.eq.s32.totalorder %v254, %v1098
        %vm1117 = vcmp.eq.s32.totalorder %v255, %v1094
        %vm1118 = vcmp.eq.s32.totalorder %v255, %v1098
        %vm1119 = vcmp.eq.s32.totalorder %v256, %v1094
        %vm1120 = vcmp.eq.s32.totalorder %v256, %v1098
        %vm1121 = vcmp.eq.s32.totalorder %v257, %v1094
        %vm1122 = vcmp.eq.s32.totalorder %v257, %v1098
        %vm1123 = vcmp.eq.s32.totalorder %v258, %v1094
        %vm1124 = vcmp.eq.s32.totalorder %v258, %v1098
        %vm1125 = vcmp.eq.s32.totalorder %v259, %v1094
        %vm1126 = vcmp.eq.s32.totalorder %v259, %v1098
        %vm1127 = vcmp.eq.s32.totalorder %v260, %v1094
        %vm1128 = vcmp.eq.s32.totalorder %v260, %v1098
        %vm1129 = vcmp.eq.s32.totalorder %v261, %v1094
        %vm1130 = vcmp.eq.s32.totalorder %v261, %v1098
        %v1131 = vsel %vm1099, 1, 0
        %v1132 = vsel %vm1100, 1, 0
        %v1133 = vsel %vm1101, 1, 0
        %v1134 = vsel %vm1102, 1, 0
        %v1135 = vsel %vm1103, 1, 0
        %v1136 = vsel %vm1104, 1, 0
        %v1137 = vsel %vm1105, 1, 0
        %v1138 = vsel %vm1106, 1, 0
        %v1139 = vsel %vm1107, 1, 0
        %v1140 = vsel %vm1108, 1, 0
        %v1141 = vsel %vm1109, 1, 0
        %v1142 = vsel %vm1110, 1, 0
        %v1143 = vsel %vm1111, 1, 0
        %v1144 = vsel %vm1112, 1, 0
        %v1145 = vsel %vm1113, 1, 0
        %v1146 = vsel %vm1114, 1, 0
        %v1147 = vsel %vm1115, 1, 0
        %v1148 = vsel %vm1116, 1, 0
        %v1149 = vsel %vm1117, 1, 0
        %v1150 = vsel %vm1118, 1, 0
        %v1151 = vsel %vm1119, 1, 0
        %v1152 = vsel %vm1120, 1, 0
        %v1153 = vsel %vm1121, 1, 0
        %v1154 = vsel %vm1122, 1, 0
        %v1155 = vsel %vm1123, 1, 0
        %v1156 = vsel %vm1124, 1, 0
        %v1157 = vsel %vm1125, 1, 0
        %v1158 = vsel %vm1126, 1, 0
        %v1159 = vsel %vm1127, 1, 0
        %v1160 = vsel %vm1128, 1, 0
        %v1161 = vsel %vm1129, 1, 0
        %v1162 = vsel %vm1130, 1, 0
        %v1163 = vcvt.s32.f32 %v1131
        %v1164 = vcvt.s32.f32 %v1132
        %v1165 = vcvt.s32.f32 %v1133
        %v1166 = vcvt.s32.f32 %v1134
        %v1167 = vcvt.s32.f32 %v1135
        %v1168 = vcvt.s32.f32 %v1136
        %v1169 = vcvt.s32.f32 %v1137
        %v1170 = vcvt.s32.f32 %v1138
        %v1171 = vcvt.s32.f32 %v1139
        %v1172 = vcvt.s32.f32 %v1140
        %v1173 = vcvt.s32.f32 %v1141
        %v1174 = vcvt.s32.f32 %v1142
        %v1175 = vcvt.s32.f32 %v1143
        %v1176 = vcvt.s32.f32 %v1144
        %v1177 = vcvt.s32.f32 %v1145
        %v1178 = vcvt.s32.f32 %v1146
        %v1179 = vcvt.s32.f32 %v1147
        %v1180 = vcvt.s32.f32 %v1148
        %v1181 = vcvt.s32.f32 %v1149
        %v1182 = vcvt.s32.f32 %v1150
        %v1183 = vcvt.s32.f32 %v1151
        %v1184 = vcvt.s32.f32 %v1152
        %v1185 = vcvt.s32.f32 %v1153
        %v1186 = vcvt.s32.f32 %v1154
        %v1187 = vcvt.s32.f32 %v1155
        %v1188 = vcvt.s32.f32 %v1156
        %v1189 = vcvt.s32.f32 %v1157
        %v1190 = vcvt.s32.f32 %v1158
        %v1191 = vcvt.s32.f32 %v1159
        %v1192 = vcvt.s32.f32 %v1160
        %v1193 = vcvt.s32.f32 %v1161
        %v1194 = vcvt.s32.f32 %v1162
        %v1195 = vadd.f32 %v1057, %v1163
        %v1196 = vadd.f32 %v1058, %v1164
        %v1197 = vadd.f32 %v1059, %v1165
        %v1198 = vadd.f32 %v1060, %v1166
        %v1199 = vadd.f32 %v1061, %v1167
        %v1200 = vadd.f32 %v1062, %v1168
        %v1201 = vadd.f32 %v1063, %v1169
        %v1202 = vadd.f32 %v1064, %v1170
        %v1203 = vadd.f32 %v1065, %v1171
        %v1204 = vadd.f32 %v1066, %v1172
        %v1205 = vadd.f32 %v1067, %v1173
        %v1206 = vadd.f32 %v1068, %v1174
        %v1207 = vadd.f32 %v1069, %v1175
        %v1208 = vadd.f32 %v1070, %v1176
        %v1209 = vadd.f32 %v1071, %v1177
        %v1210 = vadd.f32 %v1072, %v1178
        %v1211 = vadd.f32 %v1073, %v1179
        %v1212 = vadd.f32 %v1074, %v1180
        %v1213 = vadd.f32 %v1075, %v1181
        %v1214 = vadd.f32 %v1076, %v1182
        %v1215 = vadd.f32 %v1077, %v1183
        %v1216 = vadd.f32 %v1078, %v1184
        %v1217 = vadd.f32 %v1079, %v1185
        %v1218 = vadd.f32 %v1080, %v1186
        %v1219 = vadd.f32 %v1081, %v1187
        %v1220 = vadd.f32 %v1082, %v1188
        %v1221 = vadd.f32 %v1083, %v1189
        %v1222 = vadd.f32 %v1084, %v1190
        %v1223 = vadd.f32 %v1085, %v1191
        %v1224 = vadd.f32 %v1086, %v1192
        %v1225 = vadd.f32 %v1087, %v1193
        %v1226 = vadd.f32 %v1088, %v1194
        %s1227 = scalar_lea.vmem %s212, 7 [#allocation2]
        %v1228 = vld [vmem:[%s1227] ss:$8 sm:$0x3]
        %v1229 = vlaneseq
        %v1230 = vshrl.u32 %v1229, 7
        %v1231 = vsub.s32 0, %v1230
        %v1232 = vrot.slane %v1228, %v1231
        %v1233 = vlaneseq
        %v1234 = vshrl.u32 %v1233, 7
        %v1235 = vsub.s32 1, %v1234
        %v1236 = vrot.slane %v1228, %v1235
        %vm1237 = vcmp.eq.s32.totalorder %v246, %v1232
        %vm1238 = vcmp.eq.s32.totalorder %v246, %v1236
        %vm1239 = vcmp.eq.s32.totalorder %v247, %v1232
        %vm1240 = vcmp.eq.s32.totalorder %v247, %v1236
        %vm1241 = vcmp.eq.s32.totalorder %v248, %v1232
        %vm1242 = vcmp.eq.s32.totalorder %v248, %v1236
        %vm1243 = vcmp.eq.s32.totalorder %v249, %v1232
        %vm1244 = vcmp.eq.s32.totalorder %v249, %v1236
        %vm1245 = vcmp.eq.s32.totalorder %v250, %v1232
        %vm1246 = vcmp.eq.s32.totalorder %v250, %v1236
        %vm1247 = vcmp.eq.s32.totalorder %v251, %v1232
        %vm1248 = vcmp.eq.s32.totalorder %v251, %v1236
        %vm1249 = vcmp.eq.s32.totalorder %v252, %v1232
        %vm1250 = vcmp.eq.s32.totalorder %v252, %v1236
        %vm1251 = vcmp.eq.s32.totalorder %v253, %v1232
        %vm1252 = vcmp.eq.s32.totalorder %v253, %v1236
        %vm1253 = vcmp.eq.s32.totalorder %v254, %v1232
        %vm1254 = vcmp.eq.s32.totalorder %v254, %v1236
        %vm1255 = vcmp.eq.s32.totalorder %v255, %v1232
        %vm1256 = vcmp.eq.s32.totalorder %v255, %v1236
        %vm1257 = vcmp.eq.s32.totalorder %v256, %v1232
        %vm1258 = vcmp.eq.s32.totalorder %v256, %v1236
        %vm1259 = vcmp.eq.s32.totalorder %v257, %v1232
        %vm1260 = vcmp.eq.s32.totalorder %v257, %v1236
        %vm1261 = vcmp.eq.s32.totalorder %v258, %v1232
        %vm1262 = vcmp.eq.s32.totalorder %v258, %v1236
        %vm1263 = vcmp.eq.s32.totalorder %v259, %v1232
        %vm1264 = vcmp.eq.s32.totalorder %v259, %v1236
        %vm1265 = vcmp.eq.s32.totalorder %v260, %v1232
        %vm1266 = vcmp.eq.s32.totalorder %v260, %v1236
        %vm1267 = vcmp.eq.s32.totalorder %v261, %v1232
        %vm1268 = vcmp.eq.s32.totalorder %v261, %v1236
        %v1269 = vsel %vm1237, 1, 0
        %v1270 = vsel %vm1238, 1, 0
        %v1271 = vsel %vm1239, 1, 0
        %v1272 = vsel %vm1240, 1, 0
        %v1273 = vsel %vm1241, 1, 0
        %v1274 = vsel %vm1242, 1, 0
        %v1275 = vsel %vm1243, 1, 0
        %v1276 = vsel %vm1244, 1, 0
        %v1277 = vsel %vm1245, 1, 0
        %v1278 = vsel %vm1246, 1, 0
        %v1279 = vsel %vm1247, 1, 0
        %v1280 = vsel %vm1248, 1, 0
        %v1281 = vsel %vm1249, 1, 0
        %v1282 = vsel %vm1250, 1, 0
        %v1283 = vsel %vm1251, 1, 0
        %v1284 = vsel %vm1252, 1, 0
        %v1285 = vsel %vm1253, 1, 0
        %v1286 = vsel %vm1254, 1, 0
        %v1287 = vsel %vm1255, 1, 0
        %v1288 = vsel %vm1256, 1, 0
        %v1289 = vsel %vm1257, 1, 0
        %v1290 = vsel %vm1258, 1, 0
        %v1291 = vsel %vm1259, 1, 0
        %v1292 = vsel %vm1260, 1, 0
        %v1293 = vsel %vm1261, 1, 0
        %v1294 = vsel %vm1262, 1, 0
        %v1295 = vsel %vm1263, 1, 0
        %v1296 = vsel %vm1264, 1, 0
        %v1297 = vsel %vm1265, 1, 0
        %v1298 = vsel %vm1266, 1, 0
        %v1299 = vsel %vm1267, 1, 0
        %v1300 = vsel %vm1268, 1, 0
        %v1301 = vcvt.s32.f32 %v1269
        %v1302 = vcvt.s32.f32 %v1270
        %v1303 = vcvt.s32.f32 %v1271
        %v1304 = vcvt.s32.f32 %v1272
        %v1305 = vcvt.s32.f32 %v1273
        %v1306 = vcvt.s32.f32 %v1274
        %v1307 = vcvt.s32.f32 %v1275
        %v1308 = vcvt.s32.f32 %v1276
        %v1309 = vcvt.s32.f32 %v1277
        %v1310 = vcvt.s32.f32 %v1278
        %v1311 = vcvt.s32.f32 %v1279
        %v1312 = vcvt.s32.f32 %v1280
        %v1313 = vcvt.s32.f32 %v1281
        %v1314 = vcvt.s32.f32 %v1282
        %v1315 = vcvt.s32.f32 %v1283
        %v1316 = vcvt.s32.f32 %v1284
        %v1317 = vcvt.s32.f32 %v1285
        %v1318 = vcvt.s32.f32 %v1286
        %v1319 = vcvt.s32.f32 %v1287
        %v1320 = vcvt.s32.f32 %v1288
        %v1321 = vcvt.s32.f32 %v1289
        %v1322 = vcvt.s32.f32 %v1290
        %v1323 = vcvt.s32.f32 %v1291
        %v1324 = vcvt.s32.f32 %v1292
        %v1325 = vcvt.s32.f32 %v1293
        %v1326 = vcvt.s32.f32 %v1294
        %v1327 = vcvt.s32.f32 %v1295
        %v1328 = vcvt.s32.f32 %v1296
        %v1329 = vcvt.s32.f32 %v1297
        %v1330 = vcvt.s32.f32 %v1298
        %v1331 = vcvt.s32.f32 %v1299
        %v1332 = vcvt.s32.f32 %v1300
        %v1333 = vadd.f32 %v1195, %v1301
        %v1334 = vadd.f32 %v1196, %v1302
        %v1335 = vadd.f32 %v1197, %v1303
        %v1336 = vadd.f32 %v1198, %v1304
        %v1337 = vadd.f32 %v1199, %v1305
        %v1338 = vadd.f32 %v1200, %v1306
        %v1339 = vadd.f32 %v1201, %v1307
        %v1340 = vadd.f32 %v1202, %v1308
        %v1341 = vadd.f32 %v1203, %v1309
        %v1342 = vadd.f32 %v1204, %v1310
        %v1343 = vadd.f32 %v1205, %v1311
        %v1344 = vadd.f32 %v1206, %v1312
        %v1345 = vadd.f32 %v1207, %v1313
        %v1346 = vadd.f32 %v1208, %v1314
        %v1347 = vadd.f32 %v1209, %v1315
        %v1348 = vadd.f32 %v1210, %v1316
        %v1349 = vadd.f32 %v1211, %v1317
        %v1350 = vadd.f32 %v1212, %v1318
        %v1351 = vadd.f32 %v1213, %v1319
        %v1352 = vadd.f32 %v1214, %v1320
        %v1353 = vadd.f32 %v1215, %v1321
        %v1354 = vadd.f32 %v1216, %v1322
        %v1355 = vadd.f32 %v1217, %v1323
        %v1356 = vadd.f32 %v1218, %v1324
        %v1357 = vadd.f32 %v1219, %v1325
        %v1358 = vadd.f32 %v1220, %v1326
        %v1359 = vadd.f32 %v1221, %v1327
        %v1360 = vadd.f32 %v1222, %v1328
        %v1361 = vadd.f32 %v1223, %v1329
        %v1362 = vadd.f32 %v1224, %v1330
        %v1363 = vadd.f32 %v1225, %v1331
        %v1364 = vadd.f32 %v1226, %v1332
        %s1365 = scalar_lea.vmem %s212, 16 [#allocation2]
        %v1366 = vld [vmem:[%s1365] ss:$8 sm:$0x3]
        %v1367 = vlaneseq
        %v1368 = vshrl.u32 %v1367, 7
        %v1369 = vsub.s32 0, %v1368
        %v1370 = vrot.slane %v1366, %v1369
        %v1371 = vlaneseq
        %v1372 = vshrl.u32 %v1371, 7
        %v1373 = vsub.s32 1, %v1372
        %v1374 = vrot.slane %v1366, %v1373
        %vm1375 = vcmp.eq.s32.totalorder %v246, %v1370
        %vm1376 = vcmp.eq.s32.totalorder %v246, %v1374
        %vm1377 = vcmp.eq.s32.totalorder %v247, %v1370
        %vm1378 = vcmp.eq.s32.totalorder %v247, %v1374
        %vm1379 = vcmp.eq.s32.totalorder %v248, %v1370
        %vm1380 = vcmp.eq.s32.totalorder %v248, %v1374
        %vm1381 = vcmp.eq.s32.totalorder %v249, %v1370
        %vm1382 = vcmp.eq.s32.totalorder %v249, %v1374
        %vm1383 = vcmp.eq.s32.totalorder %v250, %v1370
        %vm1384 = vcmp.eq.s32.totalorder %v250, %v1374
        %vm1385 = vcmp.eq.s32.totalorder %v251, %v1370
        %vm1386 = vcmp.eq.s32.totalorder %v251, %v1374
        %vm1387 = vcmp.eq.s32.totalorder %v252, %v1370
        %vm1388 = vcmp.eq.s32.totalorder %v252, %v1374
        %vm1389 = vcmp.eq.s32.totalorder %v253, %v1370
        %vm1390 = vcmp.eq.s32.totalorder %v253, %v1374
        %vm1391 = vcmp.eq.s32.totalorder %v254, %v1370
        %vm1392 = vcmp.eq.s32.totalorder %v254, %v1374
        %vm1393 = vcmp.eq.s32.totalorder %v255, %v1370
        %vm1394 = vcmp.eq.s32.totalorder %v255, %v1374
        %vm1395 = vcmp.eq.s32.totalorder %v256, %v1370
        %vm1396 = vcmp.eq.s32.totalorder %v256, %v1374
        %vm1397 = vcmp.eq.s32.totalorder %v257, %v1370
        %vm1398 = vcmp.eq.s32.totalorder %v257, %v1374
        %vm1399 = vcmp.eq.s32.totalorder %v258, %v1370
        %vm1400 = vcmp.eq.s32.totalorder %v258, %v1374
        %vm1401 = vcmp.eq.s32.totalorder %v259, %v1370
        %vm1402 = vcmp.eq.s32.totalorder %v259, %v1374
        %vm1403 = vcmp.eq.s32.totalorder %v260, %v1370
        %vm1404 = vcmp.eq.s32.totalorder %v260, %v1374
        %vm1405 = vcmp.eq.s32.totalorder %v261, %v1370
        %vm1406 = vcmp.eq.s32.totalorder %v261, %v1374
        %v1407 = vsel %vm1375, 1, 0
        %v1408 = vsel %vm1376, 1, 0
        %v1409 = vsel %vm1377, 1, 0
        %v1410 = vsel %vm1378, 1, 0
        %v1411 = vsel %vm1379, 1, 0
        %v1412 = vsel %vm1380, 1, 0
        %v1413 = vsel %vm1381, 1, 0
        %v1414 = vsel %vm1382, 1, 0
        %v1415 = vsel %vm1383, 1, 0
        %v1416 = vsel %vm1384, 1, 0
        %v1417 = vsel %vm1385, 1, 0
        %v1418 = vsel %vm1386, 1, 0
        %v1419 = vsel %vm1387, 1, 0
        %v1420 = vsel %vm1388, 1, 0
        %v1421 = vsel %vm1389, 1, 0
        %v1422 = vsel %vm1390, 1, 0
        %v1423 = vsel %vm1391, 1, 0
        %v1424 = vsel %vm1392, 1, 0
        %v1425 = vsel %vm1393, 1, 0
        %v1426 = vsel %vm1394, 1, 0
        %v1427 = vsel %vm1395, 1, 0
        %v1428 = vsel %vm1396, 1, 0
        %v1429 = vsel %vm1397, 1, 0
        %v1430 = vsel %vm1398, 1, 0
        %v1431 = vsel %vm1399, 1, 0
        %v1432 = vsel %vm1400, 1, 0
        %v1433 = vsel %vm1401, 1, 0
        %v1434 = vsel %vm1402, 1, 0
        %v1435 = vsel %vm1403, 1, 0
        %v1436 = vsel %vm1404, 1, 0
        %v1437 = vsel %vm1405, 1, 0
        %v1438 = vsel %vm1406, 1, 0
        %v1439 = vcvt.s32.f32 %v1407
        %v1440 = vcvt.s32.f32 %v1408
        %v1441 = vcvt.s32.f32 %v1409
        %v1442 = vcvt.s32.f32 %v1410
        %v1443 = vcvt.s32.f32 %v1411
        %v1444 = vcvt.s32.f32 %v1412
        %v1445 = vcvt.s32.f32 %v1413
        %v1446 = vcvt.s32.f32 %v1414
        %v1447 = vcvt.s32.f32 %v1415
        %v1448 = vcvt.s32.f32 %v1416
        %v1449 = vcvt.s32.f32 %v1417
        %v1450 = vcvt.s32.f32 %v1418
        %v1451 = vcvt.s32.f32 %v1419
        %v1452 = vcvt.s32.f32 %v1420
        %v1453 = vcvt.s32.f32 %v1421
        %v1454 = vcvt.s32.f32 %v1422
        %v1455 = vcvt.s32.f32 %v1423
        %v1456 = vcvt.s32.f32 %v1424
        %v1457 = vcvt.s32.f32 %v1425
        %v1458 = vcvt.s32.f32 %v1426
        %v1459 = vcvt.s32.f32 %v1427
        %v1460 = vcvt.s32.f32 %v1428
        %v1461 = vcvt.s32.f32 %v1429
        %v1462 = vcvt.s32.f32 %v1430
        %v1463 = vcvt.s32.f32 %v1431
        %v1464 = vcvt.s32.f32 %v1432
        %v1465 = vcvt.s32.f32 %v1433
        %v1466 = vcvt.s32.f32 %v1434
        %v1467 = vcvt.s32.f32 %v1435
        %v1468 = vcvt.s32.f32 %v1436
        %v1469 = vcvt.s32.f32 %v1437
        %v1470 = vcvt.s32.f32 %v1438
        %v1471 = vadd.f32 %v1333, %v1439
        %v1472 = vadd.f32 %v1334, %v1440
        %v1473 = vadd.f32 %v1335, %v1441
        %v1474 = vadd.f32 %v1336, %v1442
        %v1475 = vadd.f32 %v1337, %v1443
        %v1476 = vadd.f32 %v1338, %v1444
        %v1477 = vadd.f32 %v1339, %v1445
        %v1478 = vadd.f32 %v1340, %v1446
        %v1479 = vadd.f32 %v1341, %v1447
        %v1480 = vadd.f32 %v1342, %v1448
        %v1481 = vadd.f32 %v1343, %v1449
        %v1482 = vadd.f32 %v1344, %v1450
        %v1483 = vadd.f32 %v1345, %v1451
        %v1484 = vadd.f32 %v1346, %v1452
        %v1485 = vadd.f32 %v1347, %v1453
        %v1486 = vadd.f32 %v1348, %v1454
        %v1487 = vadd.f32 %v1349, %v1455
        %v1488 = vadd.f32 %v1350, %v1456
        %v1489 = vadd.f32 %v1351, %v1457
        %v1490 = vadd.f32 %v1352, %v1458
        %v1491 = vadd.f32 %v1353, %v1459
        %v1492 = vadd.f32 %v1354, %v1460
        %v1493 = vadd.f32 %v1355, %v1461
        %v1494 = vadd.f32 %v1356, %v1462
        %v1495 = vadd.f32 %v1357, %v1463
        %v1496 = vadd.f32 %v1358, %v1464
        %v1497 = vadd.f32 %v1359, %v1465
        %v1498 = vadd.f32 %v1360, %v1466
        %v1499 = vadd.f32 %v1361, %v1467
        %v1500 = vadd.f32 %v1362, %v1468
        %v1501 = vadd.f32 %v1363, %v1469
        %v1502 = vadd.f32 %v1364, %v1470
        %s1503 = scalar_lea.vmem %s212, 17 [#allocation2]
        %v1504 = vld [vmem:[%s1503] ss:$8 sm:$0x3]
        %v1505 = vlaneseq
        %v1506 = vshrl.u32 %v1505, 7
        %v1507 = vsub.s32 0, %v1506
        %v1508 = vrot.slane %v1504, %v1507
        %v1509 = vlaneseq
        %v1510 = vshrl.u32 %v1509, 7
        %v1511 = vsub.s32 1, %v1510
        %v1512 = vrot.slane %v1504, %v1511
        %vm1513 = vcmp.eq.s32.totalorder %v246, %v1508
        %vm1514 = vcmp.eq.s32.totalorder %v246, %v1512
        %vm1515 = vcmp.eq.s32.totalorder %v247, %v1508
        %vm1516 = vcmp.eq.s32.totalorder %v247, %v1512
        %vm1517 = vcmp.eq.s32.totalorder %v248, %v1508
        %vm1518 = vcmp.eq.s32.totalorder %v248, %v1512
        %vm1519 = vcmp.eq.s32.totalorder %v249, %v1508
        %vm1520 = vcmp.eq.s32.totalorder %v249, %v1512
        %vm1521 = vcmp.eq.s32.totalorder %v250, %v1508
        %vm1522 = vcmp.eq.s32.totalorder %v250, %v1512
        %vm1523 = vcmp.eq.s32.totalorder %v251, %v1508
        %vm1524 = vcmp.eq.s32.totalorder %v251, %v1512
        %vm1525 = vcmp.eq.s32.totalorder %v252, %v1508
        %vm1526 = vcmp.eq.s32.totalorder %v252, %v1512
        %vm1527 = vcmp.eq.s32.totalorder %v253, %v1508
        %vm1528 = vcmp.eq.s32.totalorder %v253, %v1512
        %vm1529 = vcmp.eq.s32.totalorder %v254, %v1508
        %vm1530 = vcmp.eq.s32.totalorder %v254, %v1512
        %vm1531 = vcmp.eq.s32.totalorder %v255, %v1508
        %vm1532 = vcmp.eq.s32.totalorder %v255, %v1512
        %vm1533 = vcmp.eq.s32.totalorder %v256, %v1508
        %vm1534 = vcmp.eq.s32.totalorder %v256, %v1512
        %vm1535 = vcmp.eq.s32.totalorder %v257, %v1508
        %vm1536 = vcmp.eq.s32.totalorder %v257, %v1512
        %vm1537 = vcmp.eq.s32.totalorder %v258, %v1508
        %vm1538 = vcmp.eq.s32.totalorder %v258, %v1512
        %vm1539 = vcmp.eq.s32.totalorder %v259, %v1508
        %vm1540 = vcmp.eq.s32.totalorder %v259, %v1512
        %vm1541 = vcmp.eq.s32.totalorder %v260, %v1508
        %vm1542 = vcmp.eq.s32.totalorder %v260, %v1512
        %vm1543 = vcmp.eq.s32.totalorder %v261, %v1508
        %vm1544 = vcmp.eq.s32.totalorder %v261, %v1512
        %v1545 = vsel %vm1513, 1, 0
        %v1546 = vsel %vm1514, 1, 0
        %v1547 = vsel %vm1515, 1, 0
        %v1548 = vsel %vm1516, 1, 0
        %v1549 = vsel %vm1517, 1, 0
        %v1550 = vsel %vm1518, 1, 0
        %v1551 = vsel %vm1519, 1, 0
        %v1552 = vsel %vm1520, 1, 0
        %v1553 = vsel %vm1521, 1, 0
        %v1554 = vsel %vm1522, 1, 0
        %v1555 = vsel %vm1523, 1, 0
        %v1556 = vsel %vm1524, 1, 0
        %v1557 = vsel %vm1525, 1, 0
        %v1558 = vsel %vm1526, 1, 0
        %v1559 = vsel %vm1527, 1, 0
        %v1560 = vsel %vm1528, 1, 0
        %v1561 = vsel %vm1529, 1, 0
        %v1562 = vsel %vm1530, 1, 0
        %v1563 = vsel %vm1531, 1, 0
        %v1564 = vsel %vm1532, 1, 0
        %v1565 = vsel %vm1533, 1, 0
        %v1566 = vsel %vm1534, 1, 0
        %v1567 = vsel %vm1535, 1, 0
        %v1568 = vsel %vm1536, 1, 0
        %v1569 = vsel %vm1537, 1, 0
        %v1570 = vsel %vm1538, 1, 0
        %v1571 = vsel %vm1539, 1, 0
        %v1572 = vsel %vm1540, 1, 0
        %v1573 = vsel %vm1541, 1, 0
        %v1574 = vsel %vm1542, 1, 0
        %v1575 = vsel %vm1543, 1, 0
        %v1576 = vsel %vm1544, 1, 0
        %v1577 = vcvt.s32.f32 %v1545
        %v1578 = vcvt.s32.f32 %v1546
        %v1579 = vcvt.s32.f32 %v1547
        %v1580 = vcvt.s32.f32 %v1548
        %v1581 = vcvt.s32.f32 %v1549
        %v1582 = vcvt.s32.f32 %v1550
        %v1583 = vcvt.s32.f32 %v1551
        %v1584 = vcvt.s32.f32 %v1552
        %v1585 = vcvt.s32.f32 %v1553
        %v1586 = vcvt.s32.f32 %v1554
        %v1587 = vcvt.s32.f32 %v1555
        %v1588 = vcvt.s32.f32 %v1556
        %v1589 = vcvt.s32.f32 %v1557
        %v1590 = vcvt.s32.f32 %v1558
        %v1591 = vcvt.s32.f32 %v1559
        %v1592 = vcvt.s32.f32 %v1560
        %v1593 = vcvt.s32.f32 %v1561
        %v1594 = vcvt.s32.f32 %v1562
        %v1595 = vcvt.s32.f32 %v1563
        %v1596 = vcvt.s32.f32 %v1564
        %v1597 = vcvt.s32.f32 %v1565
        %v1598 = vcvt.s32.f32 %v1566
        %v1599 = vcvt.s32.f32 %v1567
        %v1600 = vcvt.s32.f32 %v1568
        %v1601 = vcvt.s32.f32 %v1569
        %v1602 = vcvt.s32.f32 %v1570
        %v1603 = vcvt.s32.f32 %v1571
        %v1604 = vcvt.s32.f32 %v1572
        %v1605 = vcvt.s32.f32 %v1573
        %v1606 = vcvt.s32.f32 %v1574
        %v1607 = vcvt.s32.f32 %v1575
        %v1608 = vcvt.s32.f32 %v1576
        %v1609 = vadd.f32 %v1471, %v1577
        %v1610 = vadd.f32 %v1472, %v1578
        %v1611 = vadd.f32 %v1473, %v1579
        %v1612 = vadd.f32 %v1474, %v1580
        %v1613 = vadd.f32 %v1475, %v1581
        %v1614 = vadd.f32 %v1476, %v1582
        %v1615 = vadd.f32 %v1477, %v1583
        %v1616 = vadd.f32 %v1478, %v1584
        %v1617 = vadd.f32 %v1479, %v1585
        %v1618 = vadd.f32 %v1480, %v1586
        %v1619 = vadd.f32 %v1481, %v1587
        %v1620 = vadd.f32 %v1482, %v1588
        %v1621 = vadd.f32 %v1483, %v1589
        %v1622 = vadd.f32 %v1484, %v1590
        %v1623 = vadd.f32 %v1485, %v1591
        %v1624 = vadd.f32 %v1486, %v1592
        %v1625 = vadd.f32 %v1487, %v1593
        %v1626 = vadd.f32 %v1488, %v1594
        %v1627 = vadd.f32 %v1489, %v1595
        %v1628 = vadd.f32 %v1490, %v1596
        %v1629 = vadd.f32 %v1491, %v1597
        %v1630 = vadd.f32 %v1492, %v1598
        %v1631 = vadd.f32 %v1493, %v1599
        %v1632 = vadd.f32 %v1494, %v1600
        %v1633 = vadd.f32 %v1495, %v1601
        %v1634 = vadd.f32 %v1496, %v1602
        %v1635 = vadd.f32 %v1497, %v1603
        %v1636 = vadd.f32 %v1498, %v1604
        %v1637 = vadd.f32 %v1499, %v1605
        %v1638 = vadd.f32 %v1500, %v1606
        %v1639 = vadd.f32 %v1501, %v1607
        %v1640 = vadd.f32 %v1502, %v1608
        %s1641 = scalar_lea.vmem %s212, 18 [#allocation2]
        %v1642 = vld [vmem:[%s1641] ss:$8 sm:$0x3]
        %v1643 = vlaneseq
        %v1644 = vshrl.u32 %v1643, 7
        %v1645 = vsub.s32 0, %v1644
        %v1646 = vrot.slane %v1642, %v1645
        %v1647 = vlaneseq
        %v1648 = vshrl.u32 %v1647, 7
        %v1649 = vsub.s32 1, %v1648
        %v1650 = vrot.slane %v1642, %v1649
        %vm1651 = vcmp.eq.s32.totalorder %v246, %v1646
        %vm1652 = vcmp.eq.s32.totalorder %v246, %v1650
        %vm1653 = vcmp.eq.s32.totalorder %v247, %v1646
        %vm1654 = vcmp.eq.s32.totalorder %v247, %v1650
        %vm1655 = vcmp.eq.s32.totalorder %v248, %v1646
        %vm1656 = vcmp.eq.s32.totalorder %v248, %v1650
        %vm1657 = vcmp.eq.s32.totalorder %v249, %v1646
        %vm1658 = vcmp.eq.s32.totalorder %v249, %v1650
        %vm1659 = vcmp.eq.s32.totalorder %v250, %v1646
        %vm1660 = vcmp.eq.s32.totalorder %v250, %v1650
        %vm1661 = vcmp.eq.s32.totalorder %v251, %v1646
        %vm1662 = vcmp.eq.s32.totalorder %v251, %v1650
        %vm1663 = vcmp.eq.s32.totalorder %v252, %v1646
        %vm1664 = vcmp.eq.s32.totalorder %v252, %v1650
        %vm1665 = vcmp.eq.s32.totalorder %v253, %v1646
        %vm1666 = vcmp.eq.s32.totalorder %v253, %v1650
        %vm1667 = vcmp.eq.s32.totalorder %v254, %v1646
        %vm1668 = vcmp.eq.s32.totalorder %v254, %v1650
        %vm1669 = vcmp.eq.s32.totalorder %v255, %v1646
        %vm1670 = vcmp.eq.s32.totalorder %v255, %v1650
        %vm1671 = vcmp.eq.s32.totalorder %v256, %v1646
        %vm1672 = vcmp.eq.s32.totalorder %v256, %v1650
        %vm1673 = vcmp.eq.s32.totalorder %v257, %v1646
        %vm1674 = vcmp.eq.s32.totalorder %v257, %v1650
        %vm1675 = vcmp.eq.s32.totalorder %v258, %v1646
        %vm1676 = vcmp.eq.s32.totalorder %v258, %v1650
        %vm1677 = vcmp.eq.s32.totalorder %v259, %v1646
        %vm1678 = vcmp.eq.s32.totalorder %v259, %v1650
        %vm1679 = vcmp.eq.s32.totalorder %v260, %v1646
        %vm1680 = vcmp.eq.s32.totalorder %v260, %v1650
        %vm1681 = vcmp.eq.s32.totalorder %v261, %v1646
        %vm1682 = vcmp.eq.s32.totalorder %v261, %v1650
        %v1683 = vsel %vm1651, 1, 0
        %v1684 = vsel %vm1652, 1, 0
        %v1685 = vsel %vm1653, 1, 0
        %v1686 = vsel %vm1654, 1, 0
        %v1687 = vsel %vm1655, 1, 0
        %v1688 = vsel %vm1656, 1, 0
        %v1689 = vsel %vm1657, 1, 0
        %v1690 = vsel %vm1658, 1, 0
        %v1691 = vsel %vm1659, 1, 0
        %v1692 = vsel %vm1660, 1, 0
        %v1693 = vsel %vm1661, 1, 0
        %v1694 = vsel %vm1662, 1, 0
        %v1695 = vsel %vm1663, 1, 0
        %v1696 = vsel %vm1664, 1, 0
        %v1697 = vsel %vm1665, 1, 0
        %v1698 = vsel %vm1666, 1, 0
        %v1699 = vsel %vm1667, 1, 0
        %v1700 = vsel %vm1668, 1, 0
        %v1701 = vsel %vm1669, 1, 0
        %v1702 = vsel %vm1670, 1, 0
        %v1703 = vsel %vm1671, 1, 0
        %v1704 = vsel %vm1672, 1, 0
        %v1705 = vsel %vm1673, 1, 0
        %v1706 = vsel %vm1674, 1, 0
        %v1707 = vsel %vm1675, 1, 0
        %v1708 = vsel %vm1676, 1, 0
        %v1709 = vsel %vm1677, 1, 0
        %v1710 = vsel %vm1678, 1, 0
        %v1711 = vsel %vm1679, 1, 0
        %v1712 = vsel %vm1680, 1, 0
        %v1713 = vsel %vm1681, 1, 0
        %v1714 = vsel %vm1682, 1, 0
        %v1715 = vcvt.s32.f32 %v1683
        %v1716 = vcvt.s32.f32 %v1684
        %v1717 = vcvt.s32.f32 %v1685
        %v1718 = vcvt.s32.f32 %v1686
        %v1719 = vcvt.s32.f32 %v1687
        %v1720 = vcvt.s32.f32 %v1688
        %v1721 = vcvt.s32.f32 %v1689
        %v1722 = vcvt.s32.f32 %v1690
        %v1723 = vcvt.s32.f32 %v1691
        %v1724 = vcvt.s32.f32 %v1692
        %v1725 = vcvt.s32.f32 %v1693
        %v1726 = vcvt.s32.f32 %v1694
        %v1727 = vcvt.s32.f32 %v1695
        %v1728 = vcvt.s32.f32 %v1696
        %v1729 = vcvt.s32.f32 %v1697
        %v1730 = vcvt.s32.f32 %v1698
        %v1731 = vcvt.s32.f32 %v1699
        %v1732 = vcvt.s32.f32 %v1700
        %v1733 = vcvt.s32.f32 %v1701
        %v1734 = vcvt.s32.f32 %v1702
        %v1735 = vcvt.s32.f32 %v1703
        %v1736 = vcvt.s32.f32 %v1704
        %v1737 = vcvt.s32.f32 %v1705
        %v1738 = vcvt.s32.f32 %v1706
        %v1739 = vcvt.s32.f32 %v1707
        %v1740 = vcvt.s32.f32 %v1708
        %v1741 = vcvt.s32.f32 %v1709
        %v1742 = vcvt.s32.f32 %v1710
        %v1743 = vcvt.s32.f32 %v1711
        %v1744 = vcvt.s32.f32 %v1712
        %v1745 = vcvt.s32.f32 %v1713
        %v1746 = vcvt.s32.f32 %v1714
        %v1747 = vadd.f32 %v1609, %v1715
        %v1748 = vadd.f32 %v1610, %v1716
        %v1749 = vadd.f32 %v1611, %v1717
        %v1750 = vadd.f32 %v1612, %v1718
        %v1751 = vadd.f32 %v1613, %v1719
        %v1752 = vadd.f32 %v1614, %v1720
        %v1753 = vadd.f32 %v1615, %v1721
        %v1754 = vadd.f32 %v1616, %v1722
        %v1755 = vadd.f32 %v1617, %v1723
        %v1756 = vadd.f32 %v1618, %v1724
        %v1757 = vadd.f32 %v1619, %v1725
        %v1758 = vadd.f32 %v1620, %v1726
        %v1759 = vadd.f32 %v1621, %v1727
        %v1760 = vadd.f32 %v1622, %v1728
        %v1761 = vadd.f32 %v1623, %v1729
        %v1762 = vadd.f32 %v1624, %v1730
        %v1763 = vadd.f32 %v1625, %v1731
        %v1764 = vadd.f32 %v1626, %v1732
        %v1765 = vadd.f32 %v1627, %v1733
        %v1766 = vadd.f32 %v1628, %v1734
        %v1767 = vadd.f32 %v1629, %v1735
        %v1768 = vadd.f32 %v1630, %v1736
        %v1769 = vadd.f32 %v1631, %v1737
        %v1770 = vadd.f32 %v1632, %v1738
        %v1771 = vadd.f32 %v1633, %v1739
        %v1772 = vadd.f32 %v1634, %v1740
        %v1773 = vadd.f32 %v1635, %v1741
        %v1774 = vadd.f32 %v1636, %v1742
        %v1775 = vadd.f32 %v1637, %v1743
        %v1776 = vadd.f32 %v1638, %v1744
        %v1777 = vadd.f32 %v1639, %v1745
        %v1778 = vadd.f32 %v1640, %v1746
        %s1779 = scalar_lea.vmem %s212, 19 [#allocation2]
        %v1780 = vld [vmem:[%s1779] ss:$8 sm:$0x3]
        %v1781 = vlaneseq
        %v1782 = vshrl.u32 %v1781, 7
        %v1783 = vsub.s32 0, %v1782
        %v1784 = vrot.slane %v1780, %v1783
        %v1785 = vlaneseq
        %v1786 = vshrl.u32 %v1785, 7
        %v1787 = vsub.s32 1, %v1786
        %v1788 = vrot.slane %v1780, %v1787
        %vm1789 = vcmp.eq.s32.totalorder %v246, %v1784
        %vm1790 = vcmp.eq.s32.totalorder %v246, %v1788
        %vm1791 = vcmp.eq.s32.totalorder %v247, %v1784
        %vm1792 = vcmp.eq.s32.totalorder %v247, %v1788
        %vm1793 = vcmp.eq.s32.totalorder %v248, %v1784
        %vm1794 = vcmp.eq.s32.totalorder %v248, %v1788
        %vm1795 = vcmp.eq.s32.totalorder %v249, %v1784
        %vm1796 = vcmp.eq.s32.totalorder %v249, %v1788
        %vm1797 = vcmp.eq.s32.totalorder %v250, %v1784
        %vm1798 = vcmp.eq.s32.totalorder %v250, %v1788
        %vm1799 = vcmp.eq.s32.totalorder %v251, %v1784
        %vm1800 = vcmp.eq.s32.totalorder %v251, %v1788
        %vm1801 = vcmp.eq.s32.totalorder %v252, %v1784
        %vm1802 = vcmp.eq.s32.totalorder %v252, %v1788
        %vm1803 = vcmp.eq.s32.totalorder %v253, %v1784
        %vm1804 = vcmp.eq.s32.totalorder %v253, %v1788
        %vm1805 = vcmp.eq.s32.totalorder %v254, %v1784
        %vm1806 = vcmp.eq.s32.totalorder %v254, %v1788
        %vm1807 = vcmp.eq.s32.totalorder %v255, %v1784
        %vm1808 = vcmp.eq.s32.totalorder %v255, %v1788
        %vm1809 = vcmp.eq.s32.totalorder %v256, %v1784
        %vm1810 = vcmp.eq.s32.totalorder %v256, %v1788
        %vm1811 = vcmp.eq.s32.totalorder %v257, %v1784
        %vm1812 = vcmp.eq.s32.totalorder %v257, %v1788
        %vm1813 = vcmp.eq.s32.totalorder %v258, %v1784
        %vm1814 = vcmp.eq.s32.totalorder %v258, %v1788
        %vm1815 = vcmp.eq.s32.totalorder %v259, %v1784
        %vm1816 = vcmp.eq.s32.totalorder %v259, %v1788
        %vm1817 = vcmp.eq.s32.totalorder %v260, %v1784
        %vm1818 = vcmp.eq.s32.totalorder %v260, %v1788
        %vm1819 = vcmp.eq.s32.totalorder %v261, %v1784
        %vm1820 = vcmp.eq.s32.totalorder %v261, %v1788
        %v1821 = vsel %vm1789, 1, 0
        %v1822 = vsel %vm1790, 1, 0
        %v1823 = vsel %vm1791, 1, 0
        %v1824 = vsel %vm1792, 1, 0
        %v1825 = vsel %vm1793, 1, 0
        %v1826 = vsel %vm1794, 1, 0
        %v1827 = vsel %vm1795, 1, 0
        %v1828 = vsel %vm1796, 1, 0
        %v1829 = vsel %vm1797, 1, 0
        %v1830 = vsel %vm1798, 1, 0
        %v1831 = vsel %vm1799, 1, 0
        %v1832 = vsel %vm1800, 1, 0
        %v1833 = vsel %vm1801, 1, 0
        %v1834 = vsel %vm1802, 1, 0
        %v1835 = vsel %vm1803, 1, 0
        %v1836 = vsel %vm1804, 1, 0
        %v1837 = vsel %vm1805, 1, 0
        %v1838 = vsel %vm1806, 1, 0
        %v1839 = vsel %vm1807, 1, 0
        %v1840 = vsel %vm1808, 1, 0
        %v1841 = vsel %vm1809, 1, 0
        %v1842 = vsel %vm1810, 1, 0
        %v1843 = vsel %vm1811, 1, 0
        %v1844 = vsel %vm1812, 1, 0
        %v1845 = vsel %vm1813, 1, 0
        %v1846 = vsel %vm1814, 1, 0
        %v1847 = vsel %vm1815, 1, 0
        %v1848 = vsel %vm1816, 1, 0
        %v1849 = vsel %vm1817, 1, 0
        %v1850 = vsel %vm1818, 1, 0
        %v1851 = vsel %vm1819, 1, 0
        %v1852 = vsel %vm1820, 1, 0
        %v1853 = vcvt.s32.f32 %v1821
        %v1854 = vcvt.s32.f32 %v1822
        %v1855 = vcvt.s32.f32 %v1823
        %v1856 = vcvt.s32.f32 %v1824
        %v1857 = vcvt.s32.f32 %v1825
        %v1858 = vcvt.s32.f32 %v1826
        %v1859 = vcvt.s32.f32 %v1827
        %v1860 = vcvt.s32.f32 %v1828
        %v1861 = vcvt.s32.f32 %v1829
        %v1862 = vcvt.s32.f32 %v1830
        %v1863 = vcvt.s32.f32 %v1831
        %v1864 = vcvt.s32.f32 %v1832
        %v1865 = vcvt.s32.f32 %v1833
        %v1866 = vcvt.s32.f32 %v1834
        %v1867 = vcvt.s32.f32 %v1835
        %v1868 = vcvt.s32.f32 %v1836
        %v1869 = vcvt.s32.f32 %v1837
        %v1870 = vcvt.s32.f32 %v1838
        %v1871 = vcvt.s32.f32 %v1839
        %v1872 = vcvt.s32.f32 %v1840
        %v1873 = vcvt.s32.f32 %v1841
        %v1874 = vcvt.s32.f32 %v1842
        %v1875 = vcvt.s32.f32 %v1843
        %v1876 = vcvt.s32.f32 %v1844
        %v1877 = vcvt.s32.f32 %v1845
        %v1878 = vcvt.s32.f32 %v1846
        %v1879 = vcvt.s32.f32 %v1847
        %v1880 = vcvt.s32.f32 %v1848
        %v1881 = vcvt.s32.f32 %v1849
        %v1882 = vcvt.s32.f32 %v1850
        %v1883 = vcvt.s32.f32 %v1851
        %v1884 = vcvt.s32.f32 %v1852
        %v1885 = vadd.f32 %v1747, %v1853
        %v1886 = vadd.f32 %v1748, %v1854
        %v1887 = vadd.f32 %v1749, %v1855
        %v1888 = vadd.f32 %v1750, %v1856
        %v1889 = vadd.f32 %v1751, %v1857
        %v1890 = vadd.f32 %v1752, %v1858
        %v1891 = vadd.f32 %v1753, %v1859
        %v1892 = vadd.f32 %v1754, %v1860
        %v1893 = vadd.f32 %v1755, %v1861
        %v1894 = vadd.f32 %v1756, %v1862
        %v1895 = vadd.f32 %v1757, %v1863
        %v1896 = vadd.f32 %v1758, %v1864
        %v1897 = vadd.f32 %v1759, %v1865
        %v1898 = vadd.f32 %v1760, %v1866
        %v1899 = vadd.f32 %v1761, %v1867
        %v1900 = vadd.f32 %v1762, %v1868
        %v1901 = vadd.f32 %v1763, %v1869
        %v1902 = vadd.f32 %v1764, %v1870
        %v1903 = vadd.f32 %v1765, %v1871
        %v1904 = vadd.f32 %v1766, %v1872
        %v1905 = vadd.f32 %v1767, %v1873
        %v1906 = vadd.f32 %v1768, %v1874
        %v1907 = vadd.f32 %v1769, %v1875
        %v1908 = vadd.f32 %v1770, %v1876
        %v1909 = vadd.f32 %v1771, %v1877
        %v1910 = vadd.f32 %v1772, %v1878
        %v1911 = vadd.f32 %v1773, %v1879
        %v1912 = vadd.f32 %v1774, %v1880
        %v1913 = vadd.f32 %v1775, %v1881
        %v1914 = vadd.f32 %v1776, %v1882
        %v1915 = vadd.f32 %v1777, %v1883
        %v1916 = vadd.f32 %v1778, %v1884
        %s1917 = scalar_lea.vmem %s212, 20 [#allocation2]
        %v1918 = vld [vmem:[%s1917] ss:$8 sm:$0x3]
        %v1919 = vlaneseq
        %v1920 = vshrl.u32 %v1919, 7
        %v1921 = vsub.s32 0, %v1920
        %v1922 = vrot.slane %v1918, %v1921
        %v1923 = vlaneseq
        %v1924 = vshrl.u32 %v1923, 7
        %v1925 = vsub.s32 1, %v1924
        %v1926 = vrot.slane %v1918, %v1925
        %vm1927 = vcmp.eq.s32.totalorder %v246, %v1922
        %vm1928 = vcmp.eq.s32.totalorder %v246, %v1926
        %vm1929 = vcmp.eq.s32.totalorder %v247, %v1922
        %vm1930 = vcmp.eq.s32.totalorder %v247, %v1926
        %vm1931 = vcmp.eq.s32.totalorder %v248, %v1922
        %vm1932 = vcmp.eq.s32.totalorder %v248, %v1926
        %vm1933 = vcmp.eq.s32.totalorder %v249, %v1922
        %vm1934 = vcmp.eq.s32.totalorder %v249, %v1926
        %vm1935 = vcmp.eq.s32.totalorder %v250, %v1922
        %vm1936 = vcmp.eq.s32.totalorder %v250, %v1926
        %vm1937 = vcmp.eq.s32.totalorder %v251, %v1922
        %vm1938 = vcmp.eq.s32.totalorder %v251, %v1926
        %vm1939 = vcmp.eq.s32.totalorder %v252, %v1922
        %vm1940 = vcmp.eq.s32.totalorder %v252, %v1926
        %vm1941 = vcmp.eq.s32.totalorder %v253, %v1922
        %vm1942 = vcmp.eq.s32.totalorder %v253, %v1926
        %vm1943 = vcmp.eq.s32.totalorder %v254, %v1922
        %vm1944 = vcmp.eq.s32.totalorder %v254, %v1926
        %vm1945 = vcmp.eq.s32.totalorder %v255, %v1922
        %vm1946 = vcmp.eq.s32.totalorder %v255, %v1926
        %vm1947 = vcmp.eq.s32.totalorder %v256, %v1922
        %vm1948 = vcmp.eq.s32.totalorder %v256, %v1926
        %vm1949 = vcmp.eq.s32.totalorder %v257, %v1922
        %vm1950 = vcmp.eq.s32.totalorder %v257, %v1926
        %vm1951 = vcmp.eq.s32.totalorder %v258, %v1922
        %vm1952 = vcmp.eq.s32.totalorder %v258, %v1926
        %vm1953 = vcmp.eq.s32.totalorder %v259, %v1922
        %vm1954 = vcmp.eq.s32.totalorder %v259, %v1926
        %vm1955 = vcmp.eq.s32.totalorder %v260, %v1922
        %vm1956 = vcmp.eq.s32.totalorder %v260, %v1926
        %vm1957 = vcmp.eq.s32.totalorder %v261, %v1922
        %vm1958 = vcmp.eq.s32.totalorder %v261, %v1926
        %v1959 = vsel %vm1927, 1, 0
        %v1960 = vsel %vm1928, 1, 0
        %v1961 = vsel %vm1929, 1, 0
        %v1962 = vsel %vm1930, 1, 0
        %v1963 = vsel %vm1931, 1, 0
        %v1964 = vsel %vm1932, 1, 0
        %v1965 = vsel %vm1933, 1, 0
        %v1966 = vsel %vm1934, 1, 0
        %v1967 = vsel %vm1935, 1, 0
        %v1968 = vsel %vm1936, 1, 0
        %v1969 = vsel %vm1937, 1, 0
        %v1970 = vsel %vm1938, 1, 0
        %v1971 = vsel %vm1939, 1, 0
        %v1972 = vsel %vm1940, 1, 0
        %v1973 = vsel %vm1941, 1, 0
        %v1974 = vsel %vm1942, 1, 0
        %v1975 = vsel %vm1943, 1, 0
        %v1976 = vsel %vm1944, 1, 0
        %v1977 = vsel %vm1945, 1, 0
        %v1978 = vsel %vm1946, 1, 0
        %v1979 = vsel %vm1947, 1, 0
        %v1980 = vsel %vm1948, 1, 0
        %v1981 = vsel %vm1949, 1, 0
        %v1982 = vsel %vm1950, 1, 0
        %v1983 = vsel %vm1951, 1, 0
        %v1984 = vsel %vm1952, 1, 0
        %v1985 = vsel %vm1953, 1, 0
        %v1986 = vsel %vm1954, 1, 0
        %v1987 = vsel %vm1955, 1, 0
        %v1988 = vsel %vm1956, 1, 0
        %v1989 = vsel %vm1957, 1, 0
        %v1990 = vsel %vm1958, 1, 0
        %v1991 = vcvt.s32.f32 %v1959
        %v1992 = vcvt.s32.f32 %v1960
        %v1993 = vcvt.s32.f32 %v1961
        %v1994 = vcvt.s32.f32 %v1962
        %v1995 = vcvt.s32.f32 %v1963
        %v1996 = vcvt.s32.f32 %v1964
        %v1997 = vcvt.s32.f32 %v1965
        %v1998 = vcvt.s32.f32 %v1966
        %v1999 = vcvt.s32.f32 %v1967
        %v2000 = vcvt.s32.f32 %v1968
        %v2001 = vcvt.s32.f32 %v1969
        %v2002 = vcvt.s32.f32 %v1970
        %v2003 = vcvt.s32.f32 %v1971
        %v2004 = vcvt.s32.f32 %v1972
        %v2005 = vcvt.s32.f32 %v1973
        %v2006 = vcvt.s32.f32 %v1974
        %v2007 = vcvt.s32.f32 %v1975
        %v2008 = vcvt.s32.f32 %v1976
        %v2009 = vcvt.s32.f32 %v1977
        %v2010 = vcvt.s32.f32 %v1978
        %v2011 = vcvt.s32.f32 %v1979
        %v2012 = vcvt.s32.f32 %v1980
        %v2013 = vcvt.s32.f32 %v1981
        %v2014 = vcvt.s32.f32 %v1982
        %v2015 = vcvt.s32.f32 %v1983
        %v2016 = vcvt.s32.f32 %v1984
        %v2017 = vcvt.s32.f32 %v1985
        %v2018 = vcvt.s32.f32 %v1986
        %v2019 = vcvt.s32.f32 %v1987
        %v2020 = vcvt.s32.f32 %v1988
        %v2021 = vcvt.s32.f32 %v1989
        %v2022 = vcvt.s32.f32 %v1990
        %v2023 = vadd.f32 %v1885, %v1991
        %v2024 = vadd.f32 %v1886, %v1992
        %v2025 = vadd.f32 %v1887, %v1993
        %v2026 = vadd.f32 %v1888, %v1994
        %v2027 = vadd.f32 %v1889, %v1995
        %v2028 = vadd.f32 %v1890, %v1996
        %v2029 = vadd.f32 %v1891, %v1997
        %v2030 = vadd.f32 %v1892, %v1998
        %v2031 = vadd.f32 %v1893, %v1999
        %v2032 = vadd.f32 %v1894, %v2000
        %v2033 = vadd.f32 %v1895, %v2001
        %v2034 = vadd.f32 %v1896, %v2002
        %v2035 = vadd.f32 %v1897, %v2003
        %v2036 = vadd.f32 %v1898, %v2004
        %v2037 = vadd.f32 %v1899, %v2005
        %v2038 = vadd.f32 %v1900, %v2006
        %v2039 = vadd.f32 %v1901, %v2007
        %v2040 = vadd.f32 %v1902, %v2008
        %v2041 = vadd.f32 %v1903, %v2009
        %v2042 = vadd.f32 %v1904, %v2010
        %v2043 = vadd.f32 %v1905, %v2011
        %v2044 = vadd.f32 %v1906, %v2012
        %v2045 = vadd.f32 %v1907, %v2013
        %v2046 = vadd.f32 %v1908, %v2014
        %v2047 = vadd.f32 %v1909, %v2015
        %v2048 = vadd.f32 %v1910, %v2016
        %v2049 = vadd.f32 %v1911, %v2017
        %v2050 = vadd.f32 %v1912, %v2018
        %v2051 = vadd.f32 %v1913, %v2019
        %v2052 = vadd.f32 %v1914, %v2020
        %v2053 = vadd.f32 %v1915, %v2021
        %v2054 = vadd.f32 %v1916, %v2022
        %s2055 = scalar_lea.vmem %s212, 21 [#allocation2]
        %v2056 = vld [vmem:[%s2055] ss:$8 sm:$0x3]
        %v2057 = vlaneseq
        %v2058 = vshrl.u32 %v2057, 7
        %v2059 = vsub.s32 0, %v2058
        %v2060 = vrot.slane %v2056, %v2059
        %v2061 = vlaneseq
        %v2062 = vshrl.u32 %v2061, 7
        %v2063 = vsub.s32 1, %v2062
        %v2064 = vrot.slane %v2056, %v2063
        %vm2065 = vcmp.eq.s32.totalorder %v246, %v2060
        %vm2066 = vcmp.eq.s32.totalorder %v246, %v2064
        %vm2067 = vcmp.eq.s32.totalorder %v247, %v2060
        %vm2068 = vcmp.eq.s32.totalorder %v247, %v2064
        %vm2069 = vcmp.eq.s32.totalorder %v248, %v2060
        %vm2070 = vcmp.eq.s32.totalorder %v248, %v2064
        %vm2071 = vcmp.eq.s32.totalorder %v249, %v2060
        %vm2072 = vcmp.eq.s32.totalorder %v249, %v2064
        %vm2073 = vcmp.eq.s32.totalorder %v250, %v2060
        %vm2074 = vcmp.eq.s32.totalorder %v250, %v2064
        %vm2075 = vcmp.eq.s32.totalorder %v251, %v2060
        %vm2076 = vcmp.eq.s32.totalorder %v251, %v2064
        %vm2077 = vcmp.eq.s32.totalorder %v252, %v2060
        %vm2078 = vcmp.eq.s32.totalorder %v252, %v2064
        %vm2079 = vcmp.eq.s32.totalorder %v253, %v2060
        %vm2080 = vcmp.eq.s32.totalorder %v253, %v2064
        %vm2081 = vcmp.eq.s32.totalorder %v254, %v2060
        %vm2082 = vcmp.eq.s32.totalorder %v254, %v2064
        %vm2083 = vcmp.eq.s32.totalorder %v255, %v2060
        %vm2084 = vcmp.eq.s32.totalorder %v255, %v2064
        %vm2085 = vcmp.eq.s32.totalorder %v256, %v2060
        %vm2086 = vcmp.eq.s32.totalorder %v256, %v2064
        %vm2087 = vcmp.eq.s32.totalorder %v257, %v2060
        %vm2088 = vcmp.eq.s32.totalorder %v257, %v2064
        %vm2089 = vcmp.eq.s32.totalorder %v258, %v2060
        %vm2090 = vcmp.eq.s32.totalorder %v258, %v2064
        %vm2091 = vcmp.eq.s32.totalorder %v259, %v2060
        %vm2092 = vcmp.eq.s32.totalorder %v259, %v2064
        %vm2093 = vcmp.eq.s32.totalorder %v260, %v2060
        %vm2094 = vcmp.eq.s32.totalorder %v260, %v2064
        %vm2095 = vcmp.eq.s32.totalorder %v261, %v2060
        %vm2096 = vcmp.eq.s32.totalorder %v261, %v2064
        %v2097 = vsel %vm2065, 1, 0
        %v2098 = vsel %vm2066, 1, 0
        %v2099 = vsel %vm2067, 1, 0
        %v2100 = vsel %vm2068, 1, 0
        %v2101 = vsel %vm2069, 1, 0
        %v2102 = vsel %vm2070, 1, 0
        %v2103 = vsel %vm2071, 1, 0
        %v2104 = vsel %vm2072, 1, 0
        %v2105 = vsel %vm2073, 1, 0
        %v2106 = vsel %vm2074, 1, 0
        %v2107 = vsel %vm2075, 1, 0
        %v2108 = vsel %vm2076, 1, 0
        %v2109 = vsel %vm2077, 1, 0
        %v2110 = vsel %vm2078, 1, 0
        %v2111 = vsel %vm2079, 1, 0
        %v2112 = vsel %vm2080, 1, 0
        %v2113 = vsel %vm2081, 1, 0
        %v2114 = vsel %vm2082, 1, 0
        %v2115 = vsel %vm2083, 1, 0
        %v2116 = vsel %vm2084, 1, 0
        %v2117 = vsel %vm2085, 1, 0
        %v2118 = vsel %vm2086, 1, 0
        %v2119 = vsel %vm2087, 1, 0
        %v2120 = vsel %vm2088, 1, 0
        %v2121 = vsel %vm2089, 1, 0
        %v2122 = vsel %vm2090, 1, 0
        %v2123 = vsel %vm2091, 1, 0
        %v2124 = vsel %vm2092, 1, 0
        %v2125 = vsel %vm2093, 1, 0
        %v2126 = vsel %vm2094, 1, 0
        %v2127 = vsel %vm2095, 1, 0
        %v2128 = vsel %vm2096, 1, 0
        %v2129 = vcvt.s32.f32 %v2097
        %v2130 = vcvt.s32.f32 %v2098
        %v2131 = vcvt.s32.f32 %v2099
        %v2132 = vcvt.s32.f32 %v2100
        %v2133 = vcvt.s32.f32 %v2101
        %v2134 = vcvt.s32.f32 %v2102
        %v2135 = vcvt.s32.f32 %v2103
        %v2136 = vcvt.s32.f32 %v2104
        %v2137 = vcvt.s32.f32 %v2105
        %v2138 = vcvt.s32.f32 %v2106
        %v2139 = vcvt.s32.f32 %v2107
        %v2140 = vcvt.s32.f32 %v2108
        %v2141 = vcvt.s32.f32 %v2109
        %v2142 = vcvt.s32.f32 %v2110
        %v2143 = vcvt.s32.f32 %v2111
        %v2144 = vcvt.s32.f32 %v2112
        %v2145 = vcvt.s32.f32 %v2113
        %v2146 = vcvt.s32.f32 %v2114
        %v2147 = vcvt.s32.f32 %v2115
        %v2148 = vcvt.s32.f32 %v2116
        %v2149 = vcvt.s32.f32 %v2117
        %v2150 = vcvt.s32.f32 %v2118
        %v2151 = vcvt.s32.f32 %v2119
        %v2152 = vcvt.s32.f32 %v2120
        %v2153 = vcvt.s32.f32 %v2121
        %v2154 = vcvt.s32.f32 %v2122
        %v2155 = vcvt.s32.f32 %v2123
        %v2156 = vcvt.s32.f32 %v2124
        %v2157 = vcvt.s32.f32 %v2125
        %v2158 = vcvt.s32.f32 %v2126
        %v2159 = vcvt.s32.f32 %v2127
        %v2160 = vcvt.s32.f32 %v2128
        %v2161 = vadd.f32 %v2023, %v2129
        %v2162 = vadd.f32 %v2024, %v2130
        %v2163 = vadd.f32 %v2025, %v2131
        %v2164 = vadd.f32 %v2026, %v2132
        %v2165 = vadd.f32 %v2027, %v2133
        %v2166 = vadd.f32 %v2028, %v2134
        %v2167 = vadd.f32 %v2029, %v2135
        %v2168 = vadd.f32 %v2030, %v2136
        %v2169 = vadd.f32 %v2031, %v2137
        %v2170 = vadd.f32 %v2032, %v2138
        %v2171 = vadd.f32 %v2033, %v2139
        %v2172 = vadd.f32 %v2034, %v2140
        %v2173 = vadd.f32 %v2035, %v2141
        %v2174 = vadd.f32 %v2036, %v2142
        %v2175 = vadd.f32 %v2037, %v2143
        %v2176 = vadd.f32 %v2038, %v2144
        %v2177 = vadd.f32 %v2039, %v2145
        %v2178 = vadd.f32 %v2040, %v2146
        %v2179 = vadd.f32 %v2041, %v2147
        %v2180 = vadd.f32 %v2042, %v2148
        %v2181 = vadd.f32 %v2043, %v2149
        %v2182 = vadd.f32 %v2044, %v2150
        %v2183 = vadd.f32 %v2045, %v2151
        %v2184 = vadd.f32 %v2046, %v2152
        %v2185 = vadd.f32 %v2047, %v2153
        %v2186 = vadd.f32 %v2048, %v2154
        %v2187 = vadd.f32 %v2049, %v2155
        %v2188 = vadd.f32 %v2050, %v2156
        %v2189 = vadd.f32 %v2051, %v2157
        %v2190 = vadd.f32 %v2052, %v2158
        %v2191 = vadd.f32 %v2053, %v2159
        %v2192 = vadd.f32 %v2054, %v2160
        %s2193 = scalar_lea.vmem %s212, 22 [#allocation2]
        %v2194 = vld [vmem:[%s2193] ss:$8 sm:$0x3]
        %v2195 = vlaneseq
        %v2196 = vshrl.u32 %v2195, 7
        %v2197 = vsub.s32 0, %v2196
        %v2198 = vrot.slane %v2194, %v2197
        %v2199 = vlaneseq
        %v2200 = vshrl.u32 %v2199, 7
        %v2201 = vsub.s32 1, %v2200
        %v2202 = vrot.slane %v2194, %v2201
        %vm2203 = vcmp.eq.s32.totalorder %v246, %v2198
        %vm2204 = vcmp.eq.s32.totalorder %v246, %v2202
        %vm2205 = vcmp.eq.s32.totalorder %v247, %v2198
        %vm2206 = vcmp.eq.s32.totalorder %v247, %v2202
        %vm2207 = vcmp.eq.s32.totalorder %v248, %v2198
        %vm2208 = vcmp.eq.s32.totalorder %v248, %v2202
        %vm2209 = vcmp.eq.s32.totalorder %v249, %v2198
        %vm2210 = vcmp.eq.s32.totalorder %v249, %v2202
        %vm2211 = vcmp.eq.s32.totalorder %v250, %v2198
        %vm2212 = vcmp.eq.s32.totalorder %v250, %v2202
        %vm2213 = vcmp.eq.s32.totalorder %v251, %v2198
        %vm2214 = vcmp.eq.s32.totalorder %v251, %v2202
        %vm2215 = vcmp.eq.s32.totalorder %v252, %v2198
        %vm2216 = vcmp.eq.s32.totalorder %v252, %v2202
        %vm2217 = vcmp.eq.s32.totalorder %v253, %v2198
        %vm2218 = vcmp.eq.s32.totalorder %v253, %v2202
        %vm2219 = vcmp.eq.s32.totalorder %v254, %v2198
        %vm2220 = vcmp.eq.s32.totalorder %v254, %v2202
        %vm2221 = vcmp.eq.s32.totalorder %v255, %v2198
        %vm2222 = vcmp.eq.s32.totalorder %v255, %v2202
        %vm2223 = vcmp.eq.s32.totalorder %v256, %v2198
        %vm2224 = vcmp.eq.s32.totalorder %v256, %v2202
        %vm2225 = vcmp.eq.s32.totalorder %v257, %v2198
        %vm2226 = vcmp.eq.s32.totalorder %v257, %v2202
        %vm2227 = vcmp.eq.s32.totalorder %v258, %v2198
        %vm2228 = vcmp.eq.s32.totalorder %v258, %v2202
        %vm2229 = vcmp.eq.s32.totalorder %v259, %v2198
        %vm2230 = vcmp.eq.s32.totalorder %v259, %v2202
        %vm2231 = vcmp.eq.s32.totalorder %v260, %v2198
        %vm2232 = vcmp.eq.s32.totalorder %v260, %v2202
        %vm2233 = vcmp.eq.s32.totalorder %v261, %v2198
        %vm2234 = vcmp.eq.s32.totalorder %v261, %v2202
        %v2235 = vsel %vm2203, 1, 0
        %v2236 = vsel %vm2204, 1, 0
        %v2237 = vsel %vm2205, 1, 0
        %v2238 = vsel %vm2206, 1, 0
        %v2239 = vsel %vm2207, 1, 0
        %v2240 = vsel %vm2208, 1, 0
        %v2241 = vsel %vm2209, 1, 0
        %v2242 = vsel %vm2210, 1, 0
        %v2243 = vsel %vm2211, 1, 0
        %v2244 = vsel %vm2212, 1, 0
        %v2245 = vsel %vm2213, 1, 0
        %v2246 = vsel %vm2214, 1, 0
        %v2247 = vsel %vm2215, 1, 0
        %v2248 = vsel %vm2216, 1, 0
        %v2249 = vsel %vm2217, 1, 0
        %v2250 = vsel %vm2218, 1, 0
        %v2251 = vsel %vm2219, 1, 0
        %v2252 = vsel %vm2220, 1, 0
        %v2253 = vsel %vm2221, 1, 0
        %v2254 = vsel %vm2222, 1, 0
        %v2255 = vsel %vm2223, 1, 0
        %v2256 = vsel %vm2224, 1, 0
        %v2257 = vsel %vm2225, 1, 0
        %v2258 = vsel %vm2226, 1, 0
        %v2259 = vsel %vm2227, 1, 0
        %v2260 = vsel %vm2228, 1, 0
        %v2261 = vsel %vm2229, 1, 0
        %v2262 = vsel %vm2230, 1, 0
        %v2263 = vsel %vm2231, 1, 0
        %v2264 = vsel %vm2232, 1, 0
        %v2265 = vsel %vm2233, 1, 0
        %v2266 = vsel %vm2234, 1, 0
        %v2267 = vcvt.s32.f32 %v2235
        %v2268 = vcvt.s32.f32 %v2236
        %v2269 = vcvt.s32.f32 %v2237
        %v2270 = vcvt.s32.f32 %v2238
        %v2271 = vcvt.s32.f32 %v2239
        %v2272 = vcvt.s32.f32 %v2240
        %v2273 = vcvt.s32.f32 %v2241
        %v2274 = vcvt.s32.f32 %v2242
        %v2275 = vcvt.s32.f32 %v2243
        %v2276 = vcvt.s32.f32 %v2244
        %v2277 = vcvt.s32.f32 %v2245
        %v2278 = vcvt.s32.f32 %v2246
        %v2279 = vcvt.s32.f32 %v2247
        %v2280 = vcvt.s32.f32 %v2248
        %v2281 = vcvt.s32.f32 %v2249
        %v2282 = vcvt.s32.f32 %v2250
        %v2283 = vcvt.s32.f32 %v2251
        %v2284 = vcvt.s32.f32 %v2252
        %v2285 = vcvt.s32.f32 %v2253
        %v2286 = vcvt.s32.f32 %v2254
        %v2287 = vcvt.s32.f32 %v2255
        %v2288 = vcvt.s32.f32 %v2256
        %v2289 = vcvt.s32.f32 %v2257
        %v2290 = vcvt.s32.f32 %v2258
        %v2291 = vcvt.s32.f32 %v2259
        %v2292 = vcvt.s32.f32 %v2260
        %v2293 = vcvt.s32.f32 %v2261
        %v2294 = vcvt.s32.f32 %v2262
        %v2295 = vcvt.s32.f32 %v2263
        %v2296 = vcvt.s32.f32 %v2264
        %v2297 = vcvt.s32.f32 %v2265
        %v2298 = vcvt.s32.f32 %v2266
        %v2299 = vadd.f32 %v2161, %v2267
        %v2300 = vadd.f32 %v2162, %v2268
        %v2301 = vadd.f32 %v2163, %v2269
        %v2302 = vadd.f32 %v2164, %v2270
        %v2303 = vadd.f32 %v2165, %v2271
        %v2304 = vadd.f32 %v2166, %v2272
        %v2305 = vadd.f32 %v2167, %v2273
        %v2306 = vadd.f32 %v2168, %v2274
        %v2307 = vadd.f32 %v2169, %v2275
        %v2308 = vadd.f32 %v2170, %v2276
        %v2309 = vadd.f32 %v2171, %v2277
        %v2310 = vadd.f32 %v2172, %v2278
        %v2311 = vadd.f32 %v2173, %v2279
        %v2312 = vadd.f32 %v2174, %v2280
        %v2313 = vadd.f32 %v2175, %v2281
        %v2314 = vadd.f32 %v2176, %v2282
        %v2315 = vadd.f32 %v2177, %v2283
        %v2316 = vadd.f32 %v2178, %v2284
        %v2317 = vadd.f32 %v2179, %v2285
        %v2318 = vadd.f32 %v2180, %v2286
        %v2319 = vadd.f32 %v2181, %v2287
        %v2320 = vadd.f32 %v2182, %v2288
        %v2321 = vadd.f32 %v2183, %v2289
        %v2322 = vadd.f32 %v2184, %v2290
        %v2323 = vadd.f32 %v2185, %v2291
        %v2324 = vadd.f32 %v2186, %v2292
        %v2325 = vadd.f32 %v2187, %v2293
        %v2326 = vadd.f32 %v2188, %v2294
        %v2327 = vadd.f32 %v2189, %v2295
        %v2328 = vadd.f32 %v2190, %v2296
        %v2329 = vadd.f32 %v2191, %v2297
        %v2330 = vadd.f32 %v2192, %v2298
        %s2331 = scalar_lea.vmem %s212, 23 [#allocation2]
        %v2332 = vld [vmem:[%s2331] ss:$8 sm:$0x3]
        %v2333 = vlaneseq
        %v2334 = vshrl.u32 %v2333, 7
        %v2335 = vsub.s32 0, %v2334
        %v2336 = vrot.slane %v2332, %v2335
        %v2337 = vlaneseq
        %v2338 = vshrl.u32 %v2337, 7
        %v2339 = vsub.s32 1, %v2338
        %v2340 = vrot.slane %v2332, %v2339
        %vm2341 = vcmp.eq.s32.totalorder %v246, %v2336
        %vm2342 = vcmp.eq.s32.totalorder %v246, %v2340
        %vm2343 = vcmp.eq.s32.totalorder %v247, %v2336
        %vm2344 = vcmp.eq.s32.totalorder %v247, %v2340
        %vm2345 = vcmp.eq.s32.totalorder %v248, %v2336
        %vm2346 = vcmp.eq.s32.totalorder %v248, %v2340
        %vm2347 = vcmp.eq.s32.totalorder %v249, %v2336
        %vm2348 = vcmp.eq.s32.totalorder %v249, %v2340
        %vm2349 = vcmp.eq.s32.totalorder %v250, %v2336
        %vm2350 = vcmp.eq.s32.totalorder %v250, %v2340
        %vm2351 = vcmp.eq.s32.totalorder %v251, %v2336
        %vm2352 = vcmp.eq.s32.totalorder %v251, %v2340
        %vm2353 = vcmp.eq.s32.totalorder %v252, %v2336
        %vm2354 = vcmp.eq.s32.totalorder %v252, %v2340
        %vm2355 = vcmp.eq.s32.totalorder %v253, %v2336
        %vm2356 = vcmp.eq.s32.totalorder %v253, %v2340
        %vm2357 = vcmp.eq.s32.totalorder %v254, %v2336
        %vm2358 = vcmp.eq.s32.totalorder %v254, %v2340
        %vm2359 = vcmp.eq.s32.totalorder %v255, %v2336
        %vm2360 = vcmp.eq.s32.totalorder %v255, %v2340
        %vm2361 = vcmp.eq.s32.totalorder %v256, %v2336
        %vm2362 = vcmp.eq.s32.totalorder %v256, %v2340
        %vm2363 = vcmp.eq.s32.totalorder %v257, %v2336
        %vm2364 = vcmp.eq.s32.totalorder %v257, %v2340
        %vm2365 = vcmp.eq.s32.totalorder %v258, %v2336
        %vm2366 = vcmp.eq.s32.totalorder %v258, %v2340
        %vm2367 = vcmp.eq.s32.totalorder %v259, %v2336
        %vm2368 = vcmp.eq.s32.totalorder %v259, %v2340
        %vm2369 = vcmp.eq.s32.totalorder %v260, %v2336
        %vm2370 = vcmp.eq.s32.totalorder %v260, %v2340
        %vm2371 = vcmp.eq.s32.totalorder %v261, %v2336
        %vm2372 = vcmp.eq.s32.totalorder %v261, %v2340
        %v2373 = vsel %vm2341, 1, 0
        %v2374 = vsel %vm2342, 1, 0
        %v2375 = vsel %vm2343, 1, 0
        %v2376 = vsel %vm2344, 1, 0
        %v2377 = vsel %vm2345, 1, 0
        %v2378 = vsel %vm2346, 1, 0
        %v2379 = vsel %vm2347, 1, 0
        %v2380 = vsel %vm2348, 1, 0
        %v2381 = vsel %vm2349, 1, 0
        %v2382 = vsel %vm2350, 1, 0
        %v2383 = vsel %vm2351, 1, 0
        %v2384 = vsel %vm2352, 1, 0
        %v2385 = vsel %vm2353, 1, 0
        %v2386 = vsel %vm2354, 1, 0
        %v2387 = vsel %vm2355, 1, 0
        %v2388 = vsel %vm2356, 1, 0
        %v2389 = vsel %vm2357, 1, 0
        %v2390 = vsel %vm2358, 1, 0
        %v2391 = vsel %vm2359, 1, 0
        %v2392 = vsel %vm2360, 1, 0
        %v2393 = vsel %vm2361, 1, 0
        %v2394 = vsel %vm2362, 1, 0
        %v2395 = vsel %vm2363, 1, 0
        %v2396 = vsel %vm2364, 1, 0
        %v2397 = vsel %vm2365, 1, 0
        %v2398 = vsel %vm2366, 1, 0
        %v2399 = vsel %vm2367, 1, 0
        %v2400 = vsel %vm2368, 1, 0
        %v2401 = vsel %vm2369, 1, 0
        %v2402 = vsel %vm2370, 1, 0
        %v2403 = vsel %vm2371, 1, 0
        %v2404 = vsel %vm2372, 1, 0
        %v2405 = vcvt.s32.f32 %v2373
        %v2406 = vcvt.s32.f32 %v2374
        %v2407 = vcvt.s32.f32 %v2375
        %v2408 = vcvt.s32.f32 %v2376
        %v2409 = vcvt.s32.f32 %v2377
        %v2410 = vcvt.s32.f32 %v2378
        %v2411 = vcvt.s32.f32 %v2379
        %v2412 = vcvt.s32.f32 %v2380
        %v2413 = vcvt.s32.f32 %v2381
        %v2414 = vcvt.s32.f32 %v2382
        %v2415 = vcvt.s32.f32 %v2383
        %v2416 = vcvt.s32.f32 %v2384
        %v2417 = vcvt.s32.f32 %v2385
        %v2418 = vcvt.s32.f32 %v2386
        %v2419 = vcvt.s32.f32 %v2387
        %v2420 = vcvt.s32.f32 %v2388
        %v2421 = vcvt.s32.f32 %v2389
        %v2422 = vcvt.s32.f32 %v2390
        %v2423 = vcvt.s32.f32 %v2391
        %v2424 = vcvt.s32.f32 %v2392
        %v2425 = vcvt.s32.f32 %v2393
        %v2426 = vcvt.s32.f32 %v2394
        %v2427 = vcvt.s32.f32 %v2395
        %v2428 = vcvt.s32.f32 %v2396
        %v2429 = vcvt.s32.f32 %v2397
        %v2430 = vcvt.s32.f32 %v2398
        %v2431 = vcvt.s32.f32 %v2399
        %v2432 = vcvt.s32.f32 %v2400
        %v2433 = vcvt.s32.f32 %v2401
        %v2434 = vcvt.s32.f32 %v2402
        %v2435 = vcvt.s32.f32 %v2403
        %v2436 = vcvt.s32.f32 %v2404
        %v2437 = vadd.f32 %v2299, %v2405
        %v2438 = vadd.f32 %v2300, %v2406
        %v2439 = vadd.f32 %v2301, %v2407
        %v2440 = vadd.f32 %v2302, %v2408
        %v2441 = vadd.f32 %v2303, %v2409
        %v2442 = vadd.f32 %v2304, %v2410
        %v2443 = vadd.f32 %v2305, %v2411
        %v2444 = vadd.f32 %v2306, %v2412
        %v2445 = vadd.f32 %v2307, %v2413
        %v2446 = vadd.f32 %v2308, %v2414
        %v2447 = vadd.f32 %v2309, %v2415
        %v2448 = vadd.f32 %v2310, %v2416
        %v2449 = vadd.f32 %v2311, %v2417
        %v2450 = vadd.f32 %v2312, %v2418
        %v2451 = vadd.f32 %v2313, %v2419
        %v2452 = vadd.f32 %v2314, %v2420
        %v2453 = vadd.f32 %v2315, %v2421
        %v2454 = vadd.f32 %v2316, %v2422
        %v2455 = vadd.f32 %v2317, %v2423
        %v2456 = vadd.f32 %v2318, %v2424
        %v2457 = vadd.f32 %v2319, %v2425
        %v2458 = vadd.f32 %v2320, %v2426
        %v2459 = vadd.f32 %v2321, %v2427
        %v2460 = vadd.f32 %v2322, %v2428
        %v2461 = vadd.f32 %v2323, %v2429
        %v2462 = vadd.f32 %v2324, %v2430
        %v2463 = vadd.f32 %v2325, %v2431
        %v2464 = vadd.f32 %v2326, %v2432
        %v2465 = vadd.f32 %v2327, %v2433
        %v2466 = vadd.f32 %v2328, %v2434
        %v2467 = vadd.f32 %v2329, %v2435
        %v2468 = vadd.f32 %v2330, %v2436
        %s2469 = scalar_lea.vmem %s212, 32 [#allocation2]
        %v2470 = vld [vmem:[%s2469] ss:$8 sm:$0x3]
        %v2471 = vlaneseq
        %v2472 = vshrl.u32 %v2471, 7
        %v2473 = vsub.s32 0, %v2472
        %v2474 = vrot.slane %v2470, %v2473
        %v2475 = vlaneseq
        %v2476 = vshrl.u32 %v2475, 7
        %v2477 = vsub.s32 1, %v2476
        %v2478 = vrot.slane %v2470, %v2477
        %vm2479 = vcmp.eq.s32.totalorder %v246, %v2474
        %vm2480 = vcmp.eq.s32.totalorder %v246, %v2478
        %vm2481 = vcmp.eq.s32.totalorder %v247, %v2474
        %vm2482 = vcmp.eq.s32.totalorder %v247, %v2478
        %vm2483 = vcmp.eq.s32.totalorder %v248, %v2474
        %vm2484 = vcmp.eq.s32.totalorder %v248, %v2478
        %vm2485 = vcmp.eq.s32.totalorder %v249, %v2474
        %vm2486 = vcmp.eq.s32.totalorder %v249, %v2478
        %vm2487 = vcmp.eq.s32.totalorder %v250, %v2474
        %vm2488 = vcmp.eq.s32.totalorder %v250, %v2478
        %vm2489 = vcmp.eq.s32.totalorder %v251, %v2474
        %vm2490 = vcmp.eq.s32.totalorder %v251, %v2478
        %vm2491 = vcmp.eq.s32.totalorder %v252, %v2474
        %vm2492 = vcmp.eq.s32.totalorder %v252, %v2478
        %vm2493 = vcmp.eq.s32.totalorder %v253, %v2474
        %vm2494 = vcmp.eq.s32.totalorder %v253, %v2478
        %vm2495 = vcmp.eq.s32.totalorder %v254, %v2474
        %vm2496 = vcmp.eq.s32.totalorder %v254, %v2478
        %vm2497 = vcmp.eq.s32.totalorder %v255, %v2474
        %vm2498 = vcmp.eq.s32.totalorder %v255, %v2478
        %vm2499 = vcmp.eq.s32.totalorder %v256, %v2474
        %vm2500 = vcmp.eq.s32.totalorder %v256, %v2478
        %vm2501 = vcmp.eq.s32.totalorder %v257, %v2474
        %vm2502 = vcmp.eq.s32.totalorder %v257, %v2478
        %vm2503 = vcmp.eq.s32.totalorder %v258, %v2474
        %vm2504 = vcmp.eq.s32.totalorder %v258, %v2478
        %vm2505 = vcmp.eq.s32.totalorder %v259, %v2474
        %vm2506 = vcmp.eq.s32.totalorder %v259, %v2478
        %vm2507 = vcmp.eq.s32.totalorder %v260, %v2474
        %vm2508 = vcmp.eq.s32.totalorder %v260, %v2478
        %vm2509 = vcmp.eq.s32.totalorder %v261, %v2474
        %vm2510 = vcmp.eq.s32.totalorder %v261, %v2478
        %v2511 = vsel %vm2479, 1, 0
        %v2512 = vsel %vm2480, 1, 0
        %v2513 = vsel %vm2481, 1, 0
        %v2514 = vsel %vm2482, 1, 0
        %v2515 = vsel %vm2483, 1, 0
        %v2516 = vsel %vm2484, 1, 0
        %v2517 = vsel %vm2485, 1, 0
        %v2518 = vsel %vm2486, 1, 0
        %v2519 = vsel %vm2487, 1, 0
        %v2520 = vsel %vm2488, 1, 0
        %v2521 = vsel %vm2489, 1, 0
        %v2522 = vsel %vm2490, 1, 0
        %v2523 = vsel %vm2491, 1, 0
        %v2524 = vsel %vm2492, 1, 0
        %v2525 = vsel %vm2493, 1, 0
        %v2526 = vsel %vm2494, 1, 0
        %v2527 = vsel %vm2495, 1, 0
        %v2528 = vsel %vm2496, 1, 0
        %v2529 = vsel %vm2497, 1, 0
        %v2530 = vsel %vm2498, 1, 0
        %v2531 = vsel %vm2499, 1, 0
        %v2532 = vsel %vm2500, 1, 0
        %v2533 = vsel %vm2501, 1, 0
        %v2534 = vsel %vm2502, 1, 0
        %v2535 = vsel %vm2503, 1, 0
        %v2536 = vsel %vm2504, 1, 0
        %v2537 = vsel %vm2505, 1, 0
        %v2538 = vsel %vm2506, 1, 0
        %v2539 = vsel %vm2507, 1, 0
        %v2540 = vsel %vm2508, 1, 0
        %v2541 = vsel %vm2509, 1, 0
        %v2542 = vsel %vm2510, 1, 0
        %v2543 = vcvt.s32.f32 %v2511
        %v2544 = vcvt.s32.f32 %v2512
        %v2545 = vcvt.s32.f32 %v2513
        %v2546 = vcvt.s32.f32 %v2514
        %v2547 = vcvt.s32.f32 %v2515
        %v2548 = vcvt.s32.f32 %v2516
        %v2549 = vcvt.s32.f32 %v2517
        %v2550 = vcvt.s32.f32 %v2518
        %v2551 = vcvt.s32.f32 %v2519
        %v2552 = vcvt.s32.f32 %v2520
        %v2553 = vcvt.s32.f32 %v2521
        %v2554 = vcvt.s32.f32 %v2522
        %v2555 = vcvt.s32.f32 %v2523
        %v2556 = vcvt.s32.f32 %v2524
        %v2557 = vcvt.s32.f32 %v2525
        %v2558 = vcvt.s32.f32 %v2526
        %v2559 = vcvt.s32.f32 %v2527
        %v2560 = vcvt.s32.f32 %v2528
        %v2561 = vcvt.s32.f32 %v2529
        %v2562 = vcvt.s32.f32 %v2530
        %v2563 = vcvt.s32.f32 %v2531
        %v2564 = vcvt.s32.f32 %v2532
        %v2565 = vcvt.s32.f32 %v2533
        %v2566 = vcvt.s32.f32 %v2534
        %v2567 = vcvt.s32.f32 %v2535
        %v2568 = vcvt.s32.f32 %v2536
        %v2569 = vcvt.s32.f32 %v2537
        %v2570 = vcvt.s32.f32 %v2538
        %v2571 = vcvt.s32.f32 %v2539
        %v2572 = vcvt.s32.f32 %v2540
        %v2573 = vcvt.s32.f32 %v2541
        %v2574 = vcvt.s32.f32 %v2542
        %v2575 = vadd.f32 %v2437, %v2543
        %v2576 = vadd.f32 %v2438, %v2544
        %v2577 = vadd.f32 %v2439, %v2545
        %v2578 = vadd.f32 %v2440, %v2546
        %v2579 = vadd.f32 %v2441, %v2547
        %v2580 = vadd.f32 %v2442, %v2548
        %v2581 = vadd.f32 %v2443, %v2549
        %v2582 = vadd.f32 %v2444, %v2550
        %v2583 = vadd.f32 %v2445, %v2551
        %v2584 = vadd.f32 %v2446, %v2552
        %v2585 = vadd.f32 %v2447, %v2553
        %v2586 = vadd.f32 %v2448, %v2554
        %v2587 = vadd.f32 %v2449, %v2555
        %v2588 = vadd.f32 %v2450, %v2556
        %v2589 = vadd.f32 %v2451, %v2557
        %v2590 = vadd.f32 %v2452, %v2558
        %v2591 = vadd.f32 %v2453, %v2559
        %v2592 = vadd.f32 %v2454, %v2560
        %v2593 = vadd.f32 %v2455, %v2561
        %v2594 = vadd.f32 %v2456, %v2562
        %v2595 = vadd.f32 %v2457, %v2563
        %v2596 = vadd.f32 %v2458, %v2564
        %v2597 = vadd.f32 %v2459, %v2565
        %v2598 = vadd.f32 %v2460, %v2566
        %v2599 = vadd.f32 %v2461, %v2567
        %v2600 = vadd.f32 %v2462, %v2568
        %v2601 = vadd.f32 %v2463, %v2569
        %v2602 = vadd.f32 %v2464, %v2570
        %v2603 = vadd.f32 %v2465, %v2571
        %v2604 = vadd.f32 %v2466, %v2572
        %v2605 = vadd.f32 %v2467, %v2573
        %v2606 = vadd.f32 %v2468, %v2574
        %s2607 = scalar_lea.vmem %s212, 33 [#allocation2]
        %v2608 = vld [vmem:[%s2607] ss:$8 sm:$0x3]
        %v2609 = vlaneseq
        %v2610 = vshrl.u32 %v2609, 7
        %v2611 = vsub.s32 0, %v2610
        %v2612 = vrot.slane %v2608, %v2611
        %v2613 = vlaneseq
        %v2614 = vshrl.u32 %v2613, 7
        %v2615 = vsub.s32 1, %v2614
        %v2616 = vrot.slane %v2608, %v2615
        %vm2617 = vcmp.eq.s32.totalorder %v246, %v2612
        %vm2618 = vcmp.eq.s32.totalorder %v246, %v2616
        %vm2619 = vcmp.eq.s32.totalorder %v247, %v2612
        %vm2620 = vcmp.eq.s32.totalorder %v247, %v2616
        %vm2621 = vcmp.eq.s32.totalorder %v248, %v2612
        %vm2622 = vcmp.eq.s32.totalorder %v248, %v2616
        %vm2623 = vcmp.eq.s32.totalorder %v249, %v2612
        %vm2624 = vcmp.eq.s32.totalorder %v249, %v2616
        %vm2625 = vcmp.eq.s32.totalorder %v250, %v2612
        %vm2626 = vcmp.eq.s32.totalorder %v250, %v2616
        %vm2627 = vcmp.eq.s32.totalorder %v251, %v2612
        %vm2628 = vcmp.eq.s32.totalorder %v251, %v2616
        %vm2629 = vcmp.eq.s32.totalorder %v252, %v2612
        %vm2630 = vcmp.eq.s32.totalorder %v252, %v2616
        %vm2631 = vcmp.eq.s32.totalorder %v253, %v2612
        %vm2632 = vcmp.eq.s32.totalorder %v253, %v2616
        %vm2633 = vcmp.eq.s32.totalorder %v254, %v2612
        %vm2634 = vcmp.eq.s32.totalorder %v254, %v2616
        %vm2635 = vcmp.eq.s32.totalorder %v255, %v2612
        %vm2636 = vcmp.eq.s32.totalorder %v255, %v2616
        %vm2637 = vcmp.eq.s32.totalorder %v256, %v2612
        %vm2638 = vcmp.eq.s32.totalorder %v256, %v2616
        %vm2639 = vcmp.eq.s32.totalorder %v257, %v2612
        %vm2640 = vcmp.eq.s32.totalorder %v257, %v2616
        %vm2641 = vcmp.eq.s32.totalorder %v258, %v2612
        %vm2642 = vcmp.eq.s32.totalorder %v258, %v2616
        %vm2643 = vcmp.eq.s32.totalorder %v259, %v2612
        %vm2644 = vcmp.eq.s32.totalorder %v259, %v2616
        %vm2645 = vcmp.eq.s32.totalorder %v260, %v2612
        %vm2646 = vcmp.eq.s32.totalorder %v260, %v2616
        %vm2647 = vcmp.eq.s32.totalorder %v261, %v2612
        %vm2648 = vcmp.eq.s32.totalorder %v261, %v2616
        %v2649 = vsel %vm2617, 1, 0
        %v2650 = vsel %vm2618, 1, 0
        %v2651 = vsel %vm2619, 1, 0
        %v2652 = vsel %vm2620, 1, 0
        %v2653 = vsel %vm2621, 1, 0
        %v2654 = vsel %vm2622, 1, 0
        %v2655 = vsel %vm2623, 1, 0
        %v2656 = vsel %vm2624, 1, 0
        %v2657 = vsel %vm2625, 1, 0
        %v2658 = vsel %vm2626, 1, 0
        %v2659 = vsel %vm2627, 1, 0
        %v2660 = vsel %vm2628, 1, 0
        %v2661 = vsel %vm2629, 1, 0
        %v2662 = vsel %vm2630, 1, 0
        %v2663 = vsel %vm2631, 1, 0
        %v2664 = vsel %vm2632, 1, 0
        %v2665 = vsel %vm2633, 1, 0
        %v2666 = vsel %vm2634, 1, 0
        %v2667 = vsel %vm2635, 1, 0
        %v2668 = vsel %vm2636, 1, 0
        %v2669 = vsel %vm2637, 1, 0
        %v2670 = vsel %vm2638, 1, 0
        %v2671 = vsel %vm2639, 1, 0
        %v2672 = vsel %vm2640, 1, 0
        %v2673 = vsel %vm2641, 1, 0
        %v2674 = vsel %vm2642, 1, 0
        %v2675 = vsel %vm2643, 1, 0
        %v2676 = vsel %vm2644, 1, 0
        %v2677 = vsel %vm2645, 1, 0
        %v2678 = vsel %vm2646, 1, 0
        %v2679 = vsel %vm2647, 1, 0
        %v2680 = vsel %vm2648, 1, 0
        %v2681 = vcvt.s32.f32 %v2649
        %v2682 = vcvt.s32.f32 %v2650
        %v2683 = vcvt.s32.f32 %v2651
        %v2684 = vcvt.s32.f32 %v2652
        %v2685 = vcvt.s32.f32 %v2653
        %v2686 = vcvt.s32.f32 %v2654
        %v2687 = vcvt.s32.f32 %v2655
        %v2688 = vcvt.s32.f32 %v2656
        %v2689 = vcvt.s32.f32 %v2657
        %v2690 = vcvt.s32.f32 %v2658
        %v2691 = vcvt.s32.f32 %v2659
        %v2692 = vcvt.s32.f32 %v2660
        %v2693 = vcvt.s32.f32 %v2661
        %v2694 = vcvt.s32.f32 %v2662
        %v2695 = vcvt.s32.f32 %v2663
        %v2696 = vcvt.s32.f32 %v2664
        %v2697 = vcvt.s32.f32 %v2665
        %v2698 = vcvt.s32.f32 %v2666
        %v2699 = vcvt.s32.f32 %v2667
        %v2700 = vcvt.s32.f32 %v2668
        %v2701 = vcvt.s32.f32 %v2669
        %v2702 = vcvt.s32.f32 %v2670
        %v2703 = vcvt.s32.f32 %v2671
        %v2704 = vcvt.s32.f32 %v2672
        %v2705 = vcvt.s32.f32 %v2673
        %v2706 = vcvt.s32.f32 %v2674
        %v2707 = vcvt.s32.f32 %v2675
        %v2708 = vcvt.s32.f32 %v2676
        %v2709 = vcvt.s32.f32 %v2677
        %v2710 = vcvt.s32.f32 %v2678
        %v2711 = vcvt.s32.f32 %v2679
        %v2712 = vcvt.s32.f32 %v2680
        %v2713 = vadd.f32 %v2575, %v2681
        %v2714 = vadd.f32 %v2576, %v2682
        %v2715 = vadd.f32 %v2577, %v2683
        %v2716 = vadd.f32 %v2578, %v2684
        %v2717 = vadd.f32 %v2579, %v2685
        %v2718 = vadd.f32 %v2580, %v2686
        %v2719 = vadd.f32 %v2581, %v2687
        %v2720 = vadd.f32 %v2582, %v2688
        %v2721 = vadd.f32 %v2583, %v2689
        %v2722 = vadd.f32 %v2584, %v2690
        %v2723 = vadd.f32 %v2585, %v2691
        %v2724 = vadd.f32 %v2586, %v2692
        %v2725 = vadd.f32 %v2587, %v2693
        %v2726 = vadd.f32 %v2588, %v2694
        %v2727 = vadd.f32 %v2589, %v2695
        %v2728 = vadd.f32 %v2590, %v2696
        %v2729 = vadd.f32 %v2591, %v2697
        %v2730 = vadd.f32 %v2592, %v2698
        %v2731 = vadd.f32 %v2593, %v2699
        %v2732 = vadd.f32 %v2594, %v2700
        %v2733 = vadd.f32 %v2595, %v2701
        %v2734 = vadd.f32 %v2596, %v2702
        %v2735 = vadd.f32 %v2597, %v2703
        %v2736 = vadd.f32 %v2598, %v2704
        %v2737 = vadd.f32 %v2599, %v2705
        %v2738 = vadd.f32 %v2600, %v2706
        %v2739 = vadd.f32 %v2601, %v2707
        %v2740 = vadd.f32 %v2602, %v2708
        %v2741 = vadd.f32 %v2603, %v2709
        %v2742 = vadd.f32 %v2604, %v2710
        %v2743 = vadd.f32 %v2605, %v2711
        %v2744 = vadd.f32 %v2606, %v2712
        %s2745 = scalar_lea.vmem %s212, 34 [#allocation2]
        %v2746 = vld [vmem:[%s2745] ss:$8 sm:$0x3]
        %v2747 = vlaneseq
        %v2748 = vshrl.u32 %v2747, 7
        %v2749 = vsub.s32 0, %v2748
        %v2750 = vrot.slane %v2746, %v2749
        %v2751 = vlaneseq
        %v2752 = vshrl.u32 %v2751, 7
        %v2753 = vsub.s32 1, %v2752
        %v2754 = vrot.slane %v2746, %v2753
        %vm2755 = vcmp.eq.s32.totalorder %v246, %v2750
        %vm2756 = vcmp.eq.s32.totalorder %v246, %v2754
        %vm2757 = vcmp.eq.s32.totalorder %v247, %v2750
        %vm2758 = vcmp.eq.s32.totalorder %v247, %v2754
        %vm2759 = vcmp.eq.s32.totalorder %v248, %v2750
        %vm2760 = vcmp.eq.s32.totalorder %v248, %v2754
        %vm2761 = vcmp.eq.s32.totalorder %v249, %v2750
        %vm2762 = vcmp.eq.s32.totalorder %v249, %v2754
        %vm2763 = vcmp.eq.s32.totalorder %v250, %v2750
        %vm2764 = vcmp.eq.s32.totalorder %v250, %v2754
        %vm2765 = vcmp.eq.s32.totalorder %v251, %v2750
        %vm2766 = vcmp.eq.s32.totalorder %v251, %v2754
        %vm2767 = vcmp.eq.s32.totalorder %v252, %v2750
        %vm2768 = vcmp.eq.s32.totalorder %v252, %v2754
        %vm2769 = vcmp.eq.s32.totalorder %v253, %v2750
        %vm2770 = vcmp.eq.s32.totalorder %v253, %v2754
        %vm2771 = vcmp.eq.s32.totalorder %v254, %v2750
        %vm2772 = vcmp.eq.s32.totalorder %v254, %v2754
        %vm2773 = vcmp.eq.s32.totalorder %v255, %v2750
        %vm2774 = vcmp.eq.s32.totalorder %v255, %v2754
        %vm2775 = vcmp.eq.s32.totalorder %v256, %v2750
        %vm2776 = vcmp.eq.s32.totalorder %v256, %v2754
        %vm2777 = vcmp.eq.s32.totalorder %v257, %v2750
        %vm2778 = vcmp.eq.s32.totalorder %v257, %v2754
        %vm2779 = vcmp.eq.s32.totalorder %v258, %v2750
        %vm2780 = vcmp.eq.s32.totalorder %v258, %v2754
        %vm2781 = vcmp.eq.s32.totalorder %v259, %v2750
        %vm2782 = vcmp.eq.s32.totalorder %v259, %v2754
        %vm2783 = vcmp.eq.s32.totalorder %v260, %v2750
        %vm2784 = vcmp.eq.s32.totalorder %v260, %v2754
        %vm2785 = vcmp.eq.s32.totalorder %v261, %v2750
        %vm2786 = vcmp.eq.s32.totalorder %v261, %v2754
        %v2787 = vsel %vm2755, 1, 0
        %v2788 = vsel %vm2756, 1, 0
        %v2789 = vsel %vm2757, 1, 0
        %v2790 = vsel %vm2758, 1, 0
        %v2791 = vsel %vm2759, 1, 0
        %v2792 = vsel %vm2760, 1, 0
        %v2793 = vsel %vm2761, 1, 0
        %v2794 = vsel %vm2762, 1, 0
        %v2795 = vsel %vm2763, 1, 0
        %v2796 = vsel %vm2764, 1, 0
        %v2797 = vsel %vm2765, 1, 0
        %v2798 = vsel %vm2766, 1, 0
        %v2799 = vsel %vm2767, 1, 0
        %v2800 = vsel %vm2768, 1, 0
        %v2801 = vsel %vm2769, 1, 0
        %v2802 = vsel %vm2770, 1, 0
        %v2803 = vsel %vm2771, 1, 0
        %v2804 = vsel %vm2772, 1, 0
        %v2805 = vsel %vm2773, 1, 0
        %v2806 = vsel %vm2774, 1, 0
        %v2807 = vsel %vm2775, 1, 0
        %v2808 = vsel %vm2776, 1, 0
        %v2809 = vsel %vm2777, 1, 0
        %v2810 = vsel %vm2778, 1, 0
        %v2811 = vsel %vm2779, 1, 0
        %v2812 = vsel %vm2780, 1, 0
        %v2813 = vsel %vm2781, 1, 0
        %v2814 = vsel %vm2782, 1, 0
        %v2815 = vsel %vm2783, 1, 0
        %v2816 = vsel %vm2784, 1, 0
        %v2817 = vsel %vm2785, 1, 0
        %v2818 = vsel %vm2786, 1, 0
        %v2819 = vcvt.s32.f32 %v2787
        %v2820 = vcvt.s32.f32 %v2788
        %v2821 = vcvt.s32.f32 %v2789
        %v2822 = vcvt.s32.f32 %v2790
        %v2823 = vcvt.s32.f32 %v2791
        %v2824 = vcvt.s32.f32 %v2792
        %v2825 = vcvt.s32.f32 %v2793
        %v2826 = vcvt.s32.f32 %v2794
        %v2827 = vcvt.s32.f32 %v2795
        %v2828 = vcvt.s32.f32 %v2796
        %v2829 = vcvt.s32.f32 %v2797
        %v2830 = vcvt.s32.f32 %v2798
        %v2831 = vcvt.s32.f32 %v2799
        %v2832 = vcvt.s32.f32 %v2800
        %v2833 = vcvt.s32.f32 %v2801
        %v2834 = vcvt.s32.f32 %v2802
        %v2835 = vcvt.s32.f32 %v2803
        %v2836 = vcvt.s32.f32 %v2804
        %v2837 = vcvt.s32.f32 %v2805
        %v2838 = vcvt.s32.f32 %v2806
        %v2839 = vcvt.s32.f32 %v2807
        %v2840 = vcvt.s32.f32 %v2808
        %v2841 = vcvt.s32.f32 %v2809
        %v2842 = vcvt.s32.f32 %v2810
        %v2843 = vcvt.s32.f32 %v2811
        %v2844 = vcvt.s32.f32 %v2812
        %v2845 = vcvt.s32.f32 %v2813
        %v2846 = vcvt.s32.f32 %v2814
        %v2847 = vcvt.s32.f32 %v2815
        %v2848 = vcvt.s32.f32 %v2816
        %v2849 = vcvt.s32.f32 %v2817
        %v2850 = vcvt.s32.f32 %v2818
        %v2851 = vadd.f32 %v2713, %v2819
        %v2852 = vadd.f32 %v2714, %v2820
        %v2853 = vadd.f32 %v2715, %v2821
        %v2854 = vadd.f32 %v2716, %v2822
        %v2855 = vadd.f32 %v2717, %v2823
        %v2856 = vadd.f32 %v2718, %v2824
        %v2857 = vadd.f32 %v2719, %v2825
        %v2858 = vadd.f32 %v2720, %v2826
        %v2859 = vadd.f32 %v2721, %v2827
        %v2860 = vadd.f32 %v2722, %v2828
        %v2861 = vadd.f32 %v2723, %v2829
        %v2862 = vadd.f32 %v2724, %v2830
        %v2863 = vadd.f32 %v2725, %v2831
        %v2864 = vadd.f32 %v2726, %v2832
        %v2865 = vadd.f32 %v2727, %v2833
        %v2866 = vadd.f32 %v2728, %v2834
        %v2867 = vadd.f32 %v2729, %v2835
        %v2868 = vadd.f32 %v2730, %v2836
        %v2869 = vadd.f32 %v2731, %v2837
        %v2870 = vadd.f32 %v2732, %v2838
        %v2871 = vadd.f32 %v2733, %v2839
        %v2872 = vadd.f32 %v2734, %v2840
        %v2873 = vadd.f32 %v2735, %v2841
        %v2874 = vadd.f32 %v2736, %v2842
        %v2875 = vadd.f32 %v2737, %v2843
        %v2876 = vadd.f32 %v2738, %v2844
        %v2877 = vadd.f32 %v2739, %v2845
        %v2878 = vadd.f32 %v2740, %v2846
        %v2879 = vadd.f32 %v2741, %v2847
        %v2880 = vadd.f32 %v2742, %v2848
        %v2881 = vadd.f32 %v2743, %v2849
        %v2882 = vadd.f32 %v2744, %v2850
        %v2883 = vpack.c.bf16 %v2853, %v2851
        %v2884 = vpack.c.bf16 %v2854, %v2852
        %v2885 = vpack.c.bf16 %v2857, %v2855
        %v2886 = vpack.c.bf16 %v2858, %v2856
        %v2887 = vpack.c.bf16 %v2861, %v2859
        %v2888 = vpack.c.bf16 %v2862, %v2860
        %v2889 = vpack.c.bf16 %v2865, %v2863
        %v2890 = vpack.c.bf16 %v2866, %v2864
        %v2891 = vpack.c.bf16 %v2869, %v2867
        %v2892 = vpack.c.bf16 %v2870, %v2868
        %v2893 = vpack.c.bf16 %v2873, %v2871
        %v2894 = vpack.c.bf16 %v2874, %v2872
        %v2895 = vpack.c.bf16 %v2877, %v2875
        %v2896 = vpack.c.bf16 %v2878, %v2876
        %v2897 = vpack.c.bf16 %v2881, %v2879
        %v2898 = vpack.c.bf16 %v2882, %v2880
        %v2899 = vld [vmem:[%s1] sm:$0xf]
        %v2900 = vld [vmem:[%s1 + $0x4] sm:$0xf]
        %v2901 = vld [vmem:[%s1 + $0x8] sm:$0xf]
        %v2902 = vld [vmem:[%s1 + $0xc] sm:$0xf]
        %v2903 = vld [vmem:[%s1 + $0x10] sm:$0xf]
        %v2904 = vld [vmem:[%s1 + $0x14] sm:$0xf]
        %v2905 = vld [vmem:[%s1 + $0x18] sm:$0xf]
        %v2906 = vld [vmem:[%s1 + $0x1c] sm:$0xf]
        %v2907 = vld [vmem:[%s1 + $0x20] sm:$0xf]
        %v2908 = vld [vmem:[%s1 + $0x24] sm:$0xf]
        %v2909 = vld [vmem:[%s1 + $0x28] sm:$0xf]
        %v2910 = vld [vmem:[%s1 + $0x2c] sm:$0xf]
        %v2911 = vld [vmem:[%s1 + $0x30] sm:$0xf]
        %v2912 = vld [vmem:[%s1 + $0x34] sm:$0xf]
        %v2913 = vld [vmem:[%s1 + $0x38] sm:$0xf]
        %v2914 = vld [vmem:[%s1 + $0x3c] sm:$0xf]
        %v2915 = vld [vmem:[%s1 + $0x40] sm:$0xf]
        %v2916 = vld [vmem:[%s1 + $0x44] sm:$0xf]
        %v2917 = vld [vmem:[%s1 + $0x48] sm:$0xf]
        %v2918 = vld [vmem:[%s1 + $0x4c] sm:$0xf]
        %v2919 = vld [vmem:[%s1 + $0x50] sm:$0xf]
        %v2920 = vld [vmem:[%s1 + $0x54] sm:$0xf]
        %v2921 = vld [vmem:[%s1 + $0x58] sm:$0xf]
        %v2922 = vld [vmem:[%s1 + $0x5c] sm:$0xf]
        %v2923 = vld [vmem:[%s1 + $0x60] sm:$0xf]
        %v2924 = vld [vmem:[%s1 + $0x64] sm:$0xf]
        %v2925 = vld [vmem:[%s1 + $0x68] sm:$0xf]
        %v2926 = vld [vmem:[%s1 + $0x6c] sm:$0xf]
        %v2927 = vld [vmem:[%s1 + $0x70] sm:$0xf]
        %v2928 = vld [vmem:[%s1 + $0x74] sm:$0xf]
        %v2929 = vld [vmem:[%s1 + $0x78] sm:$0xf]
        %v2930 = vld [vmem:[%s1 + $0x7c] sm:$0xf]
        %v2931 = vld [vmem:[%s1 + $0x80] sm:$0xf]
        %v2932 = vld [vmem:[%s1 + $0x84] sm:$0xf]
        %v2933 = vld [vmem:[%s1 + $0x88] sm:$0xf]
        %v2934 = vld [vmem:[%s1 + $0x8c] sm:$0xf]
        %v2935 = vld [vmem:[%s1 + $0x90] sm:$0xf]
        %v2936 = vld [vmem:[%s1 + $0x94] sm:$0xf]
        %v2937 = vld [vmem:[%s1 + $0x98] sm:$0xf]
        %v2938 = vld [vmem:[%s1 + $0x9c] sm:$0xf]
        %v2939 = vld [vmem:[%s1 + $0xa0] sm:$0xf]
        %v2940 = vld [vmem:[%s1 + $0xa4] sm:$0xf]
        %v2941 = vld [vmem:[%s1 + $0xa8] sm:$0xf]
        %v2942 = vld [vmem:[%s1 + $0xac] sm:$0xf]
        %v2943 = vld [vmem:[%s1 + $0xb0] sm:$0xf]
        %v2944 = vld [vmem:[%s1 + $0xb4] sm:$0xf]
        %v2945 = vld [vmem:[%s1 + $0xb8] sm:$0xf]
        %v2946 = vld [vmem:[%s1 + $0xbc] sm:$0xf]
        %v2947 = vld [vmem:[%s1 + $0xc0] sm:$0xf]
        %v2948 = vld [vmem:[%s1 + $0xc4] sm:$0xf]
        %v2949 = vld [vmem:[%s1 + $0xc8] sm:$0xf]
        %v2950 = vld [vmem:[%s1 + $0xcc] sm:$0xf]
        %v2951 = vld [vmem:[%s1 + $0xd0] sm:$0xf]
        %v2952 = vld [vmem:[%s1 + $0xd4] sm:$0xf]
        %v2953 = vld [vmem:[%s1 + $0xd8] sm:$0xf]
        %v2954 = vld [vmem:[%s1 + $0xdc] sm:$0xf]
        %v2955 = vld [vmem:[%s1 + $0xe0] sm:$0xf]
        %v2956 = vld [vmem:[%s1 + $0xe4] sm:$0xf]
        %v2957 = vld [vmem:[%s1 + $0xe8] sm:$0xf]
        %v2958 = vld [vmem:[%s1 + $0xec] sm:$0xf]
        %v2959 = vld [vmem:[%s1 + $0xf0] sm:$0xf]
        %v2960 = vld [vmem:[%s1 + $0xf4] sm:$0xf]
        %v2961 = vld [vmem:[%s1 + $0xf8] sm:$0xf]
        %v2962 = vld [vmem:[%s1 + $0xfc] sm:$0xf]
        %v3027 = vunpack.c.l.b16 %v2899
        %v3028 = vunpack.c.l.b16 %v2900
        %v3029 = vunpack.c.l.b16 %v2901
        %v3030 = vunpack.c.l.b16 %v2902
        %v3031 = vunpack.c.l.b16 %v2903
        %v3032 = vunpack.c.l.b16 %v2904
        %v3033 = vunpack.c.l.b16 %v2905
        %v3034 = vunpack.c.l.b16 %v2906
        %v3035 = vunpack.c.l.b16 %v2907
        %v3036 = vunpack.c.l.b16 %v2908
        %v3037 = vunpack.c.l.b16 %v2909
        %v3038 = vunpack.c.l.b16 %v2910
        %v3039 = vunpack.c.l.b16 %v2911
        %v3040 = vunpack.c.l.b16 %v2912
        %v3041 = vunpack.c.l.b16 %v2913
        %v3042 = vunpack.c.l.b16 %v2914
        %v3043 = vunpack.c.l.b16 %v2915
        %v3044 = vunpack.c.l.b16 %v2916
        %v3045 = vunpack.c.l.b16 %v2917
        %v3046 = vunpack.c.l.b16 %v2918
        %v3047 = vunpack.c.l.b16 %v2919
        %v3048 = vunpack.c.l.b16 %v2920
        %v3049 = vunpack.c.l.b16 %v2921
        %v3050 = vunpack.c.l.b16 %v2922
        %v3051 = vunpack.c.l.b16 %v2923
        %v3052 = vunpack.c.l.b16 %v2924
        %v3053 = vunpack.c.l.b16 %v2925
        %v3054 = vunpack.c.l.b16 %v2926
        %v3055 = vunpack.c.l.b16 %v2927
        %v3056 = vunpack.c.l.b16 %v2928
        %v3057 = vunpack.c.l.b16 %v2929
        %v3058 = vunpack.c.l.b16 %v2930
        %v3059 = vunpack.c.l.b16 %v2931
        %v3060 = vunpack.c.l.b16 %v2932
        %v3061 = vunpack.c.l.b16 %v2933
        %v3062 = vunpack.c.l.b16 %v2934
        %v3063 = vunpack.c.l.b16 %v2935
        %v3064 = vunpack.c.l.b16 %v2936
        %v3065 = vunpack.c.l.b16 %v2937
        %v3066 = vunpack.c.l.b16 %v2938
        %v3067 = vunpack.c.l.b16 %v2939
        %v3068 = vunpack.c.l.b16 %v2940
        %v3069 = vunpack.c.l.b16 %v2941
        %v3070 = vunpack.c.l.b16 %v2942
        %v3071 = vunpack.c.l.b16 %v2943
        %v3072 = vunpack.c.l.b16 %v2944
        %v3073 = vunpack.c.l.b16 %v2945
        %v3074 = vunpack.c.l.b16 %v2946
        %v3075 = vunpack.c.l.b16 %v2947
        %v3076 = vunpack.c.l.b16 %v2948
        %v3077 = vunpack.c.l.b16 %v2949
        %v3078 = vunpack.c.l.b16 %v2950
        %v3079 = vunpack.c.l.b16 %v2951
        %v3080 = vunpack.c.l.b16 %v2952
        %v3081 = vunpack.c.l.b16 %v2953
        %v3082 = vunpack.c.l.b16 %v2954
        %v3083 = vunpack.c.l.b16 %v2955
        %v3084 = vunpack.c.l.b16 %v2956
        %v3085 = vunpack.c.l.b16 %v2957
        %v3086 = vunpack.c.l.b16 %v2958
        %v3087 = vunpack.c.l.b16 %v2959
        %v3088 = vunpack.c.l.b16 %v2960
        %v3089 = vunpack.c.l.b16 %v2961
        %v3090 = vunpack.c.l.b16 %v2962
        %v3091 = vpack.c.b16 %v3028, %v3027
        %v3092 = vpack.c.b16 %v3030, %v3029
        %v3093 = vpack.c.b16 %v3032, %v3031
        %v3094 = vpack.c.b16 %v3034, %v3033
        %v3095 = vpack.c.b16 %v3036, %v3035
        %v3096 = vpack.c.b16 %v3038, %v3037
        %v3097 = vpack.c.b16 %v3040, %v3039
        %v3098 = vpack.c.b16 %v3042, %v3041
        %v3099 = vpack.c.b16 %v3044, %v3043
        %v3100 = vpack.c.b16 %v3046, %v3045
        %v3101 = vpack.c.b16 %v3048, %v3047
        %v3102 = vpack.c.b16 %v3050, %v3049
        %v3103 = vpack.c.b16 %v3052, %v3051
        %v3104 = vpack.c.b16 %v3054, %v3053
        %v3105 = vpack.c.b16 %v3056, %v3055
        %v3106 = vpack.c.b16 %v3058, %v3057
        %v3107 = vpack.c.b16 %v3060, %v3059
        %v3108 = vpack.c.b16 %v3062, %v3061
        %v3109 = vpack.c.b16 %v3064, %v3063
        %v3110 = vpack.c.b16 %v3066, %v3065
        %v3111 = vpack.c.b16 %v3068, %v3067
        %v3112 = vpack.c.b16 %v3070, %v3069
        %v3113 = vpack.c.b16 %v3072, %v3071
        %v3114 = vpack.c.b16 %v3074, %v3073
        %v3115 = vpack.c.b16 %v3076, %v3075
        %v3116 = vpack.c.b16 %v3078, %v3077
        %v3117 = vpack.c.b16 %v3080, %v3079
        %v3118 = vpack.c.b16 %v3082, %v3081
        %v3119 = vpack.c.b16 %v3084, %v3083
        %v3120 = vpack.c.b16 %v3086, %v3085
        %v3121 = vpack.c.b16 %v3088, %v3087
        %v3122 = vpack.c.b16 %v3090, %v3089
        %3155 = vmatprep.subr.bf16.mxu0 %v2884
        %3156 = vmatpush1.bf16.msra.mxu0 %v2883
        %3157 = vmatprep.subr.bf16.mxu0 %v2886
        %3158 = vmatpush1.bf16.msra.mxu0 %v2885
        %3159 = vmatprep.subr.bf16.mxu0 %v2888
        %3160 = vmatpush1.bf16.msra.mxu0 %v2887
        %3161 = vmatprep.subr.bf16.mxu0 %v2890
        %3162 = vmatpush1.bf16.msra.mxu0 %v2889
        %3163 = vmatprep.subr.bf16.mxu0 %v2892
        %3164 = vmatpush1.bf16.msra.mxu0 %v2891
        %3165 = vmatprep.subr.bf16.mxu0 %v2894
        %3166 = vmatpush1.bf16.msra.mxu0 %v2893
        %3167 = vmatprep.subr.bf16.mxu0 %v2896
        %3168 = vmatpush1.bf16.msra.mxu0 %v2895
        %3169 = vmatprep.subr.bf16.mxu0 %v2898
        %3170 = vmatpush1.bf16.msra.mxu0 %v2897
        %3171 = vmatprep.subr.bf16.mxu0 0
        %3172 = vmatpush1.bf16.msra.mxu0 0
        %3173 = vmatprep.subr.bf16.mxu0 0
        %3174 = vmatpush1.bf16.msra.mxu0 0
        %3175 = vmatprep.subr.bf16.mxu0 0
        %3176 = vmatpush1.bf16.msra.mxu0 0
        %3177 = vmatprep.subr.bf16.mxu0 0
        %3178 = vmatpush1.bf16.msra.mxu0 0
        %3179 = vmatprep.subr.bf16.mxu0 0
        %3180 = vmatpush1.bf16.msra.mxu0 0
        %3181 = vmatprep.subr.bf16.mxu0 0
        %3182 = vmatpush1.bf16.msra.mxu0 0
        %3183 = vmatprep.subr.bf16.mxu0 0
        %3184 = vmatpush1.bf16.msra.mxu0 0
        %3185 = vmatprep.subr.bf16.mxu0 0
        %3186 = vmatpush1.bf16.msra.mxu0 0
        %3187 = vmatprep.mubr.bf16.mxu0 0
        %3188 = vmatmul.mubr.bf16.gmra.mrb[0].mxu0 %v3091
        %v3189 = vpop.f32.mrb[0].mxu0
        %v3190 = vadd.f32 0.0, %v3189
        %v3191 = vpop.f32.mrb[0].mxu0
        %v3192 = vadd.f32 0.0, %v3191
        %v3193 = vpop.f32.mrb[0].mxu0
        %v3194 = vadd.f32 0.0, %v3193
        %v3195 = vpop.f32.mrb[0].mxu0
        %v3196 = vadd.f32 0.0, %v3195
        %3197 = vmatprep.mubr.bf16.mxu0 0
        %3198 = vmatmul.mubr.bf16.gmra.mrb[0].mxu0 %v3092
        %v3199 = vpop.f32.mrb[0].mxu0
        %v3200 = vadd.f32 0.0, %v3199
        %v3201 = vpop.f32.mrb[0].mxu0
        %v3202 = vadd.f32 0.0, %v3201
        %v3203 = vpop.f32.mrb[0].mxu0
        %v3204 = vadd.f32 0.0, %v3203
        %v3205 = vpop.f32.mrb[0].mxu0
        %v3206 = vadd.f32 0.0, %v3205
        %3207 = vmatprep.mubr.bf16.mxu0 0
        %3208 = vmatmul.mubr.bf16.gmra.mrb[0].mxu0 %v3093
        %v3209 = vpop.f32.mrb[0].mxu0
        %v3210 = vadd.f32 0.0, %v3209
        %v3211 = vpop.f32.mrb[0].mxu0
        %v3212 = vadd.f32 0.0, %v3211
        %v3213 = vpop.f32.mrb[0].mxu0
        %v3214 = vadd.f32 0.0, %v3213
        %v3215 = vpop.f32.mrb[0].mxu0
        %v3216 = vadd.f32 0.0, %v3215
        %3217 = vmatprep.mubr.bf16.mxu0 0
        %3218 = vmatmul.mubr.bf16.gmra.mrb[0].mxu0 %v3094
        %v3219 = vpop.f32.mrb[0].mxu0
        %v3220 = vadd.f32 0.0, %v3219
        %v3221 = vpop.f32.mrb[0].mxu0
        %v3222 = vadd.f32 0.0, %v3221
        %v3223 = vpop.f32.mrb[0].mxu0
        %v3224 = vadd.f32 0.0, %v3223
        %v3225 = vpop.f32.mrb[0].mxu0
        %v3226 = vadd.f32 0.0, %v3225
        %3227 = vmatprep.mubr.bf16.mxu0 0
        %3228 = vmatmul.mubr.bf16.gmra.mrb[0].mxu0 %v3095
        %v3229 = vpop.f32.mrb[0].mxu0
        %v3230 = vadd.f32 0.0, %v3229
        %v3231 = vpop.f32.mrb[0].mxu0
        %v3232 = vadd.f32 0.0, %v3231
        %v3233 = vpop.f32.mrb[0].mxu0
        %v3234 = vadd.f32 0.0, %v3233
        %v3235 = vpop.f32.mrb[0].mxu0
        %v3236 = vadd.f32 0.0, %v3235
        %3237 = vmatprep.mubr.bf16.mxu0 0
        %3238 = vmatmul.mubr.bf16.gmra.mrb[0].mxu0 %v3096
        %v3239 = vpop.f32.mrb[0].mxu0
        %v3240 = vadd.f32 0.0, %v3239
        %v3241 = vpop.f32.mrb[0].mxu0
        %v3242 = vadd.f32 0.0, %v3241
        %v3243 = vpop.f32.mrb[0].mxu0
        %v3244 = vadd.f32 0.0, %v3243
        %v3245 = vpop.f32.mrb[0].mxu0
        %v3246 = vadd.f32 0.0, %v3245
        %3247 = vmatprep.mubr.bf16.mxu0 0
        %3248 = vmatmul.mubr.bf16.gmra.mrb[0].mxu0 %v3097
        %v3249 = vpop.f32.mrb[0].mxu0
        %v3250 = vadd.f32 0.0, %v3249
        %v3251 = vpop.f32.mrb[0].mxu0
        %v3252 = vadd.f32 0.0, %v3251
        %v3253 = vpop.f32.mrb[0].mxu0
        %v3254 = vadd.f32 0.0, %v3253
        %v3255 = vpop.f32.mrb[0].mxu0
        %v3256 = vadd.f32 0.0, %v3255
        %3257 = vmatprep.mubr.bf16.mxu0 0
        %3258 = vmatmul.mubr.bf16.gmra.mrb[0].mxu0 %v3098
        %v3259 = vpop.f32.mrb[0].mxu0
        %v3260 = vadd.f32 0.0, %v3259
        %v3261 = vpop.f32.mrb[0].mxu0
        %v3262 = vadd.f32 0.0, %v3261
        %v3263 = vpop.f32.mrb[0].mxu0
        %v3264 = vadd.f32 0.0, %v3263
        %v3265 = vpop.f32.mrb[0].mxu0
        %v3266 = vadd.f32 0.0, %v3265
        %3267 = vmatprep.mubr.bf16.mxu0 0
        %3268 = vmatmul.mubr.bf16.gmra.mrb[0].mxu0 %v3099
        %v3269 = vpop.f32.mrb[0].mxu0
        %v3270 = vadd.f32 0.0, %v3269
        %v3271 = vpop.f32.mrb[0].mxu0
        %v3272 = vadd.f32 0.0, %v3271
        %v3273 = vpop.f32.mrb[0].mxu0
        %v3274 = vadd.f32 0.0, %v3273
        %v3275 = vpop.f32.mrb[0].mxu0
        %v3276 = vadd.f32 0.0, %v3275
        %3277 = vmatprep.mubr.bf16.mxu0 0
        %3278 = vmatmul.mubr.bf16.gmra.mrb[0].mxu0 %v3100
        %v3279 = vpop.f32.mrb[0].mxu0
        %v3280 = vadd.f32 0.0, %v3279
        %v3281 = vpop.f32.mrb[0].mxu0
        %v3282 = vadd.f32 0.0, %v3281
        %v3283 = vpop.f32.mrb[0].mxu0
        %v3284 = vadd.f32 0.0, %v3283
        %v3285 = vpop.f32.mrb[0].mxu0
        %v3286 = vadd.f32 0.0, %v3285
        %3287 = vmatprep.mubr.bf16.mxu0 0
        %3288 = vmatmul.mubr.bf16.gmra.mrb[0].mxu0 %v3101
        %v3289 = vpop.f32.mrb[0].mxu0
        %v3290 = vadd.f32 0.0, %v3289
        %v3291 = vpop.f32.mrb[0].mxu0
        %v3292 = vadd.f32 0.0, %v3291
        %v3293 = vpop.f32.mrb[0].mxu0
        %v3294 = vadd.f32 0.0, %v3293
        %v3295 = vpop.f32.mrb[0].mxu0
        %v3296 = vadd.f32 0.0, %v3295
        %3297 = vmatprep.mubr.bf16.mxu0 0
        %3298 = vmatmul.mubr.bf16.gmra.mrb[0].mxu0 %v3102
        %v3299 = vpop.f32.mrb[0].mxu0
        %v3300 = vadd.f32 0.0, %v3299
        %v3301 = vpop.f32.mrb[0].mxu0
        %v3302 = vadd.f32 0.0, %v3301
        %v3303 = vpop.f32.mrb[0].mxu0
        %v3304 = vadd.f32 0.0, %v3303
        %v3305 = vpop.f32.mrb[0].mxu0
        %v3306 = vadd.f32 0.0, %v3305
        %3307 = vmatprep.mubr.bf16.mxu0 0
        %3308 = vmatmul.mubr.bf16.gmra.mrb[0].mxu0 %v3103
        %v3309 = vpop.f32.mrb[0].mxu0
        %v3310 = vadd.f32 0.0, %v3309
        %v3311 = vpop.f32.mrb[0].mxu0
        %v3312 = vadd.f32 0.0, %v3311
        %v3313 = vpop.f32.mrb[0].mxu0
        %v3314 = vadd.f32 0.0, %v3313
        %v3315 = vpop.f32.mrb[0].mxu0
        %v3316 = vadd.f32 0.0, %v3315
        %3317 = vmatprep.mubr.bf16.mxu0 0
        %3318 = vmatmul.mubr.bf16.gmra.mrb[0].mxu0 %v3104
        %v3319 = vpop.f32.mrb[0].mxu0
        %v3320 = vadd.f32 0.0, %v3319
        %v3321 = vpop.f32.mrb[0].mxu0
        %v3322 = vadd.f32 0.0, %v3321
        %v3323 = vpop.f32.mrb[0].mxu0
        %v3324 = vadd.f32 0.0, %v3323
        %v3325 = vpop.f32.mrb[0].mxu0
        %v3326 = vadd.f32 0.0, %v3325
        %3327 = vmatprep.mubr.bf16.mxu0 0
        %3328 = vmatmul.mubr.bf16.gmra.mrb[0].mxu0 %v3105
        %v3329 = vpop.f32.mrb[0].mxu0
        %v3330 = vadd.f32 0.0, %v3329
        %v3331 = vpop.f32.mrb[0].mxu0
        %v3332 = vadd.f32 0.0, %v3331
        %v3333 = vpop.f32.mrb[0].mxu0
        %v3334 = vadd.f32 0.0, %v3333
        %v3335 = vpop.f32.mrb[0].mxu0
        %v3336 = vadd.f32 0.0, %v3335
        %3337 = vmatprep.mubr.bf16.mxu0 0
        %3338 = vmatmul.mubr.bf16.gmra.mrb[0].mxu0 %v3106
        %v3339 = vpop.f32.mrb[0].mxu0
        %v3340 = vadd.f32 0.0, %v3339
        %v3341 = vpop.f32.mrb[0].mxu0
        %v3342 = vadd.f32 0.0, %v3341
        %v3343 = vpop.f32.mrb[0].mxu0
        %v3344 = vadd.f32 0.0, %v3343
        %v3345 = vpop.f32.mrb[0].mxu0
        %v3346 = vadd.f32 0.0, %v3345
        %3347 = vmatprep.mubr.bf16.mxu0 0
        %3348 = vmatmul.mubr.bf16.gmra.mrb[0].mxu0 %v3107
        %v3349 = vpop.f32.mrb[0].mxu0
        %v3350 = vadd.f32 0.0, %v3349
        %v3351 = vpop.f32.mrb[0].mxu0
        %v3352 = vadd.f32 0.0, %v3351
        %v3353 = vpop.f32.mrb[0].mxu0
        %v3354 = vadd.f32 0.0, %v3353
        %v3355 = vpop.f32.mrb[0].mxu0
        %v3356 = vadd.f32 0.0, %v3355
        %3357 = vmatprep.mubr.bf16.mxu0 0
        %3358 = vmatmul.mubr.bf16.gmra.mrb[0].mxu0 %v3108
        %v3359 = vpop.f32.mrb[0].mxu0
        %v3360 = vadd.f32 0.0, %v3359
        %v3361 = vpop.f32.mrb[0].mxu0
        %v3362 = vadd.f32 0.0, %v3361
        %v3363 = vpop.f32.mrb[0].mxu0
        %v3364 = vadd.f32 0.0, %v3363
        %v3365 = vpop.f32.mrb[0].mxu0
        %v3366 = vadd.f32 0.0, %v3365
        %3367 = vmatprep.mubr.bf16.mxu0 0
        %3368 = vmatmul.mubr.bf16.gmra.mrb[0].mxu0 %v3109
        %v3369 = vpop.f32.mrb[0].mxu0
        %v3370 = vadd.f32 0.0, %v3369
        %v3371 = vpop.f32.mrb[0].mxu0
        %v3372 = vadd.f32 0.0, %v3371
        %v3373 = vpop.f32.mrb[0].mxu0
        %v3374 = vadd.f32 0.0, %v3373
        %v3375 = vpop.f32.mrb[0].mxu0
        %v3376 = vadd.f32 0.0, %v3375
        %3377 = vmatprep.mubr.bf16.mxu0 0
        %3378 = vmatmul.mubr.bf16.gmra.mrb[0].mxu0 %v3110
        %v3379 = vpop.f32.mrb[0].mxu0
        %v3380 = vadd.f32 0.0, %v3379
        %v3381 = vpop.f32.mrb[0].mxu0
        %v3382 = vadd.f32 0.0, %v3381
        %v3383 = vpop.f32.mrb[0].mxu0
        %v3384 = vadd.f32 0.0, %v3383
        %v3385 = vpop.f32.mrb[0].mxu0
        %v3386 = vadd.f32 0.0, %v3385
        %3387 = vmatprep.mubr.bf16.mxu0 0
        %3388 = vmatmul.mubr.bf16.gmra.mrb[0].mxu0 %v3111
        %v3389 = vpop.f32.mrb[0].mxu0
        %v3390 = vadd.f32 0.0, %v3389
        %v3391 = vpop.f32.mrb[0].mxu0
        %v3392 = vadd.f32 0.0, %v3391
        %v3393 = vpop.f32.mrb[0].mxu0
        %v3394 = vadd.f32 0.0, %v3393
        %v3395 = vpop.f32.mrb[0].mxu0
        %v3396 = vadd.f32 0.0, %v3395
        %3397 = vmatprep.mubr.bf16.mxu0 0
        %3398 = vmatmul.mubr.bf16.gmra.mrb[0].mxu0 %v3112
        %v3399 = vpop.f32.mrb[0].mxu0
        %v3400 = vadd.f32 0.0, %v3399
        %v3401 = vpop.f32.mrb[0].mxu0
        %v3402 = vadd.f32 0.0, %v3401
        %v3403 = vpop.f32.mrb[0].mxu0
        %v3404 = vadd.f32 0.0, %v3403
        %v3405 = vpop.f32.mrb[0].mxu0
        %v3406 = vadd.f32 0.0, %v3405
        %3407 = vmatprep.mubr.bf16.mxu0 0
        %3408 = vmatmul.mubr.bf16.gmra.mrb[0].mxu0 %v3113
        %v3409 = vpop.f32.mrb[0].mxu0
        %v3410 = vadd.f32 0.0, %v3409
        %v3411 = vpop.f32.mrb[0].mxu0
        %v3412 = vadd.f32 0.0, %v3411
        %v3413 = vpop.f32.mrb[0].mxu0
        %v3414 = vadd.f32 0.0, %v3413
        %v3415 = vpop.f32.mrb[0].mxu0
        %v3416 = vadd.f32 0.0, %v3415
        %3417 = vmatprep.mubr.bf16.mxu0 0
        %3418 = vmatmul.mubr.bf16.gmra.mrb[0].mxu0 %v3114
        %v3419 = vpop.f32.mrb[0].mxu0
        %v3420 = vadd.f32 0.0, %v3419
        %v3421 = vpop.f32.mrb[0].mxu0
        %v3422 = vadd.f32 0.0, %v3421
        %v3423 = vpop.f32.mrb[0].mxu0
        %v3424 = vadd.f32 0.0, %v3423
        %v3425 = vpop.f32.mrb[0].mxu0
        %v3426 = vadd.f32 0.0, %v3425
        %3427 = vmatprep.mubr.bf16.mxu0 0
        %3428 = vmatmul.mubr.bf16.gmra.mrb[0].mxu0 %v3115
        %v3429 = vpop.f32.mrb[0].mxu0
        %v3430 = vadd.f32 0.0, %v3429
        %v3431 = vpop.f32.mrb[0].mxu0
        %v3432 = vadd.f32 0.0, %v3431
        %v3433 = vpop.f32.mrb[0].mxu0
        %v3434 = vadd.f32 0.0, %v3433
        %v3435 = vpop.f32.mrb[0].mxu0
        %v3436 = vadd.f32 0.0, %v3435
        %3437 = vmatprep.mubr.bf16.mxu0 0
        %3438 = vmatmul.mubr.bf16.gmra.mrb[0].mxu0 %v3116
        %v3439 = vpop.f32.mrb[0].mxu0
        %v3440 = vadd.f32 0.0, %v3439
        %v3441 = vpop.f32.mrb[0].mxu0
        %v3442 = vadd.f32 0.0, %v3441
        %v3443 = vpop.f32.mrb[0].mxu0
        %v3444 = vadd.f32 0.0, %v3443
        %v3445 = vpop.f32.mrb[0].mxu0
        %v3446 = vadd.f32 0.0, %v3445
        %3447 = vmatprep.mubr.bf16.mxu0 0
        %3448 = vmatmul.mubr.bf16.gmra.mrb[0].mxu0 %v3117
        %v3449 = vpop.f32.mrb[0].mxu0
        %v3450 = vadd.f32 0.0, %v3449
        %v3451 = vpop.f32.mrb[0].mxu0
        %v3452 = vadd.f32 0.0, %v3451
        %v3453 = vpop.f32.mrb[0].mxu0
        %v3454 = vadd.f32 0.0, %v3453
        %v3455 = vpop.f32.mrb[0].mxu0
        %v3456 = vadd.f32 0.0, %v3455
        %3457 = vmatprep.mubr.bf16.mxu0 0
        %3458 = vmatmul.mubr.bf16.gmra.mrb[0].mxu0 %v3118
        %v3459 = vpop.f32.mrb[0].mxu0
        %v3460 = vadd.f32 0.0, %v3459
        %v3461 = vpop.f32.mrb[0].mxu0
        %v3462 = vadd.f32 0.0, %v3461
        %v3463 = vpop.f32.mrb[0].mxu0
        %v3464 = vadd.f32 0.0, %v3463
        %v3465 = vpop.f32.mrb[0].mxu0
        %v3466 = vadd.f32 0.0, %v3465
        %3467 = vmatprep.mubr.bf16.mxu0 0
        %3468 = vmatmul.mubr.bf16.gmra.mrb[0].mxu0 %v3119
        %v3469 = vpop.f32.mrb[0].mxu0
        %v3470 = vadd.f32 0.0, %v3469
        %v3471 = vpop.f32.mrb[0].mxu0
        %v3472 = vadd.f32 0.0, %v3471
        %v3473 = vpop.f32.mrb[0].mxu0
        %v3474 = vadd.f32 0.0, %v3473
        %v3475 = vpop.f32.mrb[0].mxu0
        %v3476 = vadd.f32 0.0, %v3475
        %3477 = vmatprep.mubr.bf16.mxu0 0
        %3478 = vmatmul.mubr.bf16.gmra.mrb[0].mxu0 %v3120
        %v3479 = vpop.f32.mrb[0].mxu0
        %v3480 = vadd.f32 0.0, %v3479
        %v3481 = vpop.f32.mrb[0].mxu0
        %v3482 = vadd.f32 0.0, %v3481
        %v3483 = vpop.f32.mrb[0].mxu0
        %v3484 = vadd.f32 0.0, %v3483
        %v3485 = vpop.f32.mrb[0].mxu0
        %v3486 = vadd.f32 0.0, %v3485
        %3487 = vmatprep.mubr.bf16.mxu0 0
        %3488 = vmatmul.mubr.bf16.gmra.mrb[0].mxu0 %v3121
        %v3489 = vpop.f32.mrb[0].mxu0
        %v3490 = vadd.f32 0.0, %v3489
        %v3491 = vpop.f32.mrb[0].mxu0
        %v3492 = vadd.f32 0.0, %v3491
        %v3493 = vpop.f32.mrb[0].mxu0
        %v3494 = vadd.f32 0.0, %v3493
        %v3495 = vpop.f32.mrb[0].mxu0
        %v3496 = vadd.f32 0.0, %v3495
        %3497 = vmatprep.mubr.bf16.mxu0 0
        %3498 = vmatmul.mubr.bf16.gmra.mrb[0].mxu0 %v3122
        %v3499 = vpop.f32.mrb[0].mxu0
        %v3500 = vadd.f32 0.0, %v3499
        %v3501 = vpop.f32.mrb[0].mxu0
        %v3502 = vadd.f32 0.0, %v3501
        %v3503 = vpop.f32.mrb[0].mxu0
        %v3504 = vadd.f32 0.0, %v3503
        %v3505 = vpop.f32.mrb[0].mxu0
        %v3506 = vadd.f32 0.0, %v3505
        %3507 = vdwg.mxu0
        %v3508 = vld [vmem:[%s2] sm:$0xf]
        %v3509 = vld [vmem:[%s2 + $0x4] sm:$0xf]
        %v3510 = vld [vmem:[%s2 + $0x8] sm:$0xf]
        %v3511 = vld [vmem:[%s2 + $0xc] sm:$0xf]
        %v3512 = vld [vmem:[%s2 + $0x10] sm:$0xf]
        %v3513 = vld [vmem:[%s2 + $0x14] sm:$0xf]
        %v3514 = vld [vmem:[%s2 + $0x18] sm:$0xf]
        %v3515 = vld [vmem:[%s2 + $0x1c] sm:$0xf]
        %v3516 = vld [vmem:[%s2 + $0x20] sm:$0xf]
        %v3517 = vld [vmem:[%s2 + $0x24] sm:$0xf]
        %v3518 = vld [vmem:[%s2 + $0x28] sm:$0xf]
        %v3519 = vld [vmem:[%s2 + $0x2c] sm:$0xf]
        %v3520 = vld [vmem:[%s2 + $0x30] sm:$0xf]
        %v3521 = vld [vmem:[%s2 + $0x34] sm:$0xf]
        %v3522 = vld [vmem:[%s2 + $0x38] sm:$0xf]
        %v3523 = vld [vmem:[%s2 + $0x3c] sm:$0xf]
        %v3524 = vld [vmem:[%s2 + $0x40] sm:$0xf]
        %v3525 = vld [vmem:[%s2 + $0x44] sm:$0xf]
        %v3526 = vld [vmem:[%s2 + $0x48] sm:$0xf]
        %v3527 = vld [vmem:[%s2 + $0x4c] sm:$0xf]
        %v3528 = vld [vmem:[%s2 + $0x50] sm:$0xf]
        %v3529 = vld [vmem:[%s2 + $0x54] sm:$0xf]
        %v3530 = vld [vmem:[%s2 + $0x58] sm:$0xf]
        %v3531 = vld [vmem:[%s2 + $0x5c] sm:$0xf]
        %v3532 = vld [vmem:[%s2 + $0x60] sm:$0xf]
        %v3533 = vld [vmem:[%s2 + $0x64] sm:$0xf]
        %v3534 = vld [vmem:[%s2 + $0x68] sm:$0xf]
        %v3535 = vld [vmem:[%s2 + $0x6c] sm:$0xf]
        %v3536 = vld [vmem:[%s2 + $0x70] sm:$0xf]
        %v3537 = vld [vmem:[%s2 + $0x74] sm:$0xf]
        %v3538 = vld [vmem:[%s2 + $0x78] sm:$0xf]
        %v3539 = vld [vmem:[%s2 + $0x7c] sm:$0xf]
        %v3540 = vld [vmem:[%s2 + $0x80] sm:$0xf]
        %v3541 = vld [vmem:[%s2 + $0x84] sm:$0xf]
        %v3542 = vld [vmem:[%s2 + $0x88] sm:$0xf]
        %v3543 = vld [vmem:[%s2 + $0x8c] sm:$0xf]
        %v3544 = vld [vmem:[%s2 + $0x90] sm:$0xf]
        %v3545 = vld [vmem:[%s2 + $0x94] sm:$0xf]
        %v3546 = vld [vmem:[%s2 + $0x98] sm:$0xf]
        %v3547 = vld [vmem:[%s2 + $0x9c] sm:$0xf]
        %v3548 = vld [vmem:[%s2 + $0xa0] sm:$0xf]
        %v3549 = vld [vmem:[%s2 + $0xa4] sm:$0xf]
        %v3550 = vld [vmem:[%s2 + $0xa8] sm:$0xf]
        %v3551 = vld [vmem:[%s2 + $0xac] sm:$0xf]
        %v3552 = vld [vmem:[%s2 + $0xb0] sm:$0xf]
        %v3553 = vld [vmem:[%s2 + $0xb4] sm:$0xf]
        %v3554 = vld [vmem:[%s2 + $0xb8] sm:$0xf]
        %v3555 = vld [vmem:[%s2 + $0xbc] sm:$0xf]
        %v3556 = vld [vmem:[%s2 + $0xc0] sm:$0xf]
        %v3557 = vld [vmem:[%s2 + $0xc4] sm:$0xf]
        %v3558 = vld [vmem:[%s2 + $0xc8] sm:$0xf]
        %v3559 = vld [vmem:[%s2 + $0xcc] sm:$0xf]
        %v3560 = vld [vmem:[%s2 + $0xd0] sm:$0xf]
        %v3561 = vld [vmem:[%s2 + $0xd4] sm:$0xf]
        %v3562 = vld [vmem:[%s2 + $0xd8] sm:$0xf]
        %v3563 = vld [vmem:[%s2 + $0xdc] sm:$0xf]
        %v3564 = vld [vmem:[%s2 + $0xe0] sm:$0xf]
        %v3565 = vld [vmem:[%s2 + $0xe4] sm:$0xf]
        %v3566 = vld [vmem:[%s2 + $0xe8] sm:$0xf]
        %v3567 = vld [vmem:[%s2 + $0xec] sm:$0xf]
        %v3568 = vld [vmem:[%s2 + $0xf0] sm:$0xf]
        %v3569 = vld [vmem:[%s2 + $0xf4] sm:$0xf]
        %v3570 = vld [vmem:[%s2 + $0xf8] sm:$0xf]
        %v3571 = vld [vmem:[%s2 + $0xfc] sm:$0xf]
        %v3636 = vunpack.c.l.b16 %v3508
        %v3637 = vunpack.c.l.b16 %v3509
        %v3638 = vunpack.c.l.b16 %v3510
        %v3639 = vunpack.c.l.b16 %v3511
        %v3640 = vunpack.c.l.b16 %v3512
        %v3641 = vunpack.c.l.b16 %v3513
        %v3642 = vunpack.c.l.b16 %v3514
        %v3643 = vunpack.c.l.b16 %v3515
        %v3644 = vunpack.c.l.b16 %v3516
        %v3645 = vunpack.c.l.b16 %v3517
        %v3646 = vunpack.c.l.b16 %v3518
        %v3647 = vunpack.c.l.b16 %v3519
        %v3648 = vunpack.c.l.b16 %v3520
        %v3649 = vunpack.c.l.b16 %v3521
        %v3650 = vunpack.c.l.b16 %v3522
        %v3651 = vunpack.c.l.b16 %v3523
        %v3652 = vunpack.c.l.b16 %v3524
        %v3653 = vunpack.c.l.b16 %v3525
        %v3654 = vunpack.c.l.b16 %v3526
        %v3655 = vunpack.c.l.b16 %v3527
        %v3656 = vunpack.c.l.b16 %v3528
        %v3657 = vunpack.c.l.b16 %v3529
        %v3658 = vunpack.c.l.b16 %v3530
        %v3659 = vunpack.c.l.b16 %v3531
        %v3660 = vunpack.c.l.b16 %v3532
        %v3661 = vunpack.c.l.b16 %v3533
        %v3662 = vunpack.c.l.b16 %v3534
        %v3663 = vunpack.c.l.b16 %v3535
        %v3664 = vunpack.c.l.b16 %v3536
        %v3665 = vunpack.c.l.b16 %v3537
        %v3666 = vunpack.c.l.b16 %v3538
        %v3667 = vunpack.c.l.b16 %v3539
        %v3668 = vunpack.c.l.b16 %v3540
        %v3669 = vunpack.c.l.b16 %v3541
        %v3670 = vunpack.c.l.b16 %v3542
        %v3671 = vunpack.c.l.b16 %v3543
        %v3672 = vunpack.c.l.b16 %v3544
        %v3673 = vunpack.c.l.b16 %v3545
        %v3674 = vunpack.c.l.b16 %v3546
        %v3675 = vunpack.c.l.b16 %v3547
        %v3676 = vunpack.c.l.b16 %v3548
        %v3677 = vunpack.c.l.b16 %v3549
        %v3678 = vunpack.c.l.b16 %v3550
        %v3679 = vunpack.c.l.b16 %v3551
        %v3680 = vunpack.c.l.b16 %v3552
        %v3681 = vunpack.c.l.b16 %v3553
        %v3682 = vunpack.c.l.b16 %v3554
        %v3683 = vunpack.c.l.b16 %v3555
        %v3684 = vunpack.c.l.b16 %v3556
        %v3685 = vunpack.c.l.b16 %v3557
        %v3686 = vunpack.c.l.b16 %v3558
        %v3687 = vunpack.c.l.b16 %v3559
        %v3688 = vunpack.c.l.b16 %v3560
        %v3689 = vunpack.c.l.b16 %v3561
        %v3690 = vunpack.c.l.b16 %v3562
        %v3691 = vunpack.c.l.b16 %v3563
        %v3692 = vunpack.c.l.b16 %v3564
        %v3693 = vunpack.c.l.b16 %v3565
        %v3694 = vunpack.c.l.b16 %v3566
        %v3695 = vunpack.c.l.b16 %v3567
        %v3696 = vunpack.c.l.b16 %v3568
        %v3697 = vunpack.c.l.b16 %v3569
        %v3698 = vunpack.c.l.b16 %v3570
        %v3699 = vunpack.c.l.b16 %v3571
        %v3700 = vpack.c.b16 %v3637, %v3636
        %v3701 = vpack.c.b16 %v3639, %v3638
        %v3702 = vpack.c.b16 %v3641, %v3640
        %v3703 = vpack.c.b16 %v3643, %v3642
        %v3704 = vpack.c.b16 %v3645, %v3644
        %v3705 = vpack.c.b16 %v3647, %v3646
        %v3706 = vpack.c.b16 %v3649, %v3648
        %v3707 = vpack.c.b16 %v3651, %v3650
        %v3708 = vpack.c.b16 %v3653, %v3652
        %v3709 = vpack.c.b16 %v3655, %v3654
        %v3710 = vpack.c.b16 %v3657, %v3656
        %v3711 = vpack.c.b16 %v3659, %v3658
        %v3712 = vpack.c.b16 %v3661, %v3660
        %v3713 = vpack.c.b16 %v3663, %v3662
        %v3714 = vpack.c.b16 %v3665, %v3664
        %v3715 = vpack.c.b16 %v3667, %v3666
        %v3716 = vpack.c.b16 %v3669, %v3668
        %v3717 = vpack.c.b16 %v3671, %v3670
        %v3718 = vpack.c.b16 %v3673, %v3672
        %v3719 = vpack.c.b16 %v3675, %v3674
        %v3720 = vpack.c.b16 %v3677, %v3676
        %v3721 = vpack.c.b16 %v3679, %v3678
        %v3722 = vpack.c.b16 %v3681, %v3680
        %v3723 = vpack.c.b16 %v3683, %v3682
        %v3724 = vpack.c.b16 %v3685, %v3684
        %v3725 = vpack.c.b16 %v3687, %v3686
        %v3726 = vpack.c.b16 %v3689, %v3688
        %v3727 = vpack.c.b16 %v3691, %v3690
        %v3728 = vpack.c.b16 %v3693, %v3692
        %v3729 = vpack.c.b16 %v3695, %v3694
        %v3730 = vpack.c.b16 %v3697, %v3696
        %v3731 = vpack.c.b16 %v3699, %v3698
        %3764 = vmatprep.subr.bf16.mxu0 %v2884
        %3765 = vmatpush1.bf16.msra.mxu0 %v2883
        %3766 = vmatprep.subr.bf16.mxu0 %v2886
        %3767 = vmatpush1.bf16.msra.mxu0 %v2885
        %3768 = vmatprep.subr.bf16.mxu0 %v2888
        %3769 = vmatpush1.bf16.msra.mxu0 %v2887
        %3770 = vmatprep.subr.bf16.mxu0 %v2890
        %3771 = vmatpush1.bf16.msra.mxu0 %v2889
        %3772 = vmatprep.subr.bf16.mxu0 %v2892
        %3773 = vmatpush1.bf16.msra.mxu0 %v2891
        %3774 = vmatprep.subr.bf16.mxu0 %v2894
        %3775 = vmatpush1.bf16.msra.mxu0 %v2893
        %3776 = vmatprep.subr.bf16.mxu0 %v2896
        %3777 = vmatpush1.bf16.msra.mxu0 %v2895
        %3778 = vmatprep.subr.bf16.mxu0 %v2898
        %3779 = vmatpush1.bf16.msra.mxu0 %v2897
        %3780 = vmatprep.subr.bf16.mxu0 0
        %3781 = vmatpush1.bf16.msra.mxu0 0
        %3782 = vmatprep.subr.bf16.mxu0 0
        %3783 = vmatpush1.bf16.msra.mxu0 0
        %3784 = vmatprep.subr.bf16.mxu0 0
        %3785 = vmatpush1.bf16.msra.mxu0 0
        %3786 = vmatprep.subr.bf16.mxu0 0
        %3787 = vmatpush1.bf16.msra.mxu0 0
        %3788 = vmatprep.subr.bf16.mxu0 0
        %3789 = vmatpush1.bf16.msra.mxu0 0
        %3790 = vmatprep.subr.bf16.mxu0 0
        %3791 = vmatpush1.bf16.msra.mxu0 0
        %3792 = vmatprep.subr.bf16.mxu0 0
        %3793 = vmatpush1.bf16.msra.mxu0 0
        %3794 = vmatprep.subr.bf16.mxu0 0
        %3795 = vmatpush1.bf16.msra.mxu0 0
        %3796 = vmatprep.mubr.bf16.mxu0 0
        %3797 = vmatmul.mubr.bf16.gmra.mrb[0].mxu0 %v3700
        %v3798 = vpop.f32.mrb[0].mxu0
        %v3799 = vadd.f32 0.0, %v3798
        %v3800 = vpop.f32.mrb[0].mxu0
        %v3801 = vadd.f32 0.0, %v3800
        %v3802 = vpop.f32.mrb[0].mxu0
        %v3803 = vadd.f32 0.0, %v3802
        %v3804 = vpop.f32.mrb[0].mxu0
        %v3805 = vadd.f32 0.0, %v3804
        %3806 = vmatprep.mubr.bf16.mxu0 0
        %3807 = vmatmul.mubr.bf16.gmra.mrb[0].mxu0 %v3701
        %v3808 = vpop.f32.mrb[0].mxu0
        %v3809 = vadd.f32 0.0, %v3808
        %v3810 = vpop.f32.mrb[0].mxu0
        %v3811 = vadd.f32 0.0, %v3810
        %v3812 = vpop.f32.mrb[0].mxu0
        %v3813 = vadd.f32 0.0, %v3812
        %v3814 = vpop.f32.mrb[0].mxu0
        %v3815 = vadd.f32 0.0, %v3814
        %3816 = vmatprep.mubr.bf16.mxu0 0
        %3817 = vmatmul.mubr.bf16.gmra.mrb[0].mxu0 %v3702
        %v3818 = vpop.f32.mrb[0].mxu0
        %v3819 = vadd.f32 0.0, %v3818
        %v3820 = vpop.f32.mrb[0].mxu0
        %v3821 = vadd.f32 0.0, %v3820
        %v3822 = vpop.f32.mrb[0].mxu0
        %v3823 = vadd.f32 0.0, %v3822
        %v3824 = vpop.f32.mrb[0].mxu0
        %v3825 = vadd.f32 0.0, %v3824
        %3826 = vmatprep.mubr.bf16.mxu0 0
        %3827 = vmatmul.mubr.bf16.gmra.mrb[0].mxu0 %v3703
        %v3828 = vpop.f32.mrb[0].mxu0
        %v3829 = vadd.f32 0.0, %v3828
        %v3830 = vpop.f32.mrb[0].mxu0
        %v3831 = vadd.f32 0.0, %v3830
        %v3832 = vpop.f32.mrb[0].mxu0
        %v3833 = vadd.f32 0.0, %v3832
        %v3834 = vpop.f32.mrb[0].mxu0
        %v3835 = vadd.f32 0.0, %v3834
        %3836 = vmatprep.mubr.bf16.mxu0 0
        %3837 = vmatmul.mubr.bf16.gmra.mrb[0].mxu0 %v3704
        %v3838 = vpop.f32.mrb[0].mxu0
        %v3839 = vadd.f32 0.0, %v3838
        %v3840 = vpop.f32.mrb[0].mxu0
        %v3841 = vadd.f32 0.0, %v3840
        %v3842 = vpop.f32.mrb[0].mxu0
        %v3843 = vadd.f32 0.0, %v3842
        %v3844 = vpop.f32.mrb[0].mxu0
        %v3845 = vadd.f32 0.0, %v3844
        %3846 = vmatprep.mubr.bf16.mxu0 0
        %3847 = vmatmul.mubr.bf16.gmra.mrb[0].mxu0 %v3705
        %v3848 = vpop.f32.mrb[0].mxu0
        %v3849 = vadd.f32 0.0, %v3848
        %v3850 = vpop.f32.mrb[0].mxu0
        %v3851 = vadd.f32 0.0, %v3850
        %v3852 = vpop.f32.mrb[0].mxu0
        %v3853 = vadd.f32 0.0, %v3852
        %v3854 = vpop.f32.mrb[0].mxu0
        %v3855 = vadd.f32 0.0, %v3854
        %3856 = vmatprep.mubr.bf16.mxu0 0
        %3857 = vmatmul.mubr.bf16.gmra.mrb[0].mxu0 %v3706
        %v3858 = vpop.f32.mrb[0].mxu0
        %v3859 = vadd.f32 0.0, %v3858
        %v3860 = vpop.f32.mrb[0].mxu0
        %v3861 = vadd.f32 0.0, %v3860
        %v3862 = vpop.f32.mrb[0].mxu0
        %v3863 = vadd.f32 0.0, %v3862
        %v3864 = vpop.f32.mrb[0].mxu0
        %v3865 = vadd.f32 0.0, %v3864
        %3866 = vmatprep.mubr.bf16.mxu0 0
        %3867 = vmatmul.mubr.bf16.gmra.mrb[0].mxu0 %v3707
        %v3868 = vpop.f32.mrb[0].mxu0
        %v3869 = vadd.f32 0.0, %v3868
        %v3870 = vpop.f32.mrb[0].mxu0
        %v3871 = vadd.f32 0.0, %v3870
        %v3872 = vpop.f32.mrb[0].mxu0
        %v3873 = vadd.f32 0.0, %v3872
        %v3874 = vpop.f32.mrb[0].mxu0
        %v3875 = vadd.f32 0.0, %v3874
        %3876 = vmatprep.mubr.bf16.mxu0 0
        %3877 = vmatmul.mubr.bf16.gmra.mrb[0].mxu0 %v3708
        %v3878 = vpop.f32.mrb[0].mxu0
        %v3879 = vadd.f32 0.0, %v3878
        %v3880 = vpop.f32.mrb[0].mxu0
        %v3881 = vadd.f32 0.0, %v3880
        %v3882 = vpop.f32.mrb[0].mxu0
        %v3883 = vadd.f32 0.0, %v3882
        %v3884 = vpop.f32.mrb[0].mxu0
        %v3885 = vadd.f32 0.0, %v3884
        %3886 = vmatprep.mubr.bf16.mxu0 0
        %3887 = vmatmul.mubr.bf16.gmra.mrb[0].mxu0 %v3709
        %v3888 = vpop.f32.mrb[0].mxu0
        %v3889 = vadd.f32 0.0, %v3888
        %v3890 = vpop.f32.mrb[0].mxu0
        %v3891 = vadd.f32 0.0, %v3890
        %v3892 = vpop.f32.mrb[0].mxu0
        %v3893 = vadd.f32 0.0, %v3892
        %v3894 = vpop.f32.mrb[0].mxu0
        %v3895 = vadd.f32 0.0, %v3894
        %3896 = vmatprep.mubr.bf16.mxu0 0
        %3897 = vmatmul.mubr.bf16.gmra.mrb[0].mxu0 %v3710
        %v3898 = vpop.f32.mrb[0].mxu0
        %v3899 = vadd.f32 0.0, %v3898
        %v3900 = vpop.f32.mrb[0].mxu0
        %v3901 = vadd.f32 0.0, %v3900
        %v3902 = vpop.f32.mrb[0].mxu0
        %v3903 = vadd.f32 0.0, %v3902
        %v3904 = vpop.f32.mrb[0].mxu0
        %v3905 = vadd.f32 0.0, %v3904
        %3906 = vmatprep.mubr.bf16.mxu0 0
        %3907 = vmatmul.mubr.bf16.gmra.mrb[0].mxu0 %v3711
        %v3908 = vpop.f32.mrb[0].mxu0
        %v3909 = vadd.f32 0.0, %v3908
        %v3910 = vpop.f32.mrb[0].mxu0
        %v3911 = vadd.f32 0.0, %v3910
        %v3912 = vpop.f32.mrb[0].mxu0
        %v3913 = vadd.f32 0.0, %v3912
        %v3914 = vpop.f32.mrb[0].mxu0
        %v3915 = vadd.f32 0.0, %v3914
        %3916 = vmatprep.mubr.bf16.mxu0 0
        %3917 = vmatmul.mubr.bf16.gmra.mrb[0].mxu0 %v3712
        %v3918 = vpop.f32.mrb[0].mxu0
        %v3919 = vadd.f32 0.0, %v3918
        %v3920 = vpop.f32.mrb[0].mxu0
        %v3921 = vadd.f32 0.0, %v3920
        %v3922 = vpop.f32.mrb[0].mxu0
        %v3923 = vadd.f32 0.0, %v3922
        %v3924 = vpop.f32.mrb[0].mxu0
        %v3925 = vadd.f32 0.0, %v3924
        %3926 = vmatprep.mubr.bf16.mxu0 0
        %3927 = vmatmul.mubr.bf16.gmra.mrb[0].mxu0 %v3713
        %v3928 = vpop.f32.mrb[0].mxu0
        %v3929 = vadd.f32 0.0, %v3928
        %v3930 = vpop.f32.mrb[0].mxu0
        %v3931 = vadd.f32 0.0, %v3930
        %v3932 = vpop.f32.mrb[0].mxu0
        %v3933 = vadd.f32 0.0, %v3932
        %v3934 = vpop.f32.mrb[0].mxu0
        %v3935 = vadd.f32 0.0, %v3934
        %3936 = vmatprep.mubr.bf16.mxu0 0
        %3937 = vmatmul.mubr.bf16.gmra.mrb[0].mxu0 %v3714
        %v3938 = vpop.f32.mrb[0].mxu0
        %v3939 = vadd.f32 0.0, %v3938
        %v3940 = vpop.f32.mrb[0].mxu0
        %v3941 = vadd.f32 0.0, %v3940
        %v3942 = vpop.f32.mrb[0].mxu0
        %v3943 = vadd.f32 0.0, %v3942
        %v3944 = vpop.f32.mrb[0].mxu0
        %v3945 = vadd.f32 0.0, %v3944
        %3946 = vmatprep.mubr.bf16.mxu0 0
        %3947 = vmatmul.mubr.bf16.gmra.mrb[0].mxu0 %v3715
        %v3948 = vpop.f32.mrb[0].mxu0
        %v3949 = vadd.f32 0.0, %v3948
        %v3950 = vpop.f32.mrb[0].mxu0
        %v3951 = vadd.f32 0.0, %v3950
        %v3952 = vpop.f32.mrb[0].mxu0
        %v3953 = vadd.f32 0.0, %v3952
        %v3954 = vpop.f32.mrb[0].mxu0
        %v3955 = vadd.f32 0.0, %v3954
        %3956 = vmatprep.mubr.bf16.mxu0 0
        %3957 = vmatmul.mubr.bf16.gmra.mrb[0].mxu0 %v3716
        %v3958 = vpop.f32.mrb[0].mxu0
        %v3959 = vadd.f32 0.0, %v3958
        %v3960 = vpop.f32.mrb[0].mxu0
        %v3961 = vadd.f32 0.0, %v3960
        %v3962 = vpop.f32.mrb[0].mxu0
        %v3963 = vadd.f32 0.0, %v3962
        %v3964 = vpop.f32.mrb[0].mxu0
        %v3965 = vadd.f32 0.0, %v3964
        %3966 = vmatprep.mubr.bf16.mxu0 0
        %3967 = vmatmul.mubr.bf16.gmra.mrb[0].mxu0 %v3717
        %v3968 = vpop.f32.mrb[0].mxu0
        %v3969 = vadd.f32 0.0, %v3968
        %v3970 = vpop.f32.mrb[0].mxu0
        %v3971 = vadd.f32 0.0, %v3970
        %v3972 = vpop.f32.mrb[0].mxu0
        %v3973 = vadd.f32 0.0, %v3972
        %v3974 = vpop.f32.mrb[0].mxu0
        %v3975 = vadd.f32 0.0, %v3974
        %3976 = vmatprep.mubr.bf16.mxu0 0
        %3977 = vmatmul.mubr.bf16.gmra.mrb[0].mxu0 %v3718
        %v3978 = vpop.f32.mrb[0].mxu0
        %v3979 = vadd.f32 0.0, %v3978
        %v3980 = vpop.f32.mrb[0].mxu0
        %v3981 = vadd.f32 0.0, %v3980
        %v3982 = vpop.f32.mrb[0].mxu0
        %v3983 = vadd.f32 0.0, %v3982
        %v3984 = vpop.f32.mrb[0].mxu0
        %v3985 = vadd.f32 0.0, %v3984
        %3986 = vmatprep.mubr.bf16.mxu0 0
        %3987 = vmatmul.mubr.bf16.gmra.mrb[0].mxu0 %v3719
        %v3988 = vpop.f32.mrb[0].mxu0
        %v3989 = vadd.f32 0.0, %v3988
        %v3990 = vpop.f32.mrb[0].mxu0
        %v3991 = vadd.f32 0.0, %v3990
        %v3992 = vpop.f32.mrb[0].mxu0
        %v3993 = vadd.f32 0.0, %v3992
        %v3994 = vpop.f32.mrb[0].mxu0
        %v3995 = vadd.f32 0.0, %v3994
        %3996 = vmatprep.mubr.bf16.mxu0 0
        %3997 = vmatmul.mubr.bf16.gmra.mrb[0].mxu0 %v3720
        %v3998 = vpop.f32.mrb[0].mxu0
        %v3999 = vadd.f32 0.0, %v3998
        %v4000 = vpop.f32.mrb[0].mxu0
        %v4001 = vadd.f32 0.0, %v4000
        %v4002 = vpop.f32.mrb[0].mxu0
        %v4003 = vadd.f32 0.0, %v4002
        %v4004 = vpop.f32.mrb[0].mxu0
        %v4005 = vadd.f32 0.0, %v4004
        %4006 = vmatprep.mubr.bf16.mxu0 0
        %4007 = vmatmul.mubr.bf16.gmra.mrb[0].mxu0 %v3721
        %v4008 = vpop.f32.mrb[0].mxu0
        %v4009 = vadd.f32 0.0, %v4008
        %v4010 = vpop.f32.mrb[0].mxu0
        %v4011 = vadd.f32 0.0, %v4010
        %v4012 = vpop.f32.mrb[0].mxu0
        %v4013 = vadd.f32 0.0, %v4012
        %v4014 = vpop.f32.mrb[0].mxu0
        %v4015 = vadd.f32 0.0, %v4014
        %4016 = vmatprep.mubr.bf16.mxu0 0
        %4017 = vmatmul.mubr.bf16.gmra.mrb[0].mxu0 %v3722
        %v4018 = vpop.f32.mrb[0].mxu0
        %v4019 = vadd.f32 0.0, %v4018
        %v4020 = vpop.f32.mrb[0].mxu0
        %v4021 = vadd.f32 0.0, %v4020
        %v4022 = vpop.f32.mrb[0].mxu0
        %v4023 = vadd.f32 0.0, %v4022
        %v4024 = vpop.f32.mrb[0].mxu0
        %v4025 = vadd.f32 0.0, %v4024
        %4026 = vmatprep.mubr.bf16.mxu0 0
        %4027 = vmatmul.mubr.bf16.gmra.mrb[0].mxu0 %v3723
        %v4028 = vpop.f32.mrb[0].mxu0
        %v4029 = vadd.f32 0.0, %v4028
        %v4030 = vpop.f32.mrb[0].mxu0
        %v4031 = vadd.f32 0.0, %v4030
        %v4032 = vpop.f32.mrb[0].mxu0
        %v4033 = vadd.f32 0.0, %v4032
        %v4034 = vpop.f32.mrb[0].mxu0
        %v4035 = vadd.f32 0.0, %v4034
        %4036 = vmatprep.mubr.bf16.mxu0 0
        %4037 = vmatmul.mubr.bf16.gmra.mrb[0].mxu0 %v3724
        %v4038 = vpop.f32.mrb[0].mxu0
        %v4039 = vadd.f32 0.0, %v4038
        %v4040 = vpop.f32.mrb[0].mxu0
        %v4041 = vadd.f32 0.0, %v4040
        %v4042 = vpop.f32.mrb[0].mxu0
        %v4043 = vadd.f32 0.0, %v4042
        %v4044 = vpop.f32.mrb[0].mxu0
        %v4045 = vadd.f32 0.0, %v4044
        %4046 = vmatprep.mubr.bf16.mxu0 0
        %4047 = vmatmul.mubr.bf16.gmra.mrb[0].mxu0 %v3725
        %v4048 = vpop.f32.mrb[0].mxu0
        %v4049 = vadd.f32 0.0, %v4048
        %v4050 = vpop.f32.mrb[0].mxu0
        %v4051 = vadd.f32 0.0, %v4050
        %v4052 = vpop.f32.mrb[0].mxu0
        %v4053 = vadd.f32 0.0, %v4052
        %v4054 = vpop.f32.mrb[0].mxu0
        %v4055 = vadd.f32 0.0, %v4054
        %4056 = vmatprep.mubr.bf16.mxu0 0
        %4057 = vmatmul.mubr.bf16.gmra.mrb[0].mxu0 %v3726
        %v4058 = vpop.f32.mrb[0].mxu0
        %v4059 = vadd.f32 0.0, %v4058
        %v4060 = vpop.f32.mrb[0].mxu0
        %v4061 = vadd.f32 0.0, %v4060
        %v4062 = vpop.f32.mrb[0].mxu0
        %v4063 = vadd.f32 0.0, %v4062
        %v4064 = vpop.f32.mrb[0].mxu0
        %v4065 = vadd.f32 0.0, %v4064
        %4066 = vmatprep.mubr.bf16.mxu0 0
        %4067 = vmatmul.mubr.bf16.gmra.mrb[0].mxu0 %v3727
        %v4068 = vpop.f32.mrb[0].mxu0
        %v4069 = vadd.f32 0.0, %v4068
        %v4070 = vpop.f32.mrb[0].mxu0
        %v4071 = vadd.f32 0.0, %v4070
        %v4072 = vpop.f32.mrb[0].mxu0
        %v4073 = vadd.f32 0.0, %v4072
        %v4074 = vpop.f32.mrb[0].mxu0
        %v4075 = vadd.f32 0.0, %v4074
        %4076 = vmatprep.mubr.bf16.mxu0 0
        %4077 = vmatmul.mubr.bf16.gmra.mrb[0].mxu0 %v3728
        %v4078 = vpop.f32.mrb[0].mxu0
        %v4079 = vadd.f32 0.0, %v4078
        %v4080 = vpop.f32.mrb[0].mxu0
        %v4081 = vadd.f32 0.0, %v4080
        %v4082 = vpop.f32.mrb[0].mxu0
        %v4083 = vadd.f32 0.0, %v4082
        %v4084 = vpop.f32.mrb[0].mxu0
        %v4085 = vadd.f32 0.0, %v4084
        %4086 = vmatprep.mubr.bf16.mxu0 0
        %4087 = vmatmul.mubr.bf16.gmra.mrb[0].mxu0 %v3729
        %v4088 = vpop.f32.mrb[0].mxu0
        %v4089 = vadd.f32 0.0, %v4088
        %v4090 = vpop.f32.mrb[0].mxu0
        %v4091 = vadd.f32 0.0, %v4090
        %v4092 = vpop.f32.mrb[0].mxu0
        %v4093 = vadd.f32 0.0, %v4092
        %v4094 = vpop.f32.mrb[0].mxu0
        %v4095 = vadd.f32 0.0, %v4094
        %4096 = vmatprep.mubr.bf16.mxu0 0
        %4097 = vmatmul.mubr.bf16.gmra.mrb[0].mxu0 %v3730
        %v4098 = vpop.f32.mrb[0].mxu0
        %v4099 = vadd.f32 0.0, %v4098
        %v4100 = vpop.f32.mrb[0].mxu0
        %v4101 = vadd.f32 0.0, %v4100
        %v4102 = vpop.f32.mrb[0].mxu0
        %v4103 = vadd.f32 0.0, %v4102
        %v4104 = vpop.f32.mrb[0].mxu0
        %v4105 = vadd.f32 0.0, %v4104
        %4106 = vmatprep.mubr.bf16.mxu0 0
        %4107 = vmatmul.mubr.bf16.gmra.mrb[0].mxu0 %v3731
        %v4108 = vpop.f32.mrb[0].mxu0
        %v4109 = vadd.f32 0.0, %v4108
        %v4110 = vpop.f32.mrb[0].mxu0
        %v4111 = vadd.f32 0.0, %v4110
        %v4112 = vpop.f32.mrb[0].mxu0
        %v4113 = vadd.f32 0.0, %v4112
        %v4114 = vpop.f32.mrb[0].mxu0
        %v4115 = vadd.f32 0.0, %v4114
        %4116 = vdwg.mxu0
        %v4117 = vmul.f32 %v3190, %v3799
        %v4118 = vmul.f32 %v3192, %v3801
        %v4119 = vmul.f32 %v3194, %v3803
        %v4120 = vmul.f32 %v3196, %v3805
        %v4121 = vmul.f32 %v3200, %v3809
        %v4122 = vmul.f32 %v3202, %v3811
        %v4123 = vmul.f32 %v3204, %v3813
        %v4124 = vmul.f32 %v3206, %v3815
        %v4125 = vmul.f32 %v3210, %v3819
        %v4126 = vmul.f32 %v3212, %v3821
        %v4127 = vmul.f32 %v3214, %v3823
        %v4128 = vmul.f32 %v3216, %v3825
        %v4129 = vmul.f32 %v3220, %v3829
        %v4130 = vmul.f32 %v3222, %v3831
        %v4131 = vmul.f32 %v3224, %v3833
        %v4132 = vmul.f32 %v3226, %v3835
        %v4133 = vmul.f32 %v3230, %v3839
        %v4134 = vmul.f32 %v3232, %v3841
        %v4135 = vmul.f32 %v3234, %v3843
        %v4136 = vmul.f32 %v3236, %v3845
        %v4137 = vmul.f32 %v3240, %v3849
        %v4138 = vmul.f32 %v3242, %v3851
        %v4139 = vmul.f32 %v3244, %v3853
        %v4140 = vmul.f32 %v3246, %v3855
        %v4141 = vmul.f32 %v3250, %v3859
        %v4142 = vmul.f32 %v3252, %v3861
        %v4143 = vmul.f32 %v3254, %v3863
        %v4144 = vmul.f32 %v3256, %v3865
        %v4145 = vmul.f32 %v3260, %v3869
        %v4146 = vmul.f32 %v3262, %v3871
        %v4147 = vmul.f32 %v3264, %v3873
        %v4148 = vmul.f32 %v3266, %v3875
        %v4149 = vmul.f32 %v3270, %v3879
        %v4150 = vmul.f32 %v3272, %v3881
        %v4151 = vmul.f32 %v3274, %v3883
        %v4152 = vmul.f32 %v3276, %v3885
        %v4153 = vmul.f32 %v3280, %v3889
        %v4154 = vmul.f32 %v3282, %v3891
        %v4155 = vmul.f32 %v3284, %v3893
        %v4156 = vmul.f32 %v3286, %v3895
        %v4157 = vmul.f32 %v3290, %v3899
        %v4158 = vmul.f32 %v3292, %v3901
        %v4159 = vmul.f32 %v3294, %v3903
        %v4160 = vmul.f32 %v3296, %v3905
        %v4161 = vmul.f32 %v3300, %v3909
        %v4162 = vmul.f32 %v3302, %v3911
        %v4163 = vmul.f32 %v3304, %v3913
        %v4164 = vmul.f32 %v3306, %v3915
        %v4165 = vmul.f32 %v3310, %v3919
        %v4166 = vmul.f32 %v3312, %v3921
        %v4167 = vmul.f32 %v3314, %v3923
        %v4168 = vmul.f32 %v3316, %v3925
        %v4169 = vmul.f32 %v3320, %v3929
        %v4170 = vmul.f32 %v3322, %v3931
        %v4171 = vmul.f32 %v3324, %v3933
        %v4172 = vmul.f32 %v3326, %v3935
        %v4173 = vmul.f32 %v3330, %v3939
        %v4174 = vmul.f32 %v3332, %v3941
        %v4175 = vmul.f32 %v3334, %v3943
        %v4176 = vmul.f32 %v3336, %v3945
        %v4177 = vmul.f32 %v3340, %v3949
        %v4178 = vmul.f32 %v3342, %v3951
        %v4179 = vmul.f32 %v3344, %v3953
        %v4180 = vmul.f32 %v3346, %v3955
        %v4181 = vmul.f32 %v3350, %v3959
        %v4182 = vmul.f32 %v3352, %v3961
        %v4183 = vmul.f32 %v3354, %v3963
        %v4184 = vmul.f32 %v3356, %v3965
        %v4185 = vmul.f32 %v3360, %v3969
        %v4186 = vmul.f32 %v3362, %v3971
        %v4187 = vmul.f32 %v3364, %v3973
        %v4188 = vmul.f32 %v3366, %v3975
        %v4189 = vmul.f32 %v3370, %v3979
        %v4190 = vmul.f32 %v3372, %v3981
        %v4191 = vmul.f32 %v3374, %v3983
        %v4192 = vmul.f32 %v3376, %v3985
        %v4193 = vmul.f32 %v3380, %v3989
        %v4194 = vmul.f32 %v3382, %v3991
        %v4195 = vmul.f32 %v3384, %v3993
        %v4196 = vmul.f32 %v3386, %v3995
        %v4197 = vmul.f32 %v3390, %v3999
        %v4198 = vmul.f32 %v3392, %v4001
        %v4199 = vmul.f32 %v3394, %v4003
        %v4200 = vmul.f32 %v3396, %v4005
        %v4201 = vmul.f32 %v3400, %v4009
        %v4202 = vmul.f32 %v3402, %v4011
        %v4203 = vmul.f32 %v3404, %v4013
        %v4204 = vmul.f32 %v3406, %v4015
        %v4205 = vmul.f32 %v3410, %v4019
        %v4206 = vmul.f32 %v3412, %v4021
        %v4207 = vmul.f32 %v3414, %v4023
        %v4208 = vmul.f32 %v3416, %v4025
        %v4209 = vmul.f32 %v3420, %v4029
        %v4210 = vmul.f32 %v3422, %v4031
        %v4211 = vmul.f32 %v3424, %v4033
        %v4212 = vmul.f32 %v3426, %v4035
        %v4213 = vmul.f32 %v3430, %v4039
        %v4214 = vmul.f32 %v3432, %v4041
        %v4215 = vmul.f32 %v3434, %v4043
        %v4216 = vmul.f32 %v3436, %v4045
        %v4217 = vmul.f32 %v3440, %v4049
        %v4218 = vmul.f32 %v3442, %v4051
        %v4219 = vmul.f32 %v3444, %v4053
        %v4220 = vmul.f32 %v3446, %v4055
        %v4221 = vmul.f32 %v3450, %v4059
        %v4222 = vmul.f32 %v3452, %v4061
        %v4223 = vmul.f32 %v3454, %v4063
        %v4224 = vmul.f32 %v3456, %v4065
        %v4225 = vmul.f32 %v3460, %v4069
        %v4226 = vmul.f32 %v3462, %v4071
        %v4227 = vmul.f32 %v3464, %v4073
        %v4228 = vmul.f32 %v3466, %v4075
        %v4229 = vmul.f32 %v3470, %v4079
        %v4230 = vmul.f32 %v3472, %v4081
        %v4231 = vmul.f32 %v3474, %v4083
        %v4232 = vmul.f32 %v3476, %v4085
        %v4233 = vmul.f32 %v3480, %v4089
        %v4234 = vmul.f32 %v3482, %v4091
        %v4235 = vmul.f32 %v3484, %v4093
        %v4236 = vmul.f32 %v3486, %v4095
        %v4237 = vmul.f32 %v3490, %v4099
        %v4238 = vmul.f32 %v3492, %v4101
        %v4239 = vmul.f32 %v3494, %v4103
        %v4240 = vmul.f32 %v3496, %v4105
        %v4241 = vmul.f32 %v3500, %v4109
        %v4242 = vmul.f32 %v3502, %v4111
        %v4243 = vmul.f32 %v3504, %v4113
        %v4244 = vmul.f32 %v3506, %v4115
        %v4245 = vadd.f32 %v4117, %v4119
        %v4246 = vadd.f32 %v4245, %v4121
        %v4247 = vadd.f32 %v4246, %v4123
        %v4248 = vadd.f32 %v4247, %v4125
        %v4249 = vadd.f32 %v4248, %v4127
        %v4250 = vadd.f32 %v4249, %v4129
        %v4251 = vadd.f32 %v4250, %v4131
        %v4252 = vadd.f32 %v4251, %v4133
        %v4253 = vadd.f32 %v4252, %v4135
        %v4254 = vadd.f32 %v4253, %v4137
        %v4255 = vadd.f32 %v4254, %v4139
        %v4256 = vadd.f32 %v4255, %v4141
        %v4257 = vadd.f32 %v4256, %v4143
        %v4258 = vadd.f32 %v4257, %v4145
        %v4259 = vadd.f32 %v4258, %v4147
        %v4260 = vadd.f32 %v4259, %v4149
        %v4261 = vadd.f32 %v4260, %v4151
        %v4262 = vadd.f32 %v4261, %v4153
        %v4263 = vadd.f32 %v4262, %v4155
        %v4264 = vadd.f32 %v4263, %v4157
        %v4265 = vadd.f32 %v4264, %v4159
        %v4266 = vadd.f32 %v4265, %v4161
        %v4267 = vadd.f32 %v4266, %v4163
        %v4268 = vadd.f32 %v4267, %v4165
        %v4269 = vadd.f32 %v4268, %v4167
        %v4270 = vadd.f32 %v4269, %v4169
        %v4271 = vadd.f32 %v4270, %v4171
        %v4272 = vadd.f32 %v4271, %v4173
        %v4273 = vadd.f32 %v4272, %v4175
        %v4274 = vadd.f32 %v4273, %v4177
        %v4275 = vadd.f32 %v4274, %v4179
        %v4276 = vadd.f32 %v4275, %v4181
        %v4277 = vadd.f32 %v4276, %v4183
        %v4278 = vadd.f32 %v4277, %v4185
        %v4279 = vadd.f32 %v4278, %v4187
        %v4280 = vadd.f32 %v4279, %v4189
        %v4281 = vadd.f32 %v4280, %v4191
        %v4282 = vadd.f32 %v4281, %v4193
        %v4283 = vadd.f32 %v4282, %v4195
        %v4284 = vadd.f32 %v4283, %v4197
        %v4285 = vadd.f32 %v4284, %v4199
        %v4286 = vadd.f32 %v4285, %v4201
        %v4287 = vadd.f32 %v4286, %v4203
        %v4288 = vadd.f32 %v4287, %v4205
        %v4289 = vadd.f32 %v4288, %v4207
        %v4290 = vadd.f32 %v4289, %v4209
        %v4291 = vadd.f32 %v4290, %v4211
        %v4292 = vadd.f32 %v4291, %v4213
        %v4293 = vadd.f32 %v4292, %v4215
        %v4294 = vadd.f32 %v4293, %v4217
        %v4295 = vadd.f32 %v4294, %v4219
        %v4296 = vadd.f32 %v4295, %v4221
        %v4297 = vadd.f32 %v4296, %v4223
        %v4298 = vadd.f32 %v4297, %v4225
        %v4299 = vadd.f32 %v4298, %v4227
        %v4300 = vadd.f32 %v4299, %v4229
        %v4301 = vadd.f32 %v4300, %v4231
        %v4302 = vadd.f32 %v4301, %v4233
        %v4303 = vadd.f32 %v4302, %v4235
        %v4304 = vadd.f32 %v4303, %v4237
        %v4305 = vadd.f32 %v4304, %v4239
        %v4306 = vadd.f32 %v4305, %v4241
        %v4307 = vadd.f32 %v4306, %v4243
        %v4308 = vrot.slane %v4307, 4
        %v4309 = vadd.f32 %v4307, %v4308
        %v4310 = vrot.slane %v4309, 2
        %v4311 = vadd.f32 %v4309, %v4310
        %v4312 = vrot.slane %v4311, 1
        %v4313 = vadd.f32 %v4311, %v4312
        %v4314 = vadd.f32 %v4118, %v4120
        %v4315 = vadd.f32 %v4314, %v4122
        %v4316 = vadd.f32 %v4315, %v4124
        %v4317 = vadd.f32 %v4316, %v4126
        %v4318 = vadd.f32 %v4317, %v4128
        %v4319 = vadd.f32 %v4318, %v4130
        %v4320 = vadd.f32 %v4319, %v4132
        %v4321 = vadd.f32 %v4320, %v4134
        %v4322 = vadd.f32 %v4321, %v4136
        %v4323 = vadd.f32 %v4322, %v4138
        %v4324 = vadd.f32 %v4323, %v4140
        %v4325 = vadd.f32 %v4324, %v4142
        %v4326 = vadd.f32 %v4325, %v4144
        %v4327 = vadd.f32 %v4326, %v4146
        %v4328 = vadd.f32 %v4327, %v4148
        %v4329 = vadd.f32 %v4328, %v4150
        %v4330 = vadd.f32 %v4329, %v4152
        %v4331 = vadd.f32 %v4330, %v4154
        %v4332 = vadd.f32 %v4331, %v4156
        %v4333 = vadd.f32 %v4332, %v4158
        %v4334 = vadd.f32 %v4333, %v4160
        %v4335 = vadd.f32 %v4334, %v4162
        %v4336 = vadd.f32 %v4335, %v4164
        %v4337 = vadd.f32 %v4336, %v4166
        %v4338 = vadd.f32 %v4337, %v4168
        %v4339 = vadd.f32 %v4338, %v4170
        %v4340 = vadd.f32 %v4339, %v4172
        %v4341 = vadd.f32 %v4340, %v4174
        %v4342 = vadd.f32 %v4341, %v4176
        %v4343 = vadd.f32 %v4342, %v4178
        %v4344 = vadd.f32 %v4343, %v4180
        %v4345 = vadd.f32 %v4344, %v4182
        %v4346 = vadd.f32 %v4345, %v4184
        %v4347 = vadd.f32 %v4346, %v4186
        %v4348 = vadd.f32 %v4347, %v4188
        %v4349 = vadd.f32 %v4348, %v4190
        %v4350 = vadd.f32 %v4349, %v4192
        %v4351 = vadd.f32 %v4350, %v4194
        %v4352 = vadd.f32 %v4351, %v4196
        %v4353 = vadd.f32 %v4352, %v4198
        %v4354 = vadd.f32 %v4353, %v4200
        %v4355 = vadd.f32 %v4354, %v4202
        %v4356 = vadd.f32 %v4355, %v4204
        %v4357 = vadd.f32 %v4356, %v4206
        %v4358 = vadd.f32 %v4357, %v4208
        %v4359 = vadd.f32 %v4358, %v4210
        %v4360 = vadd.f32 %v4359, %v4212
        %v4361 = vadd.f32 %v4360, %v4214
        %v4362 = vadd.f32 %v4361, %v4216
        %v4363 = vadd.f32 %v4362, %v4218
        %v4364 = vadd.f32 %v4363, %v4220
        %v4365 = vadd.f32 %v4364, %v4222
        %v4366 = vadd.f32 %v4365, %v4224
        %v4367 = vadd.f32 %v4366, %v4226
        %v4368 = vadd.f32 %v4367, %v4228
        %v4369 = vadd.f32 %v4368, %v4230
        %v4370 = vadd.f32 %v4369, %v4232
        %v4371 = vadd.f32 %v4370, %v4234
        %v4372 = vadd.f32 %v4371, %v4236
        %v4373 = vadd.f32 %v4372, %v4238
        %v4374 = vadd.f32 %v4373, %v4240
        %v4375 = vadd.f32 %v4374, %v4242
        %v4376 = vadd.f32 %v4375, %v4244
        %v4377 = vrot.slane %v4376, 4
        %v4378 = vadd.f32 %v4376, %v4377
        %v4379 = vrot.slane %v4378, 2
        %v4380 = vadd.f32 %v4378, %v4379
        %v4381 = vrot.slane %v4380, 1
        %v4382 = vadd.f32 %v4380, %v4381
        %v4383 = vadd.f32 %v4313, 0.0
        %v4384 = vadd.f32 %v4382, 0.0
        %v4385 = vld [vmem:[%s1 + $0x100] sm:$0xf]
        %v4386 = vld [vmem:[%s1 + $0x104] sm:$0xf]
        %v4387 = vld [vmem:[%s1 + $0x108] sm:$0xf]
        %v4388 = vld [vmem:[%s1 + $0x10c] sm:$0xf]
        %v4389 = vld [vmem:[%s1 + $0x110] sm:$0xf]
        %v4390 = vld [vmem:[%s1 + $0x114] sm:$0xf]
        %v4391 = vld [vmem:[%s1 + $0x118] sm:$0xf]
        %v4392 = vld [vmem:[%s1 + $0x11c] sm:$0xf]
        %v4393 = vld [vmem:[%s1 + $0x120] sm:$0xf]
        %v4394 = vld [vmem:[%s1 + $0x124] sm:$0xf]
        %v4395 = vld [vmem:[%s1 + $0x128] sm:$0xf]
        %v4396 = vld [vmem:[%s1 + $0x12c] sm:$0xf]
        %v4397 = vld [vmem:[%s1 + $0x130] sm:$0xf]
        %v4398 = vld [vmem:[%s1 + $0x134] sm:$0xf]
        %v4399 = vld [vmem:[%s1 + $0x138] sm:$0xf]
        %v4400 = vld [vmem:[%s1 + $0x13c] sm:$0xf]
        %v4401 = vld [vmem:[%s1 + $0x140] sm:$0xf]
        %v4402 = vld [vmem:[%s1 + $0x144] sm:$0xf]
        %v4403 = vld [vmem:[%s1 + $0x148] sm:$0xf]
        %v4404 = vld [vmem:[%s1 + $0x14c] sm:$0xf]
        %v4405 = vld [vmem:[%s1 + $0x150] sm:$0xf]
        %v4406 = vld [vmem:[%s1 + $0x154] sm:$0xf]
        %v4407 = vld [vmem:[%s1 + $0x158] sm:$0xf]
        %v4408 = vld [vmem:[%s1 + $0x15c] sm:$0xf]
        %v4409 = vld [vmem:[%s1 + $0x160] sm:$0xf]
        %v4410 = vld [vmem:[%s1 + $0x164] sm:$0xf]
        %v4411 = vld [vmem:[%s1 + $0x168] sm:$0xf]
        %v4412 = vld [vmem:[%s1 + $0x16c] sm:$0xf]
        %v4413 = vld [vmem:[%s1 + $0x170] sm:$0xf]
        %v4414 = vld [vmem:[%s1 + $0x174] sm:$0xf]
        %v4415 = vld [vmem:[%s1 + $0x178] sm:$0xf]
        %v4416 = vld [vmem:[%s1 + $0x17c] sm:$0xf]
        %v4417 = vld [vmem:[%s1 + $0x180] sm:$0xf]
        %v4418 = vld [vmem:[%s1 + $0x184] sm:$0xf]
        %v4419 = vld [vmem:[%s1 + $0x188] sm:$0xf]
        %v4420 = vld [vmem:[%s1 + $0x18c] sm:$0xf]
        %v4421 = vld [vmem:[%s1 + $0x190] sm:$0xf]
        %v4422 = vld [vmem:[%s1 + $0x194] sm:$0xf]
        %v4423 = vld [vmem:[%s1 + $0x198] sm:$0xf]
        %v4424 = vld [vmem:[%s1 + $0x19c] sm:$0xf]
        %v4425 = vld [vmem:[%s1 + $0x1a0] sm:$0xf]
        %v4426 = vld [vmem:[%s1 + $0x1a4] sm:$0xf]
        %v4427 = vld [vmem:[%s1 + $0x1a8] sm:$0xf]
        %v4428 = vld [vmem:[%s1 + $0x1ac] sm:$0xf]
        %v4429 = vld [vmem:[%s1 + $0x1b0] sm:$0xf]
        %v4430 = vld [vmem:[%s1 + $0x1b4] sm:$0xf]
        %v4431 = vld [vmem:[%s1 + $0x1b8] sm:$0xf]
        %v4432 = vld [vmem:[%s1 + $0x1bc] sm:$0xf]
        %v4433 = vld [vmem:[%s1 + $0x1c0] sm:$0xf]
        %v4434 = vld [vmem:[%s1 + $0x1c4] sm:$0xf]
        %v4435 = vld [vmem:[%s1 + $0x1c8] sm:$0xf]
        %v4436 = vld [vmem:[%s1 + $0x1cc] sm:$0xf]
        %v4437 = vld [vmem:[%s1 + $0x1d0] sm:$0xf]
        %v4438 = vld [vmem:[%s1 + $0x1d4] sm:$0xf]
        %v4439 = vld [vmem:[%s1 + $0x1d8] sm:$0xf]
        %v4440 = vld [vmem:[%s1 + $0x1dc] sm:$0xf]
        %v4441 = vld [vmem:[%s1 + $0x1e0] sm:$0xf]
        %v4442 = vld [vmem:[%s1 + $0x1e4] sm:$0xf]
        %v4443 = vld [vmem:[%s1 + $0x1e8] sm:$0xf]
        %v4444 = vld [vmem:[%s1 + $0x1ec] sm:$0xf]
        %v4445 = vld [vmem:[%s1 + $0x1f0] sm:$0xf]
        %v4446 = vld [vmem:[%s1 + $0x1f4] sm:$0xf]
        %v4447 = vld [vmem:[%s1 + $0x1f8] sm:$0xf]
        %v4448 = vld [vmem:[%s1 + $0x1fc] sm:$0xf]
        %v4513 = vunpack.c.l.b16 %v4385
        %v4514 = vunpack.c.l.b16 %v4386
        %v4515 = vunpack.c.l.b16 %v4387
        %v4516 = vunpack.c.l.b16 %v4388
        %v4517 = vunpack.c.l.b16 %v4389
        %v4518 = vunpack.c.l.b16 %v4390
        %v4519 = vunpack.c.l.b16 %v4391
        %v4520 = vunpack.c.l.b16 %v4392
        %v4521 = vunpack.c.l.b16 %v4393
        %v4522 = vunpack.c.l.b16 %v4394
        %v4523 = vunpack.c.l.b16 %v4395
        %v4524 = vunpack.c.l.b16 %v4396
        %v4525 = vunpack.c.l.b16 %v4397
        %v4526 = vunpack.c.l.b16 %v4398
        %v4527 = vunpack.c.l.b16 %v4399
        %v4528 = vunpack.c.l.b16 %v4400
        %v4529 = vunpack.c.l.b16 %v4401
        %v4530 = vunpack.c.l.b16 %v4402
        %v4531 = vunpack.c.l.b16 %v4403
        %v4532 = vunpack.c.l.b16 %v4404
        %v4533 = vunpack.c.l.b16 %v4405
        %v4534 = vunpack.c.l.b16 %v4406
        %v4535 = vunpack.c.l.b16 %v4407
        %v4536 = vunpack.c.l.b16 %v4408
        %v4537 = vunpack.c.l.b16 %v4409
        %v4538 = vunpack.c.l.b16 %v4410
        %v4539 = vunpack.c.l.b16 %v4411
        %v4540 = vunpack.c.l.b16 %v4412
        %v4541 = vunpack.c.l.b16 %v4413
        %v4542 = vunpack.c.l.b16 %v4414
        %v4543 = vunpack.c.l.b16 %v4415
        %v4544 = vunpack.c.l.b16 %v4416
        %v4545 = vunpack.c.l.b16 %v4417
        %v4546 = vunpack.c.l.b16 %v4418
        %v4547 = vunpack.c.l.b16 %v4419
        %v4548 = vunpack.c.l.b16 %v4420
        %v4549 = vunpack.c.l.b16 %v4421
        %v4550 = vunpack.c.l.b16 %v4422
        %v4551 = vunpack.c.l.b16 %v4423
        %v4552 = vunpack.c.l.b16 %v4424
        %v4553 = vunpack.c.l.b16 %v4425
        %v4554 = vunpack.c.l.b16 %v4426
        %v4555 = vunpack.c.l.b16 %v4427
        %v4556 = vunpack.c.l.b16 %v4428
        %v4557 = vunpack.c.l.b16 %v4429
        %v4558 = vunpack.c.l.b16 %v4430
        %v4559 = vunpack.c.l.b16 %v4431
        %v4560 = vunpack.c.l.b16 %v4432
        %v4561 = vunpack.c.l.b16 %v4433
        %v4562 = vunpack.c.l.b16 %v4434
        %v4563 = vunpack.c.l.b16 %v4435
        %v4564 = vunpack.c.l.b16 %v4436
        %v4565 = vunpack.c.l.b16 %v4437
        %v4566 = vunpack.c.l.b16 %v4438
        %v4567 = vunpack.c.l.b16 %v4439
        %v4568 = vunpack.c.l.b16 %v4440
        %v4569 = vunpack.c.l.b16 %v4441
        %v4570 = vunpack.c.l.b16 %v4442
        %v4571 = vunpack.c.l.b16 %v4443
        %v4572 = vunpack.c.l.b16 %v4444
        %v4573 = vunpack.c.l.b16 %v4445
        %v4574 = vunpack.c.l.b16 %v4446
        %v4575 = vunpack.c.l.b16 %v4447
        %v4576 = vunpack.c.l.b16 %v4448
        %v4577 = vpack.c.b16 %v4514, %v4513
        %v4578 = vpack.c.b16 %v4516, %v4515
        %v4579 = vpack.c.b16 %v4518, %v4517
        %v4580 = vpack.c.b16 %v4520, %v4519
        %v4581 = vpack.c.b16 %v4522, %v4521
        %v4582 = vpack.c.b16 %v4524, %v4523
        %v4583 = vpack.c.b16 %v4526, %v4525
        %v4584 = vpack.c.b16 %v4528, %v4527
        %v4585 = vpack.c.b16 %v4530, %v4529
        %v4586 = vpack.c.b16 %v4532, %v4531
        %v4587 = vpack.c.b16 %v4534, %v4533
        %v4588 = vpack.c.b16 %v4536, %v4535
        %v4589 = vpack.c.b16 %v4538, %v4537
        %v4590 = vpack.c.b16 %v4540, %v4539
        %v4591 = vpack.c.b16 %v4542, %v4541
        %v4592 = vpack.c.b16 %v4544, %v4543
        %v4593 = vpack.c.b16 %v4546, %v4545
        %v4594 = vpack.c.b16 %v4548, %v4547
        %v4595 = vpack.c.b16 %v4550, %v4549
        %v4596 = vpack.c.b16 %v4552, %v4551
        %v4597 = vpack.c.b16 %v4554, %v4553
        %v4598 = vpack.c.b16 %v4556, %v4555
        %v4599 = vpack.c.b16 %v4558, %v4557
        %v4600 = vpack.c.b16 %v4560, %v4559
        %v4601 = vpack.c.b16 %v4562, %v4561
        %v4602 = vpack.c.b16 %v4564, %v4563
        %v4603 = vpack.c.b16 %v4566, %v4565
        %v4604 = vpack.c.b16 %v4568, %v4567
        %v4605 = vpack.c.b16 %v4570, %v4569
        %v4606 = vpack.c.b16 %v4572, %v4571
        %v4607 = vpack.c.b16 %v4574, %v4573
        %v4608 = vpack.c.b16 %v4576, %v4575
        %4641 = vmatprep.subr.bf16.mxu0 %v2884
        %4642 = vmatpush1.bf16.msra.mxu0 %v2883
        %4643 = vmatprep.subr.bf16.mxu0 %v2886
        %4644 = vmatpush1.bf16.msra.mxu0 %v2885
        %4645 = vmatprep.subr.bf16.mxu0 %v2888
        %4646 = vmatpush1.bf16.msra.mxu0 %v2887
        %4647 = vmatprep.subr.bf16.mxu0 %v2890
        %4648 = vmatpush1.bf16.msra.mxu0 %v2889
        %4649 = vmatprep.subr.bf16.mxu0 %v2892
        %4650 = vmatpush1.bf16.msra.mxu0 %v2891
        %4651 = vmatprep.subr.bf16.mxu0 %v2894
        %4652 = vmatpush1.bf16.msra.mxu0 %v2893
        %4653 = vmatprep.subr.bf16.mxu0 %v2896
        %4654 = vmatpush1.bf16.msra.mxu0 %v2895
        %4655 = vmatprep.subr.bf16.mxu0 %v2898
        %4656 = vmatpush1.bf16.msra.mxu0 %v2897
        %4657 = vmatprep.subr.bf16.mxu0 0
        %4658 = vmatpush1.bf16.msra.mxu0 0
        %4659 = vmatprep.subr.bf16.mxu0 0
        %4660 = vmatpush1.bf16.msra.mxu0 0
        %4661 = vmatprep.subr.bf16.mxu0 0
        %4662 = vmatpush1.bf16.msra.mxu0 0
        %4663 = vmatprep.subr.bf16.mxu0 0
        %4664 = vmatpush1.bf16.msra.mxu0 0
        %4665 = vmatprep.subr.bf16.mxu0 0
        %4666 = vmatpush1.bf16.msra.mxu0 0
        %4667 = vmatprep.subr.bf16.mxu0 0
        %4668 = vmatpush1.bf16.msra.mxu0 0
        %4669 = vmatprep.subr.bf16.mxu0 0
        %4670 = vmatpush1.bf16.msra.mxu0 0
        %4671 = vmatprep.subr.bf16.mxu0 0
        %4672 = vmatpush1.bf16.msra.mxu0 0
        %4673 = vmatprep.mubr.bf16.mxu0 0
        %4674 = vmatmul.mubr.bf16.gmra.mrb[0].mxu0 %v4577
        %v4675 = vpop.f32.mrb[0].mxu0
        %v4676 = vadd.f32 0.0, %v4675
        %v4677 = vpop.f32.mrb[0].mxu0
        %v4678 = vadd.f32 0.0, %v4677
        %v4679 = vpop.f32.mrb[0].mxu0
        %v4680 = vadd.f32 0.0, %v4679
        %v4681 = vpop.f32.mrb[0].mxu0
        %v4682 = vadd.f32 0.0, %v4681
        %4683 = vmatprep.mubr.bf16.mxu0 0
        %4684 = vmatmul.mubr.bf16.gmra.mrb[0].mxu0 %v4578
        %v4685 = vpop.f32.mrb[0].mxu0
        %v4686 = vadd.f32 0.0, %v4685
        %v4687 = vpop.f32.mrb[0].mxu0
        %v4688 = vadd.f32 0.0, %v4687
        %v4689 = vpop.f32.mrb[0].mxu0
        %v4690 = vadd.f32 0.0, %v4689
        %v4691 = vpop.f32.mrb[0].mxu0
        %v4692 = vadd.f32 0.0, %v4691
        %4693 = vmatprep.mubr.bf16.mxu0 0
        %4694 = vmatmul.mubr.bf16.gmra.mrb[0].mxu0 %v4579
        %v4695 = vpop.f32.mrb[0].mxu0
        %v4696 = vadd.f32 0.0, %v4695
        %v4697 = vpop.f32.mrb[0].mxu0
        %v4698 = vadd.f32 0.0, %v4697
        %v4699 = vpop.f32.mrb[0].mxu0
        %v4700 = vadd.f32 0.0, %v4699
        %v4701 = vpop.f32.mrb[0].mxu0
        %v4702 = vadd.f32 0.0, %v4701
        %4703 = vmatprep.mubr.bf16.mxu0 0
        %4704 = vmatmul.mubr.bf16.gmra.mrb[0].mxu0 %v4580
        %v4705 = vpop.f32.mrb[0].mxu0
        %v4706 = vadd.f32 0.0, %v4705
        %v4707 = vpop.f32.mrb[0].mxu0
        %v4708 = vadd.f32 0.0, %v4707
        %v4709 = vpop.f32.mrb[0].mxu0
        %v4710 = vadd.f32 0.0, %v4709
        %v4711 = vpop.f32.mrb[0].mxu0
        %v4712 = vadd.f32 0.0, %v4711
        %4713 = vmatprep.mubr.bf16.mxu0 0
        %4714 = vmatmul.mubr.bf16.gmra.mrb[0].mxu0 %v4581
        %v4715 = vpop.f32.mrb[0].mxu0
        %v4716 = vadd.f32 0.0, %v4715
        %v4717 = vpop.f32.mrb[0].mxu0
        %v4718 = vadd.f32 0.0, %v4717
        %v4719 = vpop.f32.mrb[0].mxu0
        %v4720 = vadd.f32 0.0, %v4719
        %v4721 = vpop.f32.mrb[0].mxu0
        %v4722 = vadd.f32 0.0, %v4721
        %4723 = vmatprep.mubr.bf16.mxu0 0
        %4724 = vmatmul.mubr.bf16.gmra.mrb[0].mxu0 %v4582
        %v4725 = vpop.f32.mrb[0].mxu0
        %v4726 = vadd.f32 0.0, %v4725
        %v4727 = vpop.f32.mrb[0].mxu0
        %v4728 = vadd.f32 0.0, %v4727
        %v4729 = vpop.f32.mrb[0].mxu0
        %v4730 = vadd.f32 0.0, %v4729
        %v4731 = vpop.f32.mrb[0].mxu0
        %v4732 = vadd.f32 0.0, %v4731
        %4733 = vmatprep.mubr.bf16.mxu0 0
        %4734 = vmatmul.mubr.bf16.gmra.mrb[0].mxu0 %v4583
        %v4735 = vpop.f32.mrb[0].mxu0
        %v4736 = vadd.f32 0.0, %v4735
        %v4737 = vpop.f32.mrb[0].mxu0
        %v4738 = vadd.f32 0.0, %v4737
        %v4739 = vpop.f32.mrb[0].mxu0
        %v4740 = vadd.f32 0.0, %v4739
        %v4741 = vpop.f32.mrb[0].mxu0
        %v4742 = vadd.f32 0.0, %v4741
        %4743 = vmatprep.mubr.bf16.mxu0 0
        %4744 = vmatmul.mubr.bf16.gmra.mrb[0].mxu0 %v4584
        %v4745 = vpop.f32.mrb[0].mxu0
        %v4746 = vadd.f32 0.0, %v4745
        %v4747 = vpop.f32.mrb[0].mxu0
        %v4748 = vadd.f32 0.0, %v4747
        %v4749 = vpop.f32.mrb[0].mxu0
        %v4750 = vadd.f32 0.0, %v4749
        %v4751 = vpop.f32.mrb[0].mxu0
        %v4752 = vadd.f32 0.0, %v4751
        %4753 = vmatprep.mubr.bf16.mxu0 0
        %4754 = vmatmul.mubr.bf16.gmra.mrb[0].mxu0 %v4585
        %v4755 = vpop.f32.mrb[0].mxu0
        %v4756 = vadd.f32 0.0, %v4755
        %v4757 = vpop.f32.mrb[0].mxu0
        %v4758 = vadd.f32 0.0, %v4757
        %v4759 = vpop.f32.mrb[0].mxu0
        %v4760 = vadd.f32 0.0, %v4759
        %v4761 = vpop.f32.mrb[0].mxu0
        %v4762 = vadd.f32 0.0, %v4761
        %4763 = vmatprep.mubr.bf16.mxu0 0
        %4764 = vmatmul.mubr.bf16.gmra.mrb[0].mxu0 %v4586
        %v4765 = vpop.f32.mrb[0].mxu0
        %v4766 = vadd.f32 0.0, %v4765
        %v4767 = vpop.f32.mrb[0].mxu0
        %v4768 = vadd.f32 0.0, %v4767
        %v4769 = vpop.f32.mrb[0].mxu0
        %v4770 = vadd.f32 0.0, %v4769
        %v4771 = vpop.f32.mrb[0].mxu0
        %v4772 = vadd.f32 0.0, %v4771
        %4773 = vmatprep.mubr.bf16.mxu0 0
        %4774 = vmatmul.mubr.bf16.gmra.mrb[0].mxu0 %v4587
        %v4775 = vpop.f32.mrb[0].mxu0
        %v4776 = vadd.f32 0.0, %v4775
        %v4777 = vpop.f32.mrb[0].mxu0
        %v4778 = vadd.f32 0.0, %v4777
        %v4779 = vpop.f32.mrb[0].mxu0
        %v4780 = vadd.f32 0.0, %v4779
        %v4781 = vpop.f32.mrb[0].mxu0
        %v4782 = vadd.f32 0.0, %v4781
        %4783 = vmatprep.mubr.bf16.mxu0 0
        %4784 = vmatmul.mubr.bf16.gmra.mrb[0].mxu0 %v4588
        %v4785 = vpop.f32.mrb[0].mxu0
        %v4786 = vadd.f32 0.0, %v4785
        %v4787 = vpop.f32.mrb[0].mxu0
        %v4788 = vadd.f32 0.0, %v4787
        %v4789 = vpop.f32.mrb[0].mxu0
        %v4790 = vadd.f32 0.0, %v4789
        %v4791 = vpop.f32.mrb[0].mxu0
        %v4792 = vadd.f32 0.0, %v4791
        %4793 = vmatprep.mubr.bf16.mxu0 0
        %4794 = vmatmul.mubr.bf16.gmra.mrb[0].mxu0 %v4589
        %v4795 = vpop.f32.mrb[0].mxu0
        %v4796 = vadd.f32 0.0, %v4795
        %v4797 = vpop.f32.mrb[0].mxu0
        %v4798 = vadd.f32 0.0, %v4797
        %v4799 = vpop.f32.mrb[0].mxu0
        %v4800 = vadd.f32 0.0, %v4799
        %v4801 = vpop.f32.mrb[0].mxu0
        %v4802 = vadd.f32 0.0, %v4801
        %4803 = vmatprep.mubr.bf16.mxu0 0
        %4804 = vmatmul.mubr.bf16.gmra.mrb[0].mxu0 %v4590
        %v4805 = vpop.f32.mrb[0].mxu0
        %v4806 = vadd.f32 0.0, %v4805
        %v4807 = vpop.f32.mrb[0].mxu0
        %v4808 = vadd.f32 0.0, %v4807
        %v4809 = vpop.f32.mrb[0].mxu0
        %v4810 = vadd.f32 0.0, %v4809
        %v4811 = vpop.f32.mrb[0].mxu0
        %v4812 = vadd.f32 0.0, %v4811
        %4813 = vmatprep.mubr.bf16.mxu0 0
        %4814 = vmatmul.mubr.bf16.gmra.mrb[0].mxu0 %v4591
        %v4815 = vpop.f32.mrb[0].mxu0
        %v4816 = vadd.f32 0.0, %v4815
        %v4817 = vpop.f32.mrb[0].mxu0
        %v4818 = vadd.f32 0.0, %v4817
        %v4819 = vpop.f32.mrb[0].mxu0
        %v4820 = vadd.f32 0.0, %v4819
        %v4821 = vpop.f32.mrb[0].mxu0
        %v4822 = vadd.f32 0.0, %v4821
        %4823 = vmatprep.mubr.bf16.mxu0 0
        %4824 = vmatmul.mubr.bf16.gmra.mrb[0].mxu0 %v4592
        %v4825 = vpop.f32.mrb[0].mxu0
        %v4826 = vadd.f32 0.0, %v4825
        %v4827 = vpop.f32.mrb[0].mxu0
        %v4828 = vadd.f32 0.0, %v4827
        %v4829 = vpop.f32.mrb[0].mxu0
        %v4830 = vadd.f32 0.0, %v4829
        %v4831 = vpop.f32.mrb[0].mxu0
        %v4832 = vadd.f32 0.0, %v4831
        %4833 = vmatprep.mubr.bf16.mxu0 0
        %4834 = vmatmul.mubr.bf16.gmra.mrb[0].mxu0 %v4593
        %v4835 = vpop.f32.mrb[0].mxu0
        %v4836 = vadd.f32 0.0, %v4835
        %v4837 = vpop.f32.mrb[0].mxu0
        %v4838 = vadd.f32 0.0, %v4837
        %v4839 = vpop.f32.mrb[0].mxu0
        %v4840 = vadd.f32 0.0, %v4839
        %v4841 = vpop.f32.mrb[0].mxu0
        %v4842 = vadd.f32 0.0, %v4841
        %4843 = vmatprep.mubr.bf16.mxu0 0
        %4844 = vmatmul.mubr.bf16.gmra.mrb[0].mxu0 %v4594
        %v4845 = vpop.f32.mrb[0].mxu0
        %v4846 = vadd.f32 0.0, %v4845
        %v4847 = vpop.f32.mrb[0].mxu0
        %v4848 = vadd.f32 0.0, %v4847
        %v4849 = vpop.f32.mrb[0].mxu0
        %v4850 = vadd.f32 0.0, %v4849
        %v4851 = vpop.f32.mrb[0].mxu0
        %v4852 = vadd.f32 0.0, %v4851
        %4853 = vmatprep.mubr.bf16.mxu0 0
        %4854 = vmatmul.mubr.bf16.gmra.mrb[0].mxu0 %v4595
        %v4855 = vpop.f32.mrb[0].mxu0
        %v4856 = vadd.f32 0.0, %v4855
        %v4857 = vpop.f32.mrb[0].mxu0
        %v4858 = vadd.f32 0.0, %v4857
        %v4859 = vpop.f32.mrb[0].mxu0
        %v4860 = vadd.f32 0.0, %v4859
        %v4861 = vpop.f32.mrb[0].mxu0
        %v4862 = vadd.f32 0.0, %v4861
        %4863 = vmatprep.mubr.bf16.mxu0 0
        %4864 = vmatmul.mubr.bf16.gmra.mrb[0].mxu0 %v4596
        %v4865 = vpop.f32.mrb[0].mxu0
        %v4866 = vadd.f32 0.0, %v4865
        %v4867 = vpop.f32.mrb[0].mxu0
        %v4868 = vadd.f32 0.0, %v4867
        %v4869 = vpop.f32.mrb[0].mxu0
        %v4870 = vadd.f32 0.0, %v4869
        %v4871 = vpop.f32.mrb[0].mxu0
        %v4872 = vadd.f32 0.0, %v4871
        %4873 = vmatprep.mubr.bf16.mxu0 0
        %4874 = vmatmul.mubr.bf16.gmra.mrb[0].mxu0 %v4597
        %v4875 = vpop.f32.mrb[0].mxu0
        %v4876 = vadd.f32 0.0, %v4875
        %v4877 = vpop.f32.mrb[0].mxu0
        %v4878 = vadd.f32 0.0, %v4877
        %v4879 = vpop.f32.mrb[0].mxu0
        %v4880 = vadd.f32 0.0, %v4879
        %v4881 = vpop.f32.mrb[0].mxu0
        %v4882 = vadd.f32 0.0, %v4881
        %4883 = vmatprep.mubr.bf16.mxu0 0
        %4884 = vmatmul.mubr.bf16.gmra.mrb[0].mxu0 %v4598
        %v4885 = vpop.f32.mrb[0].mxu0
        %v4886 = vadd.f32 0.0, %v4885
        %v4887 = vpop.f32.mrb[0].mxu0
        %v4888 = vadd.f32 0.0, %v4887
        %v4889 = vpop.f32.mrb[0].mxu0
        %v4890 = vadd.f32 0.0, %v4889
        %v4891 = vpop.f32.mrb[0].mxu0
        %v4892 = vadd.f32 0.0, %v4891
        %4893 = vmatprep.mubr.bf16.mxu0 0
        %4894 = vmatmul.mubr.bf16.gmra.mrb[0].mxu0 %v4599
        %v4895 = vpop.f32.mrb[0].mxu0
        %v4896 = vadd.f32 0.0, %v4895
        %v4897 = vpop.f32.mrb[0].mxu0
        %v4898 = vadd.f32 0.0, %v4897
        %v4899 = vpop.f32.mrb[0].mxu0
        %v4900 = vadd.f32 0.0, %v4899
        %v4901 = vpop.f32.mrb[0].mxu0
        %v4902 = vadd.f32 0.0, %v4901
        %4903 = vmatprep.mubr.bf16.mxu0 0
        %4904 = vmatmul.mubr.bf16.gmra.mrb[0].mxu0 %v4600
        %v4905 = vpop.f32.mrb[0].mxu0
        %v4906 = vadd.f32 0.0, %v4905
        %v4907 = vpop.f32.mrb[0].mxu0
        %v4908 = vadd.f32 0.0, %v4907
        %v4909 = vpop.f32.mrb[0].mxu0
        %v4910 = vadd.f32 0.0, %v4909
        %v4911 = vpop.f32.mrb[0].mxu0
        %v4912 = vadd.f32 0.0, %v4911
        %4913 = vmatprep.mubr.bf16.mxu0 0
        %4914 = vmatmul.mubr.bf16.gmra.mrb[0].mxu0 %v4601
        %v4915 = vpop.f32.mrb[0].mxu0
        %v4916 = vadd.f32 0.0, %v4915
        %v4917 = vpop.f32.mrb[0].mxu0
        %v4918 = vadd.f32 0.0, %v4917
        %v4919 = vpop.f32.mrb[0].mxu0
        %v4920 = vadd.f32 0.0, %v4919
        %v4921 = vpop.f32.mrb[0].mxu0
        %v4922 = vadd.f32 0.0, %v4921
        %4923 = vmatprep.mubr.bf16.mxu0 0
        %4924 = vmatmul.mubr.bf16.gmra.mrb[0].mxu0 %v4602
        %v4925 = vpop.f32.mrb[0].mxu0
        %v4926 = vadd.f32 0.0, %v4925
        %v4927 = vpop.f32.mrb[0].mxu0
        %v4928 = vadd.f32 0.0, %v4927
        %v4929 = vpop.f32.mrb[0].mxu0
        %v4930 = vadd.f32 0.0, %v4929
        %v4931 = vpop.f32.mrb[0].mxu0
        %v4932 = vadd.f32 0.0, %v4931
        %4933 = vmatprep.mubr.bf16.mxu0 0
        %4934 = vmatmul.mubr.bf16.gmra.mrb[0].mxu0 %v4603
        %v4935 = vpop.f32.mrb[0].mxu0
        %v4936 = vadd.f32 0.0, %v4935
        %v4937 = vpop.f32.mrb[0].mxu0
        %v4938 = vadd.f32 0.0, %v4937
        %v4939 = vpop.f32.mrb[0].mxu0
        %v4940 = vadd.f32 0.0, %v4939
        %v4941 = vpop.f32.mrb[0].mxu0
        %v4942 = vadd.f32 0.0, %v4941
        %4943 = vmatprep.mubr.bf16.mxu0 0
        %4944 = vmatmul.mubr.bf16.gmra.mrb[0].mxu0 %v4604
        %v4945 = vpop.f32.mrb[0].mxu0
        %v4946 = vadd.f32 0.0, %v4945
        %v4947 = vpop.f32.mrb[0].mxu0
        %v4948 = vadd.f32 0.0, %v4947
        %v4949 = vpop.f32.mrb[0].mxu0
        %v4950 = vadd.f32 0.0, %v4949
        %v4951 = vpop.f32.mrb[0].mxu0
        %v4952 = vadd.f32 0.0, %v4951
        %4953 = vmatprep.mubr.bf16.mxu0 0
        %4954 = vmatmul.mubr.bf16.gmra.mrb[0].mxu0 %v4605
        %v4955 = vpop.f32.mrb[0].mxu0
        %v4956 = vadd.f32 0.0, %v4955
        %v4957 = vpop.f32.mrb[0].mxu0
        %v4958 = vadd.f32 0.0, %v4957
        %v4959 = vpop.f32.mrb[0].mxu0
        %v4960 = vadd.f32 0.0, %v4959
        %v4961 = vpop.f32.mrb[0].mxu0
        %v4962 = vadd.f32 0.0, %v4961
        %4963 = vmatprep.mubr.bf16.mxu0 0
        %4964 = vmatmul.mubr.bf16.gmra.mrb[0].mxu0 %v4606
        %v4965 = vpop.f32.mrb[0].mxu0
        %v4966 = vadd.f32 0.0, %v4965
        %v4967 = vpop.f32.mrb[0].mxu0
        %v4968 = vadd.f32 0.0, %v4967
        %v4969 = vpop.f32.mrb[0].mxu0
        %v4970 = vadd.f32 0.0, %v4969
        %v4971 = vpop.f32.mrb[0].mxu0
        %v4972 = vadd.f32 0.0, %v4971
        %4973 = vmatprep.mubr.bf16.mxu0 0
        %4974 = vmatmul.mubr.bf16.gmra.mrb[0].mxu0 %v4607
        %v4975 = vpop.f32.mrb[0].mxu0
        %v4976 = vadd.f32 0.0, %v4975
        %v4977 = vpop.f32.mrb[0].mxu0
        %v4978 = vadd.f32 0.0, %v4977
        %v4979 = vpop.f32.mrb[0].mxu0
        %v4980 = vadd.f32 0.0, %v4979
        %v4981 = vpop.f32.mrb[0].mxu0
        %v4982 = vadd.f32 0.0, %v4981
        %4983 = vmatprep.mubr.bf16.mxu0 0
        %4984 = vmatmul.mubr.bf16.gmra.mrb[0].mxu0 %v4608
        %v4985 = vpop.f32.mrb[0].mxu0
        %v4986 = vadd.f32 0.0, %v4985
        %v4987 = vpop.f32.mrb[0].mxu0
        %v4988 = vadd.f32 0.0, %v4987
        %v4989 = vpop.f32.mrb[0].mxu0
        %v4990 = vadd.f32 0.0, %v4989
        %v4991 = vpop.f32.mrb[0].mxu0
        %v4992 = vadd.f32 0.0, %v4991
        %4993 = vdwg.mxu0
        %v4994 = vld [vmem:[%s2 + $0x100] sm:$0xf]
        %v4995 = vld [vmem:[%s2 + $0x104] sm:$0xf]
        %v4996 = vld [vmem:[%s2 + $0x108] sm:$0xf]
        %v4997 = vld [vmem:[%s2 + $0x10c] sm:$0xf]
        %v4998 = vld [vmem:[%s2 + $0x110] sm:$0xf]
        %v4999 = vld [vmem:[%s2 + $0x114] sm:$0xf]
        %v5000 = vld [vmem:[%s2 + $0x118] sm:$0xf]
        %v5001 = vld [vmem:[%s2 + $0x11c] sm:$0xf]
        %v5002 = vld [vmem:[%s2 + $0x120] sm:$0xf]
        %v5003 = vld [vmem:[%s2 + $0x124] sm:$0xf]
        %v5004 = vld [vmem:[%s2 + $0x128] sm:$0xf]
        %v5005 = vld [vmem:[%s2 + $0x12c] sm:$0xf]
        %v5006 = vld [vmem:[%s2 + $0x130] sm:$0xf]
        %v5007 = vld [vmem:[%s2 + $0x134] sm:$0xf]
        %v5008 = vld [vmem:[%s2 + $0x138] sm:$0xf]
        %v5009 = vld [vmem:[%s2 + $0x13c] sm:$0xf]
        %v5010 = vld [vmem:[%s2 + $0x140] sm:$0xf]
        %v5011 = vld [vmem:[%s2 + $0x144] sm:$0xf]
        %v5012 = vld [vmem:[%s2 + $0x148] sm:$0xf]
        %v5013 = vld [vmem:[%s2 + $0x14c] sm:$0xf]
        %v5014 = vld [vmem:[%s2 + $0x150] sm:$0xf]
        %v5015 = vld [vmem:[%s2 + $0x154] sm:$0xf]
        %v5016 = vld [vmem:[%s2 + $0x158] sm:$0xf]
        %v5017 = vld [vmem:[%s2 + $0x15c] sm:$0xf]
        %v5018 = vld [vmem:[%s2 + $0x160] sm:$0xf]
        %v5019 = vld [vmem:[%s2 + $0x164] sm:$0xf]
        %v5020 = vld [vmem:[%s2 + $0x168] sm:$0xf]
        %v5021 = vld [vmem:[%s2 + $0x16c] sm:$0xf]
        %v5022 = vld [vmem:[%s2 + $0x170] sm:$0xf]
        %v5023 = vld [vmem:[%s2 + $0x174] sm:$0xf]
        %v5024 = vld [vmem:[%s2 + $0x178] sm:$0xf]
        %v5025 = vld [vmem:[%s2 + $0x17c] sm:$0xf]
        %v5026 = vld [vmem:[%s2 + $0x180] sm:$0xf]
        %v5027 = vld [vmem:[%s2 + $0x184] sm:$0xf]
        %v5028 = vld [vmem:[%s2 + $0x188] sm:$0xf]
        %v5029 = vld [vmem:[%s2 + $0x18c] sm:$0xf]
        %v5030 = vld [vmem:[%s2 + $0x190] sm:$0xf]
        %v5031 = vld [vmem:[%s2 + $0x194] sm:$0xf]
        %v5032 = vld [vmem:[%s2 + $0x198] sm:$0xf]
        %v5033 = vld [vmem:[%s2 + $0x19c] sm:$0xf]
        %v5034 = vld [vmem:[%s2 + $0x1a0] sm:$0xf]
        %v5035 = vld [vmem:[%s2 + $0x1a4] sm:$0xf]
        %v5036 = vld [vmem:[%s2 + $0x1a8] sm:$0xf]
        %v5037 = vld [vmem:[%s2 + $0x1ac] sm:$0xf]
        %v5038 = vld [vmem:[%s2 + $0x1b0] sm:$0xf]
        %v5039 = vld [vmem:[%s2 + $0x1b4] sm:$0xf]
        %v5040 = vld [vmem:[%s2 + $0x1b8] sm:$0xf]
        %v5041 = vld [vmem:[%s2 + $0x1bc] sm:$0xf]
        %v5042 = vld [vmem:[%s2 + $0x1c0] sm:$0xf]
        %v5043 = vld [vmem:[%s2 + $0x1c4] sm:$0xf]
        %v5044 = vld [vmem:[%s2 + $0x1c8] sm:$0xf]
        %v5045 = vld [vmem:[%s2 + $0x1cc] sm:$0xf]
        %v5046 = vld [vmem:[%s2 + $0x1d0] sm:$0xf]
        %v5047 = vld [vmem:[%s2 + $0x1d4] sm:$0xf]
        %v5048 = vld [vmem:[%s2 + $0x1d8] sm:$0xf]
        %v5049 = vld [vmem:[%s2 + $0x1dc] sm:$0xf]
        %v5050 = vld [vmem:[%s2 + $0x1e0] sm:$0xf]
        %v5051 = vld [vmem:[%s2 + $0x1e4] sm:$0xf]
        %v5052 = vld [vmem:[%s2 + $0x1e8] sm:$0xf]
        %v5053 = vld [vmem:[%s2 + $0x1ec] sm:$0xf]
        %v5054 = vld [vmem:[%s2 + $0x1f0] sm:$0xf]
        %v5055 = vld [vmem:[%s2 + $0x1f4] sm:$0xf]
        %v5056 = vld [vmem:[%s2 + $0x1f8] sm:$0xf]
        %v5057 = vld [vmem:[%s2 + $0x1fc] sm:$0xf]
        %v5122 = vunpack.c.l.b16 %v4994
        %v5123 = vunpack.c.l.b16 %v4995
        %v5124 = vunpack.c.l.b16 %v4996
        %v5125 = vunpack.c.l.b16 %v4997
        %v5126 = vunpack.c.l.b16 %v4998
        %v5127 = vunpack.c.l.b16 %v4999
        %v5128 = vunpack.c.l.b16 %v5000
        %v5129 = vunpack.c.l.b16 %v5001
        %v5130 = vunpack.c.l.b16 %v5002
        %v5131 = vunpack.c.l.b16 %v5003
        %v5132 = vunpack.c.l.b16 %v5004
        %v5133 = vunpack.c.l.b16 %v5005
        %v5134 = vunpack.c.l.b16 %v5006
        %v5135 = vunpack.c.l.b16 %v5007
        %v5136 = vunpack.c.l.b16 %v5008
        %v5137 = vunpack.c.l.b16 %v5009
        %v5138 = vunpack.c.l.b16 %v5010
        %v5139 = vunpack.c.l.b16 %v5011
        %v5140 = vunpack.c.l.b16 %v5012
        %v5141 = vunpack.c.l.b16 %v5013
        %v5142 = vunpack.c.l.b16 %v5014
        %v5143 = vunpack.c.l.b16 %v5015
        %v5144 = vunpack.c.l.b16 %v5016
        %v5145 = vunpack.c.l.b16 %v5017
        %v5146 = vunpack.c.l.b16 %v5018
        %v5147 = vunpack.c.l.b16 %v5019
        %v5148 = vunpack.c.l.b16 %v5020
        %v5149 = vunpack.c.l.b16 %v5021
        %v5150 = vunpack.c.l.b16 %v5022
        %v5151 = vunpack.c.l.b16 %v5023
        %v5152 = vunpack.c.l.b16 %v5024
        %v5153 = vunpack.c.l.b16 %v5025
        %v5154 = vunpack.c.l.b16 %v5026
        %v5155 = vunpack.c.l.b16 %v5027
        %v5156 = vunpack.c.l.b16 %v5028
        %v5157 = vunpack.c.l.b16 %v5029
        %v5158 = vunpack.c.l.b16 %v5030
        %v5159 = vunpack.c.l.b16 %v5031
        %v5160 = vunpack.c.l.b16 %v5032
        %v5161 = vunpack.c.l.b16 %v5033
        %v5162 = vunpack.c.l.b16 %v5034
        %v5163 = vunpack.c.l.b16 %v5035
        %v5164 = vunpack.c.l.b16 %v5036
        %v5165 = vunpack.c.l.b16 %v5037
        %v5166 = vunpack.c.l.b16 %v5038
        %v5167 = vunpack.c.l.b16 %v5039
        %v5168 = vunpack.c.l.b16 %v5040
        %v5169 = vunpack.c.l.b16 %v5041
        %v5170 = vunpack.c.l.b16 %v5042
        %v5171 = vunpack.c.l.b16 %v5043
        %v5172 = vunpack.c.l.b16 %v5044
        %v5173 = vunpack.c.l.b16 %v5045
        %v5174 = vunpack.c.l.b16 %v5046
        %v5175 = vunpack.c.l.b16 %v5047
        %v5176 = vunpack.c.l.b16 %v5048
        %v5177 = vunpack.c.l.b16 %v5049
        %v5178 = vunpack.c.l.b16 %v5050
        %v5179 = vunpack.c.l.b16 %v5051
        %v5180 = vunpack.c.l.b16 %v5052
        %v5181 = vunpack.c.l.b16 %v5053
        %v5182 = vunpack.c.l.b16 %v5054
        %v5183 = vunpack.c.l.b16 %v5055
        %v5184 = vunpack.c.l.b16 %v5056
        %v5185 = vunpack.c.l.b16 %v5057
        %v5186 = vpack.c.b16 %v5123, %v5122
        %v5187 = vpack.c.b16 %v5125, %v5124
        %v5188 = vpack.c.b16 %v5127, %v5126
        %v5189 = vpack.c.b16 %v5129, %v5128
        %v5190 = vpack.c.b16 %v5131, %v5130
        %v5191 = vpack.c.b16 %v5133, %v5132
        %v5192 = vpack.c.b16 %v5135, %v5134
        %v5193 = vpack.c.b16 %v5137, %v5136
        %v5194 = vpack.c.b16 %v5139, %v5138
        %v5195 = vpack.c.b16 %v5141, %v5140
        %v5196 = vpack.c.b16 %v5143, %v5142
        %v5197 = vpack.c.b16 %v5145, %v5144
        %v5198 = vpack.c.b16 %v5147, %v5146
        %v5199 = vpack.c.b16 %v5149, %v5148
        %v5200 = vpack.c.b16 %v5151, %v5150
        %v5201 = vpack.c.b16 %v5153, %v5152
        %v5202 = vpack.c.b16 %v5155, %v5154
        %v5203 = vpack.c.b16 %v5157, %v5156
        %v5204 = vpack.c.b16 %v5159, %v5158
        %v5205 = vpack.c.b16 %v5161, %v5160
        %v5206 = vpack.c.b16 %v5163, %v5162
        %v5207 = vpack.c.b16 %v5165, %v5164
        %v5208 = vpack.c.b16 %v5167, %v5166
        %v5209 = vpack.c.b16 %v5169, %v5168
        %v5210 = vpack.c.b16 %v5171, %v5170
        %v5211 = vpack.c.b16 %v5173, %v5172
        %v5212 = vpack.c.b16 %v5175, %v5174
        %v5213 = vpack.c.b16 %v5177, %v5176
        %v5214 = vpack.c.b16 %v5179, %v5178
        %v5215 = vpack.c.b16 %v5181, %v5180
        %v5216 = vpack.c.b16 %v5183, %v5182
        %v5217 = vpack.c.b16 %v5185, %v5184
        %5250 = vmatprep.subr.bf16.mxu0 %v2884
        %5251 = vmatpush1.bf16.msra.mxu0 %v2883
        %5252 = vmatprep.subr.bf16.mxu0 %v2886
        %5253 = vmatpush1.bf16.msra.mxu0 %v2885
        %5254 = vmatprep.subr.bf16.mxu0 %v2888
        %5255 = vmatpush1.bf16.msra.mxu0 %v2887
        %5256 = vmatprep.subr.bf16.mxu0 %v2890
        %5257 = vmatpush1.bf16.msra.mxu0 %v2889
        %5258 = vmatprep.subr.bf16.mxu0 %v2892
        %5259 = vmatpush1.bf16.msra.mxu0 %v2891
        %5260 = vmatprep.subr.bf16.mxu0 %v2894
        %5261 = vmatpush1.bf16.msra.mxu0 %v2893
        %5262 = vmatprep.subr.bf16.mxu0 %v2896
        %5263 = vmatpush1.bf16.msra.mxu0 %v2895
        %5264 = vmatprep.subr.bf16.mxu0 %v2898
        %5265 = vmatpush1.bf16.msra.mxu0 %v2897
        %5266 = vmatprep.subr.bf16.mxu0 0
        %5267 = vmatpush1.bf16.msra.mxu0 0
        %5268 = vmatprep.subr.bf16.mxu0 0
        %5269 = vmatpush1.bf16.msra.mxu0 0
        %5270 = vmatprep.subr.bf16.mxu0 0
        %5271 = vmatpush1.bf16.msra.mxu0 0
        %5272 = vmatprep.subr.bf16.mxu0 0
        %5273 = vmatpush1.bf16.msra.mxu0 0
        %5274 = vmatprep.subr.bf16.mxu0 0
        %5275 = vmatpush1.bf16.msra.mxu0 0
        %5276 = vmatprep.subr.bf16.mxu0 0
        %5277 = vmatpush1.bf16.msra.mxu0 0
        %5278 = vmatprep.subr.bf16.mxu0 0
        %5279 = vmatpush1.bf16.msra.mxu0 0
        %5280 = vmatprep.subr.bf16.mxu0 0
        %5281 = vmatpush1.bf16.msra.mxu0 0
        %5282 = vmatprep.mubr.bf16.mxu0 0
        %5283 = vmatmul.mubr.bf16.gmra.mrb[0].mxu0 %v5186
        %v5284 = vpop.f32.mrb[0].mxu0
        %v5285 = vadd.f32 0.0, %v5284
        %v5286 = vpop.f32.mrb[0].mxu0
        %v5287 = vadd.f32 0.0, %v5286
        %v5288 = vpop.f32.mrb[0].mxu0
        %v5289 = vadd.f32 0.0, %v5288
        %v5290 = vpop.f32.mrb[0].mxu0
        %v5291 = vadd.f32 0.0, %v5290
        %5292 = vmatprep.mubr.bf16.mxu0 0
        %5293 = vmatmul.mubr.bf16.gmra.mrb[0].mxu0 %v5187
        %v5294 = vpop.f32.mrb[0].mxu0
        %v5295 = vadd.f32 0.0, %v5294
        %v5296 = vpop.f32.mrb[0].mxu0
        %v5297 = vadd.f32 0.0, %v5296
        %v5298 = vpop.f32.mrb[0].mxu0
        %v5299 = vadd.f32 0.0, %v5298
        %v5300 = vpop.f32.mrb[0].mxu0
        %v5301 = vadd.f32 0.0, %v5300
        %5302 = vmatprep.mubr.bf16.mxu0 0
        %5303 = vmatmul.mubr.bf16.gmra.mrb[0].mxu0 %v5188
        %v5304 = vpop.f32.mrb[0].mxu0
        %v5305 = vadd.f32 0.0, %v5304
        %v5306 = vpop.f32.mrb[0].mxu0
        %v5307 = vadd.f32 0.0, %v5306
        %v5308 = vpop.f32.mrb[0].mxu0
        %v5309 = vadd.f32 0.0, %v5308
        %v5310 = vpop.f32.mrb[0].mxu0
        %v5311 = vadd.f32 0.0, %v5310
        %5312 = vmatprep.mubr.bf16.mxu0 0
        %5313 = vmatmul.mubr.bf16.gmra.mrb[0].mxu0 %v5189
        %v5314 = vpop.f32.mrb[0].mxu0
        %v5315 = vadd.f32 0.0, %v5314
        %v5316 = vpop.f32.mrb[0].mxu0
        %v5317 = vadd.f32 0.0, %v5316
        %v5318 = vpop.f32.mrb[0].mxu0
        %v5319 = vadd.f32 0.0, %v5318
        %v5320 = vpop.f32.mrb[0].mxu0
        %v5321 = vadd.f32 0.0, %v5320
        %5322 = vmatprep.mubr.bf16.mxu0 0
        %5323 = vmatmul.mubr.bf16.gmra.mrb[0].mxu0 %v5190
        %v5324 = vpop.f32.mrb[0].mxu0
        %v5325 = vadd.f32 0.0, %v5324
        %v5326 = vpop.f32.mrb[0].mxu0
        %v5327 = vadd.f32 0.0, %v5326
        %v5328 = vpop.f32.mrb[0].mxu0
        %v5329 = vadd.f32 0.0, %v5328
        %v5330 = vpop.f32.mrb[0].mxu0
        %v5331 = vadd.f32 0.0, %v5330
        %5332 = vmatprep.mubr.bf16.mxu0 0
        %5333 = vmatmul.mubr.bf16.gmra.mrb[0].mxu0 %v5191
        %v5334 = vpop.f32.mrb[0].mxu0
        %v5335 = vadd.f32 0.0, %v5334
        %v5336 = vpop.f32.mrb[0].mxu0
        %v5337 = vadd.f32 0.0, %v5336
        %v5338 = vpop.f32.mrb[0].mxu0
        %v5339 = vadd.f32 0.0, %v5338
        %v5340 = vpop.f32.mrb[0].mxu0
        %v5341 = vadd.f32 0.0, %v5340
        %5342 = vmatprep.mubr.bf16.mxu0 0
        %5343 = vmatmul.mubr.bf16.gmra.mrb[0].mxu0 %v5192
        %v5344 = vpop.f32.mrb[0].mxu0
        %v5345 = vadd.f32 0.0, %v5344
        %v5346 = vpop.f32.mrb[0].mxu0
        %v5347 = vadd.f32 0.0, %v5346
        %v5348 = vpop.f32.mrb[0].mxu0
        %v5349 = vadd.f32 0.0, %v5348
        %v5350 = vpop.f32.mrb[0].mxu0
        %v5351 = vadd.f32 0.0, %v5350
        %5352 = vmatprep.mubr.bf16.mxu0 0
        %5353 = vmatmul.mubr.bf16.gmra.mrb[0].mxu0 %v5193
        %v5354 = vpop.f32.mrb[0].mxu0
        %v5355 = vadd.f32 0.0, %v5354
        %v5356 = vpop.f32.mrb[0].mxu0
        %v5357 = vadd.f32 0.0, %v5356
        %v5358 = vpop.f32.mrb[0].mxu0
        %v5359 = vadd.f32 0.0, %v5358
        %v5360 = vpop.f32.mrb[0].mxu0
        %v5361 = vadd.f32 0.0, %v5360
        %5362 = vmatprep.mubr.bf16.mxu0 0
        %5363 = vmatmul.mubr.bf16.gmra.mrb[0].mxu0 %v5194
        %v5364 = vpop.f32.mrb[0].mxu0
        %v5365 = vadd.f32 0.0, %v5364
        %v5366 = vpop.f32.mrb[0].mxu0
        %v5367 = vadd.f32 0.0, %v5366
        %v5368 = vpop.f32.mrb[0].mxu0
        %v5369 = vadd.f32 0.0, %v5368
        %v5370 = vpop.f32.mrb[0].mxu0
        %v5371 = vadd.f32 0.0, %v5370
        %5372 = vmatprep.mubr.bf16.mxu0 0
        %5373 = vmatmul.mubr.bf16.gmra.mrb[0].mxu0 %v5195
        %v5374 = vpop.f32.mrb[0].mxu0
        %v5375 = vadd.f32 0.0, %v5374
        %v5376 = vpop.f32.mrb[0].mxu0
        %v5377 = vadd.f32 0.0, %v5376
        %v5378 = vpop.f32.mrb[0].mxu0
        %v5379 = vadd.f32 0.0, %v5378
        %v5380 = vpop.f32.mrb[0].mxu0
        %v5381 = vadd.f32 0.0, %v5380
        %5382 = vmatprep.mubr.bf16.mxu0 0
        %5383 = vmatmul.mubr.bf16.gmra.mrb[0].mxu0 %v5196
        %v5384 = vpop.f32.mrb[0].mxu0
        %v5385 = vadd.f32 0.0, %v5384
        %v5386 = vpop.f32.mrb[0].mxu0
        %v5387 = vadd.f32 0.0, %v5386
        %v5388 = vpop.f32.mrb[0].mxu0
        %v5389 = vadd.f32 0.0, %v5388
        %v5390 = vpop.f32.mrb[0].mxu0
        %v5391 = vadd.f32 0.0, %v5390
        %5392 = vmatprep.mubr.bf16.mxu0 0
        %5393 = vmatmul.mubr.bf16.gmra.mrb[0].mxu0 %v5197
        %v5394 = vpop.f32.mrb[0].mxu0
        %v5395 = vadd.f32 0.0, %v5394
        %v5396 = vpop.f32.mrb[0].mxu0
        %v5397 = vadd.f32 0.0, %v5396
        %v5398 = vpop.f32.mrb[0].mxu0
        %v5399 = vadd.f32 0.0, %v5398
        %v5400 = vpop.f32.mrb[0].mxu0
        %v5401 = vadd.f32 0.0, %v5400
        %5402 = vmatprep.mubr.bf16.mxu0 0
        %5403 = vmatmul.mubr.bf16.gmra.mrb[0].mxu0 %v5198
        %v5404 = vpop.f32.mrb[0].mxu0
        %v5405 = vadd.f32 0.0, %v5404
        %v5406 = vpop.f32.mrb[0].mxu0
        %v5407 = vadd.f32 0.0, %v5406
        %v5408 = vpop.f32.mrb[0].mxu0
        %v5409 = vadd.f32 0.0, %v5408
        %v5410 = vpop.f32.mrb[0].mxu0
        %v5411 = vadd.f32 0.0, %v5410
        %5412 = vmatprep.mubr.bf16.mxu0 0
        %5413 = vmatmul.mubr.bf16.gmra.mrb[0].mxu0 %v5199
        %v5414 = vpop.f32.mrb[0].mxu0
        %v5415 = vadd.f32 0.0, %v5414
        %v5416 = vpop.f32.mrb[0].mxu0
        %v5417 = vadd.f32 0.0, %v5416
        %v5418 = vpop.f32.mrb[0].mxu0
        %v5419 = vadd.f32 0.0, %v5418
        %v5420 = vpop.f32.mrb[0].mxu0
        %v5421 = vadd.f32 0.0, %v5420
        %5422 = vmatprep.mubr.bf16.mxu0 0
        %5423 = vmatmul.mubr.bf16.gmra.mrb[0].mxu0 %v5200
        %v5424 = vpop.f32.mrb[0].mxu0
        %v5425 = vadd.f32 0.0, %v5424
        %v5426 = vpop.f32.mrb[0].mxu0
        %v5427 = vadd.f32 0.0, %v5426
        %v5428 = vpop.f32.mrb[0].mxu0
        %v5429 = vadd.f32 0.0, %v5428
        %v5430 = vpop.f32.mrb[0].mxu0
        %v5431 = vadd.f32 0.0, %v5430
        %5432 = vmatprep.mubr.bf16.mxu0 0
        %5433 = vmatmul.mubr.bf16.gmra.mrb[0].mxu0 %v5201
        %v5434 = vpop.f32.mrb[0].mxu0
        %v5435 = vadd.f32 0.0, %v5434
        %v5436 = vpop.f32.mrb[0].mxu0
        %v5437 = vadd.f32 0.0, %v5436
        %v5438 = vpop.f32.mrb[0].mxu0
        %v5439 = vadd.f32 0.0, %v5438
        %v5440 = vpop.f32.mrb[0].mxu0
        %v5441 = vadd.f32 0.0, %v5440
        %5442 = vmatprep.mubr.bf16.mxu0 0
        %5443 = vmatmul.mubr.bf16.gmra.mrb[0].mxu0 %v5202
        %v5444 = vpop.f32.mrb[0].mxu0
        %v5445 = vadd.f32 0.0, %v5444
        %v5446 = vpop.f32.mrb[0].mxu0
        %v5447 = vadd.f32 0.0, %v5446
        %v5448 = vpop.f32.mrb[0].mxu0
        %v5449 = vadd.f32 0.0, %v5448
        %v5450 = vpop.f32.mrb[0].mxu0
        %v5451 = vadd.f32 0.0, %v5450
        %5452 = vmatprep.mubr.bf16.mxu0 0
        %5453 = vmatmul.mubr.bf16.gmra.mrb[0].mxu0 %v5203
        %v5454 = vpop.f32.mrb[0].mxu0
        %v5455 = vadd.f32 0.0, %v5454
        %v5456 = vpop.f32.mrb[0].mxu0
        %v5457 = vadd.f32 0.0, %v5456
        %v5458 = vpop.f32.mrb[0].mxu0
        %v5459 = vadd.f32 0.0, %v5458
        %v5460 = vpop.f32.mrb[0].mxu0
        %v5461 = vadd.f32 0.0, %v5460
        %5462 = vmatprep.mubr.bf16.mxu0 0
        %5463 = vmatmul.mubr.bf16.gmra.mrb[0].mxu0 %v5204
        %v5464 = vpop.f32.mrb[0].mxu0
        %v5465 = vadd.f32 0.0, %v5464
        %v5466 = vpop.f32.mrb[0].mxu0
        %v5467 = vadd.f32 0.0, %v5466
        %v5468 = vpop.f32.mrb[0].mxu0
        %v5469 = vadd.f32 0.0, %v5468
        %v5470 = vpop.f32.mrb[0].mxu0
        %v5471 = vadd.f32 0.0, %v5470
        %5472 = vmatprep.mubr.bf16.mxu0 0
        %5473 = vmatmul.mubr.bf16.gmra.mrb[0].mxu0 %v5205
        %v5474 = vpop.f32.mrb[0].mxu0
        %v5475 = vadd.f32 0.0, %v5474
        %v5476 = vpop.f32.mrb[0].mxu0
        %v5477 = vadd.f32 0.0, %v5476
        %v5478 = vpop.f32.mrb[0].mxu0
        %v5479 = vadd.f32 0.0, %v5478
        %v5480 = vpop.f32.mrb[0].mxu0
        %v5481 = vadd.f32 0.0, %v5480
        %5482 = vmatprep.mubr.bf16.mxu0 0
        %5483 = vmatmul.mubr.bf16.gmra.mrb[0].mxu0 %v5206
        %v5484 = vpop.f32.mrb[0].mxu0
        %v5485 = vadd.f32 0.0, %v5484
        %v5486 = vpop.f32.mrb[0].mxu0
        %v5487 = vadd.f32 0.0, %v5486
        %v5488 = vpop.f32.mrb[0].mxu0
        %v5489 = vadd.f32 0.0, %v5488
        %v5490 = vpop.f32.mrb[0].mxu0
        %v5491 = vadd.f32 0.0, %v5490
        %5492 = vmatprep.mubr.bf16.mxu0 0
        %5493 = vmatmul.mubr.bf16.gmra.mrb[0].mxu0 %v5207
        %v5494 = vpop.f32.mrb[0].mxu0
        %v5495 = vadd.f32 0.0, %v5494
        %v5496 = vpop.f32.mrb[0].mxu0
        %v5497 = vadd.f32 0.0, %v5496
        %v5498 = vpop.f32.mrb[0].mxu0
        %v5499 = vadd.f32 0.0, %v5498
        %v5500 = vpop.f32.mrb[0].mxu0
        %v5501 = vadd.f32 0.0, %v5500
        %5502 = vmatprep.mubr.bf16.mxu0 0
        %5503 = vmatmul.mubr.bf16.gmra.mrb[0].mxu0 %v5208
        %v5504 = vpop.f32.mrb[0].mxu0
        %v5505 = vadd.f32 0.0, %v5504
        %v5506 = vpop.f32.mrb[0].mxu0
        %v5507 = vadd.f32 0.0, %v5506
        %v5508 = vpop.f32.mrb[0].mxu0
        %v5509 = vadd.f32 0.0, %v5508
        %v5510 = vpop.f32.mrb[0].mxu0
        %v5511 = vadd.f32 0.0, %v5510
        %5512 = vmatprep.mubr.bf16.mxu0 0
        %5513 = vmatmul.mubr.bf16.gmra.mrb[0].mxu0 %v5209
        %v5514 = vpop.f32.mrb[0].mxu0
        %v5515 = vadd.f32 0.0, %v5514
        %v5516 = vpop.f32.mrb[0].mxu0
        %v5517 = vadd.f32 0.0, %v5516
        %v5518 = vpop.f32.mrb[0].mxu0
        %v5519 = vadd.f32 0.0, %v5518
        %v5520 = vpop.f32.mrb[0].mxu0
        %v5521 = vadd.f32 0.0, %v5520
        %5522 = vmatprep.mubr.bf16.mxu0 0
        %5523 = vmatmul.mubr.bf16.gmra.mrb[0].mxu0 %v5210
        %v5524 = vpop.f32.mrb[0].mxu0
        %v5525 = vadd.f32 0.0, %v5524
        %v5526 = vpop.f32.mrb[0].mxu0
        %v5527 = vadd.f32 0.0, %v5526
        %v5528 = vpop.f32.mrb[0].mxu0
        %v5529 = vadd.f32 0.0, %v5528
        %v5530 = vpop.f32.mrb[0].mxu0
        %v5531 = vadd.f32 0.0, %v5530
        %5532 = vmatprep.mubr.bf16.mxu0 0
        %5533 = vmatmul.mubr.bf16.gmra.mrb[0].mxu0 %v5211
        %v5534 = vpop.f32.mrb[0].mxu0
        %v5535 = vadd.f32 0.0, %v5534
        %v5536 = vpop.f32.mrb[0].mxu0
        %v5537 = vadd.f32 0.0, %v5536
        %v5538 = vpop.f32.mrb[0].mxu0
        %v5539 = vadd.f32 0.0, %v5538
        %v5540 = vpop.f32.mrb[0].mxu0
        %v5541 = vadd.f32 0.0, %v5540
        %5542 = vmatprep.mubr.bf16.mxu0 0
        %5543 = vmatmul.mubr.bf16.gmra.mrb[0].mxu0 %v5212
        %v5544 = vpop.f32.mrb[0].mxu0
        %v5545 = vadd.f32 0.0, %v5544
        %v5546 = vpop.f32.mrb[0].mxu0
        %v5547 = vadd.f32 0.0, %v5546
        %v5548 = vpop.f32.mrb[0].mxu0
        %v5549 = vadd.f32 0.0, %v5548
        %v5550 = vpop.f32.mrb[0].mxu0
        %v5551 = vadd.f32 0.0, %v5550
        %5552 = vmatprep.mubr.bf16.mxu0 0
        %5553 = vmatmul.mubr.bf16.gmra.mrb[0].mxu0 %v5213
        %v5554 = vpop.f32.mrb[0].mxu0
        %v5555 = vadd.f32 0.0, %v5554
        %v5556 = vpop.f32.mrb[0].mxu0
        %v5557 = vadd.f32 0.0, %v5556
        %v5558 = vpop.f32.mrb[0].mxu0
        %v5559 = vadd.f32 0.0, %v5558
        %v5560 = vpop.f32.mrb[0].mxu0
        %v5561 = vadd.f32 0.0, %v5560
        %5562 = vmatprep.mubr.bf16.mxu0 0
        %5563 = vmatmul.mubr.bf16.gmra.mrb[0].mxu0 %v5214
        %v5564 = vpop.f32.mrb[0].mxu0
        %v5565 = vadd.f32 0.0, %v5564
        %v5566 = vpop.f32.mrb[0].mxu0
        %v5567 = vadd.f32 0.0, %v5566
        %v5568 = vpop.f32.mrb[0].mxu0
        %v5569 = vadd.f32 0.0, %v5568
        %v5570 = vpop.f32.mrb[0].mxu0
        %v5571 = vadd.f32 0.0, %v5570
        %5572 = vmatprep.mubr.bf16.mxu0 0
        %5573 = vmatmul.mubr.bf16.gmra.mrb[0].mxu0 %v5215
        %v5574 = vpop.f32.mrb[0].mxu0
        %v5575 = vadd.f32 0.0, %v5574
        %v5576 = vpop.f32.mrb[0].mxu0
        %v5577 = vadd.f32 0.0, %v5576
        %v5578 = vpop.f32.mrb[0].mxu0
        %v5579 = vadd.f32 0.0, %v5578
        %v5580 = vpop.f32.mrb[0].mxu0
        %v5581 = vadd.f32 0.0, %v5580
        %5582 = vmatprep.mubr.bf16.mxu0 0
        %5583 = vmatmul.mubr.bf16.gmra.mrb[0].mxu0 %v5216
        %v5584 = vpop.f32.mrb[0].mxu0
        %v5585 = vadd.f32 0.0, %v5584
        %v5586 = vpop.f32.mrb[0].mxu0
        %v5587 = vadd.f32 0.0, %v5586
        %v5588 = vpop.f32.mrb[0].mxu0
        %v5589 = vadd.f32 0.0, %v5588
        %v5590 = vpop.f32.mrb[0].mxu0
        %v5591 = vadd.f32 0.0, %v5590
        %5592 = vmatprep.mubr.bf16.mxu0 0
        %5593 = vmatmul.mubr.bf16.gmra.mrb[0].mxu0 %v5217
        %v5594 = vpop.f32.mrb[0].mxu0
        %v5595 = vadd.f32 0.0, %v5594
        %v5596 = vpop.f32.mrb[0].mxu0
        %v5597 = vadd.f32 0.0, %v5596
        %v5598 = vpop.f32.mrb[0].mxu0
        %v5599 = vadd.f32 0.0, %v5598
        %v5600 = vpop.f32.mrb[0].mxu0
        %v5601 = vadd.f32 0.0, %v5600
        %5602 = vdwg.mxu0
        %v5603 = vmul.f32 %v4676, %v5285
        %v5604 = vmul.f32 %v4678, %v5287
        %v5605 = vmul.f32 %v4680, %v5289
        %v5606 = vmul.f32 %v4682, %v5291
        %v5607 = vmul.f32 %v4686, %v5295
        %v5608 = vmul.f32 %v4688, %v5297
        %v5609 = vmul.f32 %v4690, %v5299
        %v5610 = vmul.f32 %v4692, %v5301
        %v5611 = vmul.f32 %v4696, %v5305
        %v5612 = vmul.f32 %v4698, %v5307
        %v5613 = vmul.f32 %v4700, %v5309
        %v5614 = vmul.f32 %v4702, %v5311
        %v5615 = vmul.f32 %v4706, %v5315
        %v5616 = vmul.f32 %v4708, %v5317
        %v5617 = vmul.f32 %v4710, %v5319
        %v5618 = vmul.f32 %v4712, %v5321
        %v5619 = vmul.f32 %v4716, %v5325
        %v5620 = vmul.f32 %v4718, %v5327
        %v5621 = vmul.f32 %v4720, %v5329
        %v5622 = vmul.f32 %v4722, %v5331
        %v5623 = vmul.f32 %v4726, %v5335
        %v5624 = vmul.f32 %v4728, %v5337
        %v5625 = vmul.f32 %v4730, %v5339
        %v5626 = vmul.f32 %v4732, %v5341
        %v5627 = vmul.f32 %v4736, %v5345
        %v5628 = vmul.f32 %v4738, %v5347
        %v5629 = vmul.f32 %v4740, %v5349
        %v5630 = vmul.f32 %v4742, %v5351
        %v5631 = vmul.f32 %v4746, %v5355
        %v5632 = vmul.f32 %v4748, %v5357
        %v5633 = vmul.f32 %v4750, %v5359
        %v5634 = vmul.f32 %v4752, %v5361
        %v5635 = vmul.f32 %v4756, %v5365
        %v5636 = vmul.f32 %v4758, %v5367
        %v5637 = vmul.f32 %v4760, %v5369
        %v5638 = vmul.f32 %v4762, %v5371
        %v5639 = vmul.f32 %v4766, %v5375
        %v5640 = vmul.f32 %v4768, %v5377
        %v5641 = vmul.f32 %v4770, %v5379
        %v5642 = vmul.f32 %v4772, %v5381
        %v5643 = vmul.f32 %v4776, %v5385
        %v5644 = vmul.f32 %v4778, %v5387
        %v5645 = vmul.f32 %v4780, %v5389
        %v5646 = vmul.f32 %v4782, %v5391
        %v5647 = vmul.f32 %v4786, %v5395
        %v5648 = vmul.f32 %v4788, %v5397
        %v5649 = vmul.f32 %v4790, %v5399
        %v5650 = vmul.f32 %v4792, %v5401
        %v5651 = vmul.f32 %v4796, %v5405
        %v5652 = vmul.f32 %v4798, %v5407
        %v5653 = vmul.f32 %v4800, %v5409
        %v5654 = vmul.f32 %v4802, %v5411
        %v5655 = vmul.f32 %v4806, %v5415
        %v5656 = vmul.f32 %v4808, %v5417
        %v5657 = vmul.f32 %v4810, %v5419
        %v5658 = vmul.f32 %v4812, %v5421
        %v5659 = vmul.f32 %v4816, %v5425
        %v5660 = vmul.f32 %v4818, %v5427
        %v5661 = vmul.f32 %v4820, %v5429
        %v5662 = vmul.f32 %v4822, %v5431
        %v5663 = vmul.f32 %v4826, %v5435
        %v5664 = vmul.f32 %v4828, %v5437
        %v5665 = vmul.f32 %v4830, %v5439
        %v5666 = vmul.f32 %v4832, %v5441
        %v5667 = vmul.f32 %v4836, %v5445
        %v5668 = vmul.f32 %v4838, %v5447
        %v5669 = vmul.f32 %v4840, %v5449
        %v5670 = vmul.f32 %v4842, %v5451
        %v5671 = vmul.f32 %v4846, %v5455
        %v5672 = vmul.f32 %v4848, %v5457
        %v5673 = vmul.f32 %v4850, %v5459
        %v5674 = vmul.f32 %v4852, %v5461
        %v5675 = vmul.f32 %v4856, %v5465
        %v5676 = vmul.f32 %v4858, %v5467
        %v5677 = vmul.f32 %v4860, %v5469
        %v5678 = vmul.f32 %v4862, %v5471
        %v5679 = vmul.f32 %v4866, %v5475
        %v5680 = vmul.f32 %v4868, %v5477
        %v5681 = vmul.f32 %v4870, %v5479
        %v5682 = vmul.f32 %v4872, %v5481
        %v5683 = vmul.f32 %v4876, %v5485
        %v5684 = vmul.f32 %v4878, %v5487
        %v5685 = vmul.f32 %v4880, %v5489
        %v5686 = vmul.f32 %v4882, %v5491
        %v5687 = vmul.f32 %v4886, %v5495
        %v5688 = vmul.f32 %v4888, %v5497
        %v5689 = vmul.f32 %v4890, %v5499
        %v5690 = vmul.f32 %v4892, %v5501
        %v5691 = vmul.f32 %v4896, %v5505
        %v5692 = vmul.f32 %v4898, %v5507
        %v5693 = vmul.f32 %v4900, %v5509
        %v5694 = vmul.f32 %v4902, %v5511
        %v5695 = vmul.f32 %v4906, %v5515
        %v5696 = vmul.f32 %v4908, %v5517
        %v5697 = vmul.f32 %v4910, %v5519
        %v5698 = vmul.f32 %v4912, %v5521
        %v5699 = vmul.f32 %v4916, %v5525
        %v5700 = vmul.f32 %v4918, %v5527
        %v5701 = vmul.f32 %v4920, %v5529
        %v5702 = vmul.f32 %v4922, %v5531
        %v5703 = vmul.f32 %v4926, %v5535
        %v5704 = vmul.f32 %v4928, %v5537
        %v5705 = vmul.f32 %v4930, %v5539
        %v5706 = vmul.f32 %v4932, %v5541
        %v5707 = vmul.f32 %v4936, %v5545
        %v5708 = vmul.f32 %v4938, %v5547
        %v5709 = vmul.f32 %v4940, %v5549
        %v5710 = vmul.f32 %v4942, %v5551
        %v5711 = vmul.f32 %v4946, %v5555
        %v5712 = vmul.f32 %v4948, %v5557
        %v5713 = vmul.f32 %v4950, %v5559
        %v5714 = vmul.f32 %v4952, %v5561
        %v5715 = vmul.f32 %v4956, %v5565
        %v5716 = vmul.f32 %v4958, %v5567
        %v5717 = vmul.f32 %v4960, %v5569
        %v5718 = vmul.f32 %v4962, %v5571
        %v5719 = vmul.f32 %v4966, %v5575
        %v5720 = vmul.f32 %v4968, %v5577
        %v5721 = vmul.f32 %v4970, %v5579
        %v5722 = vmul.f32 %v4972, %v5581
        %v5723 = vmul.f32 %v4976, %v5585
        %v5724 = vmul.f32 %v4978, %v5587
        %v5725 = vmul.f32 %v4980, %v5589
        %v5726 = vmul.f32 %v4982, %v5591
        %v5727 = vmul.f32 %v4986, %v5595
        %v5728 = vmul.f32 %v4988, %v5597
        %v5729 = vmul.f32 %v4990, %v5599
        %v5730 = vmul.f32 %v4992, %v5601
        %v5731 = vadd.f32 %v5603, %v5605
        %v5732 = vadd.f32 %v5731, %v5607
        %v5733 = vadd.f32 %v5732, %v5609
        %v5734 = vadd.f32 %v5733, %v5611
        %v5735 = vadd.f32 %v5734, %v5613
        %v5736 = vadd.f32 %v5735, %v5615
        %v5737 = vadd.f32 %v5736, %v5617
        %v5738 = vadd.f32 %v5737, %v5619
        %v5739 = vadd.f32 %v5738, %v5621
        %v5740 = vadd.f32 %v5739, %v5623
        %v5741 = vadd.f32 %v5740, %v5625
        %v5742 = vadd.f32 %v5741, %v5627
        %v5743 = vadd.f32 %v5742, %v5629
        %v5744 = vadd.f32 %v5743, %v5631
        %v5745 = vadd.f32 %v5744, %v5633
        %v5746 = vadd.f32 %v5745, %v5635
        %v5747 = vadd.f32 %v5746, %v5637
        %v5748 = vadd.f32 %v5747, %v5639
        %v5749 = vadd.f32 %v5748, %v5641
        %v5750 = vadd.f32 %v5749, %v5643
        %v5751 = vadd.f32 %v5750, %v5645
        %v5752 = vadd.f32 %v5751, %v5647
        %v5753 = vadd.f32 %v5752, %v5649
        %v5754 = vadd.f32 %v5753, %v5651
        %v5755 = vadd.f32 %v5754, %v5653
        %v5756 = vadd.f32 %v5755, %v5655
        %v5757 = vadd.f32 %v5756, %v5657
        %v5758 = vadd.f32 %v5757, %v5659
        %v5759 = vadd.f32 %v5758, %v5661
        %v5760 = vadd.f32 %v5759, %v5663
        %v5761 = vadd.f32 %v5760, %v5665
        %v5762 = vadd.f32 %v5761, %v5667
        %v5763 = vadd.f32 %v5762, %v5669
        %v5764 = vadd.f32 %v5763, %v5671
        %v5765 = vadd.f32 %v5764, %v5673
        %v5766 = vadd.f32 %v5765, %v5675
        %v5767 = vadd.f32 %v5766, %v5677
        %v5768 = vadd.f32 %v5767, %v5679
        %v5769 = vadd.f32 %v5768, %v5681
        %v5770 = vadd.f32 %v5769, %v5683
        %v5771 = vadd.f32 %v5770, %v5685
        %v5772 = vadd.f32 %v5771, %v5687
        %v5773 = vadd.f32 %v5772, %v5689
        %v5774 = vadd.f32 %v5773, %v5691
        %v5775 = vadd.f32 %v5774, %v5693
        %v5776 = vadd.f32 %v5775, %v5695
        %v5777 = vadd.f32 %v5776, %v5697
        %v5778 = vadd.f32 %v5777, %v5699
        %v5779 = vadd.f32 %v5778, %v5701
        %v5780 = vadd.f32 %v5779, %v5703
        %v5781 = vadd.f32 %v5780, %v5705
        %v5782 = vadd.f32 %v5781, %v5707
        %v5783 = vadd.f32 %v5782, %v5709
        %v5784 = vadd.f32 %v5783, %v5711
        %v5785 = vadd.f32 %v5784, %v5713
        %v5786 = vadd.f32 %v5785, %v5715
        %v5787 = vadd.f32 %v5786, %v5717
        %v5788 = vadd.f32 %v5787, %v5719
        %v5789 = vadd.f32 %v5788, %v5721
        %v5790 = vadd.f32 %v5789, %v5723
        %v5791 = vadd.f32 %v5790, %v5725
        %v5792 = vadd.f32 %v5791, %v5727
        %v5793 = vadd.f32 %v5792, %v5729
        %v5794 = vrot.slane %v5793, 4
        %v5795 = vadd.f32 %v5793, %v5794
        %v5796 = vrot.slane %v5795, 2
        %v5797 = vadd.f32 %v5795, %v5796
        %v5798 = vrot.slane %v5797, 1
        %v5799 = vadd.f32 %v5797, %v5798
        %v5800 = vadd.f32 %v5604, %v5606
        %v5801 = vadd.f32 %v5800, %v5608
        %v5802 = vadd.f32 %v5801, %v5610
        %v5803 = vadd.f32 %v5802, %v5612
        %v5804 = vadd.f32 %v5803, %v5614
        %v5805 = vadd.f32 %v5804, %v5616
        %v5806 = vadd.f32 %v5805, %v5618
        %v5807 = vadd.f32 %v5806, %v5620
        %v5808 = vadd.f32 %v5807, %v5622
        %v5809 = vadd.f32 %v5808, %v5624
        %v5810 = vadd.f32 %v5809, %v5626
        %v5811 = vadd.f32 %v5810, %v5628
        %v5812 = vadd.f32 %v5811, %v5630
        %v5813 = vadd.f32 %v5812, %v5632
        %v5814 = vadd.f32 %v5813, %v5634
        %v5815 = vadd.f32 %v5814, %v5636
        %v5816 = vadd.f32 %v5815, %v5638
        %v5817 = vadd.f32 %v5816, %v5640
        %v5818 = vadd.f32 %v5817, %v5642
        %v5819 = vadd.f32 %v5818, %v5644
        %v5820 = vadd.f32 %v5819, %v5646
        %v5821 = vadd.f32 %v5820, %v5648
        %v5822 = vadd.f32 %v5821, %v5650
        %v5823 = vadd.f32 %v5822, %v5652
        %v5824 = vadd.f32 %v5823, %v5654
        %v5825 = vadd.f32 %v5824, %v5656
        %v5826 = vadd.f32 %v5825, %v5658
        %v5827 = vadd.f32 %v5826, %v5660
        %v5828 = vadd.f32 %v5827, %v5662
        %v5829 = vadd.f32 %v5828, %v5664
        %v5830 = vadd.f32 %v5829, %v5666
        %v5831 = vadd.f32 %v5830, %v5668
        %v5832 = vadd.f32 %v5831, %v5670
        %v5833 = vadd.f32 %v5832, %v5672
        %v5834 = vadd.f32 %v5833, %v5674
        %v5835 = vadd.f32 %v5834, %v5676
        %v5836 = vadd.f32 %v5835, %v5678
        %v5837 = vadd.f32 %v5836, %v5680
        %v5838 = vadd.f32 %v5837, %v5682
        %v5839 = vadd.f32 %v5838, %v5684
        %v5840 = vadd.f32 %v5839, %v5686
        %v5841 = vadd.f32 %v5840, %v5688
        %v5842 = vadd.f32 %v5841, %v5690
        %v5843 = vadd.f32 %v5842, %v5692
        %v5844 = vadd.f32 %v5843, %v5694
        %v5845 = vadd.f32 %v5844, %v5696
        %v5846 = vadd.f32 %v5845, %v5698
        %v5847 = vadd.f32 %v5846, %v5700
        %v5848 = vadd.f32 %v5847, %v5702
        %v5849 = vadd.f32 %v5848, %v5704
        %v5850 = vadd.f32 %v5849, %v5706
        %v5851 = vadd.f32 %v5850, %v5708
        %v5852 = vadd.f32 %v5851, %v5710
        %v5853 = vadd.f32 %v5852, %v5712
        %v5854 = vadd.f32 %v5853, %v5714
        %v5855 = vadd.f32 %v5854, %v5716
        %v5856 = vadd.f32 %v5855, %v5718
        %v5857 = vadd.f32 %v5856, %v5720
        %v5858 = vadd.f32 %v5857, %v5722
        %v5859 = vadd.f32 %v5858, %v5724
        %v5860 = vadd.f32 %v5859, %v5726
        %v5861 = vadd.f32 %v5860, %v5728
        %v5862 = vadd.f32 %v5861, %v5730
        %v5863 = vrot.slane %v5862, 4
        %v5864 = vadd.f32 %v5862, %v5863
        %v5865 = vrot.slane %v5864, 2
        %v5866 = vadd.f32 %v5864, %v5865
        %v5867 = vrot.slane %v5866, 1
        %v5868 = vadd.f32 %v5866, %v5867
        %v5869 = vadd.f32 %v4383, %v5799
        %v5870 = vadd.f32 %v4384, %v5868
        %v5871 = vld [vmem:[%s1 + $0x200] sm:$0xf]
        %v5872 = vld [vmem:[%s1 + $0x204] sm:$0xf]
        %v5873 = vld [vmem:[%s1 + $0x208] sm:$0xf]
        %v5874 = vld [vmem:[%s1 + $0x20c] sm:$0xf]
        %v5875 = vld [vmem:[%s1 + $0x210] sm:$0xf]
        %v5876 = vld [vmem:[%s1 + $0x214] sm:$0xf]
        %v5877 = vld [vmem:[%s1 + $0x218] sm:$0xf]
        %v5878 = vld [vmem:[%s1 + $0x21c] sm:$0xf]
        %v5879 = vld [vmem:[%s1 + $0x220] sm:$0xf]
        %v5880 = vld [vmem:[%s1 + $0x224] sm:$0xf]
        %v5881 = vld [vmem:[%s1 + $0x228] sm:$0xf]
        %v5882 = vld [vmem:[%s1 + $0x22c] sm:$0xf]
        %v5883 = vld [vmem:[%s1 + $0x230] sm:$0xf]
        %v5884 = vld [vmem:[%s1 + $0x234] sm:$0xf]
        %v5885 = vld [vmem:[%s1 + $0x238] sm:$0xf]
        %v5886 = vld [vmem:[%s1 + $0x23c] sm:$0xf]
        %v5887 = vld [vmem:[%s1 + $0x240] sm:$0xf]
        %v5888 = vld [vmem:[%s1 + $0x244] sm:$0xf]
        %v5889 = vld [vmem:[%s1 + $0x248] sm:$0xf]
        %v5890 = vld [vmem:[%s1 + $0x24c] sm:$0xf]
        %v5891 = vld [vmem:[%s1 + $0x250] sm:$0xf]
        %v5892 = vld [vmem:[%s1 + $0x254] sm:$0xf]
        %v5893 = vld [vmem:[%s1 + $0x258] sm:$0xf]
        %v5894 = vld [vmem:[%s1 + $0x25c] sm:$0xf]
        %v5895 = vld [vmem:[%s1 + $0x260] sm:$0xf]
        %v5896 = vld [vmem:[%s1 + $0x264] sm:$0xf]
        %v5897 = vld [vmem:[%s1 + $0x268] sm:$0xf]
        %v5898 = vld [vmem:[%s1 + $0x26c] sm:$0xf]
        %v5899 = vld [vmem:[%s1 + $0x270] sm:$0xf]
        %v5900 = vld [vmem:[%s1 + $0x274] sm:$0xf]
        %v5901 = vld [vmem:[%s1 + $0x278] sm:$0xf]
        %v5902 = vld [vmem:[%s1 + $0x27c] sm:$0xf]
        %v5903 = vld [vmem:[%s1 + $0x280] sm:$0xf]
        %v5904 = vld [vmem:[%s1 + $0x284] sm:$0xf]
        %v5905 = vld [vmem:[%s1 + $0x288] sm:$0xf]
        %v5906 = vld [vmem:[%s1 + $0x28c] sm:$0xf]
        %v5907 = vld [vmem:[%s1 + $0x290] sm:$0xf]
        %v5908 = vld [vmem:[%s1 + $0x294] sm:$0xf]
        %v5909 = vld [vmem:[%s1 + $0x298] sm:$0xf]
        %v5910 = vld [vmem:[%s1 + $0x29c] sm:$0xf]
        %v5911 = vld [vmem:[%s1 + $0x2a0] sm:$0xf]
        %v5912 = vld [vmem:[%s1 + $0x2a4] sm:$0xf]
        %v5913 = vld [vmem:[%s1 + $0x2a8] sm:$0xf]
        %v5914 = vld [vmem:[%s1 + $0x2ac] sm:$0xf]
        %v5915 = vld [vmem:[%s1 + $0x2b0] sm:$0xf]
        %v5916 = vld [vmem:[%s1 + $0x2b4] sm:$0xf]
        %v5917 = vld [vmem:[%s1 + $0x2b8] sm:$0xf]
        %v5918 = vld [vmem:[%s1 + $0x2bc] sm:$0xf]
        %v5967 = vunpack.c.l.b16 %v5871
        %v5968 = vunpack.c.l.b16 %v5872
        %v5969 = vunpack.c.l.b16 %v5873
        %v5970 = vunpack.c.l.b16 %v5874
        %v5971 = vunpack.c.l.b16 %v5875
        %v5972 = vunpack.c.l.b16 %v5876
        %v5973 = vunpack.c.l.b16 %v5877
        %v5974 = vunpack.c.l.b16 %v5878
        %v5975 = vunpack.c.l.b16 %v5879
        %v5976 = vunpack.c.l.b16 %v5880
        %v5977 = vunpack.c.l.b16 %v5881
        %v5978 = vunpack.c.l.b16 %v5882
        %v5979 = vunpack.c.l.b16 %v5883
        %v5980 = vunpack.c.l.b16 %v5884
        %v5981 = vunpack.c.l.b16 %v5885
        %v5982 = vunpack.c.l.b16 %v5886
        %v5983 = vunpack.c.l.b16 %v5887
        %v5984 = vunpack.c.l.b16 %v5888
        %v5985 = vunpack.c.l.b16 %v5889
        %v5986 = vunpack.c.l.b16 %v5890
        %v5987 = vunpack.c.l.b16 %v5891
        %v5988 = vunpack.c.l.b16 %v5892
        %v5989 = vunpack.c.l.b16 %v5893
        %v5990 = vunpack.c.l.b16 %v5894
        %v5991 = vunpack.c.l.b16 %v5895
        %v5992 = vunpack.c.l.b16 %v5896
        %v5993 = vunpack.c.l.b16 %v5897
        %v5994 = vunpack.c.l.b16 %v5898
        %v5995 = vunpack.c.l.b16 %v5899
        %v5996 = vunpack.c.l.b16 %v5900
        %v5997 = vunpack.c.l.b16 %v5901
        %v5998 = vunpack.c.l.b16 %v5902
        %v5999 = vunpack.c.l.b16 %v5903
        %v6000 = vunpack.c.l.b16 %v5904
        %v6001 = vunpack.c.l.b16 %v5905
        %v6002 = vunpack.c.l.b16 %v5906
        %v6003 = vunpack.c.l.b16 %v5907
        %v6004 = vunpack.c.l.b16 %v5908
        %v6005 = vunpack.c.l.b16 %v5909
        %v6006 = vunpack.c.l.b16 %v5910
        %v6007 = vunpack.c.l.b16 %v5911
        %v6008 = vunpack.c.l.b16 %v5912
        %v6009 = vunpack.c.l.b16 %v5913
        %v6010 = vunpack.c.l.b16 %v5914
        %v6011 = vunpack.c.l.b16 %v5915
        %v6012 = vunpack.c.l.b16 %v5916
        %v6013 = vunpack.c.l.b16 %v5917
        %v6014 = vunpack.c.l.b16 %v5918
        %v6015 = vpack.c.b16 %v5968, %v5967
        %v6016 = vpack.c.b16 %v5970, %v5969
        %v6017 = vpack.c.b16 %v5972, %v5971
        %v6018 = vpack.c.b16 %v5974, %v5973
        %v6019 = vpack.c.b16 %v5976, %v5975
        %v6020 = vpack.c.b16 %v5978, %v5977
        %v6021 = vpack.c.b16 %v5980, %v5979
        %v6022 = vpack.c.b16 %v5982, %v5981
        %v6023 = vpack.c.b16 %v5984, %v5983
        %v6024 = vpack.c.b16 %v5986, %v5985
        %v6025 = vpack.c.b16 %v5988, %v5987
        %v6026 = vpack.c.b16 %v5990, %v5989
        %v6027 = vpack.c.b16 %v5992, %v5991
        %v6028 = vpack.c.b16 %v5994, %v5993
        %v6029 = vpack.c.b16 %v5996, %v5995
        %v6030 = vpack.c.b16 %v5998, %v5997
        %v6031 = vpack.c.b16 %v6000, %v5999
        %v6032 = vpack.c.b16 %v6002, %v6001
        %v6033 = vpack.c.b16 %v6004, %v6003
        %v6034 = vpack.c.b16 %v6006, %v6005
        %v6035 = vpack.c.b16 %v6008, %v6007
        %v6036 = vpack.c.b16 %v6010, %v6009
        %v6037 = vpack.c.b16 %v6012, %v6011
        %v6038 = vpack.c.b16 %v6014, %v6013
        %6063 = vmatprep.subr.bf16.mxu0 %v2884
        %6064 = vmatpush1.bf16.msra.mxu0 %v2883
        %6065 = vmatprep.subr.bf16.mxu0 %v2886
        %6066 = vmatpush1.bf16.msra.mxu0 %v2885
        %6067 = vmatprep.subr.bf16.mxu0 %v2888
        %6068 = vmatpush1.bf16.msra.mxu0 %v2887
        %6069 = vmatprep.subr.bf16.mxu0 %v2890
        %6070 = vmatpush1.bf16.msra.mxu0 %v2889
        %6071 = vmatprep.subr.bf16.mxu0 %v2892
        %6072 = vmatpush1.bf16.msra.mxu0 %v2891
        %6073 = vmatprep.subr.bf16.mxu0 %v2894
        %6074 = vmatpush1.bf16.msra.mxu0 %v2893
        %6075 = vmatprep.subr.bf16.mxu0 %v2896
        %6076 = vmatpush1.bf16.msra.mxu0 %v2895
        %6077 = vmatprep.subr.bf16.mxu0 %v2898
        %6078 = vmatpush1.bf16.msra.mxu0 %v2897
        %6079 = vmatprep.subr.bf16.mxu0 0
        %6080 = vmatpush1.bf16.msra.mxu0 0
        %6081 = vmatprep.subr.bf16.mxu0 0
        %6082 = vmatpush1.bf16.msra.mxu0 0
        %6083 = vmatprep.subr.bf16.mxu0 0
        %6084 = vmatpush1.bf16.msra.mxu0 0
        %6085 = vmatprep.subr.bf16.mxu0 0
        %6086 = vmatpush1.bf16.msra.mxu0 0
        %6087 = vmatprep.subr.bf16.mxu0 0
        %6088 = vmatpush1.bf16.msra.mxu0 0
        %6089 = vmatprep.subr.bf16.mxu0 0
        %6090 = vmatpush1.bf16.msra.mxu0 0
        %6091 = vmatprep.subr.bf16.mxu0 0
        %6092 = vmatpush1.bf16.msra.mxu0 0
        %6093 = vmatprep.subr.bf16.mxu0 0
        %6094 = vmatpush1.bf16.msra.mxu0 0
        %6095 = vmatprep.mubr.bf16.mxu0 0
        %6096 = vmatmul.mubr.bf16.gmra.mrb[0].mxu0 %v6015
        %v6097 = vpop.f32.mrb[0].mxu0
        %v6098 = vadd.f32 0.0, %v6097
        %v6099 = vpop.f32.mrb[0].mxu0
        %v6100 = vadd.f32 0.0, %v6099
        %v6101 = vpop.f32.mrb[0].mxu0
        %v6102 = vadd.f32 0.0, %v6101
        %v6103 = vpop.f32.mrb[0].mxu0
        %v6104 = vadd.f32 0.0, %v6103
        %6105 = vmatprep.mubr.bf16.mxu0 0
        %6106 = vmatmul.mubr.bf16.gmra.mrb[0].mxu0 %v6016
        %v6107 = vpop.f32.mrb[0].mxu0
        %v6108 = vadd.f32 0.0, %v6107
        %v6109 = vpop.f32.mrb[0].mxu0
        %v6110 = vadd.f32 0.0, %v6109
        %v6111 = vpop.f32.mrb[0].mxu0
        %v6112 = vadd.f32 0.0, %v6111
        %v6113 = vpop.f32.mrb[0].mxu0
        %v6114 = vadd.f32 0.0, %v6113
        %6115 = vmatprep.mubr.bf16.mxu0 0
        %6116 = vmatmul.mubr.bf16.gmra.mrb[0].mxu0 %v6017
        %v6117 = vpop.f32.mrb[0].mxu0
        %v6118 = vadd.f32 0.0, %v6117
        %v6119 = vpop.f32.mrb[0].mxu0
        %v6120 = vadd.f32 0.0, %v6119
        %v6121 = vpop.f32.mrb[0].mxu0
        %v6122 = vadd.f32 0.0, %v6121
        %v6123 = vpop.f32.mrb[0].mxu0
        %v6124 = vadd.f32 0.0, %v6123
        %6125 = vmatprep.mubr.bf16.mxu0 0
        %6126 = vmatmul.mubr.bf16.gmra.mrb[0].mxu0 %v6018
        %v6127 = vpop.f32.mrb[0].mxu0
        %v6128 = vadd.f32 0.0, %v6127
        %v6129 = vpop.f32.mrb[0].mxu0
        %v6130 = vadd.f32 0.0, %v6129
        %v6131 = vpop.f32.mrb[0].mxu0
        %v6132 = vadd.f32 0.0, %v6131
        %v6133 = vpop.f32.mrb[0].mxu0
        %v6134 = vadd.f32 0.0, %v6133
        %6135 = vmatprep.mubr.bf16.mxu0 0
        %6136 = vmatmul.mubr.bf16.gmra.mrb[0].mxu0 %v6019
        %v6137 = vpop.f32.mrb[0].mxu0
        %v6138 = vadd.f32 0.0, %v6137
        %v6139 = vpop.f32.mrb[0].mxu0
        %v6140 = vadd.f32 0.0, %v6139
        %v6141 = vpop.f32.mrb[0].mxu0
        %v6142 = vadd.f32 0.0, %v6141
        %v6143 = vpop.f32.mrb[0].mxu0
        %v6144 = vadd.f32 0.0, %v6143
        %6145 = vmatprep.mubr.bf16.mxu0 0
        %6146 = vmatmul.mubr.bf16.gmra.mrb[0].mxu0 %v6020
        %v6147 = vpop.f32.mrb[0].mxu0
        %v6148 = vadd.f32 0.0, %v6147
        %v6149 = vpop.f32.mrb[0].mxu0
        %v6150 = vadd.f32 0.0, %v6149
        %v6151 = vpop.f32.mrb[0].mxu0
        %v6152 = vadd.f32 0.0, %v6151
        %v6153 = vpop.f32.mrb[0].mxu0
        %v6154 = vadd.f32 0.0, %v6153
        %6155 = vmatprep.mubr.bf16.mxu0 0
        %6156 = vmatmul.mubr.bf16.gmra.mrb[0].mxu0 %v6021
        %v6157 = vpop.f32.mrb[0].mxu0
        %v6158 = vadd.f32 0.0, %v6157
        %v6159 = vpop.f32.mrb[0].mxu0
        %v6160 = vadd.f32 0.0, %v6159
        %v6161 = vpop.f32.mrb[0].mxu0
        %v6162 = vadd.f32 0.0, %v6161
        %v6163 = vpop.f32.mrb[0].mxu0
        %v6164 = vadd.f32 0.0, %v6163
        %6165 = vmatprep.mubr.bf16.mxu0 0
        %6166 = vmatmul.mubr.bf16.gmra.mrb[0].mxu0 %v6022
        %v6167 = vpop.f32.mrb[0].mxu0
        %v6168 = vadd.f32 0.0, %v6167
        %v6169 = vpop.f32.mrb[0].mxu0
        %v6170 = vadd.f32 0.0, %v6169
        %v6171 = vpop.f32.mrb[0].mxu0
        %v6172 = vadd.f32 0.0, %v6171
        %v6173 = vpop.f32.mrb[0].mxu0
        %v6174 = vadd.f32 0.0, %v6173
        %6175 = vmatprep.mubr.bf16.mxu0 0
        %6176 = vmatmul.mubr.bf16.gmra.mrb[0].mxu0 %v6023
        %v6177 = vpop.f32.mrb[0].mxu0
        %v6178 = vadd.f32 0.0, %v6177
        %v6179 = vpop.f32.mrb[0].mxu0
        %v6180 = vadd.f32 0.0, %v6179
        %v6181 = vpop.f32.mrb[0].mxu0
        %v6182 = vadd.f32 0.0, %v6181
        %v6183 = vpop.f32.mrb[0].mxu0
        %v6184 = vadd.f32 0.0, %v6183
        %6185 = vmatprep.mubr.bf16.mxu0 0
        %6186 = vmatmul.mubr.bf16.gmra.mrb[0].mxu0 %v6024
        %v6187 = vpop.f32.mrb[0].mxu0
        %v6188 = vadd.f32 0.0, %v6187
        %v6189 = vpop.f32.mrb[0].mxu0
        %v6190 = vadd.f32 0.0, %v6189
        %v6191 = vpop.f32.mrb[0].mxu0
        %v6192 = vadd.f32 0.0, %v6191
        %v6193 = vpop.f32.mrb[0].mxu0
        %v6194 = vadd.f32 0.0, %v6193
        %6195 = vmatprep.mubr.bf16.mxu0 0
        %6196 = vmatmul.mubr.bf16.gmra.mrb[0].mxu0 %v6025
        %v6197 = vpop.f32.mrb[0].mxu0
        %v6198 = vadd.f32 0.0, %v6197
        %v6199 = vpop.f32.mrb[0].mxu0
        %v6200 = vadd.f32 0.0, %v6199
        %v6201 = vpop.f32.mrb[0].mxu0
        %v6202 = vadd.f32 0.0, %v6201
        %v6203 = vpop.f32.mrb[0].mxu0
        %v6204 = vadd.f32 0.0, %v6203
        %6205 = vmatprep.mubr.bf16.mxu0 0
        %6206 = vmatmul.mubr.bf16.gmra.mrb[0].mxu0 %v6026
        %v6207 = vpop.f32.mrb[0].mxu0
        %v6208 = vadd.f32 0.0, %v6207
        %v6209 = vpop.f32.mrb[0].mxu0
        %v6210 = vadd.f32 0.0, %v6209
        %v6211 = vpop.f32.mrb[0].mxu0
        %v6212 = vadd.f32 0.0, %v6211
        %v6213 = vpop.f32.mrb[0].mxu0
        %v6214 = vadd.f32 0.0, %v6213
        %6215 = vmatprep.mubr.bf16.mxu0 0
        %6216 = vmatmul.mubr.bf16.gmra.mrb[0].mxu0 %v6027
        %v6217 = vpop.f32.mrb[0].mxu0
        %v6218 = vadd.f32 0.0, %v6217
        %v6219 = vpop.f32.mrb[0].mxu0
        %v6220 = vadd.f32 0.0, %v6219
        %v6221 = vpop.f32.mrb[0].mxu0
        %v6222 = vadd.f32 0.0, %v6221
        %v6223 = vpop.f32.mrb[0].mxu0
        %v6224 = vadd.f32 0.0, %v6223
        %6225 = vmatprep.mubr.bf16.mxu0 0
        %6226 = vmatmul.mubr.bf16.gmra.mrb[0].mxu0 %v6028
        %v6227 = vpop.f32.mrb[0].mxu0
        %v6228 = vadd.f32 0.0, %v6227
        %v6229 = vpop.f32.mrb[0].mxu0
        %v6230 = vadd.f32 0.0, %v6229
        %v6231 = vpop.f32.mrb[0].mxu0
        %v6232 = vadd.f32 0.0, %v6231
        %v6233 = vpop.f32.mrb[0].mxu0
        %v6234 = vadd.f32 0.0, %v6233
        %6235 = vmatprep.mubr.bf16.mxu0 0
        %6236 = vmatmul.mubr.bf16.gmra.mrb[0].mxu0 %v6029
        %v6237 = vpop.f32.mrb[0].mxu0
        %v6238 = vadd.f32 0.0, %v6237
        %v6239 = vpop.f32.mrb[0].mxu0
        %v6240 = vadd.f32 0.0, %v6239
        %v6241 = vpop.f32.mrb[0].mxu0
        %v6242 = vadd.f32 0.0, %v6241
        %v6243 = vpop.f32.mrb[0].mxu0
        %v6244 = vadd.f32 0.0, %v6243
        %6245 = vmatprep.mubr.bf16.mxu0 0
        %6246 = vmatmul.mubr.bf16.gmra.mrb[0].mxu0 %v6030
        %v6247 = vpop.f32.mrb[0].mxu0
        %v6248 = vadd.f32 0.0, %v6247
        %v6249 = vpop.f32.mrb[0].mxu0
        %v6250 = vadd.f32 0.0, %v6249
        %v6251 = vpop.f32.mrb[0].mxu0
        %v6252 = vadd.f32 0.0, %v6251
        %v6253 = vpop.f32.mrb[0].mxu0
        %v6254 = vadd.f32 0.0, %v6253
        %6255 = vmatprep.mubr.bf16.mxu0 0
        %6256 = vmatmul.mubr.bf16.gmra.mrb[0].mxu0 %v6031
        %v6257 = vpop.f32.mrb[0].mxu0
        %v6258 = vadd.f32 0.0, %v6257
        %v6259 = vpop.f32.mrb[0].mxu0
        %v6260 = vadd.f32 0.0, %v6259
        %v6261 = vpop.f32.mrb[0].mxu0
        %v6262 = vadd.f32 0.0, %v6261
        %v6263 = vpop.f32.mrb[0].mxu0
        %v6264 = vadd.f32 0.0, %v6263
        %6265 = vmatprep.mubr.bf16.mxu0 0
        %6266 = vmatmul.mubr.bf16.gmra.mrb[0].mxu0 %v6032
        %v6267 = vpop.f32.mrb[0].mxu0
        %v6268 = vadd.f32 0.0, %v6267
        %v6269 = vpop.f32.mrb[0].mxu0
        %v6270 = vadd.f32 0.0, %v6269
        %v6271 = vpop.f32.mrb[0].mxu0
        %v6272 = vadd.f32 0.0, %v6271
        %v6273 = vpop.f32.mrb[0].mxu0
        %v6274 = vadd.f32 0.0, %v6273
        %6275 = vmatprep.mubr.bf16.mxu0 0
        %6276 = vmatmul.mubr.bf16.gmra.mrb[0].mxu0 %v6033
        %v6277 = vpop.f32.mrb[0].mxu0
        %v6278 = vadd.f32 0.0, %v6277
        %v6279 = vpop.f32.mrb[0].mxu0
        %v6280 = vadd.f32 0.0, %v6279
        %v6281 = vpop.f32.mrb[0].mxu0
        %v6282 = vadd.f32 0.0, %v6281
        %v6283 = vpop.f32.mrb[0].mxu0
        %v6284 = vadd.f32 0.0, %v6283
        %6285 = vmatprep.mubr.bf16.mxu0 0
        %6286 = vmatmul.mubr.bf16.gmra.mrb[0].mxu0 %v6034
        %v6287 = vpop.f32.mrb[0].mxu0
        %v6288 = vadd.f32 0.0, %v6287
        %v6289 = vpop.f32.mrb[0].mxu0
        %v6290 = vadd.f32 0.0, %v6289
        %v6291 = vpop.f32.mrb[0].mxu0
        %v6292 = vadd.f32 0.0, %v6291
        %v6293 = vpop.f32.mrb[0].mxu0
        %v6294 = vadd.f32 0.0, %v6293
        %6295 = vmatprep.mubr.bf16.mxu0 0
        %6296 = vmatmul.mubr.bf16.gmra.mrb[0].mxu0 %v6035
        %v6297 = vpop.f32.mrb[0].mxu0
        %v6298 = vadd.f32 0.0, %v6297
        %v6299 = vpop.f32.mrb[0].mxu0
        %v6300 = vadd.f32 0.0, %v6299
        %v6301 = vpop.f32.mrb[0].mxu0
        %v6302 = vadd.f32 0.0, %v6301
        %v6303 = vpop.f32.mrb[0].mxu0
        %v6304 = vadd.f32 0.0, %v6303
        %6305 = vmatprep.mubr.bf16.mxu0 0
        %6306 = vmatmul.mubr.bf16.gmra.mrb[0].mxu0 %v6036
        %v6307 = vpop.f32.mrb[0].mxu0
        %v6308 = vadd.f32 0.0, %v6307
        %v6309 = vpop.f32.mrb[0].mxu0
        %v6310 = vadd.f32 0.0, %v6309
        %v6311 = vpop.f32.mrb[0].mxu0
        %v6312 = vadd.f32 0.0, %v6311
        %v6313 = vpop.f32.mrb[0].mxu0
        %v6314 = vadd.f32 0.0, %v6313
        %6315 = vmatprep.mubr.bf16.mxu0 0
        %6316 = vmatmul.mubr.bf16.gmra.mrb[0].mxu0 %v6037
        %v6317 = vpop.f32.mrb[0].mxu0
        %v6318 = vadd.f32 0.0, %v6317
        %v6319 = vpop.f32.mrb[0].mxu0
        %v6320 = vadd.f32 0.0, %v6319
        %v6321 = vpop.f32.mrb[0].mxu0
        %v6322 = vadd.f32 0.0, %v6321
        %v6323 = vpop.f32.mrb[0].mxu0
        %v6324 = vadd.f32 0.0, %v6323
        %6325 = vmatprep.mubr.bf16.mxu0 0
        %6326 = vmatmul.mubr.bf16.gmra.mrb[0].mxu0 %v6038
        %v6327 = vpop.f32.mrb[0].mxu0
        %v6328 = vadd.f32 0.0, %v6327
        %v6329 = vpop.f32.mrb[0].mxu0
        %v6330 = vadd.f32 0.0, %v6329
        %v6331 = vpop.f32.mrb[0].mxu0
        %v6332 = vadd.f32 0.0, %v6331
        %v6333 = vpop.f32.mrb[0].mxu0
        %v6334 = vadd.f32 0.0, %v6333
        %6335 = vdwg.mxu0
        %v6336 = vld [vmem:[%s2 + $0x200] sm:$0xf]
        %v6337 = vld [vmem:[%s2 + $0x204] sm:$0xf]
        %v6338 = vld [vmem:[%s2 + $0x208] sm:$0xf]
        %v6339 = vld [vmem:[%s2 + $0x20c] sm:$0xf]
        %v6340 = vld [vmem:[%s2 + $0x210] sm:$0xf]
        %v6341 = vld [vmem:[%s2 + $0x214] sm:$0xf]
        %v6342 = vld [vmem:[%s2 + $0x218] sm:$0xf]
        %v6343 = vld [vmem:[%s2 + $0x21c] sm:$0xf]
        %v6344 = vld [vmem:[%s2 + $0x220] sm:$0xf]
        %v6345 = vld [vmem:[%s2 + $0x224] sm:$0xf]
        %v6346 = vld [vmem:[%s2 + $0x228] sm:$0xf]
        %v6347 = vld [vmem:[%s2 + $0x22c] sm:$0xf]
        %v6348 = vld [vmem:[%s2 + $0x230] sm:$0xf]
        %v6349 = vld [vmem:[%s2 + $0x234] sm:$0xf]
        %v6350 = vld [vmem:[%s2 + $0x238] sm:$0xf]
        %v6351 = vld [vmem:[%s2 + $0x23c] sm:$0xf]
        %v6352 = vld [vmem:[%s2 + $0x240] sm:$0xf]
        %v6353 = vld [vmem:[%s2 + $0x244] sm:$0xf]
        %v6354 = vld [vmem:[%s2 + $0x248] sm:$0xf]
        %v6355 = vld [vmem:[%s2 + $0x24c] sm:$0xf]
        %v6356 = vld [vmem:[%s2 + $0x250] sm:$0xf]
        %v6357 = vld [vmem:[%s2 + $0x254] sm:$0xf]
        %v6358 = vld [vmem:[%s2 + $0x258] sm:$0xf]
        %v6359 = vld [vmem:[%s2 + $0x25c] sm:$0xf]
        %v6360 = vld [vmem:[%s2 + $0x260] sm:$0xf]
        %v6361 = vld [vmem:[%s2 + $0x264] sm:$0xf]
        %v6362 = vld [vmem:[%s2 + $0x268] sm:$0xf]
        %v6363 = vld [vmem:[%s2 + $0x26c] sm:$0xf]
        %v6364 = vld [vmem:[%s2 + $0x270] sm:$0xf]
        %v6365 = vld [vmem:[%s2 + $0x274] sm:$0xf]
        %v6366 = vld [vmem:[%s2 + $0x278] sm:$0xf]
        %v6367 = vld [vmem:[%s2 + $0x27c] sm:$0xf]
        %v6368 = vld [vmem:[%s2 + $0x280] sm:$0xf]
        %v6369 = vld [vmem:[%s2 + $0x284] sm:$0xf]
        %v6370 = vld [vmem:[%s2 + $0x288] sm:$0xf]
        %v6371 = vld [vmem:[%s2 + $0x28c] sm:$0xf]
        %v6372 = vld [vmem:[%s2 + $0x290] sm:$0xf]
        %v6373 = vld [vmem:[%s2 + $0x294] sm:$0xf]
        %v6374 = vld [vmem:[%s2 + $0x298] sm:$0xf]
        %v6375 = vld [vmem:[%s2 + $0x29c] sm:$0xf]
        %v6376 = vld [vmem:[%s2 + $0x2a0] sm:$0xf]
        %v6377 = vld [vmem:[%s2 + $0x2a4] sm:$0xf]
        %v6378 = vld [vmem:[%s2 + $0x2a8] sm:$0xf]
        %v6379 = vld [vmem:[%s2 + $0x2ac] sm:$0xf]
        %v6380 = vld [vmem:[%s2 + $0x2b0] sm:$0xf]
        %v6381 = vld [vmem:[%s2 + $0x2b4] sm:$0xf]
        %v6382 = vld [vmem:[%s2 + $0x2b8] sm:$0xf]
        %v6383 = vld [vmem:[%s2 + $0x2bc] sm:$0xf]
        %v6432 = vunpack.c.l.b16 %v6336
        %v6433 = vunpack.c.l.b16 %v6337
        %v6434 = vunpack.c.l.b16 %v6338
        %v6435 = vunpack.c.l.b16 %v6339
        %v6436 = vunpack.c.l.b16 %v6340
        %v6437 = vunpack.c.l.b16 %v6341
        %v6438 = vunpack.c.l.b16 %v6342
        %v6439 = vunpack.c.l.b16 %v6343
        %v6440 = vunpack.c.l.b16 %v6344
        %v6441 = vunpack.c.l.b16 %v6345
        %v6442 = vunpack.c.l.b16 %v6346
        %v6443 = vunpack.c.l.b16 %v6347
        %v6444 = vunpack.c.l.b16 %v6348
        %v6445 = vunpack.c.l.b16 %v6349
        %v6446 = vunpack.c.l.b16 %v6350
        %v6447 = vunpack.c.l.b16 %v6351
        %v6448 = vunpack.c.l.b16 %v6352
        %v6449 = vunpack.c.l.b16 %v6353
        %v6450 = vunpack.c.l.b16 %v6354
        %v6451 = vunpack.c.l.b16 %v6355
        %v6452 = vunpack.c.l.b16 %v6356
        %v6453 = vunpack.c.l.b16 %v6357
        %v6454 = vunpack.c.l.b16 %v6358
        %v6455 = vunpack.c.l.b16 %v6359
        %v6456 = vunpack.c.l.b16 %v6360
        %v6457 = vunpack.c.l.b16 %v6361
        %v6458 = vunpack.c.l.b16 %v6362
        %v6459 = vunpack.c.l.b16 %v6363
        %v6460 = vunpack.c.l.b16 %v6364
        %v6461 = vunpack.c.l.b16 %v6365
        %v6462 = vunpack.c.l.b16 %v6366
        %v6463 = vunpack.c.l.b16 %v6367
        %v6464 = vunpack.c.l.b16 %v6368
        %v6465 = vunpack.c.l.b16 %v6369
        %v6466 = vunpack.c.l.b16 %v6370
        %v6467 = vunpack.c.l.b16 %v6371
        %v6468 = vunpack.c.l.b16 %v6372
        %v6469 = vunpack.c.l.b16 %v6373
        %v6470 = vunpack.c.l.b16 %v6374
        %v6471 = vunpack.c.l.b16 %v6375
        %v6472 = vunpack.c.l.b16 %v6376
        %v6473 = vunpack.c.l.b16 %v6377
        %v6474 = vunpack.c.l.b16 %v6378
        %v6475 = vunpack.c.l.b16 %v6379
        %v6476 = vunpack.c.l.b16 %v6380
        %v6477 = vunpack.c.l.b16 %v6381
        %v6478 = vunpack.c.l.b16 %v6382
        %v6479 = vunpack.c.l.b16 %v6383
        %v6480 = vpack.c.b16 %v6433, %v6432
        %v6481 = vpack.c.b16 %v6435, %v6434
        %v6482 = vpack.c.b16 %v6437, %v6436
        %v6483 = vpack.c.b16 %v6439, %v6438
        %v6484 = vpack.c.b16 %v6441, %v6440
        %v6485 = vpack.c.b16 %v6443, %v6442
        %v6486 = vpack.c.b16 %v6445, %v6444
        %v6487 = vpack.c.b16 %v6447, %v6446
        %v6488 = vpack.c.b16 %v6449, %v6448
        %v6489 = vpack.c.b16 %v6451, %v6450
        %v6490 = vpack.c.b16 %v6453, %v6452
        %v6491 = vpack.c.b16 %v6455, %v6454
        %v6492 = vpack.c.b16 %v6457, %v6456
        %v6493 = vpack.c.b16 %v6459, %v6458
        %v6494 = vpack.c.b16 %v6461, %v6460
        %v6495 = vpack.c.b16 %v6463, %v6462
        %v6496 = vpack.c.b16 %v6465, %v6464
        %v6497 = vpack.c.b16 %v6467, %v6466
        %v6498 = vpack.c.b16 %v6469, %v6468
        %v6499 = vpack.c.b16 %v6471, %v6470
        %v6500 = vpack.c.b16 %v6473, %v6472
        %v6501 = vpack.c.b16 %v6475, %v6474
        %v6502 = vpack.c.b16 %v6477, %v6476
        %v6503 = vpack.c.b16 %v6479, %v6478
        %6528 = vmatprep.subr.bf16.mxu0 %v2884
        %6529 = vmatpush1.bf16.msra.mxu0 %v2883
        %6530 = vmatprep.subr.bf16.mxu0 %v2886
        %6531 = vmatpush1.bf16.msra.mxu0 %v2885
        %6532 = vmatprep.subr.bf16.mxu0 %v2888
        %6533 = vmatpush1.bf16.msra.mxu0 %v2887
        %6534 = vmatprep.subr.bf16.mxu0 %v2890
        %6535 = vmatpush1.bf16.msra.mxu0 %v2889
        %6536 = vmatprep.subr.bf16.mxu0 %v2892
        %6537 = vmatpush1.bf16.msra.mxu0 %v2891
        %6538 = vmatprep.subr.bf16.mxu0 %v2894
        %6539 = vmatpush1.bf16.msra.mxu0 %v2893
        %6540 = vmatprep.subr.bf16.mxu0 %v2896
        %6541 = vmatpush1.bf16.msra.mxu0 %v2895
        %6542 = vmatprep.subr.bf16.mxu0 %v2898
        %6543 = vmatpush1.bf16.msra.mxu0 %v2897
        %6544 = vmatprep.subr.bf16.mxu0 0
        %6545 = vmatpush1.bf16.msra.mxu0 0
        %6546 = vmatprep.subr.bf16.mxu0 0
        %6547 = vmatpush1.bf16.msra.mxu0 0
        %6548 = vmatprep.subr.bf16.mxu0 0
        %6549 = vmatpush1.bf16.msra.mxu0 0
        %6550 = vmatprep.subr.bf16.mxu0 0
        %6551 = vmatpush1.bf16.msra.mxu0 0
        %6552 = vmatprep.subr.bf16.mxu0 0
        %6553 = vmatpush1.bf16.msra.mxu0 0
        %6554 = vmatprep.subr.bf16.mxu0 0
        %6555 = vmatpush1.bf16.msra.mxu0 0
        %6556 = vmatprep.subr.bf16.mxu0 0
        %6557 = vmatpush1.bf16.msra.mxu0 0
        %6558 = vmatprep.subr.bf16.mxu0 0
        %6559 = vmatpush1.bf16.msra.mxu0 0
        %6560 = vmatprep.mubr.bf16.mxu0 0
        %6561 = vmatmul.mubr.bf16.gmra.mrb[0].mxu0 %v6480
        %v6562 = vpop.f32.mrb[0].mxu0
        %v6563 = vadd.f32 0.0, %v6562
        %v6564 = vpop.f32.mrb[0].mxu0
        %v6565 = vadd.f32 0.0, %v6564
        %v6566 = vpop.f32.mrb[0].mxu0
        %v6567 = vadd.f32 0.0, %v6566
        %v6568 = vpop.f32.mrb[0].mxu0
        %v6569 = vadd.f32 0.0, %v6568
        %6570 = vmatprep.mubr.bf16.mxu0 0
        %6571 = vmatmul.mubr.bf16.gmra.mrb[0].mxu0 %v6481
        %v6572 = vpop.f32.mrb[0].mxu0
        %v6573 = vadd.f32 0.0, %v6572
        %v6574 = vpop.f32.mrb[0].mxu0
        %v6575 = vadd.f32 0.0, %v6574
        %v6576 = vpop.f32.mrb[0].mxu0
        %v6577 = vadd.f32 0.0, %v6576
        %v6578 = vpop.f32.mrb[0].mxu0
        %v6579 = vadd.f32 0.0, %v6578
        %6580 = vmatprep.mubr.bf16.mxu0 0
        %6581 = vmatmul.mubr.bf16.gmra.mrb[0].mxu0 %v6482
        %v6582 = vpop.f32.mrb[0].mxu0
        %v6583 = vadd.f32 0.0, %v6582
        %v6584 = vpop.f32.mrb[0].mxu0
        %v6585 = vadd.f32 0.0, %v6584
        %v6586 = vpop.f32.mrb[0].mxu0
        %v6587 = vadd.f32 0.0, %v6586
        %v6588 = vpop.f32.mrb[0].mxu0
        %v6589 = vadd.f32 0.0, %v6588
        %6590 = vmatprep.mubr.bf16.mxu0 0
        %6591 = vmatmul.mubr.bf16.gmra.mrb[0].mxu0 %v6483
        %v6592 = vpop.f32.mrb[0].mxu0
        %v6593 = vadd.f32 0.0, %v6592
        %v6594 = vpop.f32.mrb[0].mxu0
        %v6595 = vadd.f32 0.0, %v6594
        %v6596 = vpop.f32.mrb[0].mxu0
        %v6597 = vadd.f32 0.0, %v6596
        %v6598 = vpop.f32.mrb[0].mxu0
        %v6599 = vadd.f32 0.0, %v6598
        %6600 = vmatprep.mubr.bf16.mxu0 0
        %6601 = vmatmul.mubr.bf16.gmra.mrb[0].mxu0 %v6484
        %v6602 = vpop.f32.mrb[0].mxu0
        %v6603 = vadd.f32 0.0, %v6602
        %v6604 = vpop.f32.mrb[0].mxu0
        %v6605 = vadd.f32 0.0, %v6604
        %v6606 = vpop.f32.mrb[0].mxu0
        %v6607 = vadd.f32 0.0, %v6606
        %v6608 = vpop.f32.mrb[0].mxu0
        %v6609 = vadd.f32 0.0, %v6608
        %6610 = vmatprep.mubr.bf16.mxu0 0
        %6611 = vmatmul.mubr.bf16.gmra.mrb[0].mxu0 %v6485
        %v6612 = vpop.f32.mrb[0].mxu0
        %v6613 = vadd.f32 0.0, %v6612
        %v6614 = vpop.f32.mrb[0].mxu0
        %v6615 = vadd.f32 0.0, %v6614
        %v6616 = vpop.f32.mrb[0].mxu0
        %v6617 = vadd.f32 0.0, %v6616
        %v6618 = vpop.f32.mrb[0].mxu0
        %v6619 = vadd.f32 0.0, %v6618
        %6620 = vmatprep.mubr.bf16.mxu0 0
        %6621 = vmatmul.mubr.bf16.gmra.mrb[0].mxu0 %v6486
        %v6622 = vpop.f32.mrb[0].mxu0
        %v6623 = vadd.f32 0.0, %v6622
        %v6624 = vpop.f32.mrb[0].mxu0
        %v6625 = vadd.f32 0.0, %v6624
        %v6626 = vpop.f32.mrb[0].mxu0
        %v6627 = vadd.f32 0.0, %v6626
        %v6628 = vpop.f32.mrb[0].mxu0
        %v6629 = vadd.f32 0.0, %v6628
        %6630 = vmatprep.mubr.bf16.mxu0 0
        %6631 = vmatmul.mubr.bf16.gmra.mrb[0].mxu0 %v6487
        %v6632 = vpop.f32.mrb[0].mxu0
        %v6633 = vadd.f32 0.0, %v6632
        %v6634 = vpop.f32.mrb[0].mxu0
        %v6635 = vadd.f32 0.0, %v6634
        %v6636 = vpop.f32.mrb[0].mxu0
        %v6637 = vadd.f32 0.0, %v6636
        %v6638 = vpop.f32.mrb[0].mxu0
        %v6639 = vadd.f32 0.0, %v6638
        %6640 = vmatprep.mubr.bf16.mxu0 0
        %6641 = vmatmul.mubr.bf16.gmra.mrb[0].mxu0 %v6488
        %v6642 = vpop.f32.mrb[0].mxu0
        %v6643 = vadd.f32 0.0, %v6642
        %v6644 = vpop.f32.mrb[0].mxu0
        %v6645 = vadd.f32 0.0, %v6644
        %v6646 = vpop.f32.mrb[0].mxu0
        %v6647 = vadd.f32 0.0, %v6646
        %v6648 = vpop.f32.mrb[0].mxu0
        %v6649 = vadd.f32 0.0, %v6648
        %6650 = vmatprep.mubr.bf16.mxu0 0
        %6651 = vmatmul.mubr.bf16.gmra.mrb[0].mxu0 %v6489
        %v6652 = vpop.f32.mrb[0].mxu0
        %v6653 = vadd.f32 0.0, %v6652
        %v6654 = vpop.f32.mrb[0].mxu0
        %v6655 = vadd.f32 0.0, %v6654
        %v6656 = vpop.f32.mrb[0].mxu0
        %v6657 = vadd.f32 0.0, %v6656
        %v6658 = vpop.f32.mrb[0].mxu0
        %v6659 = vadd.f32 0.0, %v6658
        %6660 = vmatprep.mubr.bf16.mxu0 0
        %6661 = vmatmul.mubr.bf16.gmra.mrb[0].mxu0 %v6490
        %v6662 = vpop.f32.mrb[0].mxu0
        %v6663 = vadd.f32 0.0, %v6662
        %v6664 = vpop.f32.mrb[0].mxu0
        %v6665 = vadd.f32 0.0, %v6664
        %v6666 = vpop.f32.mrb[0].mxu0
        %v6667 = vadd.f32 0.0, %v6666
        %v6668 = vpop.f32.mrb[0].mxu0
        %v6669 = vadd.f32 0.0, %v6668
        %6670 = vmatprep.mubr.bf16.mxu0 0
        %6671 = vmatmul.mubr.bf16.gmra.mrb[0].mxu0 %v6491
        %v6672 = vpop.f32.mrb[0].mxu0
        %v6673 = vadd.f32 0.0, %v6672
        %v6674 = vpop.f32.mrb[0].mxu0
        %v6675 = vadd.f32 0.0, %v6674
        %v6676 = vpop.f32.mrb[0].mxu0
        %v6677 = vadd.f32 0.0, %v6676
        %v6678 = vpop.f32.mrb[0].mxu0
        %v6679 = vadd.f32 0.0, %v6678
        %6680 = vmatprep.mubr.bf16.mxu0 0
        %6681 = vmatmul.mubr.bf16.gmra.mrb[0].mxu0 %v6492
        %v6682 = vpop.f32.mrb[0].mxu0
        %v6683 = vadd.f32 0.0, %v6682
        %v6684 = vpop.f32.mrb[0].mxu0
        %v6685 = vadd.f32 0.0, %v6684
        %v6686 = vpop.f32.mrb[0].mxu0
        %v6687 = vadd.f32 0.0, %v6686
        %v6688 = vpop.f32.mrb[0].mxu0
        %v6689 = vadd.f32 0.0, %v6688
        %6690 = vmatprep.mubr.bf16.mxu0 0
        %6691 = vmatmul.mubr.bf16.gmra.mrb[0].mxu0 %v6493
        %v6692 = vpop.f32.mrb[0].mxu0
        %v6693 = vadd.f32 0.0, %v6692
        %v6694 = vpop.f32.mrb[0].mxu0
        %v6695 = vadd.f32 0.0, %v6694
        %v6696 = vpop.f32.mrb[0].mxu0
        %v6697 = vadd.f32 0.0, %v6696
        %v6698 = vpop.f32.mrb[0].mxu0
        %v6699 = vadd.f32 0.0, %v6698
        %6700 = vmatprep.mubr.bf16.mxu0 0
        %6701 = vmatmul.mubr.bf16.gmra.mrb[0].mxu0 %v6494
        %v6702 = vpop.f32.mrb[0].mxu0
        %v6703 = vadd.f32 0.0, %v6702
        %v6704 = vpop.f32.mrb[0].mxu0
        %v6705 = vadd.f32 0.0, %v6704
        %v6706 = vpop.f32.mrb[0].mxu0
        %v6707 = vadd.f32 0.0, %v6706
        %v6708 = vpop.f32.mrb[0].mxu0
        %v6709 = vadd.f32 0.0, %v6708
        %6710 = vmatprep.mubr.bf16.mxu0 0
        %6711 = vmatmul.mubr.bf16.gmra.mrb[0].mxu0 %v6495
        %v6712 = vpop.f32.mrb[0].mxu0
        %v6713 = vadd.f32 0.0, %v6712
        %v6714 = vpop.f32.mrb[0].mxu0
        %v6715 = vadd.f32 0.0, %v6714
        %v6716 = vpop.f32.mrb[0].mxu0
        %v6717 = vadd.f32 0.0, %v6716
        %v6718 = vpop.f32.mrb[0].mxu0
        %v6719 = vadd.f32 0.0, %v6718
        %6720 = vmatprep.mubr.bf16.mxu0 0
        %6721 = vmatmul.mubr.bf16.gmra.mrb[0].mxu0 %v6496
        %v6722 = vpop.f32.mrb[0].mxu0
        %v6723 = vadd.f32 0.0, %v6722
        %v6724 = vpop.f32.mrb[0].mxu0
        %v6725 = vadd.f32 0.0, %v6724
        %v6726 = vpop.f32.mrb[0].mxu0
        %v6727 = vadd.f32 0.0, %v6726
        %v6728 = vpop.f32.mrb[0].mxu0
        %v6729 = vadd.f32 0.0, %v6728
        %6730 = vmatprep.mubr.bf16.mxu0 0
        %6731 = vmatmul.mubr.bf16.gmra.mrb[0].mxu0 %v6497
        %v6732 = vpop.f32.mrb[0].mxu0
        %v6733 = vadd.f32 0.0, %v6732
        %v6734 = vpop.f32.mrb[0].mxu0
        %v6735 = vadd.f32 0.0, %v6734
        %v6736 = vpop.f32.mrb[0].mxu0
        %v6737 = vadd.f32 0.0, %v6736
        %v6738 = vpop.f32.mrb[0].mxu0
        %v6739 = vadd.f32 0.0, %v6738
        %6740 = vmatprep.mubr.bf16.mxu0 0
        %6741 = vmatmul.mubr.bf16.gmra.mrb[0].mxu0 %v6498
        %v6742 = vpop.f32.mrb[0].mxu0
        %v6743 = vadd.f32 0.0, %v6742
        %v6744 = vpop.f32.mrb[0].mxu0
        %v6745 = vadd.f32 0.0, %v6744
        %v6746 = vpop.f32.mrb[0].mxu0
        %v6747 = vadd.f32 0.0, %v6746
        %v6748 = vpop.f32.mrb[0].mxu0
        %v6749 = vadd.f32 0.0, %v6748
        %6750 = vmatprep.mubr.bf16.mxu0 0
        %6751 = vmatmul.mubr.bf16.gmra.mrb[0].mxu0 %v6499
        %v6752 = vpop.f32.mrb[0].mxu0
        %v6753 = vadd.f32 0.0, %v6752
        %v6754 = vpop.f32.mrb[0].mxu0
        %v6755 = vadd.f32 0.0, %v6754
        %v6756 = vpop.f32.mrb[0].mxu0
        %v6757 = vadd.f32 0.0, %v6756
        %v6758 = vpop.f32.mrb[0].mxu0
        %v6759 = vadd.f32 0.0, %v6758
        %6760 = vmatprep.mubr.bf16.mxu0 0
        %6761 = vmatmul.mubr.bf16.gmra.mrb[0].mxu0 %v6500
        %v6762 = vpop.f32.mrb[0].mxu0
        %v6763 = vadd.f32 0.0, %v6762
        %v6764 = vpop.f32.mrb[0].mxu0
        %v6765 = vadd.f32 0.0, %v6764
        %v6766 = vpop.f32.mrb[0].mxu0
        %v6767 = vadd.f32 0.0, %v6766
        %v6768 = vpop.f32.mrb[0].mxu0
        %v6769 = vadd.f32 0.0, %v6768
        %6770 = vmatprep.mubr.bf16.mxu0 0
        %6771 = vmatmul.mubr.bf16.gmra.mrb[0].mxu0 %v6501
        %v6772 = vpop.f32.mrb[0].mxu0
        %v6773 = vadd.f32 0.0, %v6772
        %v6774 = vpop.f32.mrb[0].mxu0
        %v6775 = vadd.f32 0.0, %v6774
        %v6776 = vpop.f32.mrb[0].mxu0
        %v6777 = vadd.f32 0.0, %v6776
        %v6778 = vpop.f32.mrb[0].mxu0
        %v6779 = vadd.f32 0.0, %v6778
        %6780 = vmatprep.mubr.bf16.mxu0 0
        %6781 = vmatmul.mubr.bf16.gmra.mrb[0].mxu0 %v6502
        %v6782 = vpop.f32.mrb[0].mxu0
        %v6783 = vadd.f32 0.0, %v6782
        %v6784 = vpop.f32.mrb[0].mxu0
        %v6785 = vadd.f32 0.0, %v6784
        %v6786 = vpop.f32.mrb[0].mxu0
        %v6787 = vadd.f32 0.0, %v6786
        %v6788 = vpop.f32.mrb[0].mxu0
        %v6789 = vadd.f32 0.0, %v6788
        %6790 = vmatprep.mubr.bf16.mxu0 0
        %6791 = vmatmul.mubr.bf16.gmra.mrb[0].mxu0 %v6503
        %v6792 = vpop.f32.mrb[0].mxu0
        %v6793 = vadd.f32 0.0, %v6792
        %v6794 = vpop.f32.mrb[0].mxu0
        %v6795 = vadd.f32 0.0, %v6794
        %v6796 = vpop.f32.mrb[0].mxu0
        %v6797 = vadd.f32 0.0, %v6796
        %v6798 = vpop.f32.mrb[0].mxu0
        %v6799 = vadd.f32 0.0, %v6798
        %6800 = vdwg.mxu0
        %v6801 = vmul.f32 %v6098, %v6563
        %v6802 = vmul.f32 %v6100, %v6565
        %v6803 = vmul.f32 %v6102, %v6567
        %v6804 = vmul.f32 %v6104, %v6569
        %v6805 = vmul.f32 %v6108, %v6573
        %v6806 = vmul.f32 %v6110, %v6575
        %v6807 = vmul.f32 %v6112, %v6577
        %v6808 = vmul.f32 %v6114, %v6579
        %v6809 = vmul.f32 %v6118, %v6583
        %v6810 = vmul.f32 %v6120, %v6585
        %v6811 = vmul.f32 %v6122, %v6587
        %v6812 = vmul.f32 %v6124, %v6589
        %v6813 = vmul.f32 %v6128, %v6593
        %v6814 = vmul.f32 %v6130, %v6595
        %v6815 = vmul.f32 %v6132, %v6597
        %v6816 = vmul.f32 %v6134, %v6599
        %v6817 = vmul.f32 %v6138, %v6603
        %v6818 = vmul.f32 %v6140, %v6605
        %v6819 = vmul.f32 %v6142, %v6607
        %v6820 = vmul.f32 %v6144, %v6609
        %v6821 = vmul.f32 %v6148, %v6613
        %v6822 = vmul.f32 %v6150, %v6615
        %v6823 = vmul.f32 %v6152, %v6617
        %v6824 = vmul.f32 %v6154, %v6619
        %v6825 = vmul.f32 %v6158, %v6623
        %v6826 = vmul.f32 %v6160, %v6625
        %v6827 = vmul.f32 %v6162, %v6627
        %v6828 = vmul.f32 %v6164, %v6629
        %v6829 = vmul.f32 %v6168, %v6633
        %v6830 = vmul.f32 %v6170, %v6635
        %v6831 = vmul.f32 %v6172, %v6637
        %v6832 = vmul.f32 %v6174, %v6639
        %v6833 = vmul.f32 %v6178, %v6643
        %v6834 = vmul.f32 %v6180, %v6645
        %v6835 = vmul.f32 %v6182, %v6647
        %v6836 = vmul.f32 %v6184, %v6649
        %v6837 = vmul.f32 %v6188, %v6653
        %v6838 = vmul.f32 %v6190, %v6655
        %v6839 = vmul.f32 %v6192, %v6657
        %v6840 = vmul.f32 %v6194, %v6659
        %v6841 = vmul.f32 %v6198, %v6663
        %v6842 = vmul.f32 %v6200, %v6665
        %v6843 = vmul.f32 %v6202, %v6667
        %v6844 = vmul.f32 %v6204, %v6669
        %v6845 = vmul.f32 %v6208, %v6673
        %v6846 = vmul.f32 %v6210, %v6675
        %v6847 = vmul.f32 %v6212, %v6677
        %v6848 = vmul.f32 %v6214, %v6679
        %v6849 = vmul.f32 %v6218, %v6683
        %v6850 = vmul.f32 %v6220, %v6685
        %v6851 = vmul.f32 %v6222, %v6687
        %v6852 = vmul.f32 %v6224, %v6689
        %v6853 = vmul.f32 %v6228, %v6693
        %v6854 = vmul.f32 %v6230, %v6695
        %v6855 = vmul.f32 %v6232, %v6697
        %v6856 = vmul.f32 %v6234, %v6699
        %v6857 = vmul.f32 %v6238, %v6703
        %v6858 = vmul.f32 %v6240, %v6705
        %v6859 = vmul.f32 %v6242, %v6707
        %v6860 = vmul.f32 %v6244, %v6709
        %v6861 = vmul.f32 %v6248, %v6713
        %v6862 = vmul.f32 %v6250, %v6715
        %v6863 = vmul.f32 %v6252, %v6717
        %v6864 = vmul.f32 %v6254, %v6719
        %v6865 = vmul.f32 %v6258, %v6723
        %v6866 = vmul.f32 %v6260, %v6725
        %v6867 = vmul.f32 %v6262, %v6727
        %v6868 = vmul.f32 %v6264, %v6729
        %v6869 = vmul.f32 %v6268, %v6733
        %v6870 = vmul.f32 %v6270, %v6735
        %v6871 = vmul.f32 %v6272, %v6737
        %v6872 = vmul.f32 %v6274, %v6739
        %v6873 = vmul.f32 %v6278, %v6743
        %v6874 = vmul.f32 %v6280, %v6745
        %v6875 = vmul.f32 %v6282, %v6747
        %v6876 = vmul.f32 %v6284, %v6749
        %v6877 = vmul.f32 %v6288, %v6753
        %v6878 = vmul.f32 %v6290, %v6755
        %v6879 = vmul.f32 %v6292, %v6757
        %v6880 = vmul.f32 %v6294, %v6759
        %v6881 = vmul.f32 %v6298, %v6763
        %v6882 = vmul.f32 %v6300, %v6765
        %v6883 = vmul.f32 %v6302, %v6767
        %v6884 = vmul.f32 %v6304, %v6769
        %v6885 = vmul.f32 %v6308, %v6773
        %v6886 = vmul.f32 %v6310, %v6775
        %v6887 = vmul.f32 %v6312, %v6777
        %v6888 = vmul.f32 %v6314, %v6779
        %v6889 = vmul.f32 %v6318, %v6783
        %v6890 = vmul.f32 %v6320, %v6785
        %v6891 = vmul.f32 %v6322, %v6787
        %v6892 = vmul.f32 %v6324, %v6789
        %v6893 = vmul.f32 %v6328, %v6793
        %v6894 = vmul.f32 %v6330, %v6795
        %v6895 = vmul.f32 %v6332, %v6797
        %v6896 = vmul.f32 %v6334, %v6799
        %v6897 = vadd.f32 %v6801, %v6803
        %v6898 = vadd.f32 %v6897, %v6805
        %v6899 = vadd.f32 %v6898, %v6807
        %v6900 = vadd.f32 %v6899, %v6809
        %v6901 = vadd.f32 %v6900, %v6811
        %v6902 = vadd.f32 %v6901, %v6813
        %v6903 = vadd.f32 %v6902, %v6815
        %v6904 = vadd.f32 %v6903, %v6817
        %v6905 = vadd.f32 %v6904, %v6819
        %v6906 = vadd.f32 %v6905, %v6821
        %v6907 = vadd.f32 %v6906, %v6823
        %v6908 = vadd.f32 %v6907, %v6825
        %v6909 = vadd.f32 %v6908, %v6827
        %v6910 = vadd.f32 %v6909, %v6829
        %v6911 = vadd.f32 %v6910, %v6831
        %v6912 = vadd.f32 %v6911, %v6833
        %v6913 = vadd.f32 %v6912, %v6835
        %v6914 = vadd.f32 %v6913, %v6837
        %v6915 = vadd.f32 %v6914, %v6839
        %v6916 = vadd.f32 %v6915, %v6841
        %v6917 = vadd.f32 %v6916, %v6843
        %v6918 = vadd.f32 %v6917, %v6845
        %v6919 = vadd.f32 %v6918, %v6847
        %v6920 = vadd.f32 %v6919, %v6849
        %v6921 = vadd.f32 %v6920, %v6851
        %v6922 = vadd.f32 %v6921, %v6853
        %v6923 = vadd.f32 %v6922, %v6855
        %v6924 = vadd.f32 %v6923, %v6857
        %v6925 = vadd.f32 %v6924, %v6859
        %v6926 = vadd.f32 %v6925, %v6861
        %v6927 = vadd.f32 %v6926, %v6863
        %v6928 = vadd.f32 %v6927, %v6865
        %v6929 = vadd.f32 %v6928, %v6867
        %v6930 = vadd.f32 %v6929, %v6869
        %v6931 = vadd.f32 %v6930, %v6871
        %v6932 = vadd.f32 %v6931, %v6873
        %v6933 = vadd.f32 %v6932, %v6875
        %v6934 = vadd.f32 %v6933, %v6877
        %v6935 = vadd.f32 %v6934, %v6879
        %v6936 = vadd.f32 %v6935, %v6881
        %v6937 = vadd.f32 %v6936, %v6883
        %v6938 = vadd.f32 %v6937, %v6885
        %v6939 = vadd.f32 %v6938, %v6887
        %v6940 = vadd.f32 %v6939, %v6889
        %v6941 = vadd.f32 %v6940, %v6891
        %v6942 = vadd.f32 %v6941, %v6893
        %v6943 = vadd.f32 %v6942, %v6895
        %v6944 = vrot.slane %v6943, 4
        %v6945 = vadd.f32 %v6943, %v6944
        %v6946 = vrot.slane %v6945, 2
        %v6947 = vadd.f32 %v6945, %v6946
        %v6948 = vrot.slane %v6947, 1
        %v6949 = vadd.f32 %v6947, %v6948
        %v6950 = vadd.f32 %v6802, %v6804
        %v6951 = vadd.f32 %v6950, %v6806
        %v6952 = vadd.f32 %v6951, %v6808
        %v6953 = vadd.f32 %v6952, %v6810
        %v6954 = vadd.f32 %v6953, %v6812
        %v6955 = vadd.f32 %v6954, %v6814
        %v6956 = vadd.f32 %v6955, %v6816
        %v6957 = vadd.f32 %v6956, %v6818
        %v6958 = vadd.f32 %v6957, %v6820
        %v6959 = vadd.f32 %v6958, %v6822
        %v6960 = vadd.f32 %v6959, %v6824
        %v6961 = vadd.f32 %v6960, %v6826
        %v6962 = vadd.f32 %v6961, %v6828
        %v6963 = vadd.f32 %v6962, %v6830
        %v6964 = vadd.f32 %v6963, %v6832
        %v6965 = vadd.f32 %v6964, %v6834
        %v6966 = vadd.f32 %v6965, %v6836
        %v6967 = vadd.f32 %v6966, %v6838
        %v6968 = vadd.f32 %v6967, %v6840
        %v6969 = vadd.f32 %v6968, %v6842
        %v6970 = vadd.f32 %v6969, %v6844
        %v6971 = vadd.f32 %v6970, %v6846
        %v6972 = vadd.f32 %v6971, %v6848
        %v6973 = vadd.f32 %v6972, %v6850
        %v6974 = vadd.f32 %v6973, %v6852
        %v6975 = vadd.f32 %v6974, %v6854
        %v6976 = vadd.f32 %v6975, %v6856
        %v6977 = vadd.f32 %v6976, %v6858
        %v6978 = vadd.f32 %v6977, %v6860
        %v6979 = vadd.f32 %v6978, %v6862
        %v6980 = vadd.f32 %v6979, %v6864
        %v6981 = vadd.f32 %v6980, %v6866
        %v6982 = vadd.f32 %v6981, %v6868
        %v6983 = vadd.f32 %v6982, %v6870
        %v6984 = vadd.f32 %v6983, %v6872
        %v6985 = vadd.f32 %v6984, %v6874
        %v6986 = vadd.f32 %v6985, %v6876
        %v6987 = vadd.f32 %v6986, %v6878
        %v6988 = vadd.f32 %v6987, %v6880
        %v6989 = vadd.f32 %v6988, %v6882
        %v6990 = vadd.f32 %v6989, %v6884
        %v6991 = vadd.f32 %v6990, %v6886
        %v6992 = vadd.f32 %v6991, %v6888
        %v6993 = vadd.f32 %v6992, %v6890
        %v6994 = vadd.f32 %v6993, %v6892
        %v6995 = vadd.f32 %v6994, %v6894
        %v6996 = vadd.f32 %v6995, %v6896
        %v6997 = vrot.slane %v6996, 4
        %v6998 = vadd.f32 %v6996, %v6997
        %v6999 = vrot.slane %v6998, 2
        %v7000 = vadd.f32 %v6998, %v6999
        %v7001 = vrot.slane %v7000, 1
        %v7002 = vadd.f32 %v7000, %v7001
        %v7003 = vadd.f32 %v5869, %v6949
        %v7004 = vadd.f32 %v5870, %v7002
        %v7005 = vld [vmem:[%s243] sm:$0x3]
        %v7008 = vcombine.low %v7003, %v7004
        %v7010 = vunpack.c.l.s4 1966171168
        %v7011 = vunpack.c.0.s8 %v7010
        %v7012 = vlaneseq
        %v7013 = vshrl.u32 %v7012, 7
        %v7014 = vsub.s32 %v7011, %v7013
        %v7015 = vrot.slane %v7008, %v7014
        %v7017 = vunpack.c.l.s4 1966171168
        %v7018 = vunpack.c.0.s8 %v7017
        %v7019 = vlaneseq
        %v7020 = vshrl.u32 %v7019, 7
        %v7021 = vsub.s32 %v7018, %v7020
        %v7022 = vrot.slane %v7015, %v7021
        %v7024 = vadd.f32 %v7005, %v7022
        %v7025 = vsub.f32 0.0, %v7024
        %v7026 = vmul.f32 %v7025, 1.442695
        %v7027 = vpow.pop %v7026
        %v7028 = vadd.f32 %v7027, 1.0
        %v7029 = vrcp.pop %v7028
        %v7030 = vmul.f32 1.0, %v7029
        %v7031 = vlaneseq
        %vm7032 = vcmp.ge.s32.totalorder %v7031, 0
        %vm7033 = vcmp.lt.s32.totalorder %v7031, 256
        %vm7034 = vmand %vm7032, %vm7033
        %7035 = vst.msk [vmem:[%s238] sm:$0x3] %vm7034, %v7030
        %s7036 = sand.u32 %s120, 1
        %s7037 = scalar_lea.sflag [#allocation4], %s7036
        %s7038 = sand.u32 %s120, 1
        %s7039 = smul.addr %s7038, 2
        %s7040 = scalar_lea.vmem [#allocation3], %s7039
        // Predicated region
        $region60: #{_lambda_.1} parent=54 // pred_check
          %p7041 = pneg %p130
        $region61: #{_lambda_.1} parent=54 // pred_check_branch
          %7043 = sbr.rel (%p7041) target = $region63
        $region62: #{_lambda_.1} parent=54 // pred_region
          %s7045 = ssub.s32 32, 32
          %7046 = vsyncadd %s7037, %s7045
          %s7047 = smul.addr %s18, 2
          %s7048 = smul.addr %s7047, 16
          %s7049 = scalar_lea.hbm %s4, %s7048
          %s7051 = sshll.u32 %s7040, 4
          %s7052 = int_to_ptr.vmem [resolvable:$true] %s7051
          %7054 = dma.vmem_to_hbm [thread:$0]  %s7052, 32, %s7049, %s7037
        $region63: #{_lambda_.1} parent=54 // pred_fallthru
          _
      $region55: #{_lambda_.1} parent=5 // pred_fallthru
        _
      %p7055 = scmp.le.s32.totalorder 2, %s13
      // Predicated region
      $region64: #{_lambda_.1} parent=5 // pred_check
        %p7056 = pneg %p7055
      $region65: #{_lambda_.1} parent=5 // pred_check_branch
        %7058 = sbr.rel (%p7056) target = $region67
      $region66: #{_lambda_.1} parent=5 // pred_region
        %s7059 = ssub.s32 %s13, 2
        // Predicated region
        $region68: #{_lambda_.1} parent=66 // pred_check
          %p7060 = pneg %p136
        $region69: #{_lambda_.1} parent=66 // pred_check_branch
          %7062 = sbr.rel (%p7060) target = $region71
        $region70: #{_lambda_.1} parent=66 // pred_region
          %s7063 = sand.u32 %s121, 1
          %s7064 = scalar_lea.sflag [#allocation4], %s7063
          %s7065 = sand.u32 %s121, 1
          %s7066 = smul.addr %s7065, 2
          %s7067 = scalar_lea.vmem [#allocation3], %s7066
          %7068 = dma.done %s7064, 32
        $region71: #{_lambda_.1} parent=66 // pred_fallthru
          _
      $region67: #{_lambda_.1} parent=5 // pred_fallthru
        _
    $region6: #{_lambda_.1} parent=1 // loop_footer
      %s17 = sadd.s32 1, %s13
    $region7: #{_lambda_.1} parent=1 // loop_footer_branch
      %12 = sbr.rel target = $region3
    $region8: #{_lambda_.1} parent=1 // loop_exit
      _
    %7069 = vsyncpa [#allocation4], 1
    %s7070 = scalar_lea.sflag [#allocation4], 1
    %7071 = vsyncpa %s7070, 1

</llo_original>
